<compile_context>
chip_gen: v5e
topology: v5e:2x2
jax: 0.10.0
libtpu: 0.0.40
codegen_flags: <defaults>
</compile_context>

<pallas_src>
import functools

import numpy as np
import jax
import jax.numpy as jnp
from jax.experimental import pallas as pl
from jax.experimental.pallas import tpu as pltpu


# ----------------------------------------------------------------------------- kernel
def _policy_kernel(p_ref, gum_ref, w1_ref, b1_ref, w2_ref, b2_ref, w3_ref, b3_ref,
                   wfc_ref, bfc_ref, wh_ref, bh_ref, out_ref, *, group):
    f32 = jnp.float32
    bf16 = jnp.bfloat16
    G = group

    # ---- conv1: ONE GEMM for all G elements ----------------------------------
    # p rows per element: 4 parity blocks (pi,pj) of a [10,10] (ih,jh) grid,
    # row = 100*(2*pi+pj) + 10*ih + jh, spatial (i1,j1) = (2*ih+pi, 2*jh+pj).
    patches = p_ref[...].reshape(G * 400, 64)                               # bf16
    a1 = jnp.maximum(
        jnp.dot(patches, w1_ref[...], preferred_element_type=f32) + b1_ref[...],
        0.0).astype(bf16)                                                   # [G*400, 32]

    # ---- conv2: 16 kernel positions, each ONE contiguous 80-row slice --------
    # valid conv2 output (i2, j2) lives at holey row s = 10*i2 + j2.
    z2 = None
    for ky2 in range(4):
        for kx2 in range(4):
            k = ky2 * 4 + kx2
            start = (100 * (2 * (ky2 % 2) + (kx2 % 2))
                     + 10 * (ky2 // 2) + (kx2 // 2))
            lhs = jnp.concatenate(
                [a1[g * 400 + start: g * 400 + start + 80, :] for g in range(G)],
                axis=0)                                                     # [G*80, 32]
            t = jnp.dot(lhs, w2_ref[k], preferred_element_type=f32)         # [G*80, 64]
            z2 = t if z2 is None else z2 + t
    a2 = jnp.maximum(z2 + b2_ref[...], 0.0).astype(bf16)                    # [G*80, 64]

    # ---- conv3: 9 kernel positions, each ONE contiguous 56-row slice ---------
    # valid conv3 output (i3, j3) lives at holey row s3 = 10*i3 + j3.
    z3 = None
    for ky3 in range(3):
        for kx3 in range(3):
            k3 = ky3 * 3 + kx3
            off = 10 * ky3 + kx3
            lhs = jnp.concatenate(
                [a2[g * 80 + off: g * 80 + off + 56, :] for g in range(G)],
                axis=0)                                                     # [G*56, 64]
            t = jnp.dot(lhs, w3_ref[k3], preferred_element_type=f32)        # [G*56, 32]
            z3 = t if z3 is None else z3 + t
    a3 = jnp.maximum(z3 + b3_ref[...], 0.0).astype(bf16)                    # [G*56, 32]

    # ---- FC: flatten each element to one lane vector, then ONE [G,1792]xGEMM -
    # flatten index = 224*r + 32*q + c  <->  a3 row s3 = 8*q + r, channel c.
    # The host-permuted wfc has ZERO rows at the holey grid's garbage positions.
    rows = []
    for g in range(G):
        t7 = jnp.concatenate(
            [a3[g * 56 + 8 * q: g * 56 + 8 * q + 8, :] for q in range(7)],
            axis=1)                                                         # [8, 224]
        rows.append(jnp.concatenate([t7[r:r + 1, :] for r in range(8)], axis=1))
    v = jnp.concatenate(rows, axis=0)                                       # [G, 1792]

    h = jnp.maximum(
        jnp.dot(v, wfc_ref[...], preferred_element_type=f32) + bfc_ref[...],
        0.0).astype(bf16)                                                   # [G, H]

    # ---- heads: one lane-dense [H, 128] GEMM (lanes 0,1 actor; lane 2 critic) -
    hv = jnp.dot(h, wh_ref[...], preferred_element_type=f32) + bh_ref[...]  # [G, 128]
    logits = hv[:, 0:2]
    value = hv[:, 2:3]

    m = jnp.max(logits, axis=-1, keepdims=True)
    z = logits - m
    logp = z - jnp.log(jnp.sum(jnp.exp(z), axis=-1, keepdims=True))         # [G, 2]

    y = logits + gum_ref[...][:, 0, 0:2]                                    # Gumbel-max
    act = (y[:, 1:2] > y[:, 0:1]).astype(f32)                               # [G, 1] in {0,1}
    alp = act * logp[:, 1:2] + (1.0 - act) * logp[:, 0:1]                   # chosen log-prob

    lane = jax.lax.broadcasted_iota(jnp.int32, (G, 128), 1)
    out = ((lane == 0).astype(f32) * value
           + (lane == 1).astype(f32) * act
           + (lane == 2).astype(f32) * alp)
    out_ref[...] = out[:, None, :]


# ----------------------------------------------------------------------------- wrapper
def _conv1_patches_parity(x2d):
    """Conv1 im2col only, parity-arranged so conv2/conv3 need just contiguous slices.

    x2d: [B, 80, 80] f32 -> [B, 400, 64] where row 100*(2*pi+pj) + 10*ih + jh holds
    the conv1 patch at spatial (i1, j1) = (2*ih+pi, 2*jh+pj) (zero rows for the
    padded ih/jh = 9 positions of odd parities).  Built purely from strided slices,
    stack, pad and reshape/transpose (no gather), ~51 KB/element in bf16.
    """
    B = x2d.shape[0]
    P = jnp.stack([x2d[:, ky:ky + 73:4, kx:kx + 73:4]
                   for ky in range(8) for kx in range(8)], axis=-1)          # [B,19,19,64]
    P = jnp.pad(P, ((0, 0), (0, 1), (0, 1), (0, 0)))                         # [B,20,20,64]
    P = P.reshape(B, 10, 2, 10, 2, 64).transpose(0, 2, 4, 1, 3, 5)           # [B,2,2,10,10,64]
    return P.reshape(B, 400, 64)


def prepare_params(tp):
    """Convert PyTorch-layout Policy weights into the kernel's GEMM operands."""
    H = tp["wfc"].shape[0]
    bf16 = jnp.bfloat16
    w1g = tp["w1"].reshape(32, 64).T.astype(bf16)                                    # [64,32]
    w2g = jnp.transpose(tp["w2"].reshape(64, 32, 16), (2, 1, 0)).astype(bf16)        # [16,32,64]
    w3g = jnp.transpose(tp["w3"].reshape(32, 64, 9), (2, 1, 0)).astype(bf16)         # [9,64,32]

    # FC weight flattened to [1792, H]: row 224*r + 32*q + c maps to conv3 holey
    # row s3 = 8*q + r (i3 = s3//10, j3 = s3%10), channel c; zero rows elsewhere
    # (these zeros neutralize the garbage rows of the holey conv3 grid).
    W4 = tp["wfc"].reshape(H, 32, 6, 6)                       # [H, c, i3, j3]
    Wsp = jnp.transpose(W4, (2, 3, 1, 0))                     # [i3, j3, c, H]
    Wsp = jnp.pad(Wsp, ((0, 0), (0, 4), (0, 0), (0, 0)))      # j3: 6 -> 10 (zeros)
    Whole = Wsp.reshape(60, 32, H)[:56]                       # [s3, c, H]
    wfcg = jnp.transpose(Whole.reshape(7, 8, 32, H),
                         (1, 0, 2, 3)).reshape(1792, H).astype(bf16)

    # actor(2) + critic(1) packed into one lane-dense [H, 128] head weight
    whg = jnp.concatenate(
        [tp["wa"].T, tp["wc"].T, jnp.zeros((H, 125), jnp.float32)], axis=1).astype(bf16)
    bhg = jnp.concatenate(
        [tp["ba"], tp["bc"], jnp.zeros((125,), jnp.float32)]).reshape(1, 128)
    return dict(
        w1=w1g, b1=tp["b1"].reshape(1, 32),
        w2=w2g, b2=tp["b2"].reshape(1, 64),
        w3=w3g, b3=tp["b3"].reshape(1, 32),
        wfc=wfcg, bfc=tp["bfc"].reshape(1, H),
        wh=whg, bh=bhg,
    )


def policy_forward(params, x, key, group=None):
    """params: PyTorch-layout weights; x: [B, 1, 80, 80] f32 (NCHW); key: PRNG key.

    Returns (value [B,1] f32, action [B,1] int32, action_log_probs [B,1] f32),
    matching Policy.forward semantics (sampling uses Gumbel-max).
    `group` = batch elements processed per grid step (must divide B).
    """
    B = x.shape[0]
    if group is None:
        group = next(g for g in (8, 4, 2, 1) if B % g == 0)
    assert B % group == 0, "batch size must be divisible by group"
    G = group
    ops = prepare_params(params)

    p = _conv1_patches_parity(x[:, 0]).astype(jnp.bfloat16)                  # [B, 400, 64]
    u = jax.random.uniform(key, (B, 2), jnp.float32, minval=1e-6, maxval=1.0)
    gum = jnp.pad(-jnp.log(-jnp.log(u)), ((0, 0), (0, 126))).reshape(B, 1, 128)

    def wspec(shape):                       # weight operand: whole array, grid-invariant
        nd = len(shape)
        return pl.BlockSpec(tuple(shape), lambda b: (0,) * nd)

    in_specs = [
        pl.BlockSpec((G, 400, 64), lambda b: (b, 0, 0)),
        pl.BlockSpec((G, 1, 128), lambda b: (b, 0, 0)),
        wspec(ops["w1"].shape), wspec(ops["b1"].shape),
        wspec(ops["w2"].shape), wspec(ops["b2"].shape),
        wspec(ops["w3"].shape), wspec(ops["b3"].shape),
        wspec(ops["wfc"].shape), wspec(ops["bfc"].shape),
        wspec(ops["wh"].shape), wspec(ops["bh"].shape),
    ]
    out_spec = pl.BlockSpec((G, 1, 128), lambda b: (b, 0, 0))

    out = pl.pallas_call(
        functools.partial(_policy_kernel, group=G),
        out_shape=jax.ShapeDtypeStruct((B, 1, 128), jnp.float32),
        grid=(B // G,),
        in_specs=in_specs,
        out_specs=out_spec,
        compiler_params=pltpu.CompilerParams(dimension_semantics=("parallel",)),
    )(p, gum, ops["w1"], ops["b1"], ops["w2"], ops["b2"], ops["w3"], ops["b3"],
      ops["wfc"], ops["bfc"], ops["wh"], ops["bh"])

    value = out[:, 0, 0:1]
    action = out[:, 0, 1:2].astype(jnp.int32)
    action_log_probs = out[:, 0, 2:3]
    return value, action, action_log_probs


# ----------------------------------------------------------------------------- reference
def reference_forward(tp, x):
    """Pure-JAX f32 reference of Policy.val_and_feature (+ logits)."""
    dn = ("NCHW", "OIHW", "NCHW")
    h = jax.lax.conv_general_dilated(x, tp["w1"], (4, 4), "VALID", dimension_numbers=dn)
    h = jax.nn.relu(h + tp["b1"][None, :, None, None])
    h = jax.lax.conv_general_dilated(h, tp["w2"], (2, 2), "VALID", dimension_numbers=dn)
    h = jax.nn.relu(h + tp["b2"][None, :, None, None])
    h = jax.lax.conv_general_dilated(h, tp["w3"], (1, 1), "VALID", dimension_numbers=dn)
    h = jax.nn.relu(h + tp["b3"][None, :, None, None])
    f = h.reshape(h.shape[0], -1)               # NCHW flatten == torch .view(B, -1)
    z = jax.nn.relu(f @ tp["wfc"].T + tp["bfc"])
    logits = z @ tp["wa"].T + tp["ba"]
    value = z @ tp["wc"].T + tp["bc"]
    return value, logits


# ----------------------------------------------------------------------------- main
if __name__ == "__main__":
    # Spatial size 80x80 / 1 channel is forced by the module's Linear(32*6*6, H).
    B, H = 4, 128
    key = jax.random.PRNGKey(0)
    ks = jax.random.split(key, 14)

    def init(k, shape, fan_in):
        return jax.random.normal(k, shape, jnp.float32) / np.sqrt(fan_in)

    params = dict(
        w1=init(ks[0], (32, 1, 8, 8), 64),    b1=init(ks[1], (32,), 64),
        w2=init(ks[2], (64, 32, 4, 4), 512),  b2=init(ks[3], (64,), 512),
        w3=init(ks[4], (32, 64, 3, 3), 576),  b3=init(ks[5], (32,), 576),
        wfc=init(ks[6], (H, 1152), 1152),     bfc=init(ks[7], (H,), 1152),
        wa=init(ks[8], (2, H), H),            ba=init(ks[9], (2,), H),
        wc=init(ks[10], (1, H), H),           bc=init(ks[11], (1,), H),
    )
    x = jax.random.uniform(ks[12], (B, 1, 80, 80), jnp.float32)
    sample_key = ks[13]

    fwd = jax.jit(policy_forward, static_argnames=("group",))
    value, action, logp = fwd(params, x, sample_key, group=2)   # grid=(2,), 2 elems/step
    jax.block_until_ready((value, action, logp))

    # correctness check against the pure-JAX f32 reference (loose: bf16 MXU inputs)
    v_ref, logits_ref = reference_forward(params, x)
    lp_ref = jax.nn.log_softmax(logits_ref, axis=-1)
    act_np = np.asarray(action)[:, 0]
    assert set(int(a) for a in np.unique(act_np)).issubset({0, 1})
    np.testing.assert_allclose(np.asarray(value), np.asarray(v_ref), rtol=0.1, atol=0.1)
    np.testing.assert_allclose(np.asarray(logp)[:, 0],
                               np.asarray(lp_ref)[np.arange(B), act_np],
                               rtol=0.1, atol=0.1)

    print("KERNEL_OK")
</pallas_src>

<mosaic_0001>
module attributes {stable_mosaic.version = 11 : i64} {
  func.func @_policy_kernel(%arg0: i32, %arg1: memref<2x400x64xbf16, #tpu.memory_space<vmem>>, %arg2: memref<2x1x128xf32, #tpu.memory_space<vmem>>, %arg3: memref<64x32xbf16, #tpu.memory_space<vmem>>, %arg4: memref<1x32xf32, #tpu.memory_space<vmem>>, %arg5: memref<16x32x64xbf16, #tpu.memory_space<vmem>>, %arg6: memref<1x64xf32, #tpu.memory_space<vmem>>, %arg7: memref<9x64x32xbf16, #tpu.memory_space<vmem>>, %arg8: memref<1x32xf32, #tpu.memory_space<vmem>>, %arg9: memref<1792x128xbf16, #tpu.memory_space<vmem>>, %arg10: memref<1x128xf32, #tpu.memory_space<vmem>>, %arg11: memref<128x128xbf16, #tpu.memory_space<vmem>>, %arg12: memref<1x128xf32, #tpu.memory_space<vmem>>, %arg13: memref<2x1x128xf32, #tpu.memory_space<vmem>>) attributes {dimension_semantics = [#tpu.dimension_semantics<parallel>], iteration_bounds = array<i64: 2>, scalar_prefetch = 0 : i64, scratch_operands = 0 : i64, tpu.core_type = #tpu.core_type<tc>, window_params = [{transform_indices = @transform_0, window_bounds = array<i64: 2, 400, 64>}, {transform_indices = @transform_1, window_bounds = array<i64: 2, 1, 128>}, {pipeline_mode = #tpu.pipeline_mode<synchronous>, transform_indices = @transform_2, window_bounds = array<i64: 64, 32>}, {pipeline_mode = #tpu.pipeline_mode<synchronous>, transform_indices = @transform_3, window_bounds = array<i64: 1, 32>}, {pipeline_mode = #tpu.pipeline_mode<synchronous>, transform_indices = @transform_4, window_bounds = array<i64: 16, 32, 64>}, {pipeline_mode = #tpu.pipeline_mode<synchronous>, transform_indices = @transform_5, window_bounds = array<i64: 1, 64>}, {pipeline_mode = #tpu.pipeline_mode<synchronous>, transform_indices = @transform_6, window_bounds = array<i64: 9, 64, 32>}, {pipeline_mode = #tpu.pipeline_mode<synchronous>, transform_indices = @transform_7, window_bounds = array<i64: 1, 32>}, {pipeline_mode = #tpu.pipeline_mode<synchronous>, transform_indices = @transform_8, window_bounds = array<i64: 1792, 128>}, {pipeline_mode = #tpu.pipeline_mode<synchronous>, transform_indices = @transform_9, window_bounds = array<i64: 1, 128>}, {pipeline_mode = #tpu.pipeline_mode<synchronous>, transform_indices = @transform_10, window_bounds = array<i64: 128, 128>}, {pipeline_mode = #tpu.pipeline_mode<synchronous>, transform_indices = @transform_11, window_bounds = array<i64: 1, 128>}, {transform_indices = @transform_12, window_bounds = array<i64: 2, 1, 128>}]} {
    %c0 = arith.constant 0 : index
    %c0_0 = arith.constant 0 : index
    %c0_1 = arith.constant 0 : index
    %0 = vector.load %arg1[%c0, %c0_0, %c0_1] : memref<2x400x64xbf16, #tpu.memory_space<vmem>>, vector<2x400x64xbf16>
    %1 = vector.shape_cast %0 : vector<2x400x64xbf16> to vector<800x64xbf16>
    %c0_2 = arith.constant 0 : index
    %c0_3 = arith.constant 0 : index
    %2 = vector.load %arg3[%c0_2, %c0_3] : memref<64x32xbf16, #tpu.memory_space<vmem>>, vector<64x32xbf16>
    %cst = arith.constant dense<0.000000e+00> : vector<800x32xf32>
    %3 = tpu.matmul %1, %2, %cst {dimension_numbers = #tpu.dot_dimension_numbers<[1], [0], [0], [1], [0, 0, 1, 1], [], []>} : vector<800x64xbf16>, vector<64x32xbf16>, vector<800x32xf32> -> vector<800x32xf32>
    %c0_4 = arith.constant 0 : index
    %c0_5 = arith.constant 0 : index
    %4 = vector.load %arg4[%c0_4, %c0_5] : memref<1x32xf32, #tpu.memory_space<vmem>>, vector<1x32xf32>
    %5 = vector.broadcast %4 : vector<1x32xf32> to vector<800x32xf32>
    %6 = arith.addf %3, %5 : vector<800x32xf32>
    %cst_6 = arith.constant 0.000000e+00 : f32
    %7 = vector.broadcast %cst_6 : f32 to vector<800x32xf32>
    %8 = arith.maximumf %6, %7 : vector<800x32xf32>
    %9 = arith.truncf %8 : vector<800x32xf32> to vector<800x32xbf16>
    %10 = vector.extract_strided_slice %9 {offsets = [0, 0], sizes = [80, 32], strides = [1, 1]} : vector<800x32xbf16> to vector<80x32xbf16>
    %11 = vector.extract_strided_slice %9 {offsets = [400, 0], sizes = [80, 32], strides = [1, 1]} : vector<800x32xbf16> to vector<80x32xbf16>
    %12 = tpu.concatenate %10, %11 in 0 : vector<80x32xbf16>, vector<80x32xbf16> -> vector<160x32xbf16>
    %c0_7 = arith.constant 0 : index
    %c0_8 = arith.constant 0 : index
    %c0_9 = arith.constant 0 : index
    %13 = vector.load %arg5[%c0_7, %c0_8, %c0_9] : memref<16x32x64xbf16, #tpu.memory_space<vmem>>, vector<1x32x64xbf16>
    %14 = vector.shape_cast %13 : vector<1x32x64xbf16> to vector<32x64xbf16>
    %cst_10 = arith.constant dense<0.000000e+00> : vector<160x64xf32>
    %15 = tpu.matmul %12, %14, %cst_10 {dimension_numbers = #tpu.dot_dimension_numbers<[1], [0], [0], [1], [0, 0, 1, 1], [], []>} : vector<160x32xbf16>, vector<32x64xbf16>, vector<160x64xf32> -> vector<160x64xf32>
    %16 = vector.extract_strided_slice %9 {offsets = [100, 0], sizes = [80, 32], strides = [1, 1]} : vector<800x32xbf16> to vector<80x32xbf16>
    %17 = vector.extract_strided_slice %9 {offsets = [500, 0], sizes = [80, 32], strides = [1, 1]} : vector<800x32xbf16> to vector<80x32xbf16>
    %18 = tpu.concatenate %16, %17 in 0 : vector<80x32xbf16>, vector<80x32xbf16> -> vector<160x32xbf16>
    %c1 = arith.constant 1 : index
    %c0_11 = arith.constant 0 : index
    %c0_12 = arith.constant 0 : index
    %19 = vector.load %arg5[%c1, %c0_11, %c0_12] : memref<16x32x64xbf16, #tpu.memory_space<vmem>>, vector<1x32x64xbf16>
    %20 = vector.shape_cast %19 : vector<1x32x64xbf16> to vector<32x64xbf16>
    %cst_13 = arith.constant dense<0.000000e+00> : vector<160x64xf32>
    %21 = tpu.matmul %18, %20, %cst_13 {dimension_numbers = #tpu.dot_dimension_numbers<[1], [0], [0], [1], [0, 0, 1, 1], [], []>} : vector<160x32xbf16>, vector<32x64xbf16>, vector<160x64xf32> -> vector<160x64xf32>
    %22 = arith.addf %15, %21 : vector<160x64xf32>
    %23 = vector.extract_strided_slice %9 {offsets = [1, 0], sizes = [80, 32], strides = [1, 1]} : vector<800x32xbf16> to vector<80x32xbf16>
    %24 = vector.extract_strided_slice %9 {offsets = [401, 0], sizes = [80, 32], strides = [1, 1]} : vector<800x32xbf16> to vector<80x32xbf16>
    %25 = tpu.concatenate %23, %24 in 0 : vector<80x32xbf16>, vector<80x32xbf16> -> vector<160x32xbf16>
    %c2 = arith.constant 2 : index
    %c0_14 = arith.constant 0 : index
    %c0_15 = arith.constant 0 : index
    %26 = vector.load %arg5[%c2, %c0_14, %c0_15] : memref<16x32x64xbf16, #tpu.memory_space<vmem>>, vector<1x32x64xbf16>
    %27 = vector.shape_cast %26 : vector<1x32x64xbf16> to vector<32x64xbf16>
    %cst_16 = arith.constant dense<0.000000e+00> : vector<160x64xf32>
    %28 = tpu.matmul %25, %27, %cst_16 {dimension_numbers = #tpu.dot_dimension_numbers<[1], [0], [0], [1], [0, 0, 1, 1], [], []>} : vector<160x32xbf16>, vector<32x64xbf16>, vector<160x64xf32> -> vector<160x64xf32>
    %29 = arith.addf %22, %28 : vector<160x64xf32>
    %30 = vector.extract_strided_slice %9 {offsets = [101, 0], sizes = [80, 32], strides = [1, 1]} : vector<800x32xbf16> to vector<80x32xbf16>
    %31 = vector.extract_strided_slice %9 {offsets = [501, 0], sizes = [80, 32], strides = [1, 1]} : vector<800x32xbf16> to vector<80x32xbf16>
    %32 = tpu.concatenate %30, %31 in 0 : vector<80x32xbf16>, vector<80x32xbf16> -> vector<160x32xbf16>
    %c3 = arith.constant 3 : index
    %c0_17 = arith.constant 0 : index
    %c0_18 = arith.constant 0 : index
    %33 = vector.load %arg5[%c3, %c0_17, %c0_18] : memref<16x32x64xbf16, #tpu.memory_space<vmem>>, vector<1x32x64xbf16>
    %34 = vector.shape_cast %33 : vector<1x32x64xbf16> to vector<32x64xbf16>
    %cst_19 = arith.constant dense<0.000000e+00> : vector<160x64xf32>
    %35 = tpu.matmul %32, %34, %cst_19 {dimension_numbers = #tpu.dot_dimension_numbers<[1], [0], [0], [1], [0, 0, 1, 1], [], []>} : vector<160x32xbf16>, vector<32x64xbf16>, vector<160x64xf32> -> vector<160x64xf32>
    %36 = arith.addf %29, %35 : vector<160x64xf32>
    %37 = vector.extract_strided_slice %9 {offsets = [200, 0], sizes = [80, 32], strides = [1, 1]} : vector<800x32xbf16> to vector<80x32xbf16>
    %38 = vector.extract_strided_slice %9 {offsets = [600, 0], sizes = [80, 32], strides = [1, 1]} : vector<800x32xbf16> to vector<80x32xbf16>
    %39 = tpu.concatenate %37, %38 in 0 : vector<80x32xbf16>, vector<80x32xbf16> -> vector<160x32xbf16>
    %c4 = arith.constant 4 : index
    %c0_20 = arith.constant 0 : index
    %c0_21 = arith.constant 0 : index
    %40 = vector.load %arg5[%c4, %c0_20, %c0_21] : memref<16x32x64xbf16, #tpu.memory_space<vmem>>, vector<1x32x64xbf16>
    %41 = vector.shape_cast %40 : vector<1x32x64xbf16> to vector<32x64xbf16>
    %cst_22 = arith.constant dense<0.000000e+00> : vector<160x64xf32>
    %42 = tpu.matmul %39, %41, %cst_22 {dimension_numbers = #tpu.dot_dimension_numbers<[1], [0], [0], [1], [0, 0, 1, 1], [], []>} : vector<160x32xbf16>, vector<32x64xbf16>, vector<160x64xf32> -> vector<160x64xf32>
    %43 = arith.addf %36, %42 : vector<160x64xf32>
    %44 = vector.extract_strided_slice %9 {offsets = [300, 0], sizes = [80, 32], strides = [1, 1]} : vector<800x32xbf16> to vector<80x32xbf16>
    %45 = vector.extract_strided_slice %9 {offsets = [700, 0], sizes = [80, 32], strides = [1, 1]} : vector<800x32xbf16> to vector<80x32xbf16>
    %46 = tpu.concatenate %44, %45 in 0 : vector<80x32xbf16>, vector<80x32xbf16> -> vector<160x32xbf16>
    %c5 = arith.constant 5 : index
    %c0_23 = arith.constant 0 : index
    %c0_24 = arith.constant 0 : index
    %47 = vector.load %arg5[%c5, %c0_23, %c0_24] : memref<16x32x64xbf16, #tpu.memory_space<vmem>>, vector<1x32x64xbf16>
    %48 = vector.shape_cast %47 : vector<1x32x64xbf16> to vector<32x64xbf16>
    %cst_25 = arith.constant dense<0.000000e+00> : vector<160x64xf32>
    %49 = tpu.matmul %46, %48, %cst_25 {dimension_numbers = #tpu.dot_dimension_numbers<[1], [0], [0], [1], [0, 0, 1, 1], [], []>} : vector<160x32xbf16>, vector<32x64xbf16>, vector<160x64xf32> -> vector<160x64xf32>
    %50 = arith.addf %43, %49 : vector<160x64xf32>
    %51 = vector.extract_strided_slice %9 {offsets = [201, 0], sizes = [80, 32], strides = [1, 1]} : vector<800x32xbf16> to vector<80x32xbf16>
    %52 = vector.extract_strided_slice %9 {offsets = [601, 0], sizes = [80, 32], strides = [1, 1]} : vector<800x32xbf16> to vector<80x32xbf16>
    %53 = tpu.concatenate %51, %52 in 0 : vector<80x32xbf16>, vector<80x32xbf16> -> vector<160x32xbf16>
    %c6 = arith.constant 6 : index
    %c0_26 = arith.constant 0 : index
    %c0_27 = arith.constant 0 : index
    %54 = vector.load %arg5[%c6, %c0_26, %c0_27] : memref<16x32x64xbf16, #tpu.memory_space<vmem>>, vector<1x32x64xbf16>
    %55 = vector.shape_cast %54 : vector<1x32x64xbf16> to vector<32x64xbf16>
    %cst_28 = arith.constant dense<0.000000e+00> : vector<160x64xf32>
    %56 = tpu.matmul %53, %55, %cst_28 {dimension_numbers = #tpu.dot_dimension_numbers<[1], [0], [0], [1], [0, 0, 1, 1], [], []>} : vector<160x32xbf16>, vector<32x64xbf16>, vector<160x64xf32> -> vector<160x64xf32>
    %57 = arith.addf %50, %56 : vector<160x64xf32>
    %58 = vector.extract_strided_slice %9 {offsets = [301, 0], sizes = [80, 32], strides = [1, 1]} : vector<800x32xbf16> to vector<80x32xbf16>
    %59 = vector.extract_strided_slice %9 {offsets = [701, 0], sizes = [80, 32], strides = [1, 1]} : vector<800x32xbf16> to vector<80x32xbf16>
    %60 = tpu.concatenate %58, %59 in 0 : vector<80x32xbf16>, vector<80x32xbf16> -> vector<160x32xbf16>
    %c7 = arith.constant 7 : index
    %c0_29 = arith.constant 0 : index
    %c0_30 = arith.constant 0 : index
    %61 = vector.load %arg5[%c7, %c0_29, %c0_30] : memref<16x32x64xbf16, #tpu.memory_space<vmem>>, vector<1x32x64xbf16>
    %62 = vector.shape_cast %61 : vector<1x32x64xbf16> to vector<32x64xbf16>
    %cst_31 = arith.constant dense<0.000000e+00> : vector<160x64xf32>
    %63 = tpu.matmul %60, %62, %cst_31 {dimension_numbers = #tpu.dot_dimension_numbers<[1], [0], [0], [1], [0, 0, 1, 1], [], []>} : vector<160x32xbf16>, vector<32x64xbf16>, vector<160x64xf32> -> vector<160x64xf32>
    %64 = arith.addf %57, %63 : vector<160x64xf32>
    %65 = vector.extract_strided_slice %9 {offsets = [10, 0], sizes = [80, 32], strides = [1, 1]} : vector<800x32xbf16> to vector<80x32xbf16>
    %66 = vector.extract_strided_slice %9 {offsets = [410, 0], sizes = [80, 32], strides = [1, 1]} : vector<800x32xbf16> to vector<80x32xbf16>
    %67 = tpu.concatenate %65, %66 in 0 : vector<80x32xbf16>, vector<80x32xbf16> -> vector<160x32xbf16>
    %c8 = arith.constant 8 : index
    %c0_32 = arith.constant 0 : index
    %c0_33 = arith.constant 0 : index
    %68 = vector.load %arg5[%c8, %c0_32, %c0_33] : memref<16x32x64xbf16, #tpu.memory_space<vmem>>, vector<1x32x64xbf16>
    %69 = vector.shape_cast %68 : vector<1x32x64xbf16> to vector<32x64xbf16>
    %cst_34 = arith.constant dense<0.000000e+00> : vector<160x64xf32>
    %70 = tpu.matmul %67, %69, %cst_34 {dimension_numbers = #tpu.dot_dimension_numbers<[1], [0], [0], [1], [0, 0, 1, 1], [], []>} : vector<160x32xbf16>, vector<32x64xbf16>, vector<160x64xf32> -> vector<160x64xf32>
    %71 = arith.addf %64, %70 : vector<160x64xf32>
    %72 = vector.extract_strided_slice %9 {offsets = [110, 0], sizes = [80, 32], strides = [1, 1]} : vector<800x32xbf16> to vector<80x32xbf16>
    %73 = vector.extract_strided_slice %9 {offsets = [510, 0], sizes = [80, 32], strides = [1, 1]} : vector<800x32xbf16> to vector<80x32xbf16>
    %74 = tpu.concatenate %72, %73 in 0 : vector<80x32xbf16>, vector<80x32xbf16> -> vector<160x32xbf16>
    %c9 = arith.constant 9 : index
    %c0_35 = arith.constant 0 : index
    %c0_36 = arith.constant 0 : index
    %75 = vector.load %arg5[%c9, %c0_35, %c0_36] : memref<16x32x64xbf16, #tpu.memory_space<vmem>>, vector<1x32x64xbf16>
    %76 = vector.shape_cast %75 : vector<1x32x64xbf16> to vector<32x64xbf16>
    %cst_37 = arith.constant dense<0.000000e+00> : vector<160x64xf32>
    %77 = tpu.matmul %74, %76, %cst_37 {dimension_numbers = #tpu.dot_dimension_numbers<[1], [0], [0], [1], [0, 0, 1, 1], [], []>} : vector<160x32xbf16>, vector<32x64xbf16>, vector<160x64xf32> -> vector<160x64xf32>
    %78 = arith.addf %71, %77 : vector<160x64xf32>
    %79 = vector.extract_strided_slice %9 {offsets = [11, 0], sizes = [80, 32], strides = [1, 1]} : vector<800x32xbf16> to vector<80x32xbf16>
    %80 = vector.extract_strided_slice %9 {offsets = [411, 0], sizes = [80, 32], strides = [1, 1]} : vector<800x32xbf16> to vector<80x32xbf16>
    %81 = tpu.concatenate %79, %80 in 0 : vector<80x32xbf16>, vector<80x32xbf16> -> vector<160x32xbf16>
    %c10 = arith.constant 10 : index
    %c0_38 = arith.constant 0 : index
    %c0_39 = arith.constant 0 : index
    %82 = vector.load %arg5[%c10, %c0_38, %c0_39] : memref<16x32x64xbf16, #tpu.memory_space<vmem>>, vector<1x32x64xbf16>
    %83 = vector.shape_cast %82 : vector<1x32x64xbf16> to vector<32x64xbf16>
    %cst_40 = arith.constant dense<0.000000e+00> : vector<160x64xf32>
    %84 = tpu.matmul %81, %83, %cst_40 {dimension_numbers = #tpu.dot_dimension_numbers<[1], [0], [0], [1], [0, 0, 1, 1], [], []>} : vector<160x32xbf16>, vector<32x64xbf16>, vector<160x64xf32> -> vector<160x64xf32>
    %85 = arith.addf %78, %84 : vector<160x64xf32>
    %86 = vector.extract_strided_slice %9 {offsets = [111, 0], sizes = [80, 32], strides = [1, 1]} : vector<800x32xbf16> to vector<80x32xbf16>
    %87 = vector.extract_strided_slice %9 {offsets = [511, 0], sizes = [80, 32], strides = [1, 1]} : vector<800x32xbf16> to vector<80x32xbf16>
    %88 = tpu.concatenate %86, %87 in 0 : vector<80x32xbf16>, vector<80x32xbf16> -> vector<160x32xbf16>
    %c11 = arith.constant 11 : index
    %c0_41 = arith.constant 0 : index
    %c0_42 = arith.constant 0 : index
    %89 = vector.load %arg5[%c11, %c0_41, %c0_42] : memref<16x32x64xbf16, #tpu.memory_space<vmem>>, vector<1x32x64xbf16>
    %90 = vector.shape_cast %89 : vector<1x32x64xbf16> to vector<32x64xbf16>
    %cst_43 = arith.constant dense<0.000000e+00> : vector<160x64xf32>
    %91 = tpu.matmul %88, %90, %cst_43 {dimension_numbers = #tpu.dot_dimension_numbers<[1], [0], [0], [1], [0, 0, 1, 1], [], []>} : vector<160x32xbf16>, vector<32x64xbf16>, vector<160x64xf32> -> vector<160x64xf32>
    %92 = arith.addf %85, %91 : vector<160x64xf32>
    %93 = vector.extract_strided_slice %9 {offsets = [210, 0], sizes = [80, 32], strides = [1, 1]} : vector<800x32xbf16> to vector<80x32xbf16>
    %94 = vector.extract_strided_slice %9 {offsets = [610, 0], sizes = [80, 32], strides = [1, 1]} : vector<800x32xbf16> to vector<80x32xbf16>
    %95 = tpu.concatenate %93, %94 in 0 : vector<80x32xbf16>, vector<80x32xbf16> -> vector<160x32xbf16>
    %c12 = arith.constant 12 : index
    %c0_44 = arith.constant 0 : index
    %c0_45 = arith.constant 0 : index
    %96 = vector.load %arg5[%c12, %c0_44, %c0_45] : memref<16x32x64xbf16, #tpu.memory_space<vmem>>, vector<1x32x64xbf16>
    %97 = vector.shape_cast %96 : vector<1x32x64xbf16> to vector<32x64xbf16>
    %cst_46 = arith.constant dense<0.000000e+00> : vector<160x64xf32>
    %98 = tpu.matmul %95, %97, %cst_46 {dimension_numbers = #tpu.dot_dimension_numbers<[1], [0], [0], [1], [0, 0, 1, 1], [], []>} : vector<160x32xbf16>, vector<32x64xbf16>, vector<160x64xf32> -> vector<160x64xf32>
    %99 = arith.addf %92, %98 : vector<160x64xf32>
    %100 = vector.extract_strided_slice %9 {offsets = [310, 0], sizes = [80, 32], strides = [1, 1]} : vector<800x32xbf16> to vector<80x32xbf16>
    %101 = vector.extract_strided_slice %9 {offsets = [710, 0], sizes = [80, 32], strides = [1, 1]} : vector<800x32xbf16> to vector<80x32xbf16>
    %102 = tpu.concatenate %100, %101 in 0 : vector<80x32xbf16>, vector<80x32xbf16> -> vector<160x32xbf16>
    %c13 = arith.constant 13 : index
    %c0_47 = arith.constant 0 : index
    %c0_48 = arith.constant 0 : index
    %103 = vector.load %arg5[%c13, %c0_47, %c0_48] : memref<16x32x64xbf16, #tpu.memory_space<vmem>>, vector<1x32x64xbf16>
    %104 = vector.shape_cast %103 : vector<1x32x64xbf16> to vector<32x64xbf16>
    %cst_49 = arith.constant dense<0.000000e+00> : vector<160x64xf32>
    %105 = tpu.matmul %102, %104, %cst_49 {dimension_numbers = #tpu.dot_dimension_numbers<[1], [0], [0], [1], [0, 0, 1, 1], [], []>} : vector<160x32xbf16>, vector<32x64xbf16>, vector<160x64xf32> -> vector<160x64xf32>
    %106 = arith.addf %99, %105 : vector<160x64xf32>
    %107 = vector.extract_strided_slice %9 {offsets = [211, 0], sizes = [80, 32], strides = [1, 1]} : vector<800x32xbf16> to vector<80x32xbf16>
    %108 = vector.extract_strided_slice %9 {offsets = [611, 0], sizes = [80, 32], strides = [1, 1]} : vector<800x32xbf16> to vector<80x32xbf16>
    %109 = tpu.concatenate %107, %108 in 0 : vector<80x32xbf16>, vector<80x32xbf16> -> vector<160x32xbf16>
    %c14 = arith.constant 14 : index
    %c0_50 = arith.constant 0 : index
    %c0_51 = arith.constant 0 : index
    %110 = vector.load %arg5[%c14, %c0_50, %c0_51] : memref<16x32x64xbf16, #tpu.memory_space<vmem>>, vector<1x32x64xbf16>
    %111 = vector.shape_cast %110 : vector<1x32x64xbf16> to vector<32x64xbf16>
    %cst_52 = arith.constant dense<0.000000e+00> : vector<160x64xf32>
    %112 = tpu.matmul %109, %111, %cst_52 {dimension_numbers = #tpu.dot_dimension_numbers<[1], [0], [0], [1], [0, 0, 1, 1], [], []>} : vector<160x32xbf16>, vector<32x64xbf16>, vector<160x64xf32> -> vector<160x64xf32>
    %113 = arith.addf %106, %112 : vector<160x64xf32>
    %114 = vector.extract_strided_slice %9 {offsets = [311, 0], sizes = [80, 32], strides = [1, 1]} : vector<800x32xbf16> to vector<80x32xbf16>
    %115 = vector.extract_strided_slice %9 {offsets = [711, 0], sizes = [80, 32], strides = [1, 1]} : vector<800x32xbf16> to vector<80x32xbf16>
    %116 = tpu.concatenate %114, %115 in 0 : vector<80x32xbf16>, vector<80x32xbf16> -> vector<160x32xbf16>
    %c15 = arith.constant 15 : index
    %c0_53 = arith.constant 0 : index
    %c0_54 = arith.constant 0 : index
    %117 = vector.load %arg5[%c15, %c0_53, %c0_54] : memref<16x32x64xbf16, #tpu.memory_space<vmem>>, vector<1x32x64xbf16>
    %118 = vector.shape_cast %117 : vector<1x32x64xbf16> to vector<32x64xbf16>
    %cst_55 = arith.constant dense<0.000000e+00> : vector<160x64xf32>
    %119 = tpu.matmul %116, %118, %cst_55 {dimension_numbers = #tpu.dot_dimension_numbers<[1], [0], [0], [1], [0, 0, 1, 1], [], []>} : vector<160x32xbf16>, vector<32x64xbf16>, vector<160x64xf32> -> vector<160x64xf32>
    %120 = arith.addf %113, %119 : vector<160x64xf32>
    %c0_56 = arith.constant 0 : index
    %c0_57 = arith.constant 0 : index
    %121 = vector.load %arg6[%c0_56, %c0_57] : memref<1x64xf32, #tpu.memory_space<vmem>>, vector<1x64xf32>
    %122 = vector.broadcast %121 : vector<1x64xf32> to vector<160x64xf32>
    %123 = arith.addf %120, %122 : vector<160x64xf32>
    %cst_58 = arith.constant 0.000000e+00 : f32
    %124 = vector.broadcast %cst_58 : f32 to vector<160x64xf32>
    %125 = arith.maximumf %123, %124 : vector<160x64xf32>
    %126 = arith.truncf %125 : vector<160x64xf32> to vector<160x64xbf16>
    %127 = vector.extract_strided_slice %126 {offsets = [0, 0], sizes = [56, 64], strides = [1, 1]} : vector<160x64xbf16> to vector<56x64xbf16>
    %128 = vector.extract_strided_slice %126 {offsets = [80, 0], sizes = [56, 64], strides = [1, 1]} : vector<160x64xbf16> to vector<56x64xbf16>
    %129 = tpu.concatenate %127, %128 in 0 : vector<56x64xbf16>, vector<56x64xbf16> -> vector<112x64xbf16>
    %c0_59 = arith.constant 0 : index
    %c0_60 = arith.constant 0 : index
    %c0_61 = arith.constant 0 : index
    %130 = vector.load %arg7[%c0_59, %c0_60, %c0_61] : memref<9x64x32xbf16, #tpu.memory_space<vmem>>, vector<1x64x32xbf16>
    %131 = vector.shape_cast %130 : vector<1x64x32xbf16> to vector<64x32xbf16>
    %cst_62 = arith.constant dense<0.000000e+00> : vector<112x32xf32>
    %132 = tpu.matmul %129, %131, %cst_62 {dimension_numbers = #tpu.dot_dimension_numbers<[1], [0], [0], [1], [0, 0, 1, 1], [], []>} : vector<112x64xbf16>, vector<64x32xbf16>, vector<112x32xf32> -> vector<112x32xf32>
    %133 = vector.extract_strided_slice %126 {offsets = [1, 0], sizes = [56, 64], strides = [1, 1]} : vector<160x64xbf16> to vector<56x64xbf16>
    %134 = vector.extract_strided_slice %126 {offsets = [81, 0], sizes = [56, 64], strides = [1, 1]} : vector<160x64xbf16> to vector<56x64xbf16>
    %135 = tpu.concatenate %133, %134 in 0 : vector<56x64xbf16>, vector<56x64xbf16> -> vector<112x64xbf16>
    %c1_63 = arith.constant 1 : index
    %c0_64 = arith.constant 0 : index
    %c0_65 = arith.constant 0 : index
    %136 = vector.load %arg7[%c1_63, %c0_64, %c0_65] : memref<9x64x32xbf16, #tpu.memory_space<vmem>>, vector<1x64x32xbf16>
    %137 = vector.shape_cast %136 : vector<1x64x32xbf16> to vector<64x32xbf16>
    %cst_66 = arith.constant dense<0.000000e+00> : vector<112x32xf32>
    %138 = tpu.matmul %135, %137, %cst_66 {dimension_numbers = #tpu.dot_dimension_numbers<[1], [0], [0], [1], [0, 0, 1, 1], [], []>} : vector<112x64xbf16>, vector<64x32xbf16>, vector<112x32xf32> -> vector<112x32xf32>
    %139 = arith.addf %132, %138 : vector<112x32xf32>
    %140 = vector.extract_strided_slice %126 {offsets = [2, 0], sizes = [56, 64], strides = [1, 1]} : vector<160x64xbf16> to vector<56x64xbf16>
    %141 = vector.extract_strided_slice %126 {offsets = [82, 0], sizes = [56, 64], strides = [1, 1]} : vector<160x64xbf16> to vector<56x64xbf16>
    %142 = tpu.concatenate %140, %141 in 0 : vector<56x64xbf16>, vector<56x64xbf16> -> vector<112x64xbf16>
    %c2_67 = arith.constant 2 : index
    %c0_68 = arith.constant 0 : index
    %c0_69 = arith.constant 0 : index
    %143 = vector.load %arg7[%c2_67, %c0_68, %c0_69] : memref<9x64x32xbf16, #tpu.memory_space<vmem>>, vector<1x64x32xbf16>
    %144 = vector.shape_cast %143 : vector<1x64x32xbf16> to vector<64x32xbf16>
    %cst_70 = arith.constant dense<0.000000e+00> : vector<112x32xf32>
    %145 = tpu.matmul %142, %144, %cst_70 {dimension_numbers = #tpu.dot_dimension_numbers<[1], [0], [0], [1], [0, 0, 1, 1], [], []>} : vector<112x64xbf16>, vector<64x32xbf16>, vector<112x32xf32> -> vector<112x32xf32>
    %146 = arith.addf %139, %145 : vector<112x32xf32>
    %147 = vector.extract_strided_slice %126 {offsets = [10, 0], sizes = [56, 64], strides = [1, 1]} : vector<160x64xbf16> to vector<56x64xbf16>
    %148 = vector.extract_strided_slice %126 {offsets = [90, 0], sizes = [56, 64], strides = [1, 1]} : vector<160x64xbf16> to vector<56x64xbf16>
    %149 = tpu.concatenate %147, %148 in 0 : vector<56x64xbf16>, vector<56x64xbf16> -> vector<112x64xbf16>
    %c3_71 = arith.constant 3 : index
    %c0_72 = arith.constant 0 : index
    %c0_73 = arith.constant 0 : index
    %150 = vector.load %arg7[%c3_71, %c0_72, %c0_73] : memref<9x64x32xbf16, #tpu.memory_space<vmem>>, vector<1x64x32xbf16>
    %151 = vector.shape_cast %150 : vector<1x64x32xbf16> to vector<64x32xbf16>
    %cst_74 = arith.constant dense<0.000000e+00> : vector<112x32xf32>
    %152 = tpu.matmul %149, %151, %cst_74 {dimension_numbers = #tpu.dot_dimension_numbers<[1], [0], [0], [1], [0, 0, 1, 1], [], []>} : vector<112x64xbf16>, vector<64x32xbf16>, vector<112x32xf32> -> vector<112x32xf32>
    %153 = arith.addf %146, %152 : vector<112x32xf32>
    %154 = vector.extract_strided_slice %126 {offsets = [11, 0], sizes = [56, 64], strides = [1, 1]} : vector<160x64xbf16> to vector<56x64xbf16>
    %155 = vector.extract_strided_slice %126 {offsets = [91, 0], sizes = [56, 64], strides = [1, 1]} : vector<160x64xbf16> to vector<56x64xbf16>
    %156 = tpu.concatenate %154, %155 in 0 : vector<56x64xbf16>, vector<56x64xbf16> -> vector<112x64xbf16>
    %c4_75 = arith.constant 4 : index
    %c0_76 = arith.constant 0 : index
    %c0_77 = arith.constant 0 : index
    %157 = vector.load %arg7[%c4_75, %c0_76, %c0_77] : memref<9x64x32xbf16, #tpu.memory_space<vmem>>, vector<1x64x32xbf16>
    %158 = vector.shape_cast %157 : vector<1x64x32xbf16> to vector<64x32xbf16>
    %cst_78 = arith.constant dense<0.000000e+00> : vector<112x32xf32>
    %159 = tpu.matmul %156, %158, %cst_78 {dimension_numbers = #tpu.dot_dimension_numbers<[1], [0], [0], [1], [0, 0, 1, 1], [], []>} : vector<112x64xbf16>, vector<64x32xbf16>, vector<112x32xf32> -> vector<112x32xf32>
    %160 = arith.addf %153, %159 : vector<112x32xf32>
    %161 = vector.extract_strided_slice %126 {offsets = [12, 0], sizes = [56, 64], strides = [1, 1]} : vector<160x64xbf16> to vector<56x64xbf16>
    %162 = vector.extract_strided_slice %126 {offsets = [92, 0], sizes = [56, 64], strides = [1, 1]} : vector<160x64xbf16> to vector<56x64xbf16>
    %163 = tpu.concatenate %161, %162 in 0 : vector<56x64xbf16>, vector<56x64xbf16> -> vector<112x64xbf16>
    %c5_79 = arith.constant 5 : index
    %c0_80 = arith.constant 0 : index
    %c0_81 = arith.constant 0 : index
    %164 = vector.load %arg7[%c5_79, %c0_80, %c0_81] : memref<9x64x32xbf16, #tpu.memory_space<vmem>>, vector<1x64x32xbf16>
    %165 = vector.shape_cast %164 : vector<1x64x32xbf16> to vector<64x32xbf16>
    %cst_82 = arith.constant dense<0.000000e+00> : vector<112x32xf32>
    %166 = tpu.matmul %163, %165, %cst_82 {dimension_numbers = #tpu.dot_dimension_numbers<[1], [0], [0], [1], [0, 0, 1, 1], [], []>} : vector<112x64xbf16>, vector<64x32xbf16>, vector<112x32xf32> -> vector<112x32xf32>
    %167 = arith.addf %160, %166 : vector<112x32xf32>
    %168 = vector.extract_strided_slice %126 {offsets = [20, 0], sizes = [56, 64], strides = [1, 1]} : vector<160x64xbf16> to vector<56x64xbf16>
    %169 = vector.extract_strided_slice %126 {offsets = [100, 0], sizes = [56, 64], strides = [1, 1]} : vector<160x64xbf16> to vector<56x64xbf16>
    %170 = tpu.concatenate %168, %169 in 0 : vector<56x64xbf16>, vector<56x64xbf16> -> vector<112x64xbf16>
    %c6_83 = arith.constant 6 : index
    %c0_84 = arith.constant 0 : index
    %c0_85 = arith.constant 0 : index
    %171 = vector.load %arg7[%c6_83, %c0_84, %c0_85] : memref<9x64x32xbf16, #tpu.memory_space<vmem>>, vector<1x64x32xbf16>
    %172 = vector.shape_cast %171 : vector<1x64x32xbf16> to vector<64x32xbf16>
    %cst_86 = arith.constant dense<0.000000e+00> : vector<112x32xf32>
    %173 = tpu.matmul %170, %172, %cst_86 {dimension_numbers = #tpu.dot_dimension_numbers<[1], [0], [0], [1], [0, 0, 1, 1], [], []>} : vector<112x64xbf16>, vector<64x32xbf16>, vector<112x32xf32> -> vector<112x32xf32>
    %174 = arith.addf %167, %173 : vector<112x32xf32>
    %175 = vector.extract_strided_slice %126 {offsets = [21, 0], sizes = [56, 64], strides = [1, 1]} : vector<160x64xbf16> to vector<56x64xbf16>
    %176 = vector.extract_strided_slice %126 {offsets = [101, 0], sizes = [56, 64], strides = [1, 1]} : vector<160x64xbf16> to vector<56x64xbf16>
    %177 = tpu.concatenate %175, %176 in 0 : vector<56x64xbf16>, vector<56x64xbf16> -> vector<112x64xbf16>
    %c7_87 = arith.constant 7 : index
    %c0_88 = arith.constant 0 : index
    %c0_89 = arith.constant 0 : index
    %178 = vector.load %arg7[%c7_87, %c0_88, %c0_89] : memref<9x64x32xbf16, #tpu.memory_space<vmem>>, vector<1x64x32xbf16>
    %179 = vector.shape_cast %178 : vector<1x64x32xbf16> to vector<64x32xbf16>
    %cst_90 = arith.constant dense<0.000000e+00> : vector<112x32xf32>
    %180 = tpu.matmul %177, %179, %cst_90 {dimension_numbers = #tpu.dot_dimension_numbers<[1], [0], [0], [1], [0, 0, 1, 1], [], []>} : vector<112x64xbf16>, vector<64x32xbf16>, vector<112x32xf32> -> vector<112x32xf32>
    %181 = arith.addf %174, %180 : vector<112x32xf32>
    %182 = vector.extract_strided_slice %126 {offsets = [22, 0], sizes = [56, 64], strides = [1, 1]} : vector<160x64xbf16> to vector<56x64xbf16>
    %183 = vector.extract_strided_slice %126 {offsets = [102, 0], sizes = [56, 64], strides = [1, 1]} : vector<160x64xbf16> to vector<56x64xbf16>
    %184 = tpu.concatenate %182, %183 in 0 : vector<56x64xbf16>, vector<56x64xbf16> -> vector<112x64xbf16>
    %c8_91 = arith.constant 8 : index
    %c0_92 = arith.constant 0 : index
    %c0_93 = arith.constant 0 : index
    %185 = vector.load %arg7[%c8_91, %c0_92, %c0_93] : memref<9x64x32xbf16, #tpu.memory_space<vmem>>, vector<1x64x32xbf16>
    %186 = vector.shape_cast %185 : vector<1x64x32xbf16> to vector<64x32xbf16>
    %cst_94 = arith.constant dense<0.000000e+00> : vector<112x32xf32>
    %187 = tpu.matmul %184, %186, %cst_94 {dimension_numbers = #tpu.dot_dimension_numbers<[1], [0], [0], [1], [0, 0, 1, 1], [], []>} : vector<112x64xbf16>, vector<64x32xbf16>, vector<112x32xf32> -> vector<112x32xf32>
    %188 = arith.addf %181, %187 : vector<112x32xf32>
    %c0_95 = arith.constant 0 : index
    %c0_96 = arith.constant 0 : index
    %189 = vector.load %arg8[%c0_95, %c0_96] : memref<1x32xf32, #tpu.memory_space<vmem>>, vector<1x32xf32>
    %190 = vector.broadcast %189 : vector<1x32xf32> to vector<112x32xf32>
    %191 = arith.addf %188, %190 : vector<112x32xf32>
    %cst_97 = arith.constant 0.000000e+00 : f32
    %192 = vector.broadcast %cst_97 : f32 to vector<112x32xf32>
    %193 = arith.maximumf %191, %192 : vector<112x32xf32>
    %194 = arith.truncf %193 : vector<112x32xf32> to vector<112x32xbf16>
    %195 = vector.extract_strided_slice %194 {offsets = [0, 0], sizes = [8, 32], strides = [1, 1]} : vector<112x32xbf16> to vector<8x32xbf16>
    %196 = vector.extract_strided_slice %194 {offsets = [8, 0], sizes = [8, 32], strides = [1, 1]} : vector<112x32xbf16> to vector<8x32xbf16>
    %197 = vector.extract_strided_slice %194 {offsets = [16, 0], sizes = [8, 32], strides = [1, 1]} : vector<112x32xbf16> to vector<8x32xbf16>
    %198 = vector.extract_strided_slice %194 {offsets = [24, 0], sizes = [8, 32], strides = [1, 1]} : vector<112x32xbf16> to vector<8x32xbf16>
    %199 = vector.extract_strided_slice %194 {offsets = [32, 0], sizes = [8, 32], strides = [1, 1]} : vector<112x32xbf16> to vector<8x32xbf16>
    %200 = vector.extract_strided_slice %194 {offsets = [40, 0], sizes = [8, 32], strides = [1, 1]} : vector<112x32xbf16> to vector<8x32xbf16>
    %201 = vector.extract_strided_slice %194 {offsets = [48, 0], sizes = [8, 32], strides = [1, 1]} : vector<112x32xbf16> to vector<8x32xbf16>
    %202 = tpu.concatenate %195, %196, %197, %198, %199, %200, %201 in 1 : vector<8x32xbf16>, vector<8x32xbf16>, vector<8x32xbf16>, vector<8x32xbf16>, vector<8x32xbf16>, vector<8x32xbf16>, vector<8x32xbf16> -> vector<8x224xbf16>
    %203 = vector.extract_strided_slice %202 {offsets = [0, 0], sizes = [1, 224], strides = [1, 1]} : vector<8x224xbf16> to vector<1x224xbf16>
    %204 = vector.extract_strided_slice %202 {offsets = [1, 0], sizes = [1, 224], strides = [1, 1]} : vector<8x224xbf16> to vector<1x224xbf16>
    %205 = vector.extract_strided_slice %202 {offsets = [2, 0], sizes = [1, 224], strides = [1, 1]} : vector<8x224xbf16> to vector<1x224xbf16>
    %206 = vector.extract_strided_slice %202 {offsets = [3, 0], sizes = [1, 224], strides = [1, 1]} : vector<8x224xbf16> to vector<1x224xbf16>
    %207 = vector.extract_strided_slice %202 {offsets = [4, 0], sizes = [1, 224], strides = [1, 1]} : vector<8x224xbf16> to vector<1x224xbf16>
    %208 = vector.extract_strided_slice %202 {offsets = [5, 0], sizes = [1, 224], strides = [1, 1]} : vector<8x224xbf16> to vector<1x224xbf16>
    %209 = vector.extract_strided_slice %202 {offsets = [6, 0], sizes = [1, 224], strides = [1, 1]} : vector<8x224xbf16> to vector<1x224xbf16>
    %210 = vector.extract_strided_slice %202 {offsets = [7, 0], sizes = [1, 224], strides = [1, 1]} : vector<8x224xbf16> to vector<1x224xbf16>
    %211 = tpu.concatenate %203, %204, %205, %206, %207, %208, %209, %210 in 1 : vector<1x224xbf16>, vector<1x224xbf16>, vector<1x224xbf16>, vector<1x224xbf16>, vector<1x224xbf16>, vector<1x224xbf16>, vector<1x224xbf16>, vector<1x224xbf16> -> vector<1x1792xbf16>
    %212 = vector.extract_strided_slice %194 {offsets = [56, 0], sizes = [8, 32], strides = [1, 1]} : vector<112x32xbf16> to vector<8x32xbf16>
    %213 = vector.extract_strided_slice %194 {offsets = [64, 0], sizes = [8, 32], strides = [1, 1]} : vector<112x32xbf16> to vector<8x32xbf16>
    %214 = vector.extract_strided_slice %194 {offsets = [72, 0], sizes = [8, 32], strides = [1, 1]} : vector<112x32xbf16> to vector<8x32xbf16>
    %215 = vector.extract_strided_slice %194 {offsets = [80, 0], sizes = [8, 32], strides = [1, 1]} : vector<112x32xbf16> to vector<8x32xbf16>
    %216 = vector.extract_strided_slice %194 {offsets = [88, 0], sizes = [8, 32], strides = [1, 1]} : vector<112x32xbf16> to vector<8x32xbf16>
    %217 = vector.extract_strided_slice %194 {offsets = [96, 0], sizes = [8, 32], strides = [1, 1]} : vector<112x32xbf16> to vector<8x32xbf16>
    %218 = vector.extract_strided_slice %194 {offsets = [104, 0], sizes = [8, 32], strides = [1, 1]} : vector<112x32xbf16> to vector<8x32xbf16>
    %219 = tpu.concatenate %212, %213, %214, %215, %216, %217, %218 in 1 : vector<8x32xbf16>, vector<8x32xbf16>, vector<8x32xbf16>, vector<8x32xbf16>, vector<8x32xbf16>, vector<8x32xbf16>, vector<8x32xbf16> -> vector<8x224xbf16>
    %220 = vector.extract_strided_slice %219 {offsets = [0, 0], sizes = [1, 224], strides = [1, 1]} : vector<8x224xbf16> to vector<1x224xbf16>
    %221 = vector.extract_strided_slice %219 {offsets = [1, 0], sizes = [1, 224], strides = [1, 1]} : vector<8x224xbf16> to vector<1x224xbf16>
    %222 = vector.extract_strided_slice %219 {offsets = [2, 0], sizes = [1, 224], strides = [1, 1]} : vector<8x224xbf16> to vector<1x224xbf16>
    %223 = vector.extract_strided_slice %219 {offsets = [3, 0], sizes = [1, 224], strides = [1, 1]} : vector<8x224xbf16> to vector<1x224xbf16>
    %224 = vector.extract_strided_slice %219 {offsets = [4, 0], sizes = [1, 224], strides = [1, 1]} : vector<8x224xbf16> to vector<1x224xbf16>
    %225 = vector.extract_strided_slice %219 {offsets = [5, 0], sizes = [1, 224], strides = [1, 1]} : vector<8x224xbf16> to vector<1x224xbf16>
    %226 = vector.extract_strided_slice %219 {offsets = [6, 0], sizes = [1, 224], strides = [1, 1]} : vector<8x224xbf16> to vector<1x224xbf16>
    %227 = vector.extract_strided_slice %219 {offsets = [7, 0], sizes = [1, 224], strides = [1, 1]} : vector<8x224xbf16> to vector<1x224xbf16>
    %228 = tpu.concatenate %220, %221, %222, %223, %224, %225, %226, %227 in 1 : vector<1x224xbf16>, vector<1x224xbf16>, vector<1x224xbf16>, vector<1x224xbf16>, vector<1x224xbf16>, vector<1x224xbf16>, vector<1x224xbf16>, vector<1x224xbf16> -> vector<1x1792xbf16>
    %229 = tpu.concatenate %211, %228 in 0 : vector<1x1792xbf16>, vector<1x1792xbf16> -> vector<2x1792xbf16>
    %c0_98 = arith.constant 0 : index
    %c0_99 = arith.constant 0 : index
    %230 = vector.load %arg9[%c0_98, %c0_99] : memref<1792x128xbf16, #tpu.memory_space<vmem>>, vector<1792x128xbf16>
    %cst_100 = arith.constant dense<0.000000e+00> : vector<2x128xf32>
    %231 = tpu.matmul %229, %230, %cst_100 {dimension_numbers = #tpu.dot_dimension_numbers<[1], [0], [0], [1], [0, 0, 1, 1], [], []>} : vector<2x1792xbf16>, vector<1792x128xbf16>, vector<2x128xf32> -> vector<2x128xf32>
    %c0_101 = arith.constant 0 : index
    %c0_102 = arith.constant 0 : index
    %232 = vector.load %arg10[%c0_101, %c0_102] : memref<1x128xf32, #tpu.memory_space<vmem>>, vector<1x128xf32>
    %233 = vector.broadcast %232 : vector<1x128xf32> to vector<2x128xf32>
    %234 = arith.addf %231, %233 : vector<2x128xf32>
    %cst_103 = arith.constant 0.000000e+00 : f32
    %235 = vector.broadcast %cst_103 : f32 to vector<2x128xf32>
    %236 = arith.maximumf %234, %235 : vector<2x128xf32>
    %237 = arith.truncf %236 : vector<2x128xf32> to vector<2x128xbf16>
    %c0_104 = arith.constant 0 : index
    %c0_105 = arith.constant 0 : index
    %238 = vector.load %arg11[%c0_104, %c0_105] : memref<128x128xbf16, #tpu.memory_space<vmem>>, vector<128x128xbf16>
    %cst_106 = arith.constant dense<0.000000e+00> : vector<2x128xf32>
    %239 = tpu.matmul %237, %238, %cst_106 {dimension_numbers = #tpu.dot_dimension_numbers<[1], [0], [0], [1], [0, 0, 1, 1], [], []>} : vector<2x128xbf16>, vector<128x128xbf16>, vector<2x128xf32> -> vector<2x128xf32>
    %c0_107 = arith.constant 0 : index
    %c0_108 = arith.constant 0 : index
    %240 = vector.load %arg12[%c0_107, %c0_108] : memref<1x128xf32, #tpu.memory_space<vmem>>, vector<1x128xf32>
    %241 = vector.broadcast %240 : vector<1x128xf32> to vector<2x128xf32>
    %242 = arith.addf %239, %241 : vector<2x128xf32>
    %243 = vector.extract_strided_slice %242 {offsets = [0, 0], sizes = [2, 2], strides = [1, 1]} : vector<2x128xf32> to vector<2x2xf32>
    %244 = vector.extract_strided_slice %242 {offsets = [0, 2], sizes = [2, 1], strides = [1, 1]} : vector<2x128xf32> to vector<2x1xf32>
    %cst_109 = arith.constant dense<0xFF800000> : vector<2xf32>
    %245 = vector.multi_reduction <maximumf>, %243, %cst_109 [1] : vector<2x2xf32> to vector<2xf32>
    %246 = vector.shape_cast %245 : vector<2xf32> to vector<2x1xf32>
    %247 = vector.broadcast %246 : vector<2x1xf32> to vector<2x2xf32>
    %248 = arith.subf %243, %247 : vector<2x2xf32>
    %249 = math.exp %248 : vector<2x2xf32>
    %cst_110 = arith.constant dense<0.000000e+00> : vector<2xf32>
    %250 = vector.multi_reduction <add>, %249, %cst_110 [1] : vector<2x2xf32> to vector<2xf32>
    %251 = vector.shape_cast %250 : vector<2xf32> to vector<2x1xf32>
    %252 = math.log %251 : vector<2x1xf32>
    %253 = vector.broadcast %252 : vector<2x1xf32> to vector<2x2xf32>
    %254 = arith.subf %248, %253 : vector<2x2xf32>
    %c0_111 = arith.constant 0 : index
    %c0_112 = arith.constant 0 : index
    %c0_113 = arith.constant 0 : index
    %255 = vector.load %arg2[%c0_111, %c0_112, %c0_113] : memref<2x1x128xf32, #tpu.memory_space<vmem>>, vector<2x1x128xf32>
    %256 = vector.extract_strided_slice %255 {offsets = [0, 0, 0], sizes = [2, 1, 2], strides = [1, 1, 1]} : vector<2x1x128xf32> to vector<2x1x2xf32>
    %257 = vector.shape_cast %256 : vector<2x1x2xf32> to vector<2x2xf32>
    %258 = arith.addf %243, %257 : vector<2x2xf32>
    %259 = vector.extract_strided_slice %258 {offsets = [0, 1], sizes = [2, 1], strides = [1, 1]} : vector<2x2xf32> to vector<2x1xf32>
    %260 = vector.extract_strided_slice %258 {offsets = [0, 0], sizes = [2, 1], strides = [1, 1]} : vector<2x2xf32> to vector<2x1xf32>
    %261 = arith.cmpf ogt, %259, %260 : vector<2x1xf32>
    %262 = arith.extui %261 : vector<2x1xi1> to vector<2x1xi32>
    %263 = arith.sitofp %262 : vector<2x1xi32> to vector<2x1xf32>
    %264 = vector.extract_strided_slice %254 {offsets = [0, 1], sizes = [2, 1], strides = [1, 1]} : vector<2x2xf32> to vector<2x1xf32>
    %265 = arith.mulf %263, %264 : vector<2x1xf32>
    %cst_114 = arith.constant 1.000000e+00 : f32
    %266 = vector.broadcast %cst_114 : f32 to vector<2x1xf32>
    %267 = arith.subf %266, %263 : vector<2x1xf32>
    %268 = vector.extract_strided_slice %254 {offsets = [0, 0], sizes = [2, 1], strides = [1, 1]} : vector<2x2xf32> to vector<2x1xf32>
    %269 = arith.mulf %267, %268 : vector<2x1xf32>
    %270 = arith.addf %265, %269 : vector<2x1xf32>
    %271 = tpu.iota {dimensions = array<i32: 1>} : vector<2x128xi32>
    %c0_i32 = arith.constant 0 : i32
    %272 = vector.broadcast %c0_i32 : i32 to vector<2x128xi32>
    %273 = arith.cmpi eq, %271, %272 : vector<2x128xi32>
    %274 = arith.extui %273 : vector<2x128xi1> to vector<2x128xi32>
    %275 = arith.sitofp %274 : vector<2x128xi32> to vector<2x128xf32>
    %276 = vector.broadcast %244 : vector<2x1xf32> to vector<2x128xf32>
    %277 = arith.mulf %275, %276 : vector<2x128xf32>
    %c1_i32 = arith.constant 1 : i32
    %278 = vector.broadcast %c1_i32 : i32 to vector<2x128xi32>
    %279 = arith.cmpi eq, %271, %278 : vector<2x128xi32>
    %280 = arith.extui %279 : vector<2x128xi1> to vector<2x128xi32>
    %281 = arith.sitofp %280 : vector<2x128xi32> to vector<2x128xf32>
    %282 = vector.broadcast %263 : vector<2x1xf32> to vector<2x128xf32>
    %283 = arith.mulf %281, %282 : vector<2x128xf32>
    %284 = arith.addf %277, %283 : vector<2x128xf32>
    %c2_i32 = arith.constant 2 : i32
    %285 = vector.broadcast %c2_i32 : i32 to vector<2x128xi32>
    %286 = arith.cmpi eq, %271, %285 : vector<2x128xi32>
    %287 = arith.extui %286 : vector<2x128xi1> to vector<2x128xi32>
    %288 = arith.sitofp %287 : vector<2x128xi32> to vector<2x128xf32>
    %289 = vector.broadcast %270 : vector<2x1xf32> to vector<2x128xf32>
    %290 = arith.mulf %288, %289 : vector<2x128xf32>
    %291 = arith.addf %284, %290 : vector<2x128xf32>
    %292 = vector.shape_cast %291 : vector<2x128xf32> to vector<2x1x128xf32>
    %c0_115 = arith.constant 0 : index
    %c0_116 = arith.constant 0 : index
    %c0_117 = arith.constant 0 : index
    %293 = vector.load %arg13[%c0_115, %c0_116, %c0_117] : memref<2x1x128xf32, #tpu.memory_space<vmem>>, vector<2x1x128xf32>
    tpu.vector_store %arg13[%c0_115, %c0_116, %c0_117], %292 {strides = array<i32>} : memref<2x1x128xf32, #tpu.memory_space<vmem>>, vector<2x1x128xf32>,
    return
  }
  func.func @transform_0(%arg0: i32) -> (i32, i32, i32) {
    %c0_i32 = arith.constant 0 : i32
    %c0_i32_0 = arith.constant 0 : i32
    %c0_i32_1 = arith.constant 0 : i32
    return %arg0, %c0_i32, %c0_i32_0 : i32, i32, i32
  }
  func.func @transform_1(%arg0: i32) -> (i32, i32, i32) {
    %c0_i32 = arith.constant 0 : i32
    %c0_i32_0 = arith.constant 0 : i32
    %c0_i32_1 = arith.constant 0 : i32
    return %arg0, %c0_i32, %c0_i32_0 : i32, i32, i32
  }
  func.func @transform_2(%arg0: i32) -> (i32, i32) {
    %c0_i32 = arith.constant 0 : i32
    %c0_i32_0 = arith.constant 0 : i32
    %c0_i32_1 = arith.constant 0 : i32
    return %c0_i32, %c0_i32_0 : i32, i32
  }
  func.func @transform_3(%arg0: i32) -> (i32, i32) {
    %c0_i32 = arith.constant 0 : i32
    %c0_i32_0 = arith.constant 0 : i32
    %c0_i32_1 = arith.constant 0 : i32
    return %c0_i32, %c0_i32_0 : i32, i32
  }
  func.func @transform_4(%arg0: i32) -> (i32, i32, i32) {
    %c0_i32 = arith.constant 0 : i32
    %c0_i32_0 = arith.constant 0 : i32
    %c0_i32_1 = arith.constant 0 : i32
    %c0_i32_2 = arith.constant 0 : i32
    return %c0_i32, %c0_i32_0, %c0_i32_1 : i32, i32, i32
  }
  func.func @transform_5(%arg0: i32) -> (i32, i32) {
    %c0_i32 = arith.constant 0 : i32
    %c0_i32_0 = arith.constant 0 : i32
    %c0_i32_1 = arith.constant 0 : i32
    return %c0_i32, %c0_i32_0 : i32, i32
  }
  func.func @transform_6(%arg0: i32) -> (i32, i32, i32) {
    %c0_i32 = arith.constant 0 : i32
    %c0_i32_0 = arith.constant 0 : i32
    %c0_i32_1 = arith.constant 0 : i32
    %c0_i32_2 = arith.constant 0 : i32
    return %c0_i32, %c0_i32_0, %c0_i32_1 : i32, i32, i32
  }
  func.func @transform_7(%arg0: i32) -> (i32, i32) {
    %c0_i32 = arith.constant 0 : i32
    %c0_i32_0 = arith.constant 0 : i32
    %c0_i32_1 = arith.constant 0 : i32
    return %c0_i32, %c0_i32_0 : i32, i32
  }
  func.func @transform_8(%arg0: i32) -> (i32, i32) {
    %c0_i32 = arith.constant 0 : i32
    %c0_i32_0 = arith.constant 0 : i32
    %c0_i32_1 = arith.constant 0 : i32
    return %c0_i32, %c0_i32_0 : i32, i32
  }
  func.func @transform_9(%arg0: i32) -> (i32, i32) {
    %c0_i32 = arith.constant 0 : i32
    %c0_i32_0 = arith.constant 0 : i32
    %c0_i32_1 = arith.constant 0 : i32
    return %c0_i32, %c0_i32_0 : i32, i32
  }
  func.func @transform_10(%arg0: i32) -> (i32, i32) {
    %c0_i32 = arith.constant 0 : i32
    %c0_i32_0 = arith.constant 0 : i32
    %c0_i32_1 = arith.constant 0 : i32
    return %c0_i32, %c0_i32_0 : i32, i32
  }
  func.func @transform_11(%arg0: i32) -> (i32, i32) {
    %c0_i32 = arith.constant 0 : i32
    %c0_i32_0 = arith.constant 0 : i32
    %c0_i32_1 = arith.constant 0 : i32
    return %c0_i32, %c0_i32_0 : i32, i32
  }
  func.func @transform_12(%arg0: i32) -> (i32, i32, i32) {
    %c0_i32 = arith.constant 0 : i32
    %c0_i32_0 = arith.constant 0 : i32
    %c0_i32_1 = arith.constant 0 : i32
    return %arg0, %c0_i32, %c0_i32_0 : i32, i32, i32
  }
}

</mosaic_0001>

<llo_original>
// kernel: policy_forward.1
$region0: #{policy_forward.1}
  #allocation0 [shape = 'u32[]', space=smem, size = 0x4, offset = 0x4, fixed_abs, tag = 'smem constant byte address 0x4 - core index']
  #allocation1 [shape = 'u32[72,128]{1,0:T(1,128)}', space=vmem, size = 0x9000, scoped, tag = 'internal scratch']
  %s0 = inlined_call_operand.vmem [shape: bf16[4,400,64], index: 0, kind: input, shape index: {}]
  %s1 = inlined_call_operand.vmem [shape: f32[4,1,128], index: 1, kind: input, shape index: {}]
  %s2 = inlined_call_operand.vmem [shape: bf16[64,32], index: 2, kind: input, shape index: {}]
  %s3 = inlined_call_operand.vmem [shape: f32[1,32], index: 3, kind: input, shape index: {}]
  %s4 = inlined_call_operand.vmem [shape: bf16[16,32,64], index: 4, kind: input, shape index: {}]
  %s5 = inlined_call_operand.vmem [shape: f32[1,64], index: 5, kind: input, shape index: {}]
  %s6 = inlined_call_operand.vmem [shape: bf16[9,64,32], index: 6, kind: input, shape index: {}]
  %s7 = inlined_call_operand.vmem [shape: f32[1,32], index: 7, kind: input, shape index: {}]
  %s8 = inlined_call_operand.vmem [shape: bf16[1792,128], index: 8, kind: input, shape index: {}]
  %s9 = inlined_call_operand.vmem [shape: f32[1,128], index: 9, kind: input, shape index: {}]
  %s10 = inlined_call_operand.vmem [shape: bf16[128,128], index: 10, kind: input, shape index: {}]
  %s11 = inlined_call_operand.vmem [shape: f32[1,128], index: 11, kind: input, shape index: {}]
  %s12 = inlined_call_operand.vmem [shape: f32[4,1,128], index: 12, kind: output, shape index: {}]
  %s13 = sld [smem:[#allocation0]]
  $region81: #{policy_forward.1} parent=0
    _
  %s15 = ssub.s32 1, %s13
  %s16 = scalar_select 0, %s15, %s13
  loop: start=0, step=1, limit=4
  $region2: #{policy_forward.1} parent=0 // loop_pre_header
    _
  $region3: #{policy_forward.1} parent=0 // loop_header
    %s18 = sphi 0, %s22
    %p19 = scmp.ge.s32.totalorder %s18, 4
    %s28 = sphi 0, %s30
    %s31 = sphi 0, %s28
    %s32 = sphi 0, %s31
    %s48 = sphi 0, %s32
    %s54 = sphi 0, %s56
    %s57 = sphi 0, %s54
    %s58 = sphi 0, %s57
    %s74 = sphi 0, %s58
    %s78 = sphi 0, %s78
    %s80 = sphi 0, %s78
    %s81 = sphi 0, %s80
    %s95 = sphi 0, %s81
    %s99 = sphi 0, %s99
    %s101 = sphi 0, %s99
    %s102 = sphi 0, %s101
    %s116 = sphi 0, %s102
    %s120 = sphi 0, %s120
    %s122 = sphi 0, %s120
    %s123 = sphi 0, %s122
    %s137 = sphi 0, %s123
    %s141 = sphi 0, %s141
    %s143 = sphi 0, %s141
    %s144 = sphi 0, %s143
    %s158 = sphi 0, %s144
    %s162 = sphi 0, %s162
    %s164 = sphi 0, %s162
    %s165 = sphi 0, %s164
    %s179 = sphi 0, %s165
    %s183 = sphi 0, %s183
    %s185 = sphi 0, %s183
    %s186 = sphi 0, %s185
    %s200 = sphi 0, %s186
    %s204 = sphi 0, %s204
    %s206 = sphi 0, %s204
    %s207 = sphi 0, %s206
    %s221 = sphi 0, %s207
    %s225 = sphi 0, %s225
    %s227 = sphi 0, %s225
    %s228 = sphi 0, %s227
    %s242 = sphi 0, %s228
    %s246 = sphi 0, %s246
    %s248 = sphi 0, %s246
    %s249 = sphi 0, %s248
    %s263 = sphi 0, %s249
    %s267 = sphi 0, %s267
    %s269 = sphi 0, %s267
    %s270 = sphi 0, %s269
    %s284 = sphi 0, %s270
    %s290 = sphi 0, %s292
    %s293 = sphi 0, %s290
    %s294 = sphi 0, %s293
    %s310 = sphi 0, %s294
  $region4: #{policy_forward.1} parent=0 // loop_header_branch
    %21 = sbr.rel (%p19) target = $region8
  $region5: #{policy_forward.1} parent=0 // loop_body
    %s23 = ssub.s32 %s18, 1
    %s24 = ssub.s32 %s18, 2
    %s25 = sadd.s32 %s18, 1
    %s26 = ssub.s32 %s18, %s25
    %p27 = scmp.eq.s32.totalorder %s26, 0
    %s29 = sadd.s32 %s28, 1
    %s30 = scalar_select %p27, %s28, %s29
    %p33 = pneg %p27
    %p34 = scmp.eq.s32.totalorder %s18, 1
    %p35 = por %p33, %p34
    %p36 = scmp.ne.s32.totalorder %s28, %s31
    %p37 = scmp.eq.s32.totalorder %s18, 0
    %p38 = por %p36, %p37
    %p39 = scmp.ne.s32.totalorder %s28, %s31
    %p40 = scmp.eq.s32.totalorder %s23, 1
    %p41 = por %p39, %p40
    %p42 = scmp.ne.s32.totalorder %s31, %s32
    %p43 = scmp.eq.s32.totalorder %s23, 0
    %p44 = por %p42, %p43
    %p45 = scmp.ne.s32.totalorder %s31, %s32
    %p46 = scmp.eq.s32.totalorder %s24, 1
    %p47 = por %p45, %p46
    %p49 = scmp.ne.s32.totalorder %s32, %s48
    %p50 = scmp.eq.s32.totalorder %s24, 0
    %p51 = por %p49, %p50
    %s52 = ssub.s32 %s18, %s25
    %p53 = scmp.eq.s32.totalorder %s52, 0
    %s55 = sadd.s32 %s54, 1
    %s56 = scalar_select %p53, %s54, %s55
    %p59 = pneg %p53
    %p60 = scmp.eq.s32.totalorder %s18, 1
    %p61 = por %p59, %p60
    %p62 = scmp.ne.s32.totalorder %s54, %s57
    %p63 = scmp.eq.s32.totalorder %s18, 0
    %p64 = por %p62, %p63
    %p65 = scmp.ne.s32.totalorder %s54, %s57
    %p66 = scmp.eq.s32.totalorder %s23, 1
    %p67 = por %p65, %p66
    %p68 = scmp.ne.s32.totalorder %s57, %s58
    %p69 = scmp.eq.s32.totalorder %s23, 0
    %p70 = por %p68, %p69
    %p71 = scmp.ne.s32.totalorder %s57, %s58
    %p72 = scmp.eq.s32.totalorder %s24, 1
    %p73 = por %p71, %p72
    %p75 = scmp.ne.s32.totalorder %s58, %s74
    %p76 = scmp.eq.s32.totalorder %s24, 0
    %p77 = por %p75, %p76
    %s79 = sadd.s32 %s78, 1
    %p82 = scmp.eq.s32.totalorder %s18, 1
    %p83 = scmp.ne.s32.totalorder %s78, %s80
    %p84 = scmp.eq.s32.totalorder %s18, 0
    %p85 = por %p83, %p84
    %p86 = scmp.ne.s32.totalorder %s78, %s80
    %p87 = scmp.eq.s32.totalorder %s23, 1
    %p88 = por %p86, %p87
    %p89 = scmp.ne.s32.totalorder %s80, %s81
    %p90 = scmp.eq.s32.totalorder %s23, 0
    %p91 = por %p89, %p90
    %p92 = scmp.ne.s32.totalorder %s80, %s81
    %p93 = scmp.eq.s32.totalorder %s24, 1
    %p94 = por %p92, %p93
    %p96 = scmp.ne.s32.totalorder %s81, %s95
    %p97 = scmp.eq.s32.totalorder %s24, 0
    %p98 = por %p96, %p97
    %s100 = sadd.s32 %s99, 1
    %p103 = scmp.eq.s32.totalorder %s18, 1
    %p104 = scmp.ne.s32.totalorder %s99, %s101
    %p105 = scmp.eq.s32.totalorder %s18, 0
    %p106 = por %p104, %p105
    %p107 = scmp.ne.s32.totalorder %s99, %s101
    %p108 = scmp.eq.s32.totalorder %s23, 1
    %p109 = por %p107, %p108
    %p110 = scmp.ne.s32.totalorder %s101, %s102
    %p111 = scmp.eq.s32.totalorder %s23, 0
    %p112 = por %p110, %p111
    %p113 = scmp.ne.s32.totalorder %s101, %s102
    %p114 = scmp.eq.s32.totalorder %s24, 1
    %p115 = por %p113, %p114
    %p117 = scmp.ne.s32.totalorder %s102, %s116
    %p118 = scmp.eq.s32.totalorder %s24, 0
    %p119 = por %p117, %p118
    %s121 = sadd.s32 %s120, 1
    %p124 = scmp.eq.s32.totalorder %s18, 1
    %p125 = scmp.ne.s32.totalorder %s120, %s122
    %p126 = scmp.eq.s32.totalorder %s18, 0
    %p127 = por %p125, %p126
    %p128 = scmp.ne.s32.totalorder %s120, %s122
    %p129 = scmp.eq.s32.totalorder %s23, 1
    %p130 = por %p128, %p129
    %p131 = scmp.ne.s32.totalorder %s122, %s123
    %p132 = scmp.eq.s32.totalorder %s23, 0
    %p133 = por %p131, %p132
    %p134 = scmp.ne.s32.totalorder %s122, %s123
    %p135 = scmp.eq.s32.totalorder %s24, 1
    %p136 = por %p134, %p135
    %p138 = scmp.ne.s32.totalorder %s123, %s137
    %p139 = scmp.eq.s32.totalorder %s24, 0
    %p140 = por %p138, %p139
    %s142 = sadd.s32 %s141, 1
    %p145 = scmp.eq.s32.totalorder %s18, 1
    %p146 = scmp.ne.s32.totalorder %s141, %s143
    %p147 = scmp.eq.s32.totalorder %s18, 0
    %p148 = por %p146, %p147
    %p149 = scmp.ne.s32.totalorder %s141, %s143
    %p150 = scmp.eq.s32.totalorder %s23, 1
    %p151 = por %p149, %p150
    %p152 = scmp.ne.s32.totalorder %s143, %s144
    %p153 = scmp.eq.s32.totalorder %s23, 0
    %p154 = por %p152, %p153
    %p155 = scmp.ne.s32.totalorder %s143, %s144
    %p156 = scmp.eq.s32.totalorder %s24, 1
    %p157 = por %p155, %p156
    %p159 = scmp.ne.s32.totalorder %s144, %s158
    %p160 = scmp.eq.s32.totalorder %s24, 0
    %p161 = por %p159, %p160
    %s163 = sadd.s32 %s162, 1
    %p166 = scmp.eq.s32.totalorder %s18, 1
    %p167 = scmp.ne.s32.totalorder %s162, %s164
    %p168 = scmp.eq.s32.totalorder %s18, 0
    %p169 = por %p167, %p168
    %p170 = scmp.ne.s32.totalorder %s162, %s164
    %p171 = scmp.eq.s32.totalorder %s23, 1
    %p172 = por %p170, %p171
    %p173 = scmp.ne.s32.totalorder %s164, %s165
    %p174 = scmp.eq.s32.totalorder %s23, 0
    %p175 = por %p173, %p174
    %p176 = scmp.ne.s32.totalorder %s164, %s165
    %p177 = scmp.eq.s32.totalorder %s24, 1
    %p178 = por %p176, %p177
    %p180 = scmp.ne.s32.totalorder %s165, %s179
    %p181 = scmp.eq.s32.totalorder %s24, 0
    %p182 = por %p180, %p181
    %s184 = sadd.s32 %s183, 1
    %p187 = scmp.eq.s32.totalorder %s18, 1
    %p188 = scmp.ne.s32.totalorder %s183, %s185
    %p189 = scmp.eq.s32.totalorder %s18, 0
    %p190 = por %p188, %p189
    %p191 = scmp.ne.s32.totalorder %s183, %s185
    %p192 = scmp.eq.s32.totalorder %s23, 1
    %p193 = por %p191, %p192
    %p194 = scmp.ne.s32.totalorder %s185, %s186
    %p195 = scmp.eq.s32.totalorder %s23, 0
    %p196 = por %p194, %p195
    %p197 = scmp.ne.s32.totalorder %s185, %s186
    %p198 = scmp.eq.s32.totalorder %s24, 1
    %p199 = por %p197, %p198
    %p201 = scmp.ne.s32.totalorder %s186, %s200
    %p202 = scmp.eq.s32.totalorder %s24, 0
    %p203 = por %p201, %p202
    %s205 = sadd.s32 %s204, 1
    %p208 = scmp.eq.s32.totalorder %s18, 1
    %p209 = scmp.ne.s32.totalorder %s204, %s206
    %p210 = scmp.eq.s32.totalorder %s18, 0
    %p211 = por %p209, %p210
    %p212 = scmp.ne.s32.totalorder %s204, %s206
    %p213 = scmp.eq.s32.totalorder %s23, 1
    %p214 = por %p212, %p213
    %p215 = scmp.ne.s32.totalorder %s206, %s207
    %p216 = scmp.eq.s32.totalorder %s23, 0
    %p217 = por %p215, %p216
    %p218 = scmp.ne.s32.totalorder %s206, %s207
    %p219 = scmp.eq.s32.totalorder %s24, 1
    %p220 = por %p218, %p219
    %p222 = scmp.ne.s32.totalorder %s207, %s221
    %p223 = scmp.eq.s32.totalorder %s24, 0
    %p224 = por %p222, %p223
    %s226 = sadd.s32 %s225, 1
    %p229 = scmp.eq.s32.totalorder %s18, 1
    %p230 = scmp.ne.s32.totalorder %s225, %s227
    %p231 = scmp.eq.s32.totalorder %s18, 0
    %p232 = por %p230, %p231
    %p233 = scmp.ne.s32.totalorder %s225, %s227
    %p234 = scmp.eq.s32.totalorder %s23, 1
    %p235 = por %p233, %p234
    %p236 = scmp.ne.s32.totalorder %s227, %s228
    %p237 = scmp.eq.s32.totalorder %s23, 0
    %p238 = por %p236, %p237
    %p239 = scmp.ne.s32.totalorder %s227, %s228
    %p240 = scmp.eq.s32.totalorder %s24, 1
    %p241 = por %p239, %p240
    %p243 = scmp.ne.s32.totalorder %s228, %s242
    %p244 = scmp.eq.s32.totalorder %s24, 0
    %p245 = por %p243, %p244
    %s247 = sadd.s32 %s246, 1
    %p250 = scmp.eq.s32.totalorder %s18, 1
    %p251 = scmp.ne.s32.totalorder %s246, %s248
    %p252 = scmp.eq.s32.totalorder %s18, 0
    %p253 = por %p251, %p252
    %p254 = scmp.ne.s32.totalorder %s246, %s248
    %p255 = scmp.eq.s32.totalorder %s23, 1
    %p256 = por %p254, %p255
    %p257 = scmp.ne.s32.totalorder %s248, %s249
    %p258 = scmp.eq.s32.totalorder %s23, 0
    %p259 = por %p257, %p258
    %p260 = scmp.ne.s32.totalorder %s248, %s249
    %p261 = scmp.eq.s32.totalorder %s24, 1
    %p262 = por %p260, %p261
    %p264 = scmp.ne.s32.totalorder %s249, %s263
    %p265 = scmp.eq.s32.totalorder %s24, 0
    %p266 = por %p264, %p265
    %s268 = sadd.s32 %s267, 1
    %p271 = scmp.eq.s32.totalorder %s18, 1
    %p272 = scmp.ne.s32.totalorder %s267, %s269
    %p273 = scmp.eq.s32.totalorder %s18, 0
    %p274 = por %p272, %p273
    %p275 = scmp.ne.s32.totalorder %s267, %s269
    %p276 = scmp.eq.s32.totalorder %s23, 1
    %p277 = por %p275, %p276
    %p278 = scmp.ne.s32.totalorder %s269, %s270
    %p279 = scmp.eq.s32.totalorder %s23, 0
    %p280 = por %p278, %p279
    %p281 = scmp.ne.s32.totalorder %s269, %s270
    %p282 = scmp.eq.s32.totalorder %s24, 1
    %p283 = por %p281, %p282
    %p285 = scmp.ne.s32.totalorder %s270, %s284
    %p286 = scmp.eq.s32.totalorder %s24, 0
    %p287 = por %p285, %p286
    %s288 = ssub.s32 %s18, %s25
    %p289 = scmp.eq.s32.totalorder %s288, 0
    %s291 = sadd.s32 %s290, 1
    %s292 = scalar_select %p289, %s290, %s291
    %p295 = pneg %p289
    %p296 = scmp.eq.s32.totalorder %s18, 1
    %p297 = por %p295, %p296
    %p298 = scmp.ne.s32.totalorder %s290, %s293
    %p299 = scmp.eq.s32.totalorder %s18, 0
    %p300 = por %p298, %p299
    %p301 = scmp.ne.s32.totalorder %s290, %s293
    %p302 = scmp.eq.s32.totalorder %s23, 1
    %p303 = por %p301, %p302
    %p304 = scmp.ne.s32.totalorder %s293, %s294
    %p305 = scmp.eq.s32.totalorder %s23, 0
    %p306 = por %p304, %p305
    %p307 = scmp.ne.s32.totalorder %s293, %s294
    %p308 = scmp.eq.s32.totalorder %s24, 1
    %p309 = por %p307, %p308
    %p311 = scmp.ne.s32.totalorder %s294, %s310
    %p312 = scmp.eq.s32.totalorder %s24, 0
    %p313 = por %p311, %p312
    %p314 = scmp.le.s32.totalorder 1, %s18
    %p315 = scmp.lt.s32.totalorder %s18, 3
    %p316 = pnand %p314, %p315
    %p317 = pneg %p316
    // Predicated region
    $region9: #{policy_forward.1} parent=5 // pred_check
      _
    $region10: #{policy_forward.1} parent=5 // pred_check_branch
      %319 = sbr.rel (%p316) target = $region12
    $region11: #{policy_forward.1} parent=5 // pred_region
      %s320 = ssub.s32 %s18, 1
      // Predicated region
      $region13: #{policy_forward.1} parent=11 // pred_check
        %p321 = pneg %p91
      $region14: #{policy_forward.1} parent=11 // pred_check_branch
        %323 = sbr.rel (%p321) target = $region16
      $region15: #{policy_forward.1} parent=11 // pred_region
        _
      $region16: #{policy_forward.1} parent=11 // pred_fallthru
        _
      // Predicated region
      $region17: #{policy_forward.1} parent=11 // pred_check
        %p324 = pneg %p112
      $region18: #{policy_forward.1} parent=11 // pred_check_branch
        %326 = sbr.rel (%p324) target = $region20
      $region19: #{policy_forward.1} parent=11 // pred_region
        _
      $region20: #{policy_forward.1} parent=11 // pred_fallthru
        _
      // Predicated region
      $region21: #{policy_forward.1} parent=11 // pred_check
        %p327 = pneg %p133
      $region22: #{policy_forward.1} parent=11 // pred_check_branch
        %329 = sbr.rel (%p327) target = $region24
      $region23: #{policy_forward.1} parent=11 // pred_region
        _
      $region24: #{policy_forward.1} parent=11 // pred_fallthru
        _
      // Predicated region
      $region25: #{policy_forward.1} parent=11 // pred_check
        %p330 = pneg %p154
      $region26: #{policy_forward.1} parent=11 // pred_check_branch
        %332 = sbr.rel (%p330) target = $region28
      $region27: #{policy_forward.1} parent=11 // pred_region
        _
      $region28: #{policy_forward.1} parent=11 // pred_fallthru
        _
      // Predicated region
      $region29: #{policy_forward.1} parent=11 // pred_check
        %p333 = pneg %p175
      $region30: #{policy_forward.1} parent=11 // pred_check_branch
        %335 = sbr.rel (%p333) target = $region32
      $region31: #{policy_forward.1} parent=11 // pred_region
        _
      $region32: #{policy_forward.1} parent=11 // pred_fallthru
        _
      // Predicated region
      $region33: #{policy_forward.1} parent=11 // pred_check
        %p336 = pneg %p196
      $region34: #{policy_forward.1} parent=11 // pred_check_branch
        %338 = sbr.rel (%p336) target = $region36
      $region35: #{policy_forward.1} parent=11 // pred_region
        _
      $region36: #{policy_forward.1} parent=11 // pred_fallthru
        _
      // Predicated region
      $region37: #{policy_forward.1} parent=11 // pred_check
        %p339 = pneg %p217
      $region38: #{policy_forward.1} parent=11 // pred_check_branch
        %341 = sbr.rel (%p339) target = $region40
      $region39: #{policy_forward.1} parent=11 // pred_region
        _
      $region40: #{policy_forward.1} parent=11 // pred_fallthru
        _
      // Predicated region
      $region41: #{policy_forward.1} parent=11 // pred_check
        %p342 = pneg %p238
      $region42: #{policy_forward.1} parent=11 // pred_check_branch
        %344 = sbr.rel (%p342) target = $region44
      $region43: #{policy_forward.1} parent=11 // pred_region
        _
      $region44: #{policy_forward.1} parent=11 // pred_fallthru
        _
      // Predicated region
      $region45: #{policy_forward.1} parent=11 // pred_check
        %p345 = pneg %p259
      $region46: #{policy_forward.1} parent=11 // pred_check_branch
        %347 = sbr.rel (%p345) target = $region48
      $region47: #{policy_forward.1} parent=11 // pred_region
        _
      $region48: #{policy_forward.1} parent=11 // pred_fallthru
        _
      // Predicated region
      $region49: #{policy_forward.1} parent=11 // pred_check
        %p348 = pneg %p280
      $region50: #{policy_forward.1} parent=11 // pred_check_branch
        %350 = sbr.rel (%p348) target = $region52
      $region51: #{policy_forward.1} parent=11 // pred_region
        _
      $region52: #{policy_forward.1} parent=11 // pred_fallthru
        _
    $region12: #{policy_forward.1} parent=5 // pred_fallthru
      _
    %p351 = scmp.lt.s32.totalorder %s18, 2
    // Predicated region
    $region53: #{policy_forward.1} parent=5 // pred_check
      %p352 = pneg %p351
    $region54: #{policy_forward.1} parent=5 // pred_check_branch
      %354 = sbr.rel (%p352) target = $region56
    $region55: #{policy_forward.1} parent=5 // pred_region
      // Predicated region
      $region57: #{policy_forward.1} parent=55 // pred_check
        %p355 = pneg %p38
      $region58: #{policy_forward.1} parent=55 // pred_check_branch
        %357 = sbr.rel (%p355) target = $region60
      $region59: #{policy_forward.1} parent=55 // pred_region
        %s358 = smul.u32 2, %s18
        %p359 = scmp.lt.s32.totalorder %s358, 3
        %s360 = scalar_select %p359, %s358, 3
        %s361 = smul.addr %s360, 50
        %s362 = smul.addr %s361, 4
        %s363 = scalar_lea.vmem %s0, %s362
        %s364 = smul.u32 2, %s18
      $region60: #{policy_forward.1} parent=55 // pred_fallthru
        _
      // Predicated region
      $region61: #{policy_forward.1} parent=55 // pred_check
        %p365 = pneg %p64
      $region62: #{policy_forward.1} parent=55 // pred_check_branch
        %367 = sbr.rel (%p365) target = $region64
      $region63: #{policy_forward.1} parent=55 // pred_region
        %s368 = smul.u32 2, %s18
        %p369 = scmp.lt.s32.totalorder %s368, 3
        %s370 = scalar_select %p369, %s368, 3
        %s371 = scalar_lea.vmem %s1, %s370
        %s372 = smul.u32 2, %s18
      $region64: #{policy_forward.1} parent=55 // pred_fallthru
        _
    $region56: #{policy_forward.1} parent=5 // pred_fallthru
      _
    %p373 = scmp.le.s32.totalorder 1, %s18
    %p374 = scmp.lt.s32.totalorder %s18, 3
    %p375 = pnand %p373, %p374
    %p376 = pneg %p375
    // Predicated region
    $region65: #{policy_forward.1} parent=5 // pred_check
      _
    $region66: #{policy_forward.1} parent=5 // pred_check_branch
      %378 = sbr.rel (%p375) target = $region68
    $region67: #{policy_forward.1} parent=5 // pred_region
      %s379 = ssub.s32 %s18, 1
      %s380 = smul.u32 2, %s23
      %p381 = scmp.lt.s32.totalorder %s380, 3
      %s382 = scalar_select %p381, %s380, 3
      %s383 = smul.addr %s382, 50
      %s384 = smul.addr %s383, 4
      %s385 = scalar_lea.vmem %s0, %s384
      %p386 = pneg %p44
      %p387 = pneg %p41
      %s388 = smul.u32 2, %s23
      %p389 = scmp.lt.s32.totalorder %s388, 3
      %s390 = scalar_select %p389, %s388, 3
      %s391 = scalar_lea.vmem %s1, %s390
      %p392 = pneg %p70
      %p393 = pneg %p67
      %p394 = pneg %p91
      %p395 = pneg %p88
      %p396 = pneg %p112
      %p397 = pneg %p109
      %p398 = pneg %p133
      %p399 = pneg %p130
      %p400 = pneg %p154
      %p401 = pneg %p151
      %p402 = pneg %p175
      %p403 = pneg %p172
      %p404 = pneg %p196
      %p405 = pneg %p193
      %p406 = pneg %p217
      %p407 = pneg %p214
      %p408 = pneg %p238
      %p409 = pneg %p235
      %p410 = pneg %p259
      %p411 = pneg %p256
      %p412 = pneg %p280
      %p413 = pneg %p277
      %p414 = pneg %p306
      %p415 = pneg %p303
      %s416 = smul.u32 2, %s23
      %p417 = scmp.lt.s32.totalorder %s416, 3
      %s418 = scalar_select %p417, %s416, 3
      %s419 = scalar_lea.vmem %s12, %s418
      %s420 = smul.u32 2, %s23
      %p421 = scmp.lt.s32.totalorder %s420, 3
      %s422 = scalar_select %p421, %s420, 3
      %s423 = smul.addr %s422, 50
      %s424 = smul.addr %s423, 4
      %s425 = scalar_lea.vmem %s0, %s424
      %s426 = smul.u32 2, %s23
      %s427 = smul.u32 2, %s23
      %p428 = scmp.lt.s32.totalorder %s427, 3
      %s429 = scalar_select %p428, %s427, 3
      %s430 = scalar_lea.vmem %s1, %s429
      %s431 = smul.u32 2, %s23
      %s432 = smul.u32 2, %s23
      %p433 = scmp.lt.s32.totalorder %s432, 3
      %s434 = scalar_select %p433, %s432, 3
      %s435 = scalar_lea.vmem %s12, %s434
      %s436 = smul.u32 2, %s23
      %v438 = vld [vmem:[%s425] sm:$0xf]
      %v439 = vld [vmem:[%s425 + $0x4] sm:$0xf]
      %v440 = vld [vmem:[%s425 + $0x8] sm:$0xf]
      %v441 = vld [vmem:[%s425 + $0xc] sm:$0xf]
      %v442 = vld [vmem:[%s425 + $0x10] sm:$0xf]
      %v443 = vld [vmem:[%s425 + $0x14] sm:$0xf]
      %v444 = vld [vmem:[%s425 + $0x18] sm:$0xf]
      %v445 = vld [vmem:[%s425 + $0x1c] sm:$0xf]
      %v446 = vld [vmem:[%s425 + $0x20] sm:$0xf]
      %v447 = vld [vmem:[%s425 + $0x24] sm:$0xf]
      %v448 = vld [vmem:[%s425 + $0x28] sm:$0xf]
      %v449 = vld [vmem:[%s425 + $0x2c] sm:$0xf]
      %v450 = vld [vmem:[%s425 + $0x30] sm:$0xf]
      %v451 = vld [vmem:[%s425 + $0x34] sm:$0xf]
      %v452 = vld [vmem:[%s425 + $0x38] sm:$0xf]
      %v453 = vld [vmem:[%s425 + $0x3c] sm:$0xf]
      %v454 = vld [vmem:[%s425 + $0x40] sm:$0xf]
      %v455 = vld [vmem:[%s425 + $0x44] sm:$0xf]
      %v456 = vld [vmem:[%s425 + $0x48] sm:$0xf]
      %v457 = vld [vmem:[%s425 + $0x4c] sm:$0xf]
      %v458 = vld [vmem:[%s425 + $0x50] sm:$0xf]
      %v459 = vld [vmem:[%s425 + $0x54] sm:$0xf]
      %v460 = vld [vmem:[%s425 + $0x58] sm:$0xf]
      %v461 = vld [vmem:[%s425 + $0x5c] sm:$0xf]
      %v462 = vld [vmem:[%s425 + $0x60] sm:$0xf]
      %v463 = vld [vmem:[%s425 + $0x64] sm:$0xf]
      %v464 = vld [vmem:[%s425 + $0x68] sm:$0xf]
      %v465 = vld [vmem:[%s425 + $0x6c] sm:$0xf]
      %v466 = vld [vmem:[%s425 + $0x70] sm:$0xf]
      %v467 = vld [vmem:[%s425 + $0x74] sm:$0xf]
      %v468 = vld [vmem:[%s425 + $0x78] sm:$0xf]
      %v469 = vld [vmem:[%s425 + $0x7c] sm:$0xf]
      %v470 = vld [vmem:[%s425 + $0x80] sm:$0xf]
      %v471 = vld [vmem:[%s425 + $0x84] sm:$0xf]
      %v472 = vld [vmem:[%s425 + $0x88] sm:$0xf]
      %v473 = vld [vmem:[%s425 + $0x8c] sm:$0xf]
      %v474 = vld [vmem:[%s425 + $0x90] sm:$0xf]
      %v475 = vld [vmem:[%s425 + $0x94] sm:$0xf]
      %v476 = vld [vmem:[%s425 + $0x98] sm:$0xf]
      %v477 = vld [vmem:[%s425 + $0x9c] sm:$0xf]
      %v478 = vld [vmem:[%s425 + $0xa0] sm:$0xf]
      %v479 = vld [vmem:[%s425 + $0xa4] sm:$0xf]
      %v480 = vld [vmem:[%s425 + $0xa8] sm:$0xf]
      %v481 = vld [vmem:[%s425 + $0xac] sm:$0xf]
      %v482 = vld [vmem:[%s425 + $0xb0] sm:$0xf]
      %v483 = vld [vmem:[%s425 + $0xb4] sm:$0xf]
      %v484 = vld [vmem:[%s425 + $0xb8] sm:$0xf]
      %v485 = vld [vmem:[%s425 + $0xbc] sm:$0xf]
      %v486 = vld [vmem:[%s425 + $0xc0] sm:$0xf]
      %v487 = vld [vmem:[%s425 + $0xc4] sm:$0xf]
      %v488 = vld [vmem:[%s425 + $0xc8] sm:$0xf]
      %v489 = vld [vmem:[%s425 + $0xcc] sm:$0xf]
      %v490 = vld [vmem:[%s425 + $0xd0] sm:$0xf]
      %v491 = vld [vmem:[%s425 + $0xd4] sm:$0xf]
      %v492 = vld [vmem:[%s425 + $0xd8] sm:$0xf]
      %v493 = vld [vmem:[%s425 + $0xdc] sm:$0xf]
      %v494 = vld [vmem:[%s425 + $0xe0] sm:$0xf]
      %v495 = vld [vmem:[%s425 + $0xe4] sm:$0xf]
      %v496 = vld [vmem:[%s425 + $0xe8] sm:$0xf]
      %v497 = vld [vmem:[%s425 + $0xec] sm:$0xf]
      %v498 = vld [vmem:[%s425 + $0xf0] sm:$0xf]
      %v499 = vld [vmem:[%s425 + $0xf4] sm:$0xf]
      %v500 = vld [vmem:[%s425 + $0xf8] sm:$0xf]
      %v501 = vld [vmem:[%s425 + $0xfc] sm:$0xf]
      %v502 = vld [vmem:[%s425 + $0x100] sm:$0xf]
      %v503 = vld [vmem:[%s425 + $0x104] sm:$0xf]
      %v504 = vld [vmem:[%s425 + $0x108] sm:$0xf]
      %v505 = vld [vmem:[%s425 + $0x10c] sm:$0xf]
      %v506 = vld [vmem:[%s425 + $0x110] sm:$0xf]
      %v507 = vld [vmem:[%s425 + $0x114] sm:$0xf]
      %v508 = vld [vmem:[%s425 + $0x118] sm:$0xf]
      %v509 = vld [vmem:[%s425 + $0x11c] sm:$0xf]
      %v510 = vld [vmem:[%s425 + $0x120] sm:$0xf]
      %v511 = vld [vmem:[%s425 + $0x124] sm:$0xf]
      %v512 = vld [vmem:[%s425 + $0x128] sm:$0xf]
      %v513 = vld [vmem:[%s425 + $0x12c] sm:$0xf]
      %v514 = vld [vmem:[%s425 + $0x130] sm:$0xf]
      %v515 = vld [vmem:[%s425 + $0x134] sm:$0xf]
      %v516 = vld [vmem:[%s425 + $0x138] sm:$0xf]
      %v517 = vld [vmem:[%s425 + $0x13c] sm:$0xf]
      %v518 = vld [vmem:[%s425 + $0x140] sm:$0xf]
      %v519 = vld [vmem:[%s425 + $0x144] sm:$0xf]
      %v520 = vld [vmem:[%s425 + $0x148] sm:$0xf]
      %v521 = vld [vmem:[%s425 + $0x14c] sm:$0xf]
      %v522 = vld [vmem:[%s425 + $0x150] sm:$0xf]
      %v523 = vld [vmem:[%s425 + $0x154] sm:$0xf]
      %v524 = vld [vmem:[%s425 + $0x158] sm:$0xf]
      %v525 = vld [vmem:[%s425 + $0x15c] sm:$0xf]
      %v526 = vld [vmem:[%s425 + $0x160] sm:$0xf]
      %v527 = vld [vmem:[%s425 + $0x164] sm:$0xf]
      %v528 = vld [vmem:[%s425 + $0x168] sm:$0xf]
      %v529 = vld [vmem:[%s425 + $0x16c] sm:$0xf]
      %v530 = vld [vmem:[%s425 + $0x170] sm:$0xf]
      %v531 = vld [vmem:[%s425 + $0x174] sm:$0xf]
      %v532 = vld [vmem:[%s425 + $0x178] sm:$0xf]
      %v533 = vld [vmem:[%s425 + $0x17c] sm:$0xf]
      %v534 = vld [vmem:[%s425 + $0x180] sm:$0xf]
      %v535 = vld [vmem:[%s425 + $0x184] sm:$0xf]
      %v536 = vld [vmem:[%s425 + $0x188] sm:$0xf]
      %v537 = vld [vmem:[%s425 + $0x18c] sm:$0xf]
      %v538 = vld [vmem:[%s2] sm:$0xf]
      %v539 = vld [vmem:[%s2 + $0x4] sm:$0xf]
      %v540 = vld [vmem:[%s2 + $0x8] sm:$0xf]
      %v541 = vld [vmem:[%s2 + $0xc] sm:$0xf]
      %v542 = vld [vmem:[%s2 + $0x10] sm:$0xf]
      %v543 = vld [vmem:[%s2 + $0x14] sm:$0xf]
      %v544 = vld [vmem:[%s2 + $0x18] sm:$0xf]
      %v545 = vld [vmem:[%s2 + $0x1c] sm:$0xf]
      %v546 = vld [vmem:[%s3] sm:$0x1]
      %v548 = vperm.slane %v546, 0
      %v650 = vunpack.c.l.b16 %v438
      %v651 = vunpack.c.l.b16 %v439
      %v652 = vunpack.c.l.b16 %v440
      %v653 = vunpack.c.l.b16 %v441
      %v654 = vunpack.c.l.b16 %v442
      %v655 = vunpack.c.l.b16 %v443
      %v656 = vunpack.c.l.b16 %v444
      %v657 = vunpack.c.l.b16 %v445
      %v658 = vunpack.c.l.b16 %v446
      %v659 = vunpack.c.l.b16 %v447
      %v660 = vunpack.c.l.b16 %v448
      %v661 = vunpack.c.l.b16 %v449
      %v662 = vunpack.c.l.b16 %v450
      %v663 = vunpack.c.l.b16 %v451
      %v664 = vunpack.c.l.b16 %v452
      %v665 = vunpack.c.l.b16 %v453
      %v666 = vunpack.c.l.b16 %v454
      %v667 = vunpack.c.l.b16 %v455
      %v668 = vunpack.c.l.b16 %v456
      %v669 = vunpack.c.l.b16 %v457
      %v670 = vunpack.c.l.b16 %v458
      %v671 = vunpack.c.l.b16 %v459
      %v672 = vunpack.c.l.b16 %v460
      %v673 = vunpack.c.l.b16 %v461
      %v674 = vunpack.c.l.b16 %v462
      %v675 = vunpack.c.l.b16 %v463
      %v676 = vunpack.c.l.b16 %v464
      %v677 = vunpack.c.l.b16 %v465
      %v678 = vunpack.c.l.b16 %v466
      %v679 = vunpack.c.l.b16 %v467
      %v680 = vunpack.c.l.b16 %v468
      %v681 = vunpack.c.l.b16 %v469
      %v682 = vunpack.c.l.b16 %v470
      %v683 = vunpack.c.l.b16 %v471
      %v684 = vunpack.c.l.b16 %v472
      %v685 = vunpack.c.l.b16 %v473
      %v686 = vunpack.c.l.b16 %v474
      %v687 = vunpack.c.l.b16 %v475
      %v688 = vunpack.c.l.b16 %v476
      %v689 = vunpack.c.l.b16 %v477
      %v690 = vunpack.c.l.b16 %v478
      %v691 = vunpack.c.l.b16 %v479
      %v692 = vunpack.c.l.b16 %v480
      %v693 = vunpack.c.l.b16 %v481
      %v694 = vunpack.c.l.b16 %v482
      %v695 = vunpack.c.l.b16 %v483
      %v696 = vunpack.c.l.b16 %v484
      %v697 = vunpack.c.l.b16 %v485
      %v698 = vunpack.c.l.b16 %v486
      %v699 = vunpack.c.l.b16 %v487
      %v700 = vunpack.c.l.b16 %v488
      %v701 = vunpack.c.l.b16 %v489
      %v702 = vunpack.c.l.b16 %v490
      %v703 = vunpack.c.l.b16 %v491
      %v704 = vunpack.c.l.b16 %v492
      %v705 = vunpack.c.l.b16 %v493
      %v706 = vunpack.c.l.b16 %v494
      %v707 = vunpack.c.l.b16 %v495
      %v708 = vunpack.c.l.b16 %v496
      %v709 = vunpack.c.l.b16 %v497
      %v710 = vunpack.c.l.b16 %v498
      %v711 = vunpack.c.l.b16 %v499
      %v712 = vunpack.c.l.b16 %v500
      %v713 = vunpack.c.l.b16 %v501
      %v714 = vunpack.c.l.b16 %v502
      %v715 = vunpack.c.l.b16 %v503
      %v716 = vunpack.c.l.b16 %v504
      %v717 = vunpack.c.l.b16 %v505
      %v718 = vunpack.c.l.b16 %v506
      %v719 = vunpack.c.l.b16 %v507
      %v720 = vunpack.c.l.b16 %v508
      %v721 = vunpack.c.l.b16 %v509
      %v722 = vunpack.c.l.b16 %v510
      %v723 = vunpack.c.l.b16 %v511
      %v724 = vunpack.c.l.b16 %v512
      %v725 = vunpack.c.l.b16 %v513
      %v726 = vunpack.c.l.b16 %v514
      %v727 = vunpack.c.l.b16 %v515
      %v728 = vunpack.c.l.b16 %v516
      %v729 = vunpack.c.l.b16 %v517
      %v730 = vunpack.c.l.b16 %v518
      %v731 = vunpack.c.l.b16 %v519
      %v732 = vunpack.c.l.b16 %v520
      %v733 = vunpack.c.l.b16 %v521
      %v734 = vunpack.c.l.b16 %v522
      %v735 = vunpack.c.l.b16 %v523
      %v736 = vunpack.c.l.b16 %v524
      %v737 = vunpack.c.l.b16 %v525
      %v738 = vunpack.c.l.b16 %v526
      %v739 = vunpack.c.l.b16 %v527
      %v740 = vunpack.c.l.b16 %v528
      %v741 = vunpack.c.l.b16 %v529
      %v742 = vunpack.c.l.b16 %v530
      %v743 = vunpack.c.l.b16 %v531
      %v744 = vunpack.c.l.b16 %v532
      %v745 = vunpack.c.l.b16 %v533
      %v746 = vunpack.c.l.b16 %v534
      %v747 = vunpack.c.l.b16 %v535
      %v748 = vunpack.c.l.b16 %v536
      %v749 = vunpack.c.l.b16 %v537
      %v750 = vpack.c.b16 %v651, %v650
      %v751 = vpack.c.b16 %v653, %v652
      %v752 = vpack.c.b16 %v655, %v654
      %v753 = vpack.c.b16 %v657, %v656
      %v754 = vpack.c.b16 %v659, %v658
      %v755 = vpack.c.b16 %v661, %v660
      %v756 = vpack.c.b16 %v663, %v662
      %v757 = vpack.c.b16 %v665, %v664
      %v758 = vpack.c.b16 %v667, %v666
      %v759 = vpack.c.b16 %v669, %v668
      %v760 = vpack.c.b16 %v671, %v670
      %v761 = vpack.c.b16 %v673, %v672
      %v762 = vpack.c.b16 %v675, %v674
      %v763 = vpack.c.b16 %v677, %v676
      %v764 = vpack.c.b16 %v679, %v678
      %v765 = vpack.c.b16 %v681, %v680
      %v766 = vpack.c.b16 %v683, %v682
      %v767 = vpack.c.b16 %v685, %v684
      %v768 = vpack.c.b16 %v687, %v686
      %v769 = vpack.c.b16 %v689, %v688
      %v770 = vpack.c.b16 %v691, %v690
      %v771 = vpack.c.b16 %v693, %v692
      %v772 = vpack.c.b16 %v695, %v694
      %v773 = vpack.c.b16 %v697, %v696
      %v774 = vpack.c.b16 %v699, %v698
      %v775 = vpack.c.b16 %v701, %v700
      %v776 = vpack.c.b16 %v703, %v702
      %v777 = vpack.c.b16 %v705, %v704
      %v778 = vpack.c.b16 %v707, %v706
      %v779 = vpack.c.b16 %v709, %v708
      %v780 = vpack.c.b16 %v711, %v710
      %v781 = vpack.c.b16 %v713, %v712
      %v782 = vpack.c.b16 %v715, %v714
      %v783 = vpack.c.b16 %v717, %v716
      %v784 = vpack.c.b16 %v719, %v718
      %v785 = vpack.c.b16 %v721, %v720
      %v786 = vpack.c.b16 %v723, %v722
      %v787 = vpack.c.b16 %v725, %v724
      %v788 = vpack.c.b16 %v727, %v726
      %v789 = vpack.c.b16 %v729, %v728
      %v790 = vpack.c.b16 %v731, %v730
      %v791 = vpack.c.b16 %v733, %v732
      %v792 = vpack.c.b16 %v735, %v734
      %v793 = vpack.c.b16 %v737, %v736
      %v794 = vpack.c.b16 %v739, %v738
      %v795 = vpack.c.b16 %v741, %v740
      %v796 = vpack.c.b16 %v743, %v742
      %v797 = vpack.c.b16 %v745, %v744
      %v798 = vpack.c.b16 %v747, %v746
      %v799 = vpack.c.b16 %v749, %v748
      %v808 = vunpack.c.l.b16 %v538
      %v809 = vunpack.c.l.b16 %v539
      %v810 = vunpack.c.l.b16 %v540
      %v811 = vunpack.c.l.b16 %v541
      %v812 = vunpack.c.l.b16 %v542
      %v813 = vunpack.c.l.b16 %v543
      %v814 = vunpack.c.l.b16 %v544
      %v815 = vunpack.c.l.b16 %v545
      %v816 = vpack.c.b16 %v809, %v808
      %v817 = vpack.c.b16 %v811, %v810
      %v818 = vpack.c.b16 %v813, %v812
      %v819 = vpack.c.b16 %v815, %v814
      %vm824 = vcmask 523264
      %v826 = vsel %vm824, %v750, 0
      %v829 = vsel %vm824, %v751, 0
      %v832 = vsel %vm824, %v752, 0
      %v835 = vsel %vm824, %v753, 0
      %v838 = vsel %vm824, %v754, 0
      %v841 = vsel %vm824, %v755, 0
      %v844 = vsel %vm824, %v756, 0
      %v847 = vsel %vm824, %v757, 0
      %v850 = vsel %vm824, %v758, 0
      %v853 = vsel %vm824, %v759, 0
      %v856 = vsel %vm824, %v760, 0
      %v859 = vsel %vm824, %v761, 0
      %v862 = vsel %vm824, %v762, 0
      %v865 = vsel %vm824, %v763, 0
      %v868 = vsel %vm824, %v764, 0
      %v871 = vsel %vm824, %v765, 0
      %v874 = vsel %vm824, %v766, 0
      %v877 = vsel %vm824, %v767, 0
      %v880 = vsel %vm824, %v768, 0
      %v883 = vsel %vm824, %v769, 0
      %v886 = vsel %vm824, %v770, 0
      %v889 = vsel %vm824, %v771, 0
      %v892 = vsel %vm824, %v772, 0
      %v895 = vsel %vm824, %v773, 0
      %v898 = vsel %vm824, %v774, 0
      %v901 = vsel %vm824, %v775, 0
      %v904 = vsel %vm824, %v776, 0
      %v907 = vsel %vm824, %v777, 0
      %v910 = vsel %vm824, %v778, 0
      %v913 = vsel %vm824, %v779, 0
      %v916 = vsel %vm824, %v780, 0
      %v919 = vsel %vm824, %v781, 0
      %v922 = vsel %vm824, %v782, 0
      %v925 = vsel %vm824, %v783, 0
      %v928 = vsel %vm824, %v784, 0
      %v931 = vsel %vm824, %v785, 0
      %v934 = vsel %vm824, %v786, 0
      %v937 = vsel %vm824, %v787, 0
      %v940 = vsel %vm824, %v788, 0
      %v943 = vsel %vm824, %v789, 0
      %v946 = vsel %vm824, %v790, 0
      %v949 = vsel %vm824, %v791, 0
      %v952 = vsel %vm824, %v792, 0
      %v955 = vsel %vm824, %v793, 0
      %v958 = vsel %vm824, %v794, 0
      %v961 = vsel %vm824, %v795, 0
      %v964 = vsel %vm824, %v796, 0
      %v967 = vsel %vm824, %v797, 0
      %v970 = vsel %vm824, %v798, 0
      %v973 = vsel %vm824, %v799, 0
      %975 = vmatpush.bf16.msra.mxu0 0
      %976 = vmatpush.bf16.msra.mxu0 0
      %977 = vmatpush.bf16.msra.mxu0 0
      %978 = vmatpush.bf16.msra.mxu0 0
      %979 = vmatpush.bf16.msra.mxu0 %v819
      %980 = vmatpush.bf16.msra.mxu0 %v818
      %981 = vmatpush.bf16.msra.mxu0 %v817
      %982 = vmatpush.bf16.msra.mxu0 %v816
      %983 = vmatmul.bf16.gmra.mxu0 %v826
      %v984 = vpop.f32.mrf.mxu0
      %v985 = vadd.f32 %v548, %v984
      %v986 = vpop.f32.mrf.mxu0
      %v987 = vadd.f32 %v548, %v986
      %988 = vmatmul.bf16.gmra.mxu0 %v829
      %v989 = vpop.f32.mrf.mxu0
      %v990 = vadd.f32 %v548, %v989
      %v991 = vpop.f32.mrf.mxu0
      %v992 = vadd.f32 %v548, %v991
      %993 = vmatmul.bf16.gmra.mxu0 %v832
      %v994 = vpop.f32.mrf.mxu0
      %v995 = vadd.f32 %v548, %v994
      %v996 = vpop.f32.mrf.mxu0
      %v997 = vadd.f32 %v548, %v996
      %998 = vmatmul.bf16.gmra.mxu0 %v835
      %v999 = vpop.f32.mrf.mxu0
      %v1000 = vadd.f32 %v548, %v999
      %v1001 = vpop.f32.mrf.mxu0
      %v1002 = vadd.f32 %v548, %v1001
      %1003 = vmatmul.bf16.gmra.mxu0 %v838
      %v1004 = vpop.f32.mrf.mxu0
      %v1005 = vadd.f32 %v548, %v1004
      %v1006 = vpop.f32.mrf.mxu0
      %v1007 = vadd.f32 %v548, %v1006
      %1008 = vmatmul.bf16.gmra.mxu0 %v841
      %v1009 = vpop.f32.mrf.mxu0
      %v1010 = vadd.f32 %v548, %v1009
      %v1011 = vpop.f32.mrf.mxu0
      %v1012 = vadd.f32 %v548, %v1011
      %1013 = vmatmul.bf16.gmra.mxu0 %v844
      %v1014 = vpop.f32.mrf.mxu0
      %v1015 = vadd.f32 %v548, %v1014
      %v1016 = vpop.f32.mrf.mxu0
      %v1017 = vadd.f32 %v548, %v1016
      %1018 = vmatmul.bf16.gmra.mxu0 %v847
      %v1019 = vpop.f32.mrf.mxu0
      %v1020 = vadd.f32 %v548, %v1019
      %v1021 = vpop.f32.mrf.mxu0
      %v1022 = vadd.f32 %v548, %v1021
      %1023 = vmatmul.bf16.gmra.mxu0 %v850
      %v1024 = vpop.f32.mrf.mxu0
      %v1025 = vadd.f32 %v548, %v1024
      %v1026 = vpop.f32.mrf.mxu0
      %v1027 = vadd.f32 %v548, %v1026
      %1028 = vmatmul.bf16.gmra.mxu0 %v853
      %v1029 = vpop.f32.mrf.mxu0
      %v1030 = vadd.f32 %v548, %v1029
      %v1031 = vpop.f32.mrf.mxu0
      %v1032 = vadd.f32 %v548, %v1031
      %1033 = vmatmul.bf16.gmra.mxu0 %v856
      %v1034 = vpop.f32.mrf.mxu0
      %v1035 = vadd.f32 %v548, %v1034
      %v1036 = vpop.f32.mrf.mxu0
      %v1037 = vadd.f32 %v548, %v1036
      %1038 = vmatmul.bf16.gmra.mxu0 %v859
      %v1039 = vpop.f32.mrf.mxu0
      %v1040 = vadd.f32 %v548, %v1039
      %v1041 = vpop.f32.mrf.mxu0
      %v1042 = vadd.f32 %v548, %v1041
      %1043 = vmatmul.bf16.gmra.mxu0 %v862
      %v1044 = vpop.f32.mrf.mxu0
      %v1045 = vpop.f32.mrf.mxu0
      %v1046 = vadd.f32 %v548, %v1045
      %1047 = vmatmul.bf16.gmra.mxu0 %v865
      %v1048 = vpop.f32.mrf.mxu0
      %v1049 = vadd.f32 %v548, %v1048
      %v1050 = vpop.f32.mrf.mxu0
      %v1051 = vadd.f32 %v548, %v1050
      %1052 = vmatmul.bf16.gmra.mxu0 %v868
      %v1053 = vpop.f32.mrf.mxu0
      %v1054 = vadd.f32 %v548, %v1053
      %v1055 = vpop.f32.mrf.mxu0
      %v1056 = vadd.f32 %v548, %v1055
      %1057 = vmatmul.bf16.gmra.mxu0 %v871
      %v1058 = vpop.f32.mrf.mxu0
      %v1059 = vadd.f32 %v548, %v1058
      %v1060 = vpop.f32.mrf.mxu0
      %v1061 = vadd.f32 %v548, %v1060
      %1062 = vmatmul.bf16.gmra.mxu0 %v874
      %v1063 = vpop.f32.mrf.mxu0
      %v1064 = vadd.f32 %v548, %v1063
      %v1065 = vpop.f32.mrf.mxu0
      %v1066 = vadd.f32 %v548, %v1065
      %1067 = vmatmul.bf16.gmra.mxu0 %v877
      %v1068 = vpop.f32.mrf.mxu0
      %v1069 = vadd.f32 %v548, %v1068
      %v1070 = vpop.f32.mrf.mxu0
      %v1071 = vadd.f32 %v548, %v1070
      %1072 = vmatmul.bf16.gmra.mxu0 %v880
      %v1073 = vpop.f32.mrf.mxu0
      %v1074 = vadd.f32 %v548, %v1073
      %v1075 = vpop.f32.mrf.mxu0
      %v1076 = vadd.f32 %v548, %v1075
      %1077 = vmatmul.bf16.gmra.mxu0 %v883
      %v1078 = vpop.f32.mrf.mxu0
      %v1079 = vadd.f32 %v548, %v1078
      %v1080 = vpop.f32.mrf.mxu0
      %v1081 = vadd.f32 %v548, %v1080
      %1082 = vmatmul.bf16.gmra.mxu0 %v886
      %v1083 = vpop.f32.mrf.mxu0
      %v1084 = vadd.f32 %v548, %v1083
      %v1085 = vpop.f32.mrf.mxu0
      %v1086 = vadd.f32 %v548, %v1085
      %1087 = vmatmul.bf16.gmra.mxu0 %v889
      %v1088 = vpop.f32.mrf.mxu0
      %v1089 = vadd.f32 %v548, %v1088
      %v1090 = vpop.f32.mrf.mxu0
      %v1091 = vadd.f32 %v548, %v1090
      %1092 = vmatmul.bf16.gmra.mxu0 %v892
      %v1093 = vpop.f32.mrf.mxu0
      %v1094 = vadd.f32 %v548, %v1093
      %v1095 = vpop.f32.mrf.mxu0
      %v1096 = vadd.f32 %v548, %v1095
      %1097 = vmatmul.bf16.gmra.mxu0 %v895
      %v1098 = vpop.f32.mrf.mxu0
      %v1099 = vadd.f32 %v548, %v1098
      %v1100 = vpop.f32.mrf.mxu0
      %v1101 = vadd.f32 %v548, %v1100
      %1102 = vmatmul.bf16.gmra.mxu0 %v898
      %v1103 = vpop.f32.mrf.mxu0
      %v1104 = vadd.f32 %v548, %v1103
      %v1105 = vpop.f32.mrf.mxu0
      %1106 = vmatmul.bf16.gmra.mxu0 %v901
      %v1107 = vpop.f32.mrf.mxu0
      %v1108 = vadd.f32 %v548, %v1107
      %v1109 = vpop.f32.mrf.mxu0
      %v1110 = vadd.f32 %v548, %v1109
      %1111 = vmatmul.bf16.gmra.mxu0 %v904
      %v1112 = vpop.f32.mrf.mxu0
      %v1113 = vadd.f32 %v548, %v1112
      %v1114 = vpop.f32.mrf.mxu0
      %v1115 = vadd.f32 %v548, %v1114
      %1116 = vmatmul.bf16.gmra.mxu0 %v907
      %v1117 = vpop.f32.mrf.mxu0
      %v1118 = vadd.f32 %v548, %v1117
      %v1119 = vpop.f32.mrf.mxu0
      %v1120 = vadd.f32 %v548, %v1119
      %1121 = vmatmul.bf16.gmra.mxu0 %v910
      %v1122 = vpop.f32.mrf.mxu0
      %v1123 = vadd.f32 %v548, %v1122
      %v1124 = vpop.f32.mrf.mxu0
      %v1125 = vadd.f32 %v548, %v1124
      %1126 = vmatmul.bf16.gmra.mxu0 %v913
      %v1127 = vpop.f32.mrf.mxu0
      %v1128 = vadd.f32 %v548, %v1127
      %v1129 = vpop.f32.mrf.mxu0
      %v1130 = vadd.f32 %v548, %v1129
      %1131 = vmatmul.bf16.gmra.mxu0 %v916
      %v1132 = vpop.f32.mrf.mxu0
      %v1133 = vadd.f32 %v548, %v1132
      %v1134 = vpop.f32.mrf.mxu0
      %v1135 = vadd.f32 %v548, %v1134
      %1136 = vmatmul.bf16.gmra.mxu0 %v919
      %v1137 = vpop.f32.mrf.mxu0
      %v1138 = vadd.f32 %v548, %v1137
      %v1139 = vpop.f32.mrf.mxu0
      %v1140 = vadd.f32 %v548, %v1139
      %1141 = vmatmul.bf16.gmra.mxu0 %v922
      %v1142 = vpop.f32.mrf.mxu0
      %v1143 = vadd.f32 %v548, %v1142
      %v1144 = vpop.f32.mrf.mxu0
      %v1145 = vadd.f32 %v548, %v1144
      %1146 = vmatmul.bf16.gmra.mxu0 %v925
      %v1147 = vpop.f32.mrf.mxu0
      %v1148 = vadd.f32 %v548, %v1147
      %v1149 = vpop.f32.mrf.mxu0
      %v1150 = vadd.f32 %v548, %v1149
      %1151 = vmatmul.bf16.gmra.mxu0 %v928
      %v1152 = vpop.f32.mrf.mxu0
      %v1153 = vadd.f32 %v548, %v1152
      %v1154 = vpop.f32.mrf.mxu0
      %v1155 = vadd.f32 %v548, %v1154
      %1156 = vmatmul.bf16.gmra.mxu0 %v931
      %v1157 = vpop.f32.mrf.mxu0
      %v1158 = vadd.f32 %v548, %v1157
      %v1159 = vpop.f32.mrf.mxu0
      %v1160 = vadd.f32 %v548, %v1159
      %1161 = vmatmul.bf16.gmra.mxu0 %v934
      %v1162 = vpop.f32.mrf.mxu0
      %v1163 = vadd.f32 %v548, %v1162
      %v1164 = vpop.f32.mrf.mxu0
      %v1165 = vadd.f32 %v548, %v1164
      %1166 = vmatmul.bf16.gmra.mxu0 %v937
      %v1167 = vpop.f32.mrf.mxu0
      %v1168 = vpop.f32.mrf.mxu0
      %v1169 = vadd.f32 %v548, %v1168
      %1170 = vmatmul.bf16.gmra.mxu0 %v940
      %v1171 = vpop.f32.mrf.mxu0
      %v1172 = vadd.f32 %v548, %v1171
      %v1173 = vpop.f32.mrf.mxu0
      %v1174 = vadd.f32 %v548, %v1173
      %1175 = vmatmul.bf16.gmra.mxu0 %v943
      %v1176 = vpop.f32.mrf.mxu0
      %v1177 = vadd.f32 %v548, %v1176
      %v1178 = vpop.f32.mrf.mxu0
      %v1179 = vadd.f32 %v548, %v1178
      %1180 = vmatmul.bf16.gmra.mxu0 %v946
      %v1181 = vpop.f32.mrf.mxu0
      %v1182 = vadd.f32 %v548, %v1181
      %v1183 = vpop.f32.mrf.mxu0
      %v1184 = vadd.f32 %v548, %v1183
      %1185 = vmatmul.bf16.gmra.mxu0 %v949
      %v1186 = vpop.f32.mrf.mxu0
      %v1187 = vadd.f32 %v548, %v1186
      %v1188 = vpop.f32.mrf.mxu0
      %v1189 = vadd.f32 %v548, %v1188
      %1190 = vmatmul.bf16.gmra.mxu0 %v952
      %v1191 = vpop.f32.mrf.mxu0
      %v1192 = vadd.f32 %v548, %v1191
      %v1193 = vpop.f32.mrf.mxu0
      %v1194 = vadd.f32 %v548, %v1193
      %1195 = vmatmul.bf16.gmra.mxu0 %v955
      %v1196 = vpop.f32.mrf.mxu0
      %v1197 = vadd.f32 %v548, %v1196
      %v1198 = vpop.f32.mrf.mxu0
      %v1199 = vadd.f32 %v548, %v1198
      %1200 = vmatmul.bf16.gmra.mxu0 %v958
      %v1201 = vpop.f32.mrf.mxu0
      %v1202 = vadd.f32 %v548, %v1201
      %v1203 = vpop.f32.mrf.mxu0
      %v1204 = vadd.f32 %v548, %v1203
      %1205 = vmatmul.bf16.gmra.mxu0 %v961
      %v1206 = vpop.f32.mrf.mxu0
      %v1207 = vadd.f32 %v548, %v1206
      %v1208 = vpop.f32.mrf.mxu0
      %v1209 = vadd.f32 %v548, %v1208
      %1210 = vmatmul.bf16.gmra.mxu0 %v964
      %v1211 = vpop.f32.mrf.mxu0
      %v1212 = vadd.f32 %v548, %v1211
      %v1213 = vpop.f32.mrf.mxu0
      %v1214 = vadd.f32 %v548, %v1213
      %1215 = vmatmul.bf16.gmra.mxu0 %v967
      %v1216 = vpop.f32.mrf.mxu0
      %v1217 = vadd.f32 %v548, %v1216
      %v1218 = vpop.f32.mrf.mxu0
      %v1219 = vadd.f32 %v548, %v1218
      %1220 = vmatmul.bf16.gmra.mxu0 %v970
      %v1221 = vpop.f32.mrf.mxu0
      %v1222 = vadd.f32 %v548, %v1221
      %v1223 = vpop.f32.mrf.mxu0
      %v1224 = vadd.f32 %v548, %v1223
      %1225 = vmatmul.bf16.gmra.mxu0 %v973
      %v1226 = vpop.f32.mrf.mxu0
      %v1227 = vadd.f32 %v548, %v1226
      %v1228 = vpop.f32.mrf.mxu0
      %1229 = vdwg.mxu0
      %v1230 = vmax.f32 %v985, 0.0
      %v1231 = vmax.f32 %v987, 0.0
      %v1232 = vmax.f32 %v990, 0.0
      %v1233 = vmax.f32 %v992, 0.0
      %v1234 = vmax.f32 %v995, 0.0
      %v1235 = vmax.f32 %v997, 0.0
      %v1236 = vmax.f32 %v1000, 0.0
      %v1237 = vmax.f32 %v1002, 0.0
      %v1238 = vmax.f32 %v1005, 0.0
      %v1239 = vmax.f32 %v1007, 0.0
      %v1240 = vmax.f32 %v1010, 0.0
      %v1241 = vmax.f32 %v1012, 0.0
      %v1242 = vmax.f32 %v1015, 0.0
      %v1243 = vmax.f32 %v1017, 0.0
      %v1244 = vmax.f32 %v1020, 0.0
      %v1245 = vmax.f32 %v1022, 0.0
      %v1246 = vmax.f32 %v1025, 0.0
      %v1247 = vmax.f32 %v1027, 0.0
      %v1248 = vmax.f32 %v1030, 0.0
      %v1249 = vmax.f32 %v1032, 0.0
      %v1250 = vmax.f32 %v1035, 0.0
      %v1251 = vmax.f32 %v1037, 0.0
      %v1252 = vmax.f32 %v1040, 0.0
      %v1253 = vmax.f32 %v1042, 0.0
      %v1254 = vmax.f32 %v1046, 0.0
      %v1255 = vmax.f32 %v1049, 0.0
      %v1256 = vmax.f32 %v1051, 0.0
      %v1257 = vmax.f32 %v1054, 0.0
      %v1258 = vmax.f32 %v1056, 0.0
      %v1259 = vmax.f32 %v1059, 0.0
      %v1260 = vmax.f32 %v1061, 0.0
      %v1261 = vmax.f32 %v1064, 0.0
      %v1262 = vmax.f32 %v1066, 0.0
      %v1263 = vmax.f32 %v1069, 0.0
      %v1264 = vmax.f32 %v1071, 0.0
      %v1265 = vmax.f32 %v1074, 0.0
      %v1266 = vmax.f32 %v1076, 0.0
      %v1267 = vmax.f32 %v1079, 0.0
      %v1268 = vmax.f32 %v1081, 0.0
      %v1269 = vmax.f32 %v1084, 0.0
      %v1270 = vmax.f32 %v1086, 0.0
      %v1271 = vmax.f32 %v1089, 0.0
      %v1272 = vmax.f32 %v1091, 0.0
      %v1273 = vmax.f32 %v1094, 0.0
      %v1274 = vmax.f32 %v1096, 0.0
      %v1275 = vmax.f32 %v1099, 0.0
      %v1276 = vmax.f32 %v1101, 0.0
      %v1277 = vmax.f32 %v1104, 0.0
      %v1278 = vmax.f32 %v1108, 0.0
      %v1279 = vmax.f32 %v1110, 0.0
      %v1280 = vmax.f32 %v1113, 0.0
      %v1281 = vmax.f32 %v1115, 0.0
      %v1282 = vmax.f32 %v1118, 0.0
      %v1283 = vmax.f32 %v1120, 0.0
      %v1284 = vmax.f32 %v1123, 0.0
      %v1285 = vmax.f32 %v1125, 0.0
      %v1286 = vmax.f32 %v1128, 0.0
      %v1287 = vmax.f32 %v1130, 0.0
      %v1288 = vmax.f32 %v1133, 0.0
      %v1289 = vmax.f32 %v1135, 0.0
      %v1290 = vmax.f32 %v1138, 0.0
      %v1291 = vmax.f32 %v1140, 0.0
      %v1292 = vmax.f32 %v1143, 0.0
      %v1293 = vmax.f32 %v1145, 0.0
      %v1294 = vmax.f32 %v1148, 0.0
      %v1295 = vmax.f32 %v1150, 0.0
      %v1296 = vmax.f32 %v1153, 0.0
      %v1297 = vmax.f32 %v1155, 0.0
      %v1298 = vmax.f32 %v1158, 0.0
      %v1299 = vmax.f32 %v1160, 0.0
      %v1300 = vmax.f32 %v1163, 0.0
      %v1301 = vmax.f32 %v1165, 0.0
      %v1302 = vmax.f32 %v1169, 0.0
      %v1303 = vmax.f32 %v1172, 0.0
      %v1304 = vmax.f32 %v1174, 0.0
      %v1305 = vmax.f32 %v1177, 0.0
      %v1306 = vmax.f32 %v1179, 0.0
      %v1307 = vmax.f32 %v1182, 0.0
      %v1308 = vmax.f32 %v1184, 0.0
      %v1309 = vmax.f32 %v1187, 0.0
      %v1310 = vmax.f32 %v1189, 0.0
      %v1311 = vmax.f32 %v1192, 0.0
      %v1312 = vmax.f32 %v1194, 0.0
      %v1313 = vmax.f32 %v1197, 0.0
      %v1314 = vmax.f32 %v1199, 0.0
      %v1315 = vmax.f32 %v1202, 0.0
      %v1316 = vmax.f32 %v1204, 0.0
      %v1317 = vmax.f32 %v1207, 0.0
      %v1318 = vmax.f32 %v1209, 0.0
      %v1319 = vmax.f32 %v1212, 0.0
      %v1320 = vmax.f32 %v1214, 0.0
      %v1321 = vmax.f32 %v1217, 0.0
      %v1322 = vmax.f32 %v1219, 0.0
      %v1323 = vmax.f32 %v1222, 0.0
      %v1324 = vmax.f32 %v1224, 0.0
      %v1325 = vmax.f32 %v1227, 0.0
      %v1326 = vpack.c.bf16 %v1230, %v1230
      %v1327 = vpack.c.bf16 %v1231, %v1231
      %v1328 = vpack.c.bf16 %v1232, %v1232
      %v1329 = vpack.c.bf16 %v1233, %v1233
      %v1330 = vpack.c.bf16 %v1234, %v1234
      %v1331 = vpack.c.bf16 %v1235, %v1235
      %v1332 = vpack.c.bf16 %v1236, %v1236
      %v1333 = vpack.c.bf16 %v1237, %v1237
      %v1334 = vpack.c.bf16 %v1238, %v1238
      %v1335 = vpack.c.bf16 %v1239, %v1239
      %v1336 = vpack.c.bf16 %v1240, %v1240
      %v1337 = vpack.c.bf16 %v1241, %v1241
      %v1338 = vpack.c.bf16 %v1242, %v1242
      %v1339 = vpack.c.bf16 %v1243, %v1243
      %v1340 = vpack.c.bf16 %v1244, %v1244
      %v1341 = vpack.c.bf16 %v1245, %v1245
      %v1342 = vpack.c.bf16 %v1246, %v1246
      %v1343 = vpack.c.bf16 %v1247, %v1247
      %v1344 = vpack.c.bf16 %v1248, %v1248
      %v1345 = vpack.c.bf16 %v1249, %v1249
      %v1346 = vpack.c.bf16 %v1250, %v1250
      %v1347 = vpack.c.bf16 %v1251, %v1251
      %v1348 = vpack.c.bf16 %v1252, %v1252
      %v1349 = vpack.c.bf16 %v1253, %v1253
      %v1350 = vpack.c.bf16 %v1254, %v1254
      %v1351 = vpack.c.bf16 %v1255, %v1255
      %v1352 = vpack.c.bf16 %v1256, %v1256
      %v1353 = vpack.c.bf16 %v1257, %v1257
      %v1354 = vpack.c.bf16 %v1258, %v1258
      %v1355 = vpack.c.bf16 %v1259, %v1259
      %v1356 = vpack.c.bf16 %v1260, %v1260
      %v1357 = vpack.c.bf16 %v1261, %v1261
      %v1358 = vpack.c.bf16 %v1262, %v1262
      %v1359 = vpack.c.bf16 %v1263, %v1263
      %v1360 = vpack.c.bf16 %v1264, %v1264
      %v1361 = vpack.c.bf16 %v1265, %v1265
      %v1362 = vpack.c.bf16 %v1266, %v1266
      %v1363 = vpack.c.bf16 %v1267, %v1267
      %v1364 = vpack.c.bf16 %v1268, %v1268
      %v1365 = vpack.c.bf16 %v1269, %v1269
      %v1366 = vpack.c.bf16 %v1270, %v1270
      %v1367 = vpack.c.bf16 %v1271, %v1271
      %v1368 = vpack.c.bf16 %v1272, %v1272
      %v1369 = vpack.c.bf16 %v1273, %v1273
      %v1370 = vpack.c.bf16 %v1274, %v1274
      %v1371 = vpack.c.bf16 %v1275, %v1275
      %v1372 = vpack.c.bf16 %v1276, %v1276
      %v1373 = vpack.c.bf16 %v1277, %v1277
      %v1374 = vpack.c.bf16 %v1278, %v1278
      %v1375 = vpack.c.bf16 %v1279, %v1279
      %v1376 = vpack.c.bf16 %v1280, %v1280
      %v1377 = vpack.c.bf16 %v1281, %v1281
      %v1378 = vpack.c.bf16 %v1282, %v1282
      %v1379 = vpack.c.bf16 %v1283, %v1283
      %v1380 = vpack.c.bf16 %v1284, %v1284
      %v1381 = vpack.c.bf16 %v1285, %v1285
      %v1382 = vpack.c.bf16 %v1286, %v1286
      %v1383 = vpack.c.bf16 %v1287, %v1287
      %v1384 = vpack.c.bf16 %v1288, %v1288
      %v1385 = vpack.c.bf16 %v1289, %v1289
      %v1386 = vpack.c.bf16 %v1290, %v1290
      %v1387 = vpack.c.bf16 %v1291, %v1291
      %v1388 = vpack.c.bf16 %v1292, %v1292
      %v1389 = vpack.c.bf16 %v1293, %v1293
      %v1390 = vpack.c.bf16 %v1294, %v1294
      %v1391 = vpack.c.bf16 %v1295, %v1295
      %v1392 = vpack.c.bf16 %v1296, %v1296
      %v1393 = vpack.c.bf16 %v1297, %v1297
      %v1394 = vpack.c.bf16 %v1298, %v1298
      %v1395 = vpack.c.bf16 %v1299, %v1299
      %v1396 = vpack.c.bf16 %v1300, %v1300
      %v1397 = vpack.c.bf16 %v1301, %v1301
      %v1398 = vpack.c.bf16 %v1302, %v1302
      %v1399 = vpack.c.bf16 %v1303, %v1303
      %v1400 = vpack.c.bf16 %v1304, %v1304
      %v1401 = vpack.c.bf16 %v1305, %v1305
      %v1402 = vpack.c.bf16 %v1306, %v1306
      %v1403 = vpack.c.bf16 %v1307, %v1307
      %v1404 = vpack.c.bf16 %v1308, %v1308
      %v1405 = vpack.c.bf16 %v1309, %v1309
      %v1406 = vpack.c.bf16 %v1310, %v1310
      %v1407 = vpack.c.bf16 %v1311, %v1311
      %v1408 = vpack.c.bf16 %v1312, %v1312
      %v1409 = vpack.c.bf16 %v1313, %v1313
      %v1410 = vpack.c.bf16 %v1314, %v1314
      %v1411 = vpack.c.bf16 %v1315, %v1315
      %v1412 = vpack.c.bf16 %v1316, %v1316
      %v1413 = vpack.c.bf16 %v1317, %v1317
      %v1414 = vpack.c.bf16 %v1318, %v1318
      %v1415 = vpack.c.bf16 %v1319, %v1319
      %v1416 = vpack.c.bf16 %v1320, %v1320
      %v1417 = vpack.c.bf16 %v1321, %v1321
      %v1418 = vpack.c.bf16 %v1322, %v1322
      %v1419 = vpack.c.bf16 %v1323, %v1323
      %v1420 = vpack.c.bf16 %v1324, %v1324
      %v1421 = vpack.c.bf16 %v1325, %v1325
      %v1432 = vunpack.c.l.b16 %v1326
      %v1433 = vunpack.c.l.b16 %v1327
      %v1434 = vunpack.c.l.b16 %v1328
      %v1435 = vunpack.c.l.b16 %v1329
      %v1436 = vunpack.c.l.b16 %v1330
      %v1437 = vunpack.c.l.b16 %v1331
      %v1438 = vunpack.c.l.b16 %v1332
      %v1439 = vunpack.c.l.b16 %v1333
      %v1440 = vunpack.c.l.b16 %v1334
      %v1441 = vunpack.c.l.b16 %v1335
      %v1442 = vpack.c.b16 %v1433, %v1432
      %v1443 = vpack.c.b16 %v1435, %v1434
      %v1444 = vpack.c.b16 %v1437, %v1436
      %v1445 = vpack.c.b16 %v1439, %v1438
      %v1446 = vpack.c.b16 %v1441, %v1440
      %v1457 = vunpack.c.l.b16 %v1374
      %v1458 = vunpack.c.l.b16 %v1375
      %v1459 = vunpack.c.l.b16 %v1376
      %v1460 = vunpack.c.l.b16 %v1377
      %v1461 = vunpack.c.l.b16 %v1378
      %v1462 = vunpack.c.l.b16 %v1379
      %v1463 = vunpack.c.l.b16 %v1380
      %v1464 = vunpack.c.l.b16 %v1381
      %v1465 = vunpack.c.l.b16 %v1382
      %v1466 = vunpack.c.l.b16 %v1383
      %v1467 = vpack.c.b16 %v1458, %v1457
      %v1468 = vpack.c.b16 %v1460, %v1459
      %v1469 = vpack.c.b16 %v1462, %v1461
      %v1470 = vpack.c.b16 %v1464, %v1463
      %v1471 = vpack.c.b16 %v1466, %v1465
      %v1472 = vld [vmem:[%s4] sm:$0xf]
      %v1473 = vld [vmem:[%s4 + $0x4] sm:$0xf]
      %v1474 = vld [vmem:[%s4 + $0x8] sm:$0xf]
      %v1475 = vld [vmem:[%s4 + $0xc] sm:$0xf]
      %v1487 = vunpack.c.l.b16 %v1338
      %v1488 = vunpack.c.l.b16 %v1339
      %v1489 = vunpack.c.l.b16 %v1340
      %v1490 = vunpack.c.l.b16 %v1341
      %v1491 = vunpack.c.l.b16 %v1342
      %v1492 = vunpack.c.l.b16 %v1343
      %v1493 = vunpack.c.l.b16 %v1344
      %v1494 = vunpack.c.l.b16 %v1345
      %v1495 = vunpack.c.l.b16 %v1346
      %v1496 = vunpack.c.l.b16 %v1347
      %v1497 = vunpack.c.l.b16 %v1348
      %v1498 = vpack.c.b16 %v1488, %v1487
      %v1499 = vpack.c.b16 %v1490, %v1489
      %v1500 = vpack.c.b16 %v1492, %v1491
      %v1501 = vpack.c.b16 %v1494, %v1493
      %v1502 = vpack.c.b16 %v1496, %v1495
      %v1503 = vpack.c.b16 %v1497, %v1497
      %vm1504 = vcmask 1045504
      %v1505 = vrot.slane %v1498, 2
      %v1506 = vrot.slane %v1499, 2
      %v1507 = vsel %vm1504, %v1505, %v1506
      %v1508 = vrot.slane %v1500, 2
      %v1509 = vsel %vm1504, %v1506, %v1508
      %v1510 = vrot.slane %v1501, 2
      %v1511 = vsel %vm1504, %v1508, %v1510
      %v1512 = vrot.slane %v1502, 2
      %v1513 = vsel %vm1504, %v1510, %v1512
      %v1514 = vrot.slane %v1503, 2
      %v1515 = vsel %vm1504, %v1512, %v1514
      %v1527 = vunpack.c.l.b16 %v1386
      %v1528 = vunpack.c.l.b16 %v1387
      %v1529 = vunpack.c.l.b16 %v1388
      %v1530 = vunpack.c.l.b16 %v1389
      %v1531 = vunpack.c.l.b16 %v1390
      %v1532 = vunpack.c.l.b16 %v1391
      %v1533 = vunpack.c.l.b16 %v1392
      %v1534 = vunpack.c.l.b16 %v1393
      %v1535 = vunpack.c.l.b16 %v1394
      %v1536 = vunpack.c.l.b16 %v1395
      %v1537 = vunpack.c.l.b16 %v1396
      %v1538 = vpack.c.b16 %v1528, %v1527
      %v1539 = vpack.c.b16 %v1530, %v1529
      %v1540 = vpack.c.b16 %v1532, %v1531
      %v1541 = vpack.c.b16 %v1534, %v1533
      %v1542 = vpack.c.b16 %v1536, %v1535
      %v1543 = vpack.c.b16 %v1537, %v1537
      %v1544 = vrot.slane %v1538, 2
      %v1545 = vrot.slane %v1539, 2
      %v1546 = vsel %vm1504, %v1544, %v1545
      %v1547 = vrot.slane %v1540, 2
      %v1548 = vsel %vm1504, %v1545, %v1547
      %v1549 = vrot.slane %v1541, 2
      %v1550 = vsel %vm1504, %v1547, %v1549
      %v1551 = vrot.slane %v1542, 2
      %v1552 = vsel %vm1504, %v1549, %v1551
      %v1553 = vrot.slane %v1543, 2
      %v1554 = vsel %vm1504, %v1551, %v1553
      %s1555 = scalar_lea.vmem %s4, 16
      %v1556 = vld [vmem:[%s1555] sm:$0xf]
      %v1557 = vld [vmem:[%s1555 + $0x4] sm:$0xf]
      %v1558 = vld [vmem:[%s1555 + $0x8] sm:$0xf]
      %v1559 = vld [vmem:[%s1555 + $0xc] sm:$0xf]
      %v1564 = vunpack.c.l.b16 %v1556
      %v1565 = vunpack.c.l.b16 %v1557
      %v1566 = vunpack.c.l.b16 %v1558
      %v1567 = vunpack.c.l.b16 %v1559
      %v1568 = vpack.c.b16 %v1565, %v1564
      %v1569 = vpack.c.b16 %v1567, %v1566
      %vm1572 = vcmask 261120
      %v1574 = vsel %vm1572, %v1507, 0
      %v1577 = vsel %vm1572, %v1509, 0
      %v1580 = vsel %vm1572, %v1511, 0
      %v1583 = vsel %vm1572, %v1513, 0
      %v1586 = vsel %vm1572, %v1515, 0
      %v1589 = vsel %vm1572, %v1546, 0
      %v1592 = vsel %vm1572, %v1548, 0
      %v1595 = vsel %vm1572, %v1550, 0
      %v1598 = vsel %vm1572, %v1552, 0
      %v1601 = vsel %vm1572, %v1554, 0
      %1603 = vmatpush.bf16.msra.mxu0 0
      %1604 = vmatpush.bf16.msra.mxu0 0
      %1605 = vmatpush.bf16.msra.mxu0 0
      %1606 = vmatpush.bf16.msra.mxu0 0
      %1607 = vmatpush.bf16.msra.mxu0 0
      %1608 = vmatpush.bf16.msra.mxu0 0
      %1609 = vmatpush.bf16.msra.mxu0 %v1569
      %1610 = vmatpush.bf16.msra.mxu0 %v1568
      %1611 = vmatmul.bf16.gmra.mxu0 %v1574
      %v1612 = vpop.f32.mrf.mxu0
      %v1613 = vadd.f32 0.0, %v1612
      %v1614 = vpop.f32.mrf.mxu0
      %v1615 = vadd.f32 0.0, %v1614
      %1616 = vmatmul.bf16.gmra.mxu0 %v1577
      %v1617 = vpop.f32.mrf.mxu0
      %v1618 = vadd.f32 0.0, %v1617
      %v1619 = vpop.f32.mrf.mxu0
      %v1620 = vadd.f32 0.0, %v1619
      %1621 = vmatmul.bf16.gmra.mxu0 %v1580
      %v1622 = vpop.f32.mrf.mxu0
      %v1623 = vadd.f32 0.0, %v1622
      %v1624 = vpop.f32.mrf.mxu0
      %v1625 = vadd.f32 0.0, %v1624
      %1626 = vmatmul.bf16.gmra.mxu0 %v1583
      %v1627 = vpop.f32.mrf.mxu0
      %v1628 = vadd.f32 0.0, %v1627
      %v1629 = vpop.f32.mrf.mxu0
      %v1630 = vadd.f32 0.0, %v1629
      %1631 = vmatmul.bf16.gmra.mxu0 %v1586
      %v1632 = vpop.f32.mrf.mxu0
      %v1633 = vadd.f32 0.0, %v1632
      %v1634 = vpop.f32.mrf.mxu0
      %v1635 = vadd.f32 0.0, %v1634
      %1636 = vmatmul.bf16.gmra.mxu0 %v1589
      %v1637 = vpop.f32.mrf.mxu0
      %v1638 = vadd.f32 0.0, %v1637
      %v1639 = vpop.f32.mrf.mxu0
      %v1640 = vadd.f32 0.0, %v1639
      %1641 = vmatmul.bf16.gmra.mxu0 %v1592
      %v1642 = vpop.f32.mrf.mxu0
      %v1643 = vadd.f32 0.0, %v1642
      %v1644 = vpop.f32.mrf.mxu0
      %v1645 = vadd.f32 0.0, %v1644
      %1646 = vmatmul.bf16.gmra.mxu0 %v1595
      %v1647 = vpop.f32.mrf.mxu0
      %v1648 = vadd.f32 0.0, %v1647
      %v1649 = vpop.f32.mrf.mxu0
      %v1650 = vadd.f32 0.0, %v1649
      %1651 = vmatmul.bf16.gmra.mxu0 %v1598
      %v1652 = vpop.f32.mrf.mxu0
      %v1653 = vadd.f32 0.0, %v1652
      %v1654 = vpop.f32.mrf.mxu0
      %v1655 = vadd.f32 0.0, %v1654
      %1656 = vmatmul.bf16.gmra.mxu0 %v1601
      %v1657 = vpop.f32.mrf.mxu0
      %v1658 = vadd.f32 0.0, %v1657
      %v1659 = vpop.f32.mrf.mxu0
      %v1660 = vadd.f32 0.0, %v1659
      %1661 = vdwg.mxu0
      %v1666 = vunpack.c.l.b16 %v1472
      %v1667 = vunpack.c.l.b16 %v1473
      %v1668 = vunpack.c.l.b16 %v1474
      %v1669 = vunpack.c.l.b16 %v1475
      %v1670 = vpack.c.b16 %v1667, %v1666
      %v1671 = vpack.c.b16 %v1669, %v1668
      %v1675 = vsel %vm1572, %v1442, 0
      %v1678 = vsel %vm1572, %v1443, 0
      %v1681 = vsel %vm1572, %v1444, 0
      %v1684 = vsel %vm1572, %v1445, 0
      %v1687 = vsel %vm1572, %v1446, 0
      %v1690 = vsel %vm1572, %v1467, 0
      %v1693 = vsel %vm1572, %v1468, 0
      %v1696 = vsel %vm1572, %v1469, 0
      %v1699 = vsel %vm1572, %v1470, 0
      %v1702 = vsel %vm1572, %v1471, 0
      %1704 = vmatpush.bf16.msra.mxu0 0
      %1705 = vmatpush.bf16.msra.mxu0 0
      %1706 = vmatpush.bf16.msra.mxu0 0
      %1707 = vmatpush.bf16.msra.mxu0 0
      %1708 = vmatpush.bf16.msra.mxu0 0
      %1709 = vmatpush.bf16.msra.mxu0 0
      %1710 = vmatpush.bf16.msra.mxu0 %v1671
      %1711 = vmatpush.bf16.msra.mxu0 %v1670
      %1712 = vmatmul.bf16.gmra.mxu0 %v1675
      %v1713 = vpop.f32.mrf.mxu0
      %v1714 = vadd.f32 %v1613, %v1713
      %v1715 = vpop.f32.mrf.mxu0
      %v1716 = vadd.f32 %v1615, %v1715
      %1717 = vmatmul.bf16.gmra.mxu0 %v1678
      %v1718 = vpop.f32.mrf.mxu0
      %v1719 = vadd.f32 %v1618, %v1718
      %v1720 = vpop.f32.mrf.mxu0
      %v1721 = vadd.f32 %v1620, %v1720
      %1722 = vmatmul.bf16.gmra.mxu0 %v1681
      %v1723 = vpop.f32.mrf.mxu0
      %v1724 = vadd.f32 %v1623, %v1723
      %v1725 = vpop.f32.mrf.mxu0
      %v1726 = vadd.f32 %v1625, %v1725
      %1727 = vmatmul.bf16.gmra.mxu0 %v1684
      %v1728 = vpop.f32.mrf.mxu0
      %v1729 = vadd.f32 %v1628, %v1728
      %v1730 = vpop.f32.mrf.mxu0
      %v1731 = vadd.f32 %v1630, %v1730
      %1732 = vmatmul.bf16.gmra.mxu0 %v1687
      %v1733 = vpop.f32.mrf.mxu0
      %v1734 = vadd.f32 %v1633, %v1733
      %v1735 = vpop.f32.mrf.mxu0
      %v1736 = vadd.f32 %v1635, %v1735
      %1737 = vmatmul.bf16.gmra.mxu0 %v1690
      %v1738 = vpop.f32.mrf.mxu0
      %v1739 = vadd.f32 %v1638, %v1738
      %v1740 = vpop.f32.mrf.mxu0
      %v1741 = vadd.f32 %v1640, %v1740
      %1742 = vmatmul.bf16.gmra.mxu0 %v1693
      %v1743 = vpop.f32.mrf.mxu0
      %v1744 = vadd.f32 %v1643, %v1743
      %v1745 = vpop.f32.mrf.mxu0
      %v1746 = vadd.f32 %v1645, %v1745
      %1747 = vmatmul.bf16.gmra.mxu0 %v1696
      %v1748 = vpop.f32.mrf.mxu0
      %v1749 = vadd.f32 %v1648, %v1748
      %v1750 = vpop.f32.mrf.mxu0
      %v1751 = vadd.f32 %v1650, %v1750
      %1752 = vmatmul.bf16.gmra.mxu0 %v1699
      %v1753 = vpop.f32.mrf.mxu0
      %v1754 = vadd.f32 %v1653, %v1753
      %v1755 = vpop.f32.mrf.mxu0
      %v1756 = vadd.f32 %v1655, %v1755
      %1757 = vmatmul.bf16.gmra.mxu0 %v1702
      %v1758 = vpop.f32.mrf.mxu0
      %v1759 = vadd.f32 %v1658, %v1758
      %v1760 = vpop.f32.mrf.mxu0
      %v1761 = vadd.f32 %v1660, %v1760
      %1762 = vdwg.mxu0
      %v1764 = vunpack.c.l.b16 %v1336
      %v1765 = vpack.c.b16 %v1764, %v1764
      %vm1766 = vsmask.f32 7424
      %v1767 = vshrl.u32 %v1442, 16
      %v1769 = vshll.u32 %v1442, 16
      %v1771 = vrot.slane %v1769, 1
      %v1772 = vor.u32 %v1767, %v1771
      %v1773 = vshll.u32 %v1443, 16
      %v1775 = vrot.slane %v1773, 1
      %v1776 = vsel %vm1766, %v1772, %v1775
      %v1777 = vshrl.u32 %v1443, 16
      %v1779 = vor.u32 %v1777, %v1775
      %v1780 = vshll.u32 %v1444, 16
      %v1782 = vrot.slane %v1780, 1
      %v1783 = vsel %vm1766, %v1779, %v1782
      %v1784 = vshrl.u32 %v1444, 16
      %v1786 = vor.u32 %v1784, %v1782
      %v1787 = vshll.u32 %v1445, 16
      %v1789 = vrot.slane %v1787, 1
      %v1790 = vsel %vm1766, %v1786, %v1789
      %v1791 = vshrl.u32 %v1445, 16
      %v1793 = vor.u32 %v1791, %v1789
      %v1794 = vshll.u32 %v1446, 16
      %v1796 = vrot.slane %v1794, 1
      %v1797 = vsel %vm1766, %v1793, %v1796
      %v1798 = vshrl.u32 %v1446, 16
      %v1800 = vor.u32 %v1798, %v1796
      %v1802 = vshll.u32 %v1765, 16
      %v1804 = vrot.slane %v1802, 1
      %v1805 = vsel %vm1766, %v1800, %v1804
      %v1807 = vunpack.c.l.b16 %v1384
      %v1808 = vpack.c.b16 %v1807, %v1807
      %v1809 = vshrl.u32 %v1467, 16
      %v1811 = vshll.u32 %v1467, 16
      %v1813 = vrot.slane %v1811, 1
      %v1814 = vor.u32 %v1809, %v1813
      %v1815 = vshll.u32 %v1468, 16
      %v1817 = vrot.slane %v1815, 1
      %v1818 = vsel %vm1766, %v1814, %v1817
      %v1819 = vshrl.u32 %v1468, 16
      %v1821 = vor.u32 %v1819, %v1817
      %v1822 = vshll.u32 %v1469, 16
      %v1824 = vrot.slane %v1822, 1
      %v1825 = vsel %vm1766, %v1821, %v1824
      %v1826 = vshrl.u32 %v1469, 16
      %v1828 = vor.u32 %v1826, %v1824
      %v1829 = vshll.u32 %v1470, 16
      %v1831 = vrot.slane %v1829, 1
      %v1832 = vsel %vm1766, %v1828, %v1831
      %v1833 = vshrl.u32 %v1470, 16
      %v1835 = vor.u32 %v1833, %v1831
      %v1836 = vshll.u32 %v1471, 16
      %v1838 = vrot.slane %v1836, 1
      %v1839 = vsel %vm1766, %v1835, %v1838
      %v1840 = vshrl.u32 %v1471, 16
      %v1842 = vor.u32 %v1840, %v1838
      %v1844 = vshll.u32 %v1808, 16
      %v1846 = vrot.slane %v1844, 1
      %v1847 = vsel %vm1766, %v1842, %v1846
      %s1848 = scalar_lea.vmem %s4, 32
      %v1849 = vld [vmem:[%s1848] sm:$0xf]
      %v1850 = vld [vmem:[%s1848 + $0x4] sm:$0xf]
      %v1851 = vld [vmem:[%s1848 + $0x8] sm:$0xf]
      %v1852 = vld [vmem:[%s1848 + $0xc] sm:$0xf]
      %v1857 = vunpack.c.l.b16 %v1849
      %v1858 = vunpack.c.l.b16 %v1850
      %v1859 = vunpack.c.l.b16 %v1851
      %v1860 = vunpack.c.l.b16 %v1852
      %v1861 = vpack.c.b16 %v1858, %v1857
      %v1862 = vpack.c.b16 %v1860, %v1859
      %v1866 = vsel %vm1572, %v1776, 0
      %v1869 = vsel %vm1572, %v1783, 0
      %v1872 = vsel %vm1572, %v1790, 0
      %v1875 = vsel %vm1572, %v1797, 0
      %v1878 = vsel %vm1572, %v1805, 0
      %v1881 = vsel %vm1572, %v1818, 0
      %v1884 = vsel %vm1572, %v1825, 0
      %v1887 = vsel %vm1572, %v1832, 0
      %v1890 = vsel %vm1572, %v1839, 0
      %v1893 = vsel %vm1572, %v1847, 0
      %1895 = vmatpush.bf16.msra.mxu0 0
      %1896 = vmatpush.bf16.msra.mxu0 0
      %1897 = vmatpush.bf16.msra.mxu0 0
      %1898 = vmatpush.bf16.msra.mxu0 0
      %1899 = vmatpush.bf16.msra.mxu0 0
      %1900 = vmatpush.bf16.msra.mxu0 0
      %1901 = vmatpush.bf16.msra.mxu0 %v1862
      %1902 = vmatpush.bf16.msra.mxu0 %v1861
      %1903 = vmatmul.bf16.gmra.mxu0 %v1866
      %v1904 = vpop.f32.mrf.mxu0
      %v1905 = vadd.f32 0.0, %v1904
      %v1906 = vpop.f32.mrf.mxu0
      %v1907 = vadd.f32 0.0, %v1906
      %1908 = vmatmul.bf16.gmra.mxu0 %v1869
      %v1909 = vpop.f32.mrf.mxu0
      %v1910 = vadd.f32 0.0, %v1909
      %v1911 = vpop.f32.mrf.mxu0
      %v1912 = vadd.f32 0.0, %v1911
      %1913 = vmatmul.bf16.gmra.mxu0 %v1872
      %v1914 = vpop.f32.mrf.mxu0
      %v1915 = vadd.f32 0.0, %v1914
      %v1916 = vpop.f32.mrf.mxu0
      %v1917 = vadd.f32 0.0, %v1916
      %1918 = vmatmul.bf16.gmra.mxu0 %v1875
      %v1919 = vpop.f32.mrf.mxu0
      %v1920 = vadd.f32 0.0, %v1919
      %v1921 = vpop.f32.mrf.mxu0
      %v1922 = vadd.f32 0.0, %v1921
      %1923 = vmatmul.bf16.gmra.mxu0 %v1878
      %v1924 = vpop.f32.mrf.mxu0
      %v1925 = vadd.f32 0.0, %v1924
      %v1926 = vpop.f32.mrf.mxu0
      %v1927 = vadd.f32 0.0, %v1926
      %1928 = vmatmul.bf16.gmra.mxu0 %v1881
      %v1929 = vpop.f32.mrf.mxu0
      %v1930 = vadd.f32 0.0, %v1929
      %v1931 = vpop.f32.mrf.mxu0
      %v1932 = vadd.f32 0.0, %v1931
      %1933 = vmatmul.bf16.gmra.mxu0 %v1884
      %v1934 = vpop.f32.mrf.mxu0
      %v1935 = vadd.f32 0.0, %v1934
      %v1936 = vpop.f32.mrf.mxu0
      %v1937 = vadd.f32 0.0, %v1936
      %1938 = vmatmul.bf16.gmra.mxu0 %v1887
      %v1939 = vpop.f32.mrf.mxu0
      %v1940 = vadd.f32 0.0, %v1939
      %v1941 = vpop.f32.mrf.mxu0
      %v1942 = vadd.f32 0.0, %v1941
      %1943 = vmatmul.bf16.gmra.mxu0 %v1890
      %v1944 = vpop.f32.mrf.mxu0
      %v1945 = vadd.f32 0.0, %v1944
      %v1946 = vpop.f32.mrf.mxu0
      %v1947 = vadd.f32 0.0, %v1946
      %1948 = vmatmul.bf16.gmra.mxu0 %v1893
      %v1949 = vpop.f32.mrf.mxu0
      %v1950 = vadd.f32 0.0, %v1949
      %v1951 = vpop.f32.mrf.mxu0
      %v1952 = vadd.f32 0.0, %v1951
      %1953 = vdwg.mxu0
      %v1954 = vadd.f32 %v1714, %v1905
      %v1955 = vadd.f32 %v1716, %v1907
      %v1956 = vadd.f32 %v1719, %v1910
      %v1957 = vadd.f32 %v1721, %v1912
      %v1958 = vadd.f32 %v1724, %v1915
      %v1959 = vadd.f32 %v1726, %v1917
      %v1960 = vadd.f32 %v1729, %v1920
      %v1961 = vadd.f32 %v1731, %v1922
      %v1962 = vadd.f32 %v1734, %v1925
      %v1963 = vadd.f32 %v1736, %v1927
      %v1964 = vadd.f32 %v1739, %v1930
      %v1965 = vadd.f32 %v1741, %v1932
      %v1966 = vadd.f32 %v1744, %v1935
      %v1967 = vadd.f32 %v1746, %v1937
      %v1968 = vadd.f32 %v1749, %v1940
      %v1969 = vadd.f32 %v1751, %v1942
      %v1970 = vadd.f32 %v1754, %v1945
      %v1971 = vadd.f32 %v1756, %v1947
      %v1972 = vadd.f32 %v1759, %v1950
      %v1973 = vadd.f32 %v1761, %v1952
      %vm1974 = vsmask.f32 5376
      %v1976 = vshrl.u32 %v1498, 16
      %v1978 = vrot.slane %v1976, 2
      %v1979 = vshll.u32 %v1498, 16
      %v1981 = vrot.slane %v1979, 3
      %v1982 = vor.u32 %v1978, %v1981
      %v1984 = vshrl.u32 %v1499, 16
      %v1986 = vrot.slane %v1984, 2
      %v1987 = vshll.u32 %v1499, 16
      %v1989 = vrot.slane %v1987, 3
      %v1990 = vor.u32 %v1986, %v1989
      %v1991 = vsel %vm1974, %v1982, %v1990
      %v1993 = vshrl.u32 %v1500, 16
      %v1995 = vrot.slane %v1993, 2
      %v1996 = vshll.u32 %v1500, 16
      %v1998 = vrot.slane %v1996, 3
      %v1999 = vor.u32 %v1995, %v1998
      %v2000 = vsel %vm1974, %v1990, %v1999
      %v2002 = vshrl.u32 %v1501, 16
      %v2004 = vrot.slane %v2002, 2
      %v2005 = vshll.u32 %v1501, 16
      %v2007 = vrot.slane %v2005, 3
      %v2008 = vor.u32 %v2004, %v2007
      %v2009 = vsel %vm1974, %v1999, %v2008
      %v2011 = vshrl.u32 %v1502, 16
      %v2013 = vrot.slane %v2011, 2
      %v2014 = vshll.u32 %v1502, 16
      %v2016 = vrot.slane %v2014, 3
      %v2017 = vor.u32 %v2013, %v2016
      %v2018 = vsel %vm1974, %v2008, %v2017
      %v2020 = vshrl.u32 %v1503, 16
      %v2022 = vrot.slane %v2020, 2
      %v2023 = vshll.u32 %v1503, 16
      %v2025 = vrot.slane %v2023, 3
      %v2026 = vor.u32 %v2022, %v2025
      %v2027 = vsel %vm1974, %v2017, %v2026
      %v2029 = vshrl.u32 %v1538, 16
      %v2031 = vrot.slane %v2029, 2
      %v2032 = vshll.u32 %v1538, 16
      %v2034 = vrot.slane %v2032, 3
      %v2035 = vor.u32 %v2031, %v2034
      %v2037 = vshrl.u32 %v1539, 16
      %v2039 = vrot.slane %v2037, 2
      %v2040 = vshll.u32 %v1539, 16
      %v2042 = vrot.slane %v2040, 3
      %v2043 = vor.u32 %v2039, %v2042
      %v2044 = vsel %vm1974, %v2035, %v2043
      %v2046 = vshrl.u32 %v1540, 16
      %v2048 = vrot.slane %v2046, 2
      %v2049 = vshll.u32 %v1540, 16
      %v2051 = vrot.slane %v2049, 3
      %v2052 = vor.u32 %v2048, %v2051
      %v2053 = vsel %vm1974, %v2043, %v2052
      %v2055 = vshrl.u32 %v1541, 16
      %v2057 = vrot.slane %v2055, 2
      %v2058 = vshll.u32 %v1541, 16
      %v2060 = vrot.slane %v2058, 3
      %v2061 = vor.u32 %v2057, %v2060
      %v2062 = vsel %vm1974, %v2052, %v2061
      %v2064 = vshrl.u32 %v1542, 16
      %v2066 = vrot.slane %v2064, 2
      %v2067 = vshll.u32 %v1542, 16
      %v2069 = vrot.slane %v2067, 3
      %v2070 = vor.u32 %v2066, %v2069
      %v2071 = vsel %vm1974, %v2061, %v2070
      %v2073 = vshrl.u32 %v1543, 16
      %v2075 = vrot.slane %v2073, 2
      %v2076 = vshll.u32 %v1543, 16
      %v2078 = vrot.slane %v2076, 3
      %v2079 = vor.u32 %v2075, %v2078
      %v2080 = vsel %vm1974, %v2070, %v2079
      %s2081 = scalar_lea.vmem %s4, 48
      %v2082 = vld [vmem:[%s2081] sm:$0xf]
      %v2083 = vld [vmem:[%s2081 + $0x4] sm:$0xf]
      %v2084 = vld [vmem:[%s2081 + $0x8] sm:$0xf]
      %v2085 = vld [vmem:[%s2081 + $0xc] sm:$0xf]
      %v2090 = vunpack.c.l.b16 %v2082
      %v2091 = vunpack.c.l.b16 %v2083
      %v2092 = vunpack.c.l.b16 %v2084
      %v2093 = vunpack.c.l.b16 %v2085
      %v2094 = vpack.c.b16 %v2091, %v2090
      %v2095 = vpack.c.b16 %v2093, %v2092
      %v2099 = vsel %vm1572, %v1991, 0
      %v2102 = vsel %vm1572, %v2000, 0
      %v2105 = vsel %vm1572, %v2009, 0
      %v2108 = vsel %vm1572, %v2018, 0
      %v2111 = vsel %vm1572, %v2027, 0
      %v2114 = vsel %vm1572, %v2044, 0
      %v2117 = vsel %vm1572, %v2053, 0
      %v2120 = vsel %vm1572, %v2062, 0
      %v2123 = vsel %vm1572, %v2071, 0
      %v2126 = vsel %vm1572, %v2080, 0
      %2128 = vmatpush.bf16.msra.mxu0 0
      %2129 = vmatpush.bf16.msra.mxu0 0
      %2130 = vmatpush.bf16.msra.mxu0 0
      %2131 = vmatpush.bf16.msra.mxu0 0
      %2132 = vmatpush.bf16.msra.mxu0 0
      %2133 = vmatpush.bf16.msra.mxu0 0
      %2134 = vmatpush.bf16.msra.mxu0 %v2095
      %2135 = vmatpush.bf16.msra.mxu0 %v2094
      %2136 = vmatmul.bf16.gmra.mxu0 %v2099
      %v2137 = vpop.f32.mrf.mxu0
      %v2138 = vadd.f32 0.0, %v2137
      %v2139 = vpop.f32.mrf.mxu0
      %v2140 = vadd.f32 0.0, %v2139
      %2141 = vmatmul.bf16.gmra.mxu0 %v2102
      %v2142 = vpop.f32.mrf.mxu0
      %v2143 = vadd.f32 0.0, %v2142
      %v2144 = vpop.f32.mrf.mxu0
      %v2145 = vadd.f32 0.0, %v2144
      %2146 = vmatmul.bf16.gmra.mxu0 %v2105
      %v2147 = vpop.f32.mrf.mxu0
      %v2148 = vadd.f32 0.0, %v2147
      %v2149 = vpop.f32.mrf.mxu0
      %v2150 = vadd.f32 0.0, %v2149
      %2151 = vmatmul.bf16.gmra.mxu0 %v2108
      %v2152 = vpop.f32.mrf.mxu0
      %v2153 = vadd.f32 0.0, %v2152
      %v2154 = vpop.f32.mrf.mxu0
      %v2155 = vadd.f32 0.0, %v2154
      %2156 = vmatmul.bf16.gmra.mxu0 %v2111
      %v2157 = vpop.f32.mrf.mxu0
      %v2158 = vadd.f32 0.0, %v2157
      %v2159 = vpop.f32.mrf.mxu0
      %v2160 = vadd.f32 0.0, %v2159
      %2161 = vmatmul.bf16.gmra.mxu0 %v2114
      %v2162 = vpop.f32.mrf.mxu0
      %v2163 = vadd.f32 0.0, %v2162
      %v2164 = vpop.f32.mrf.mxu0
      %v2165 = vadd.f32 0.0, %v2164
      %2166 = vmatmul.bf16.gmra.mxu0 %v2117
      %v2167 = vpop.f32.mrf.mxu0
      %v2168 = vadd.f32 0.0, %v2167
      %v2169 = vpop.f32.mrf.mxu0
      %v2170 = vadd.f32 0.0, %v2169
      %2171 = vmatmul.bf16.gmra.mxu0 %v2120
      %v2172 = vpop.f32.mrf.mxu0
      %v2173 = vadd.f32 0.0, %v2172
      %v2174 = vpop.f32.mrf.mxu0
      %v2175 = vadd.f32 0.0, %v2174
      %2176 = vmatmul.bf16.gmra.mxu0 %v2123
      %v2177 = vpop.f32.mrf.mxu0
      %v2178 = vadd.f32 0.0, %v2177
      %v2179 = vpop.f32.mrf.mxu0
      %v2180 = vadd.f32 0.0, %v2179
      %2181 = vmatmul.bf16.gmra.mxu0 %v2126
      %v2182 = vpop.f32.mrf.mxu0
      %v2183 = vadd.f32 0.0, %v2182
      %v2184 = vpop.f32.mrf.mxu0
      %v2185 = vadd.f32 0.0, %v2184
      %2186 = vdwg.mxu0
      %v2187 = vadd.f32 %v1954, %v2138
      %v2188 = vadd.f32 %v1955, %v2140
      %v2189 = vadd.f32 %v1956, %v2143
      %v2190 = vadd.f32 %v1957, %v2145
      %v2191 = vadd.f32 %v1958, %v2148
      %v2192 = vadd.f32 %v1959, %v2150
      %v2193 = vadd.f32 %v1960, %v2153
      %v2194 = vadd.f32 %v1961, %v2155
      %v2195 = vadd.f32 %v1962, %v2158
      %v2196 = vadd.f32 %v1963, %v2160
      %v2197 = vadd.f32 %v1964, %v2163
      %v2198 = vadd.f32 %v1965, %v2165
      %v2199 = vadd.f32 %v1966, %v2168
      %v2200 = vadd.f32 %v1967, %v2170
      %v2201 = vadd.f32 %v1968, %v2173
      %v2202 = vadd.f32 %v1969, %v2175
      %v2203 = vadd.f32 %v1970, %v2178
      %v2204 = vadd.f32 %v1971, %v2180
      %v2205 = vadd.f32 %v1972, %v2183
      %v2206 = vadd.f32 %v1973, %v2185
      %v2217 = vunpack.c.l.b16 %v1350
      %v2218 = vunpack.c.l.b16 %v1351
      %v2219 = vunpack.c.l.b16 %v1352
      %v2220 = vunpack.c.l.b16 %v1353
      %v2221 = vunpack.c.l.b16 %v1354
      %v2222 = vunpack.c.l.b16 %v1355
      %v2223 = vunpack.c.l.b16 %v1356
      %v2224 = vunpack.c.l.b16 %v1357
      %v2225 = vunpack.c.l.b16 %v1358
      %v2226 = vunpack.c.l.b16 %v1359
      %v2227 = vpack.c.b16 %v2218, %v2217
      %v2228 = vpack.c.b16 %v2220, %v2219
      %v2229 = vpack.c.b16 %v2222, %v2221
      %v2230 = vpack.c.b16 %v2224, %v2223
      %v2231 = vpack.c.b16 %v2226, %v2225
      %v2242 = vunpack.c.l.b16 %v1398
      %v2243 = vunpack.c.l.b16 %v1399
      %v2244 = vunpack.c.l.b16 %v1400
      %v2245 = vunpack.c.l.b16 %v1401
      %v2246 = vunpack.c.l.b16 %v1402
      %v2247 = vunpack.c.l.b16 %v1403
      %v2248 = vunpack.c.l.b16 %v1404
      %v2249 = vunpack.c.l.b16 %v1405
      %v2250 = vunpack.c.l.b16 %v1406
      %v2251 = vunpack.c.l.b16 %v1407
      %v2252 = vpack.c.b16 %v2243, %v2242
      %v2253 = vpack.c.b16 %v2245, %v2244
      %v2254 = vpack.c.b16 %v2247, %v2246
      %v2255 = vpack.c.b16 %v2249, %v2248
      %v2256 = vpack.c.b16 %v2251, %v2250
      %s2257 = scalar_lea.vmem %s4, 64
      %v2258 = vld [vmem:[%s2257] sm:$0xf]
      %v2259 = vld [vmem:[%s2257 + $0x4] sm:$0xf]
      %v2260 = vld [vmem:[%s2257 + $0x8] sm:$0xf]
      %v2261 = vld [vmem:[%s2257 + $0xc] sm:$0xf]
      %v2266 = vunpack.c.l.b16 %v2258
      %v2267 = vunpack.c.l.b16 %v2259
      %v2268 = vunpack.c.l.b16 %v2260
      %v2269 = vunpack.c.l.b16 %v2261
      %v2270 = vpack.c.b16 %v2267, %v2266
      %v2271 = vpack.c.b16 %v2269, %v2268
      %v2275 = vsel %vm1572, %v2227, 0
      %v2278 = vsel %vm1572, %v2228, 0
      %v2281 = vsel %vm1572, %v2229, 0
      %v2284 = vsel %vm1572, %v2230, 0
      %v2287 = vsel %vm1572, %v2231, 0
      %v2290 = vsel %vm1572, %v2252, 0
      %v2293 = vsel %vm1572, %v2253, 0
      %v2296 = vsel %vm1572, %v2254, 0
      %v2299 = vsel %vm1572, %v2255, 0
      %v2302 = vsel %vm1572, %v2256, 0
      %2304 = vmatpush.bf16.msra.mxu0 0
      %2305 = vmatpush.bf16.msra.mxu0 0
      %2306 = vmatpush.bf16.msra.mxu0 0
      %2307 = vmatpush.bf16.msra.mxu0 0
      %2308 = vmatpush.bf16.msra.mxu0 0
      %2309 = vmatpush.bf16.msra.mxu0 0
      %2310 = vmatpush.bf16.msra.mxu0 %v2271
      %2311 = vmatpush.bf16.msra.mxu0 %v2270
      %2312 = vmatmul.bf16.gmra.mxu0 %v2275
      %v2313 = vpop.f32.mrf.mxu0
      %v2314 = vadd.f32 0.0, %v2313
      %v2315 = vpop.f32.mrf.mxu0
      %v2316 = vadd.f32 0.0, %v2315
      %2317 = vmatmul.bf16.gmra.mxu0 %v2278
      %v2318 = vpop.f32.mrf.mxu0
      %v2319 = vadd.f32 0.0, %v2318
      %v2320 = vpop.f32.mrf.mxu0
      %v2321 = vadd.f32 0.0, %v2320
      %2322 = vmatmul.bf16.gmra.mxu0 %v2281
      %v2323 = vpop.f32.mrf.mxu0
      %v2324 = vadd.f32 0.0, %v2323
      %v2325 = vpop.f32.mrf.mxu0
      %v2326 = vadd.f32 0.0, %v2325
      %2327 = vmatmul.bf16.gmra.mxu0 %v2284
      %v2328 = vpop.f32.mrf.mxu0
      %v2329 = vadd.f32 0.0, %v2328
      %v2330 = vpop.f32.mrf.mxu0
      %v2331 = vadd.f32 0.0, %v2330
      %2332 = vmatmul.bf16.gmra.mxu0 %v2287
      %v2333 = vpop.f32.mrf.mxu0
      %v2334 = vadd.f32 0.0, %v2333
      %v2335 = vpop.f32.mrf.mxu0
      %v2336 = vadd.f32 0.0, %v2335
      %2337 = vmatmul.bf16.gmra.mxu0 %v2290
      %v2338 = vpop.f32.mrf.mxu0
      %v2339 = vadd.f32 0.0, %v2338
      %v2340 = vpop.f32.mrf.mxu0
      %v2341 = vadd.f32 0.0, %v2340
      %2342 = vmatmul.bf16.gmra.mxu0 %v2293
      %v2343 = vpop.f32.mrf.mxu0
      %v2344 = vadd.f32 0.0, %v2343
      %v2345 = vpop.f32.mrf.mxu0
      %v2346 = vadd.f32 0.0, %v2345
      %2347 = vmatmul.bf16.gmra.mxu0 %v2296
      %v2348 = vpop.f32.mrf.mxu0
      %v2349 = vadd.f32 0.0, %v2348
      %v2350 = vpop.f32.mrf.mxu0
      %v2351 = vadd.f32 0.0, %v2350
      %2352 = vmatmul.bf16.gmra.mxu0 %v2299
      %v2353 = vpop.f32.mrf.mxu0
      %v2354 = vadd.f32 0.0, %v2353
      %v2355 = vpop.f32.mrf.mxu0
      %v2356 = vadd.f32 0.0, %v2355
      %2357 = vmatmul.bf16.gmra.mxu0 %v2302
      %v2358 = vpop.f32.mrf.mxu0
      %v2359 = vadd.f32 0.0, %v2358
      %v2360 = vpop.f32.mrf.mxu0
      %v2361 = vadd.f32 0.0, %v2360
      %2362 = vdwg.mxu0
      %v2363 = vadd.f32 %v2187, %v2314
      %v2364 = vadd.f32 %v2188, %v2316
      %v2365 = vadd.f32 %v2189, %v2319
      %v2366 = vadd.f32 %v2190, %v2321
      %v2367 = vadd.f32 %v2191, %v2324
      %v2368 = vadd.f32 %v2192, %v2326
      %v2369 = vadd.f32 %v2193, %v2329
      %v2370 = vadd.f32 %v2194, %v2331
      %v2371 = vadd.f32 %v2195, %v2334
      %v2372 = vadd.f32 %v2196, %v2336
      %v2373 = vadd.f32 %v2197, %v2339
      %v2374 = vadd.f32 %v2198, %v2341
      %v2375 = vadd.f32 %v2199, %v2344
      %v2376 = vadd.f32 %v2200, %v2346
      %v2377 = vadd.f32 %v2201, %v2349
      %v2378 = vadd.f32 %v2202, %v2351
      %v2379 = vadd.f32 %v2203, %v2354
      %v2380 = vadd.f32 %v2204, %v2356
      %v2381 = vadd.f32 %v2205, %v2359
      %v2382 = vadd.f32 %v2206, %v2361
      %v2394 = vunpack.c.l.b16 %v1362
      %v2395 = vunpack.c.l.b16 %v1363
      %v2396 = vunpack.c.l.b16 %v1364
      %v2397 = vunpack.c.l.b16 %v1365
      %v2398 = vunpack.c.l.b16 %v1366
      %v2399 = vunpack.c.l.b16 %v1367
      %v2400 = vunpack.c.l.b16 %v1368
      %v2401 = vunpack.c.l.b16 %v1369
      %v2402 = vunpack.c.l.b16 %v1370
      %v2403 = vunpack.c.l.b16 %v1371
      %v2404 = vunpack.c.l.b16 %v1372
      %v2405 = vpack.c.b16 %v2395, %v2394
      %v2406 = vpack.c.b16 %v2397, %v2396
      %v2407 = vpack.c.b16 %v2399, %v2398
      %v2408 = vpack.c.b16 %v2401, %v2400
      %v2409 = vpack.c.b16 %v2403, %v2402
      %v2410 = vpack.c.b16 %v2404, %v2404
      %v2411 = vrot.slane %v2405, 2
      %v2412 = vrot.slane %v2406, 2
      %v2413 = vsel %vm1504, %v2411, %v2412
      %v2414 = vrot.slane %v2407, 2
      %v2415 = vsel %vm1504, %v2412, %v2414
      %v2416 = vrot.slane %v2408, 2
      %v2417 = vsel %vm1504, %v2414, %v2416
      %v2418 = vrot.slane %v2409, 2
      %v2419 = vsel %vm1504, %v2416, %v2418
      %v2420 = vrot.slane %v2410, 2
      %v2421 = vsel %vm1504, %v2418, %v2420
      %v2433 = vunpack.c.l.b16 %v1410
      %v2434 = vunpack.c.l.b16 %v1411
      %v2435 = vunpack.c.l.b16 %v1412
      %v2436 = vunpack.c.l.b16 %v1413
      %v2437 = vunpack.c.l.b16 %v1414
      %v2438 = vunpack.c.l.b16 %v1415
      %v2439 = vunpack.c.l.b16 %v1416
      %v2440 = vunpack.c.l.b16 %v1417
      %v2441 = vunpack.c.l.b16 %v1418
      %v2442 = vunpack.c.l.b16 %v1419
      %v2443 = vunpack.c.l.b16 %v1420
      %v2444 = vpack.c.b16 %v2434, %v2433
      %v2445 = vpack.c.b16 %v2436, %v2435
      %v2446 = vpack.c.b16 %v2438, %v2437
      %v2447 = vpack.c.b16 %v2440, %v2439
      %v2448 = vpack.c.b16 %v2442, %v2441
      %v2449 = vpack.c.b16 %v2443, %v2443
      %v2450 = vrot.slane %v2444, 2
      %v2451 = vrot.slane %v2445, 2
      %v2452 = vsel %vm1504, %v2450, %v2451
      %v2453 = vrot.slane %v2446, 2
      %v2454 = vsel %vm1504, %v2451, %v2453
      %v2455 = vrot.slane %v2447, 2
      %v2456 = vsel %vm1504, %v2453, %v2455
      %v2457 = vrot.slane %v2448, 2
      %v2458 = vsel %vm1504, %v2455, %v2457
      %v2459 = vrot.slane %v2449, 2
      %v2460 = vsel %vm1504, %v2457, %v2459
      %s2461 = scalar_lea.vmem %s4, 80
      %v2462 = vld [vmem:[%s2461] sm:$0xf]
      %v2463 = vld [vmem:[%s2461 + $0x4] sm:$0xf]
      %v2464 = vld [vmem:[%s2461 + $0x8] sm:$0xf]
      %v2465 = vld [vmem:[%s2461 + $0xc] sm:$0xf]
      %v2470 = vunpack.c.l.b16 %v2462
      %v2471 = vunpack.c.l.b16 %v2463
      %v2472 = vunpack.c.l.b16 %v2464
      %v2473 = vunpack.c.l.b16 %v2465
      %v2474 = vpack.c.b16 %v2471, %v2470
      %v2475 = vpack.c.b16 %v2473, %v2472
      %v2479 = vsel %vm1572, %v2413, 0
      %v2482 = vsel %vm1572, %v2415, 0
      %v2485 = vsel %vm1572, %v2417, 0
      %v2488 = vsel %vm1572, %v2419, 0
      %v2491 = vsel %vm1572, %v2421, 0
      %v2494 = vsel %vm1572, %v2452, 0
      %v2497 = vsel %vm1572, %v2454, 0
      %v2500 = vsel %vm1572, %v2456, 0
      %v2503 = vsel %vm1572, %v2458, 0
      %v2506 = vsel %vm1572, %v2460, 0
      %2508 = vmatpush.bf16.msra.mxu0 0
      %2509 = vmatpush.bf16.msra.mxu0 0
      %2510 = vmatpush.bf16.msra.mxu0 0
      %2511 = vmatpush.bf16.msra.mxu0 0
      %2512 = vmatpush.bf16.msra.mxu0 0
      %2513 = vmatpush.bf16.msra.mxu0 0
      %2514 = vmatpush.bf16.msra.mxu0 %v2475
      %2515 = vmatpush.bf16.msra.mxu0 %v2474
      %2516 = vmatmul.bf16.gmra.mxu0 %v2479
      %v2517 = vpop.f32.mrf.mxu0
      %v2518 = vadd.f32 0.0, %v2517
      %v2519 = vpop.f32.mrf.mxu0
      %v2520 = vadd.f32 0.0, %v2519
      %2521 = vmatmul.bf16.gmra.mxu0 %v2482
      %v2522 = vpop.f32.mrf.mxu0
      %v2523 = vadd.f32 0.0, %v2522
      %v2524 = vpop.f32.mrf.mxu0
      %v2525 = vadd.f32 0.0, %v2524
      %2526 = vmatmul.bf16.gmra.mxu0 %v2485
      %v2527 = vpop.f32.mrf.mxu0
      %v2528 = vadd.f32 0.0, %v2527
      %v2529 = vpop.f32.mrf.mxu0
      %v2530 = vadd.f32 0.0, %v2529
      %2531 = vmatmul.bf16.gmra.mxu0 %v2488
      %v2532 = vpop.f32.mrf.mxu0
      %v2533 = vadd.f32 0.0, %v2532
      %v2534 = vpop.f32.mrf.mxu0
      %v2535 = vadd.f32 0.0, %v2534
      %2536 = vmatmul.bf16.gmra.mxu0 %v2491
      %v2537 = vpop.f32.mrf.mxu0
      %v2538 = vadd.f32 0.0, %v2537
      %v2539 = vpop.f32.mrf.mxu0
      %v2540 = vadd.f32 0.0, %v2539
      %2541 = vmatmul.bf16.gmra.mxu0 %v2494
      %v2542 = vpop.f32.mrf.mxu0
      %v2543 = vadd.f32 0.0, %v2542
      %v2544 = vpop.f32.mrf.mxu0
      %v2545 = vadd.f32 0.0, %v2544
      %2546 = vmatmul.bf16.gmra.mxu0 %v2497
      %v2547 = vpop.f32.mrf.mxu0
      %v2548 = vadd.f32 0.0, %v2547
      %v2549 = vpop.f32.mrf.mxu0
      %v2550 = vadd.f32 0.0, %v2549
      %2551 = vmatmul.bf16.gmra.mxu0 %v2500
      %v2552 = vpop.f32.mrf.mxu0
      %v2553 = vadd.f32 0.0, %v2552
      %v2554 = vpop.f32.mrf.mxu0
      %v2555 = vadd.f32 0.0, %v2554
      %2556 = vmatmul.bf16.gmra.mxu0 %v2503
      %v2557 = vpop.f32.mrf.mxu0
      %v2558 = vadd.f32 0.0, %v2557
      %v2559 = vpop.f32.mrf.mxu0
      %v2560 = vadd.f32 0.0, %v2559
      %2561 = vmatmul.bf16.gmra.mxu0 %v2506
      %v2562 = vpop.f32.mrf.mxu0
      %v2563 = vadd.f32 0.0, %v2562
      %v2564 = vpop.f32.mrf.mxu0
      %v2565 = vadd.f32 0.0, %v2564
      %2566 = vdwg.mxu0
      %v2567 = vadd.f32 %v2363, %v2518
      %v2568 = vadd.f32 %v2364, %v2520
      %v2569 = vadd.f32 %v2365, %v2523
      %v2570 = vadd.f32 %v2366, %v2525
      %v2571 = vadd.f32 %v2367, %v2528
      %v2572 = vadd.f32 %v2368, %v2530
      %v2573 = vadd.f32 %v2369, %v2533
      %v2574 = vadd.f32 %v2370, %v2535
      %v2575 = vadd.f32 %v2371, %v2538
      %v2576 = vadd.f32 %v2372, %v2540
      %v2577 = vadd.f32 %v2373, %v2543
      %v2578 = vadd.f32 %v2374, %v2545
      %v2579 = vadd.f32 %v2375, %v2548
      %v2580 = vadd.f32 %v2376, %v2550
      %v2581 = vadd.f32 %v2377, %v2553
      %v2582 = vadd.f32 %v2378, %v2555
      %v2583 = vadd.f32 %v2379, %v2558
      %v2584 = vadd.f32 %v2380, %v2560
      %v2585 = vadd.f32 %v2381, %v2563
      %v2586 = vadd.f32 %v2382, %v2565
      %v2588 = vunpack.c.l.b16 %v1360
      %v2589 = vpack.c.b16 %v2588, %v2588
      %v2590 = vshrl.u32 %v2227, 16
      %v2592 = vshll.u32 %v2227, 16
      %v2594 = vrot.slane %v2592, 1
      %v2595 = vor.u32 %v2590, %v2594
      %v2596 = vshll.u32 %v2228, 16
      %v2598 = vrot.slane %v2596, 1
      %v2599 = vsel %vm1766, %v2595, %v2598
      %v2600 = vshrl.u32 %v2228, 16
      %v2602 = vor.u32 %v2600, %v2598
      %v2603 = vshll.u32 %v2229, 16
      %v2605 = vrot.slane %v2603, 1
      %v2606 = vsel %vm1766, %v2602, %v2605
      %v2607 = vshrl.u32 %v2229, 16
      %v2609 = vor.u32 %v2607, %v2605
      %v2610 = vshll.u32 %v2230, 16
      %v2612 = vrot.slane %v2610, 1
      %v2613 = vsel %vm1766, %v2609, %v2612
      %v2614 = vshrl.u32 %v2230, 16
      %v2616 = vor.u32 %v2614, %v2612
      %v2617 = vshll.u32 %v2231, 16
      %v2619 = vrot.slane %v2617, 1
      %v2620 = vsel %vm1766, %v2616, %v2619
      %v2621 = vshrl.u32 %v2231, 16
      %v2623 = vor.u32 %v2621, %v2619
      %v2625 = vshll.u32 %v2589, 16
      %v2627 = vrot.slane %v2625, 1
      %v2628 = vsel %vm1766, %v2623, %v2627
      %v2630 = vunpack.c.l.b16 %v1408
      %v2631 = vpack.c.b16 %v2630, %v2630
      %v2632 = vshrl.u32 %v2252, 16
      %v2634 = vshll.u32 %v2252, 16
      %v2636 = vrot.slane %v2634, 1
      %v2637 = vor.u32 %v2632, %v2636
      %v2638 = vshll.u32 %v2253, 16
      %v2640 = vrot.slane %v2638, 1
      %v2641 = vsel %vm1766, %v2637, %v2640
      %v2642 = vshrl.u32 %v2253, 16
      %v2644 = vor.u32 %v2642, %v2640
      %v2645 = vshll.u32 %v2254, 16
      %v2647 = vrot.slane %v2645, 1
      %v2648 = vsel %vm1766, %v2644, %v2647
      %v2649 = vshrl.u32 %v2254, 16
      %v2651 = vor.u32 %v2649, %v2647
      %v2652 = vshll.u32 %v2255, 16
      %v2654 = vrot.slane %v2652, 1
      %v2655 = vsel %vm1766, %v2651, %v2654
      %v2656 = vshrl.u32 %v2255, 16
      %v2658 = vor.u32 %v2656, %v2654
      %v2659 = vshll.u32 %v2256, 16
      %v2661 = vrot.slane %v2659, 1
      %v2662 = vsel %vm1766, %v2658, %v2661
      %v2663 = vshrl.u32 %v2256, 16
      %v2665 = vor.u32 %v2663, %v2661
      %v2667 = vshll.u32 %v2631, 16
      %v2669 = vrot.slane %v2667, 1
      %v2670 = vsel %vm1766, %v2665, %v2669
      %s2671 = scalar_lea.vmem %s4, 96
      %v2672 = vld [vmem:[%s2671] sm:$0xf]
      %v2673 = vld [vmem:[%s2671 + $0x4] sm:$0xf]
      %v2674 = vld [vmem:[%s2671 + $0x8] sm:$0xf]
      %v2675 = vld [vmem:[%s2671 + $0xc] sm:$0xf]
      %v2680 = vunpack.c.l.b16 %v2672
      %v2681 = vunpack.c.l.b16 %v2673
      %v2682 = vunpack.c.l.b16 %v2674
      %v2683 = vunpack.c.l.b16 %v2675
      %v2684 = vpack.c.b16 %v2681, %v2680
      %v2685 = vpack.c.b16 %v2683, %v2682
      %v2689 = vsel %vm1572, %v2599, 0
      %v2692 = vsel %vm1572, %v2606, 0
      %v2695 = vsel %vm1572, %v2613, 0
      %v2698 = vsel %vm1572, %v2620, 0
      %v2701 = vsel %vm1572, %v2628, 0
      %v2704 = vsel %vm1572, %v2641, 0
      %v2707 = vsel %vm1572, %v2648, 0
      %v2710 = vsel %vm1572, %v2655, 0
      %v2713 = vsel %vm1572, %v2662, 0
      %v2716 = vsel %vm1572, %v2670, 0
      %2718 = vmatpush.bf16.msra.mxu0 0
      %2719 = vmatpush.bf16.msra.mxu0 0
      %2720 = vmatpush.bf16.msra.mxu0 0
      %2721 = vmatpush.bf16.msra.mxu0 0
      %2722 = vmatpush.bf16.msra.mxu0 0
      %2723 = vmatpush.bf16.msra.mxu0 0
      %2724 = vmatpush.bf16.msra.mxu0 %v2685
      %2725 = vmatpush.bf16.msra.mxu0 %v2684
      %2726 = vmatmul.bf16.gmra.mxu0 %v2689
      %v2727 = vpop.f32.mrf.mxu0
      %v2728 = vadd.f32 0.0, %v2727
      %v2729 = vpop.f32.mrf.mxu0
      %v2730 = vadd.f32 0.0, %v2729
      %2731 = vmatmul.bf16.gmra.mxu0 %v2692
      %v2732 = vpop.f32.mrf.mxu0
      %v2733 = vadd.f32 0.0, %v2732
      %v2734 = vpop.f32.mrf.mxu0
      %v2735 = vadd.f32 0.0, %v2734
      %2736 = vmatmul.bf16.gmra.mxu0 %v2695
      %v2737 = vpop.f32.mrf.mxu0
      %v2738 = vadd.f32 0.0, %v2737
      %v2739 = vpop.f32.mrf.mxu0
      %v2740 = vadd.f32 0.0, %v2739
      %2741 = vmatmul.bf16.gmra.mxu0 %v2698
      %v2742 = vpop.f32.mrf.mxu0
      %v2743 = vadd.f32 0.0, %v2742
      %v2744 = vpop.f32.mrf.mxu0
      %v2745 = vadd.f32 0.0, %v2744
      %2746 = vmatmul.bf16.gmra.mxu0 %v2701
      %v2747 = vpop.f32.mrf.mxu0
      %v2748 = vadd.f32 0.0, %v2747
      %v2749 = vpop.f32.mrf.mxu0
      %v2750 = vadd.f32 0.0, %v2749
      %2751 = vmatmul.bf16.gmra.mxu0 %v2704
      %v2752 = vpop.f32.mrf.mxu0
      %v2753 = vadd.f32 0.0, %v2752
      %v2754 = vpop.f32.mrf.mxu0
      %v2755 = vadd.f32 0.0, %v2754
      %2756 = vmatmul.bf16.gmra.mxu0 %v2707
      %v2757 = vpop.f32.mrf.mxu0
      %v2758 = vadd.f32 0.0, %v2757
      %v2759 = vpop.f32.mrf.mxu0
      %v2760 = vadd.f32 0.0, %v2759
      %2761 = vmatmul.bf16.gmra.mxu0 %v2710
      %v2762 = vpop.f32.mrf.mxu0
      %v2763 = vadd.f32 0.0, %v2762
      %v2764 = vpop.f32.mrf.mxu0
      %v2765 = vadd.f32 0.0, %v2764
      %2766 = vmatmul.bf16.gmra.mxu0 %v2713
      %v2767 = vpop.f32.mrf.mxu0
      %v2768 = vadd.f32 0.0, %v2767
      %v2769 = vpop.f32.mrf.mxu0
      %v2770 = vadd.f32 0.0, %v2769
      %2771 = vmatmul.bf16.gmra.mxu0 %v2716
      %v2772 = vpop.f32.mrf.mxu0
      %v2773 = vadd.f32 0.0, %v2772
      %v2774 = vpop.f32.mrf.mxu0
      %v2775 = vadd.f32 0.0, %v2774
      %2776 = vdwg.mxu0
      %v2777 = vadd.f32 %v2567, %v2728
      %v2778 = vadd.f32 %v2568, %v2730
      %v2779 = vadd.f32 %v2569, %v2733
      %v2780 = vadd.f32 %v2570, %v2735
      %v2781 = vadd.f32 %v2571, %v2738
      %v2782 = vadd.f32 %v2572, %v2740
      %v2783 = vadd.f32 %v2573, %v2743
      %v2784 = vadd.f32 %v2574, %v2745
      %v2785 = vadd.f32 %v2575, %v2748
      %v2786 = vadd.f32 %v2576, %v2750
      %v2787 = vadd.f32 %v2577, %v2753
      %v2788 = vadd.f32 %v2578, %v2755
      %v2789 = vadd.f32 %v2579, %v2758
      %v2790 = vadd.f32 %v2580, %v2760
      %v2791 = vadd.f32 %v2581, %v2763
      %v2792 = vadd.f32 %v2582, %v2765
      %v2793 = vadd.f32 %v2583, %v2768
      %v2794 = vadd.f32 %v2584, %v2770
      %v2795 = vadd.f32 %v2585, %v2773
      %v2796 = vadd.f32 %v2586, %v2775
      %v2798 = vshrl.u32 %v2405, 16
      %v2800 = vrot.slane %v2798, 2
      %v2801 = vshll.u32 %v2405, 16
      %v2803 = vrot.slane %v2801, 3
      %v2804 = vor.u32 %v2800, %v2803
      %v2806 = vshrl.u32 %v2406, 16
      %v2808 = vrot.slane %v2806, 2
      %v2809 = vshll.u32 %v2406, 16
      %v2811 = vrot.slane %v2809, 3
      %v2812 = vor.u32 %v2808, %v2811
      %v2813 = vsel %vm1974, %v2804, %v2812
      %v2815 = vshrl.u32 %v2407, 16
      %v2817 = vrot.slane %v2815, 2
      %v2818 = vshll.u32 %v2407, 16
      %v2820 = vrot.slane %v2818, 3
      %v2821 = vor.u32 %v2817, %v2820
      %v2822 = vsel %vm1974, %v2812, %v2821
      %v2824 = vshrl.u32 %v2408, 16
      %v2826 = vrot.slane %v2824, 2
      %v2827 = vshll.u32 %v2408, 16
      %v2829 = vrot.slane %v2827, 3
      %v2830 = vor.u32 %v2826, %v2829
      %v2831 = vsel %vm1974, %v2821, %v2830
      %v2833 = vshrl.u32 %v2409, 16
      %v2835 = vrot.slane %v2833, 2
      %v2836 = vshll.u32 %v2409, 16
      %v2838 = vrot.slane %v2836, 3
      %v2839 = vor.u32 %v2835, %v2838
      %v2840 = vsel %vm1974, %v2830, %v2839
      %v2842 = vshrl.u32 %v2410, 16
      %v2844 = vrot.slane %v2842, 2
      %v2845 = vshll.u32 %v2410, 16
      %v2847 = vrot.slane %v2845, 3
      %v2848 = vor.u32 %v2844, %v2847
      %v2849 = vsel %vm1974, %v2839, %v2848
      %v2851 = vshrl.u32 %v2444, 16
      %v2853 = vrot.slane %v2851, 2
      %v2854 = vshll.u32 %v2444, 16
      %v2856 = vrot.slane %v2854, 3
      %v2857 = vor.u32 %v2853, %v2856
      %v2859 = vshrl.u32 %v2445, 16
      %v2861 = vrot.slane %v2859, 2
      %v2862 = vshll.u32 %v2445, 16
      %v2864 = vrot.slane %v2862, 3
      %v2865 = vor.u32 %v2861, %v2864
      %v2866 = vsel %vm1974, %v2857, %v2865
      %v2868 = vshrl.u32 %v2446, 16
      %v2870 = vrot.slane %v2868, 2
      %v2871 = vshll.u32 %v2446, 16
      %v2873 = vrot.slane %v2871, 3
      %v2874 = vor.u32 %v2870, %v2873
      %v2875 = vsel %vm1974, %v2865, %v2874
      %v2877 = vshrl.u32 %v2447, 16
      %v2879 = vrot.slane %v2877, 2
      %v2880 = vshll.u32 %v2447, 16
      %v2882 = vrot.slane %v2880, 3
      %v2883 = vor.u32 %v2879, %v2882
      %v2884 = vsel %vm1974, %v2874, %v2883
      %v2886 = vshrl.u32 %v2448, 16
      %v2888 = vrot.slane %v2886, 2
      %v2889 = vshll.u32 %v2448, 16
      %v2891 = vrot.slane %v2889, 3
      %v2892 = vor.u32 %v2888, %v2891
      %v2893 = vsel %vm1974, %v2883, %v2892
      %v2895 = vshrl.u32 %v2449, 16
      %v2897 = vrot.slane %v2895, 2
      %v2898 = vshll.u32 %v2449, 16
      %v2900 = vrot.slane %v2898, 3
      %v2901 = vor.u32 %v2897, %v2900
      %v2902 = vsel %vm1974, %v2892, %v2901
      %s2903 = scalar_lea.vmem %s4, 112
      %v2904 = vld [vmem:[%s2903] sm:$0xf]
      %v2905 = vld [vmem:[%s2903 + $0x4] sm:$0xf]
      %v2906 = vld [vmem:[%s2903 + $0x8] sm:$0xf]
      %v2907 = vld [vmem:[%s2903 + $0xc] sm:$0xf]
      %v2912 = vunpack.c.l.b16 %v2904
      %v2913 = vunpack.c.l.b16 %v2905
      %v2914 = vunpack.c.l.b16 %v2906
      %v2915 = vunpack.c.l.b16 %v2907
      %v2916 = vpack.c.b16 %v2913, %v2912
      %v2917 = vpack.c.b16 %v2915, %v2914
      %v2921 = vsel %vm1572, %v2813, 0
      %v2924 = vsel %vm1572, %v2822, 0
      %v2927 = vsel %vm1572, %v2831, 0
      %v2930 = vsel %vm1572, %v2840, 0
      %v2933 = vsel %vm1572, %v2849, 0
      %v2936 = vsel %vm1572, %v2866, 0
      %v2939 = vsel %vm1572, %v2875, 0
      %v2942 = vsel %vm1572, %v2884, 0
      %v2945 = vsel %vm1572, %v2893, 0
      %v2948 = vsel %vm1572, %v2902, 0
      %2950 = vmatpush.bf16.msra.mxu0 0
      %2951 = vmatpush.bf16.msra.mxu0 0
      %2952 = vmatpush.bf16.msra.mxu0 0
      %2953 = vmatpush.bf16.msra.mxu0 0
      %2954 = vmatpush.bf16.msra.mxu0 0
      %2955 = vmatpush.bf16.msra.mxu0 0
      %2956 = vmatpush.bf16.msra.mxu0 %v2917
      %2957 = vmatpush.bf16.msra.mxu0 %v2916
      %2958 = vmatmul.bf16.gmra.mxu0 %v2921
      %v2959 = vpop.f32.mrf.mxu0
      %v2960 = vadd.f32 0.0, %v2959
      %v2961 = vpop.f32.mrf.mxu0
      %v2962 = vadd.f32 0.0, %v2961
      %2963 = vmatmul.bf16.gmra.mxu0 %v2924
      %v2964 = vpop.f32.mrf.mxu0
      %v2965 = vadd.f32 0.0, %v2964
      %v2966 = vpop.f32.mrf.mxu0
      %v2967 = vadd.f32 0.0, %v2966
      %2968 = vmatmul.bf16.gmra.mxu0 %v2927
      %v2969 = vpop.f32.mrf.mxu0
      %v2970 = vadd.f32 0.0, %v2969
      %v2971 = vpop.f32.mrf.mxu0
      %v2972 = vadd.f32 0.0, %v2971
      %2973 = vmatmul.bf16.gmra.mxu0 %v2930
      %v2974 = vpop.f32.mrf.mxu0
      %v2975 = vadd.f32 0.0, %v2974
      %v2976 = vpop.f32.mrf.mxu0
      %v2977 = vadd.f32 0.0, %v2976
      %2978 = vmatmul.bf16.gmra.mxu0 %v2933
      %v2979 = vpop.f32.mrf.mxu0
      %v2980 = vadd.f32 0.0, %v2979
      %v2981 = vpop.f32.mrf.mxu0
      %v2982 = vadd.f32 0.0, %v2981
      %2983 = vmatmul.bf16.gmra.mxu0 %v2936
      %v2984 = vpop.f32.mrf.mxu0
      %v2985 = vadd.f32 0.0, %v2984
      %v2986 = vpop.f32.mrf.mxu0
      %v2987 = vadd.f32 0.0, %v2986
      %2988 = vmatmul.bf16.gmra.mxu0 %v2939
      %v2989 = vpop.f32.mrf.mxu0
      %v2990 = vadd.f32 0.0, %v2989
      %v2991 = vpop.f32.mrf.mxu0
      %v2992 = vadd.f32 0.0, %v2991
      %2993 = vmatmul.bf16.gmra.mxu0 %v2942
      %v2994 = vpop.f32.mrf.mxu0
      %v2995 = vadd.f32 0.0, %v2994
      %v2996 = vpop.f32.mrf.mxu0
      %v2997 = vadd.f32 0.0, %v2996
      %2998 = vmatmul.bf16.gmra.mxu0 %v2945
      %v2999 = vpop.f32.mrf.mxu0
      %v3000 = vadd.f32 0.0, %v2999
      %v3001 = vpop.f32.mrf.mxu0
      %v3002 = vadd.f32 0.0, %v3001
      %3003 = vmatmul.bf16.gmra.mxu0 %v2948
      %v3004 = vpop.f32.mrf.mxu0
      %v3005 = vadd.f32 0.0, %v3004
      %v3006 = vpop.f32.mrf.mxu0
      %v3007 = vadd.f32 0.0, %v3006
      %3008 = vdwg.mxu0
      %v3009 = vadd.f32 %v2777, %v2960
      %v3010 = vadd.f32 %v2778, %v2962
      %v3011 = vadd.f32 %v2779, %v2965
      %v3012 = vadd.f32 %v2780, %v2967
      %v3013 = vadd.f32 %v2781, %v2970
      %v3014 = vadd.f32 %v2782, %v2972
      %v3015 = vadd.f32 %v2783, %v2975
      %v3016 = vadd.f32 %v2784, %v2977
      %v3017 = vadd.f32 %v2785, %v2980
      %v3018 = vadd.f32 %v2786, %v2982
      %v3019 = vadd.f32 %v2787, %v2985
      %v3020 = vadd.f32 %v2788, %v2987
      %v3021 = vadd.f32 %v2789, %v2990
      %v3022 = vadd.f32 %v2790, %v2992
      %v3023 = vadd.f32 %v2791, %v2995
      %v3024 = vadd.f32 %v2792, %v2997
      %v3025 = vadd.f32 %v2793, %v3000
      %v3026 = vadd.f32 %v2794, %v3002
      %v3027 = vadd.f32 %v2795, %v3005
      %v3028 = vadd.f32 %v2796, %v3007
      %v3030 = vunpack.c.l.b16 %v1337
      %v3031 = vpack.c.b16 %v1434, %v1433
      %v3032 = vpack.c.b16 %v1436, %v1435
      %v3033 = vpack.c.b16 %v1438, %v1437
      %v3034 = vpack.c.b16 %v1440, %v1439
      %v3035 = vpack.c.b16 %v1764, %v1441
      %v3036 = vpack.c.b16 %v3030, %v3030
      %vm3037 = vcmask 1046528
      %v3038 = vrot.slane %v3031, 1
      %v3039 = vrot.slane %v3032, 1
      %v3040 = vsel %vm3037, %v3038, %v3039
      %v3041 = vrot.slane %v3033, 1
      %v3042 = vsel %vm3037, %v3039, %v3041
      %v3043 = vrot.slane %v3034, 1
      %v3044 = vsel %vm3037, %v3041, %v3043
      %v3045 = vrot.slane %v3035, 1
      %v3046 = vsel %vm3037, %v3043, %v3045
      %v3047 = vrot.slane %v3036, 1
      %v3048 = vsel %vm3037, %v3045, %v3047
      %v3050 = vunpack.c.l.b16 %v1385
      %v3051 = vpack.c.b16 %v1459, %v1458
      %v3052 = vpack.c.b16 %v1461, %v1460
      %v3053 = vpack.c.b16 %v1463, %v1462
      %v3054 = vpack.c.b16 %v1465, %v1464
      %v3055 = vpack.c.b16 %v1807, %v1466
      %v3056 = vpack.c.b16 %v3050, %v3050
      %v3057 = vrot.slane %v3051, 1
      %v3058 = vrot.slane %v3052, 1
      %v3059 = vsel %vm3037, %v3057, %v3058
      %v3060 = vrot.slane %v3053, 1
      %v3061 = vsel %vm3037, %v3058, %v3060
      %v3062 = vrot.slane %v3054, 1
      %v3063 = vsel %vm3037, %v3060, %v3062
      %v3064 = vrot.slane %v3055, 1
      %v3065 = vsel %vm3037, %v3062, %v3064
      %v3066 = vrot.slane %v3056, 1
      %v3067 = vsel %vm3037, %v3064, %v3066
      %s3068 = scalar_lea.vmem %s4, 128
      %v3069 = vld [vmem:[%s3068] sm:$0xf]
      %v3070 = vld [vmem:[%s3068 + $0x4] sm:$0xf]
      %v3071 = vld [vmem:[%s3068 + $0x8] sm:$0xf]
      %v3072 = vld [vmem:[%s3068 + $0xc] sm:$0xf]
      %v3077 = vunpack.c.l.b16 %v3069
      %v3078 = vunpack.c.l.b16 %v3070
      %v3079 = vunpack.c.l.b16 %v3071
      %v3080 = vunpack.c.l.b16 %v3072
      %v3081 = vpack.c.b16 %v3078, %v3077
      %v3082 = vpack.c.b16 %v3080, %v3079
      %v3086 = vsel %vm1572, %v3040, 0
      %v3089 = vsel %vm1572, %v3042, 0
      %v3092 = vsel %vm1572, %v3044, 0
      %v3095 = vsel %vm1572, %v3046, 0
      %v3098 = vsel %vm1572, %v3048, 0
      %v3101 = vsel %vm1572, %v3059, 0
      %v3104 = vsel %vm1572, %v3061, 0
      %v3107 = vsel %vm1572, %v3063, 0
      %v3110 = vsel %vm1572, %v3065, 0
      %v3113 = vsel %vm1572, %v3067, 0
      %3115 = vmatpush.bf16.msra.mxu0 0
      %3116 = vmatpush.bf16.msra.mxu0 0
      %3117 = vmatpush.bf16.msra.mxu0 0
      %3118 = vmatpush.bf16.msra.mxu0 0
      %3119 = vmatpush.bf16.msra.mxu0 0
      %3120 = vmatpush.bf16.msra.mxu0 0
      %3121 = vmatpush.bf16.msra.mxu0 %v3082
      %3122 = vmatpush.bf16.msra.mxu0 %v3081
      %3123 = vmatmul.bf16.gmra.mxu0 %v3086
      %v3124 = vpop.f32.mrf.mxu0
      %v3125 = vadd.f32 0.0, %v3124
      %v3126 = vpop.f32.mrf.mxu0
      %v3127 = vadd.f32 0.0, %v3126
      %3128 = vmatmul.bf16.gmra.mxu0 %v3089
      %v3129 = vpop.f32.mrf.mxu0
      %v3130 = vadd.f32 0.0, %v3129
      %v3131 = vpop.f32.mrf.mxu0
      %v3132 = vadd.f32 0.0, %v3131
      %3133 = vmatmul.bf16.gmra.mxu0 %v3092
      %v3134 = vpop.f32.mrf.mxu0
      %v3135 = vadd.f32 0.0, %v3134
      %v3136 = vpop.f32.mrf.mxu0
      %v3137 = vadd.f32 0.0, %v3136
      %3138 = vmatmul.bf16.gmra.mxu0 %v3095
      %v3139 = vpop.f32.mrf.mxu0
      %v3140 = vadd.f32 0.0, %v3139
      %v3141 = vpop.f32.mrf.mxu0
      %v3142 = vadd.f32 0.0, %v3141
      %3143 = vmatmul.bf16.gmra.mxu0 %v3098
      %v3144 = vpop.f32.mrf.mxu0
      %v3145 = vadd.f32 0.0, %v3144
      %v3146 = vpop.f32.mrf.mxu0
      %v3147 = vadd.f32 0.0, %v3146
      %3148 = vmatmul.bf16.gmra.mxu0 %v3101
      %v3149 = vpop.f32.mrf.mxu0
      %v3150 = vadd.f32 0.0, %v3149
      %v3151 = vpop.f32.mrf.mxu0
      %v3152 = vadd.f32 0.0, %v3151
      %3153 = vmatmul.bf16.gmra.mxu0 %v3104
      %v3154 = vpop.f32.mrf.mxu0
      %v3155 = vadd.f32 0.0, %v3154
      %v3156 = vpop.f32.mrf.mxu0
      %v3157 = vadd.f32 0.0, %v3156
      %3158 = vmatmul.bf16.gmra.mxu0 %v3107
      %v3159 = vpop.f32.mrf.mxu0
      %v3160 = vadd.f32 0.0, %v3159
      %v3161 = vpop.f32.mrf.mxu0
      %v3162 = vadd.f32 0.0, %v3161
      %3163 = vmatmul.bf16.gmra.mxu0 %v3110
      %v3164 = vpop.f32.mrf.mxu0
      %v3165 = vadd.f32 0.0, %v3164
      %v3166 = vpop.f32.mrf.mxu0
      %v3167 = vadd.f32 0.0, %v3166
      %3168 = vmatmul.bf16.gmra.mxu0 %v3113
      %v3169 = vpop.f32.mrf.mxu0
      %v3170 = vadd.f32 0.0, %v3169
      %v3171 = vpop.f32.mrf.mxu0
      %v3172 = vadd.f32 0.0, %v3171
      %3173 = vdwg.mxu0
      %v3174 = vadd.f32 %v3009, %v3125
      %v3175 = vadd.f32 %v3010, %v3127
      %v3176 = vadd.f32 %v3011, %v3130
      %v3177 = vadd.f32 %v3012, %v3132
      %v3178 = vadd.f32 %v3013, %v3135
      %v3179 = vadd.f32 %v3014, %v3137
      %v3180 = vadd.f32 %v3015, %v3140
      %v3181 = vadd.f32 %v3016, %v3142
      %v3182 = vadd.f32 %v3017, %v3145
      %v3183 = vadd.f32 %v3018, %v3147
      %v3184 = vadd.f32 %v3019, %v3150
      %v3185 = vadd.f32 %v3020, %v3152
      %v3186 = vadd.f32 %v3021, %v3155
      %v3187 = vadd.f32 %v3022, %v3157
      %v3188 = vadd.f32 %v3023, %v3160
      %v3189 = vadd.f32 %v3024, %v3162
      %v3190 = vadd.f32 %v3025, %v3165
      %v3191 = vadd.f32 %v3026, %v3167
      %v3192 = vadd.f32 %v3027, %v3170
      %v3193 = vadd.f32 %v3028, %v3172
      %v3195 = vunpack.c.l.b16 %v1349
      %v3196 = vpack.c.b16 %v1489, %v1488
      %v3197 = vpack.c.b16 %v1491, %v1490
      %v3198 = vpack.c.b16 %v1493, %v1492
      %v3199 = vpack.c.b16 %v1495, %v1494
      %v3200 = vpack.c.b16 %v1497, %v1496
      %v3201 = vpack.c.b16 %v3195, %v3195
      %vm3202 = vcmask 1044480
      %v3203 = vrot.slane %v3196, 3
      %v3204 = vrot.slane %v3197, 3
      %v3205 = vsel %vm3202, %v3203, %v3204
      %v3206 = vrot.slane %v3198, 3
      %v3207 = vsel %vm3202, %v3204, %v3206
      %v3208 = vrot.slane %v3199, 3
      %v3209 = vsel %vm3202, %v3206, %v3208
      %v3210 = vrot.slane %v3200, 3
      %v3211 = vsel %vm3202, %v3208, %v3210
      %v3212 = vrot.slane %v3201, 3
      %v3213 = vsel %vm3202, %v3210, %v3212
      %v3215 = vunpack.c.l.b16 %v1397
      %v3216 = vpack.c.b16 %v1529, %v1528
      %v3217 = vpack.c.b16 %v1531, %v1530
      %v3218 = vpack.c.b16 %v1533, %v1532
      %v3219 = vpack.c.b16 %v1535, %v1534
      %v3220 = vpack.c.b16 %v1537, %v1536
      %v3221 = vpack.c.b16 %v3215, %v3215
      %v3222 = vrot.slane %v3216, 3
      %v3223 = vrot.slane %v3217, 3
      %v3224 = vsel %vm3202, %v3222, %v3223
      %v3225 = vrot.slane %v3218, 3
      %v3226 = vsel %vm3202, %v3223, %v3225
      %v3227 = vrot.slane %v3219, 3
      %v3228 = vsel %vm3202, %v3225, %v3227
      %v3229 = vrot.slane %v3220, 3
      %v3230 = vsel %vm3202, %v3227, %v3229
      %v3231 = vrot.slane %v3221, 3
      %v3232 = vsel %vm3202, %v3229, %v3231
      %s3233 = scalar_lea.vmem %s4, 144
      %v3234 = vld [vmem:[%s3233] sm:$0xf]
      %v3235 = vld [vmem:[%s3233 + $0x4] sm:$0xf]
      %v3236 = vld [vmem:[%s3233 + $0x8] sm:$0xf]
      %v3237 = vld [vmem:[%s3233 + $0xc] sm:$0xf]
      %v3242 = vunpack.c.l.b16 %v3234
      %v3243 = vunpack.c.l.b16 %v3235
      %v3244 = vunpack.c.l.b16 %v3236
      %v3245 = vunpack.c.l.b16 %v3237
      %v3246 = vpack.c.b16 %v3243, %v3242
      %v3247 = vpack.c.b16 %v3245, %v3244
      %v3251 = vsel %vm1572, %v3205, 0
      %v3254 = vsel %vm1572, %v3207, 0
      %v3257 = vsel %vm1572, %v3209, 0
      %v3260 = vsel %vm1572, %v3211, 0
      %v3263 = vsel %vm1572, %v3213, 0
      %v3266 = vsel %vm1572, %v3224, 0
      %v3269 = vsel %vm1572, %v3226, 0
      %v3272 = vsel %vm1572, %v3228, 0
      %v3275 = vsel %vm1572, %v3230, 0
      %v3278 = vsel %vm1572, %v3232, 0
      %3280 = vmatpush.bf16.msra.mxu0 0
      %3281 = vmatpush.bf16.msra.mxu0 0
      %3282 = vmatpush.bf16.msra.mxu0 0
      %3283 = vmatpush.bf16.msra.mxu0 0
      %3284 = vmatpush.bf16.msra.mxu0 0
      %3285 = vmatpush.bf16.msra.mxu0 0
      %3286 = vmatpush.bf16.msra.mxu0 %v3247
      %3287 = vmatpush.bf16.msra.mxu0 %v3246
      %3288 = vmatmul.bf16.gmra.mxu0 %v3251
      %v3289 = vpop.f32.mrf.mxu0
      %v3290 = vadd.f32 0.0, %v3289
      %v3291 = vpop.f32.mrf.mxu0
      %v3292 = vadd.f32 0.0, %v3291
      %3293 = vmatmul.bf16.gmra.mxu0 %v3254
      %v3294 = vpop.f32.mrf.mxu0
      %v3295 = vadd.f32 0.0, %v3294
      %v3296 = vpop.f32.mrf.mxu0
      %v3297 = vadd.f32 0.0, %v3296
      %3298 = vmatmul.bf16.gmra.mxu0 %v3257
      %v3299 = vpop.f32.mrf.mxu0
      %v3300 = vadd.f32 0.0, %v3299
      %v3301 = vpop.f32.mrf.mxu0
      %v3302 = vadd.f32 0.0, %v3301
      %3303 = vmatmul.bf16.gmra.mxu0 %v3260
      %v3304 = vpop.f32.mrf.mxu0
      %v3305 = vadd.f32 0.0, %v3304
      %v3306 = vpop.f32.mrf.mxu0
      %v3307 = vadd.f32 0.0, %v3306
      %3308 = vmatmul.bf16.gmra.mxu0 %v3263
      %v3309 = vpop.f32.mrf.mxu0
      %v3310 = vadd.f32 0.0, %v3309
      %v3311 = vpop.f32.mrf.mxu0
      %v3312 = vadd.f32 0.0, %v3311
      %3313 = vmatmul.bf16.gmra.mxu0 %v3266
      %v3314 = vpop.f32.mrf.mxu0
      %v3315 = vadd.f32 0.0, %v3314
      %v3316 = vpop.f32.mrf.mxu0
      %v3317 = vadd.f32 0.0, %v3316
      %3318 = vmatmul.bf16.gmra.mxu0 %v3269
      %v3319 = vpop.f32.mrf.mxu0
      %v3320 = vadd.f32 0.0, %v3319
      %v3321 = vpop.f32.mrf.mxu0
      %v3322 = vadd.f32 0.0, %v3321
      %3323 = vmatmul.bf16.gmra.mxu0 %v3272
      %v3324 = vpop.f32.mrf.mxu0
      %v3325 = vadd.f32 0.0, %v3324
      %v3326 = vpop.f32.mrf.mxu0
      %v3327 = vadd.f32 0.0, %v3326
      %3328 = vmatmul.bf16.gmra.mxu0 %v3275
      %v3329 = vpop.f32.mrf.mxu0
      %v3330 = vadd.f32 0.0, %v3329
      %v3331 = vpop.f32.mrf.mxu0
      %v3332 = vadd.f32 0.0, %v3331
      %3333 = vmatmul.bf16.gmra.mxu0 %v3278
      %v3334 = vpop.f32.mrf.mxu0
      %v3335 = vadd.f32 0.0, %v3334
      %v3336 = vpop.f32.mrf.mxu0
      %v3337 = vadd.f32 0.0, %v3336
      %3338 = vdwg.mxu0
      %v3339 = vadd.f32 %v3174, %v3290
      %v3340 = vadd.f32 %v3175, %v3292
      %v3341 = vadd.f32 %v3176, %v3295
      %v3342 = vadd.f32 %v3177, %v3297
      %v3343 = vadd.f32 %v3178, %v3300
      %v3344 = vadd.f32 %v3179, %v3302
      %v3345 = vadd.f32 %v3180, %v3305
      %v3346 = vadd.f32 %v3181, %v3307
      %v3347 = vadd.f32 %v3182, %v3310
      %v3348 = vadd.f32 %v3183, %v3312
      %v3349 = vadd.f32 %v3184, %v3315
      %v3350 = vadd.f32 %v3185, %v3317
      %v3351 = vadd.f32 %v3186, %v3320
      %v3352 = vadd.f32 %v3187, %v3322
      %v3353 = vadd.f32 %v3188, %v3325
      %v3354 = vadd.f32 %v3189, %v3327
      %v3355 = vadd.f32 %v3190, %v3330
      %v3356 = vadd.f32 %v3191, %v3332
      %v3357 = vadd.f32 %v3192, %v3335
      %v3358 = vadd.f32 %v3193, %v3337
      %vm3359 = vsmask.f32 6400
      %v3361 = vshrl.u32 %v3031, 16
      %v3363 = vrot.slane %v3361, 1
      %v3364 = vshll.u32 %v3031, 16
      %v3366 = vrot.slane %v3364, 2
      %v3367 = vor.u32 %v3363, %v3366
      %v3369 = vshrl.u32 %v3032, 16
      %v3371 = vrot.slane %v3369, 1
      %v3372 = vshll.u32 %v3032, 16
      %v3374 = vrot.slane %v3372, 2
      %v3375 = vor.u32 %v3371, %v3374
      %v3376 = vsel %vm3359, %v3367, %v3375
      %v3378 = vshrl.u32 %v3033, 16
      %v3380 = vrot.slane %v3378, 1
      %v3381 = vshll.u32 %v3033, 16
      %v3383 = vrot.slane %v3381, 2
      %v3384 = vor.u32 %v3380, %v3383
      %v3385 = vsel %vm3359, %v3375, %v3384
      %v3387 = vshrl.u32 %v3034, 16
      %v3389 = vrot.slane %v3387, 1
      %v3390 = vshll.u32 %v3034, 16
      %v3392 = vrot.slane %v3390, 2
      %v3393 = vor.u32 %v3389, %v3392
      %v3394 = vsel %vm3359, %v3384, %v3393
      %v3396 = vshrl.u32 %v3035, 16
      %v3398 = vrot.slane %v3396, 1
      %v3399 = vshll.u32 %v3035, 16
      %v3401 = vrot.slane %v3399, 2
      %v3402 = vor.u32 %v3398, %v3401
      %v3403 = vsel %vm3359, %v3393, %v3402
      %v3405 = vshrl.u32 %v3036, 16
      %v3407 = vrot.slane %v3405, 1
      %v3408 = vshll.u32 %v3036, 16
      %v3410 = vrot.slane %v3408, 2
      %v3411 = vor.u32 %v3407, %v3410
      %v3412 = vsel %vm3359, %v3402, %v3411
      %v3414 = vshrl.u32 %v3051, 16
      %v3416 = vrot.slane %v3414, 1
      %v3417 = vshll.u32 %v3051, 16
      %v3419 = vrot.slane %v3417, 2
      %v3420 = vor.u32 %v3416, %v3419
      %v3422 = vshrl.u32 %v3052, 16
      %v3424 = vrot.slane %v3422, 1
      %v3425 = vshll.u32 %v3052, 16
      %v3427 = vrot.slane %v3425, 2
      %v3428 = vor.u32 %v3424, %v3427
      %v3429 = vsel %vm3359, %v3420, %v3428
      %v3431 = vshrl.u32 %v3053, 16
      %v3433 = vrot.slane %v3431, 1
      %v3434 = vshll.u32 %v3053, 16
      %v3436 = vrot.slane %v3434, 2
      %v3437 = vor.u32 %v3433, %v3436
      %v3438 = vsel %vm3359, %v3428, %v3437
      %v3440 = vshrl.u32 %v3054, 16
      %v3442 = vrot.slane %v3440, 1
      %v3443 = vshll.u32 %v3054, 16
      %v3445 = vrot.slane %v3443, 2
      %v3446 = vor.u32 %v3442, %v3445
      %v3447 = vsel %vm3359, %v3437, %v3446
      %v3449 = vshrl.u32 %v3055, 16
      %v3451 = vrot.slane %v3449, 1
      %v3452 = vshll.u32 %v3055, 16
      %v3454 = vrot.slane %v3452, 2
      %v3455 = vor.u32 %v3451, %v3454
      %v3456 = vsel %vm3359, %v3446, %v3455
      %v3458 = vshrl.u32 %v3056, 16
      %v3460 = vrot.slane %v3458, 1
      %v3461 = vshll.u32 %v3056, 16
      %v3463 = vrot.slane %v3461, 2
      %v3464 = vor.u32 %v3460, %v3463
      %v3465 = vsel %vm3359, %v3455, %v3464
      %s3466 = scalar_lea.vmem %s4, 160
      %v3467 = vld [vmem:[%s3466] sm:$0xf]
      %v3468 = vld [vmem:[%s3466 + $0x4] sm:$0xf]
      %v3469 = vld [vmem:[%s3466 + $0x8] sm:$0xf]
      %v3470 = vld [vmem:[%s3466 + $0xc] sm:$0xf]
      %v3475 = vunpack.c.l.b16 %v3467
      %v3476 = vunpack.c.l.b16 %v3468
      %v3477 = vunpack.c.l.b16 %v3469
      %v3478 = vunpack.c.l.b16 %v3470
      %v3479 = vpack.c.b16 %v3476, %v3475
      %v3480 = vpack.c.b16 %v3478, %v3477
      %v3484 = vsel %vm1572, %v3376, 0
      %v3487 = vsel %vm1572, %v3385, 0
      %v3490 = vsel %vm1572, %v3394, 0
      %v3493 = vsel %vm1572, %v3403, 0
      %v3496 = vsel %vm1572, %v3412, 0
      %v3499 = vsel %vm1572, %v3429, 0
      %v3502 = vsel %vm1572, %v3438, 0
      %v3505 = vsel %vm1572, %v3447, 0
      %v3508 = vsel %vm1572, %v3456, 0
      %v3511 = vsel %vm1572, %v3465, 0
      %3513 = vmatpush.bf16.msra.mxu0 0
      %3514 = vmatpush.bf16.msra.mxu0 0
      %3515 = vmatpush.bf16.msra.mxu0 0
      %3516 = vmatpush.bf16.msra.mxu0 0
      %3517 = vmatpush.bf16.msra.mxu0 0
      %3518 = vmatpush.bf16.msra.mxu0 0
      %3519 = vmatpush.bf16.msra.mxu0 %v3480
      %3520 = vmatpush.bf16.msra.mxu0 %v3479
      %3521 = vmatmul.bf16.gmra.mxu0 %v3484
      %v3522 = vpop.f32.mrf.mxu0
      %v3523 = vadd.f32 0.0, %v3522
      %v3524 = vpop.f32.mrf.mxu0
      %v3525 = vadd.f32 0.0, %v3524
      %3526 = vmatmul.bf16.gmra.mxu0 %v3487
      %v3527 = vpop.f32.mrf.mxu0
      %v3528 = vadd.f32 0.0, %v3527
      %v3529 = vpop.f32.mrf.mxu0
      %v3530 = vadd.f32 0.0, %v3529
      %3531 = vmatmul.bf16.gmra.mxu0 %v3490
      %v3532 = vpop.f32.mrf.mxu0
      %v3533 = vadd.f32 0.0, %v3532
      %v3534 = vpop.f32.mrf.mxu0
      %v3535 = vadd.f32 0.0, %v3534
      %3536 = vmatmul.bf16.gmra.mxu0 %v3493
      %v3537 = vpop.f32.mrf.mxu0
      %v3538 = vadd.f32 0.0, %v3537
      %v3539 = vpop.f32.mrf.mxu0
      %v3540 = vadd.f32 0.0, %v3539
      %3541 = vmatmul.bf16.gmra.mxu0 %v3496
      %v3542 = vpop.f32.mrf.mxu0
      %v3543 = vadd.f32 0.0, %v3542
      %v3544 = vpop.f32.mrf.mxu0
      %v3545 = vadd.f32 0.0, %v3544
      %3546 = vmatmul.bf16.gmra.mxu0 %v3499
      %v3547 = vpop.f32.mrf.mxu0
      %v3548 = vadd.f32 0.0, %v3547
      %v3549 = vpop.f32.mrf.mxu0
      %v3550 = vadd.f32 0.0, %v3549
      %3551 = vmatmul.bf16.gmra.mxu0 %v3502
      %v3552 = vpop.f32.mrf.mxu0
      %v3553 = vadd.f32 0.0, %v3552
      %v3554 = vpop.f32.mrf.mxu0
      %v3555 = vadd.f32 0.0, %v3554
      %3556 = vmatmul.bf16.gmra.mxu0 %v3505
      %v3557 = vpop.f32.mrf.mxu0
      %v3558 = vadd.f32 0.0, %v3557
      %v3559 = vpop.f32.mrf.mxu0
      %v3560 = vadd.f32 0.0, %v3559
      %3561 = vmatmul.bf16.gmra.mxu0 %v3508
      %v3562 = vpop.f32.mrf.mxu0
      %v3563 = vadd.f32 0.0, %v3562
      %v3564 = vpop.f32.mrf.mxu0
      %v3565 = vadd.f32 0.0, %v3564
      %3566 = vmatmul.bf16.gmra.mxu0 %v3511
      %v3567 = vpop.f32.mrf.mxu0
      %v3568 = vadd.f32 0.0, %v3567
      %v3569 = vpop.f32.mrf.mxu0
      %v3570 = vadd.f32 0.0, %v3569
      %3571 = vdwg.mxu0
      %v3572 = vadd.f32 %v3339, %v3523
      %v3573 = vadd.f32 %v3340, %v3525
      %v3574 = vadd.f32 %v3341, %v3528
      %v3575 = vadd.f32 %v3342, %v3530
      %v3576 = vadd.f32 %v3343, %v3533
      %v3577 = vadd.f32 %v3344, %v3535
      %v3578 = vadd.f32 %v3345, %v3538
      %v3579 = vadd.f32 %v3346, %v3540
      %v3580 = vadd.f32 %v3347, %v3543
      %v3581 = vadd.f32 %v3348, %v3545
      %v3582 = vadd.f32 %v3349, %v3548
      %v3583 = vadd.f32 %v3350, %v3550
      %v3584 = vadd.f32 %v3351, %v3553
      %v3585 = vadd.f32 %v3352, %v3555
      %v3586 = vadd.f32 %v3353, %v3558
      %v3587 = vadd.f32 %v3354, %v3560
      %v3588 = vadd.f32 %v3355, %v3563
      %v3589 = vadd.f32 %v3356, %v3565
      %v3590 = vadd.f32 %v3357, %v3568
      %v3591 = vadd.f32 %v3358, %v3570
      %vm3592 = vsmask.f32 4352
      %v3594 = vshrl.u32 %v3196, 16
      %v3596 = vrot.slane %v3594, 3
      %v3597 = vshll.u32 %v3196, 16
      %v3599 = vrot.slane %v3597, 4
      %v3600 = vor.u32 %v3596, %v3599
      %v3602 = vshrl.u32 %v3197, 16
      %v3604 = vrot.slane %v3602, 3
      %v3605 = vshll.u32 %v3197, 16
      %v3607 = vrot.slane %v3605, 4
      %v3608 = vor.u32 %v3604, %v3607
      %v3609 = vsel %vm3592, %v3600, %v3608
      %v3611 = vshrl.u32 %v3198, 16
      %v3613 = vrot.slane %v3611, 3
      %v3614 = vshll.u32 %v3198, 16
      %v3616 = vrot.slane %v3614, 4
      %v3617 = vor.u32 %v3613, %v3616
      %v3618 = vsel %vm3592, %v3608, %v3617
      %v3620 = vshrl.u32 %v3199, 16
      %v3622 = vrot.slane %v3620, 3
      %v3623 = vshll.u32 %v3199, 16
      %v3625 = vrot.slane %v3623, 4
      %v3626 = vor.u32 %v3622, %v3625
      %v3627 = vsel %vm3592, %v3617, %v3626
      %v3629 = vshrl.u32 %v3200, 16
      %v3631 = vrot.slane %v3629, 3
      %v3632 = vshll.u32 %v3200, 16
      %v3634 = vrot.slane %v3632, 4
      %v3635 = vor.u32 %v3631, %v3634
      %v3636 = vsel %vm3592, %v3626, %v3635
      %v3638 = vshrl.u32 %v3201, 16
      %v3640 = vrot.slane %v3638, 3
      %v3641 = vshll.u32 %v3201, 16
      %v3643 = vrot.slane %v3641, 4
      %v3644 = vor.u32 %v3640, %v3643
      %v3645 = vsel %vm3592, %v3635, %v3644
      %v3647 = vshrl.u32 %v3216, 16
      %v3649 = vrot.slane %v3647, 3
      %v3650 = vshll.u32 %v3216, 16
      %v3652 = vrot.slane %v3650, 4
      %v3653 = vor.u32 %v3649, %v3652
      %v3655 = vshrl.u32 %v3217, 16
      %v3657 = vrot.slane %v3655, 3
      %v3658 = vshll.u32 %v3217, 16
      %v3660 = vrot.slane %v3658, 4
      %v3661 = vor.u32 %v3657, %v3660
      %v3662 = vsel %vm3592, %v3653, %v3661
      %v3664 = vshrl.u32 %v3218, 16
      %v3666 = vrot.slane %v3664, 3
      %v3667 = vshll.u32 %v3218, 16
      %v3669 = vrot.slane %v3667, 4
      %v3670 = vor.u32 %v3666, %v3669
      %v3671 = vsel %vm3592, %v3661, %v3670
      %v3673 = vshrl.u32 %v3219, 16
      %v3675 = vrot.slane %v3673, 3
      %v3676 = vshll.u32 %v3219, 16
      %v3678 = vrot.slane %v3676, 4
      %v3679 = vor.u32 %v3675, %v3678
      %v3680 = vsel %vm3592, %v3670, %v3679
      %v3682 = vshrl.u32 %v3220, 16
      %v3684 = vrot.slane %v3682, 3
      %v3685 = vshll.u32 %v3220, 16
      %v3687 = vrot.slane %v3685, 4
      %v3688 = vor.u32 %v3684, %v3687
      %v3689 = vsel %vm3592, %v3679, %v3688
      %v3691 = vshrl.u32 %v3221, 16
      %v3693 = vrot.slane %v3691, 3
      %v3694 = vshll.u32 %v3221, 16
      %v3696 = vrot.slane %v3694, 4
      %v3697 = vor.u32 %v3693, %v3696
      %v3698 = vsel %vm3592, %v3688, %v3697
      %s3699 = scalar_lea.vmem %s4, 176
      %v3700 = vld [vmem:[%s3699] sm:$0xf]
      %v3701 = vld [vmem:[%s3699 + $0x4] sm:$0xf]
      %v3702 = vld [vmem:[%s3699 + $0x8] sm:$0xf]
      %v3703 = vld [vmem:[%s3699 + $0xc] sm:$0xf]
      %v3708 = vunpack.c.l.b16 %v3700
      %v3709 = vunpack.c.l.b16 %v3701
      %v3710 = vunpack.c.l.b16 %v3702
      %v3711 = vunpack.c.l.b16 %v3703
      %v3712 = vpack.c.b16 %v3709, %v3708
      %v3713 = vpack.c.b16 %v3711, %v3710
      %v3717 = vsel %vm1572, %v3609, 0
      %v3720 = vsel %vm1572, %v3618, 0
      %v3723 = vsel %vm1572, %v3627, 0
      %v3726 = vsel %vm1572, %v3636, 0
      %v3729 = vsel %vm1572, %v3645, 0
      %v3732 = vsel %vm1572, %v3662, 0
      %v3735 = vsel %vm1572, %v3671, 0
      %v3738 = vsel %vm1572, %v3680, 0
      %v3741 = vsel %vm1572, %v3689, 0
      %v3744 = vsel %vm1572, %v3698, 0
      %3746 = vmatpush.bf16.msra.mxu0 0
      %3747 = vmatpush.bf16.msra.mxu0 0
      %3748 = vmatpush.bf16.msra.mxu0 0
      %3749 = vmatpush.bf16.msra.mxu0 0
      %3750 = vmatpush.bf16.msra.mxu0 0
      %3751 = vmatpush.bf16.msra.mxu0 0
      %3752 = vmatpush.bf16.msra.mxu0 %v3713
      %3753 = vmatpush.bf16.msra.mxu0 %v3712
      %3754 = vmatmul.bf16.gmra.mxu0 %v3717
      %v3755 = vpop.f32.mrf.mxu0
      %v3756 = vadd.f32 0.0, %v3755
      %v3757 = vpop.f32.mrf.mxu0
      %v3758 = vadd.f32 0.0, %v3757
      %3759 = vmatmul.bf16.gmra.mxu0 %v3720
      %v3760 = vpop.f32.mrf.mxu0
      %v3761 = vadd.f32 0.0, %v3760
      %v3762 = vpop.f32.mrf.mxu0
      %v3763 = vadd.f32 0.0, %v3762
      %3764 = vmatmul.bf16.gmra.mxu0 %v3723
      %v3765 = vpop.f32.mrf.mxu0
      %v3766 = vadd.f32 0.0, %v3765
      %v3767 = vpop.f32.mrf.mxu0
      %v3768 = vadd.f32 0.0, %v3767
      %3769 = vmatmul.bf16.gmra.mxu0 %v3726
      %v3770 = vpop.f32.mrf.mxu0
      %v3771 = vadd.f32 0.0, %v3770
      %v3772 = vpop.f32.mrf.mxu0
      %v3773 = vadd.f32 0.0, %v3772
      %3774 = vmatmul.bf16.gmra.mxu0 %v3729
      %v3775 = vpop.f32.mrf.mxu0
      %v3776 = vadd.f32 0.0, %v3775
      %v3777 = vpop.f32.mrf.mxu0
      %v3778 = vadd.f32 0.0, %v3777
      %3779 = vmatmul.bf16.gmra.mxu0 %v3732
      %v3780 = vpop.f32.mrf.mxu0
      %v3781 = vadd.f32 0.0, %v3780
      %v3782 = vpop.f32.mrf.mxu0
      %v3783 = vadd.f32 0.0, %v3782
      %3784 = vmatmul.bf16.gmra.mxu0 %v3735
      %v3785 = vpop.f32.mrf.mxu0
      %v3786 = vadd.f32 0.0, %v3785
      %v3787 = vpop.f32.mrf.mxu0
      %v3788 = vadd.f32 0.0, %v3787
      %3789 = vmatmul.bf16.gmra.mxu0 %v3738
      %v3790 = vpop.f32.mrf.mxu0
      %v3791 = vadd.f32 0.0, %v3790
      %v3792 = vpop.f32.mrf.mxu0
      %v3793 = vadd.f32 0.0, %v3792
      %3794 = vmatmul.bf16.gmra.mxu0 %v3741
      %v3795 = vpop.f32.mrf.mxu0
      %v3796 = vadd.f32 0.0, %v3795
      %v3797 = vpop.f32.mrf.mxu0
      %v3798 = vadd.f32 0.0, %v3797
      %3799 = vmatmul.bf16.gmra.mxu0 %v3744
      %v3800 = vpop.f32.mrf.mxu0
      %v3801 = vadd.f32 0.0, %v3800
      %v3802 = vpop.f32.mrf.mxu0
      %v3803 = vadd.f32 0.0, %v3802
      %3804 = vdwg.mxu0
      %v3805 = vadd.f32 %v3572, %v3756
      %v3806 = vadd.f32 %v3573, %v3758
      %v3807 = vadd.f32 %v3574, %v3761
      %v3808 = vadd.f32 %v3575, %v3763
      %v3809 = vadd.f32 %v3576, %v3766
      %v3810 = vadd.f32 %v3577, %v3768
      %v3811 = vadd.f32 %v3578, %v3771
      %v3812 = vadd.f32 %v3579, %v3773
      %v3813 = vadd.f32 %v3580, %v3776
      %v3814 = vadd.f32 %v3581, %v3778
      %v3815 = vadd.f32 %v3582, %v3781
      %v3816 = vadd.f32 %v3583, %v3783
      %v3817 = vadd.f32 %v3584, %v3786
      %v3818 = vadd.f32 %v3585, %v3788
      %v3819 = vadd.f32 %v3586, %v3791
      %v3820 = vadd.f32 %v3587, %v3793
      %v3821 = vadd.f32 %v3588, %v3796
      %v3822 = vadd.f32 %v3589, %v3798
      %v3823 = vadd.f32 %v3590, %v3801
      %v3824 = vadd.f32 %v3591, %v3803
      %v3826 = vunpack.c.l.b16 %v1361
      %v3827 = vpack.c.b16 %v2219, %v2218
      %v3828 = vpack.c.b16 %v2221, %v2220
      %v3829 = vpack.c.b16 %v2223, %v2222
      %v3830 = vpack.c.b16 %v2225, %v2224
      %v3831 = vpack.c.b16 %v2588, %v2226
      %v3832 = vpack.c.b16 %v3826, %v3826
      %v3833 = vrot.slane %v3827, 1
      %v3834 = vrot.slane %v3828, 1
      %v3835 = vsel %vm3037, %v3833, %v3834
      %v3836 = vrot.slane %v3829, 1
      %v3837 = vsel %vm3037, %v3834, %v3836
      %v3838 = vrot.slane %v3830, 1
      %v3839 = vsel %vm3037, %v3836, %v3838
      %v3840 = vrot.slane %v3831, 1
      %v3841 = vsel %vm3037, %v3838, %v3840
      %v3842 = vrot.slane %v3832, 1
      %v3843 = vsel %vm3037, %v3840, %v3842
      %v3845 = vunpack.c.l.b16 %v1409
      %v3846 = vpack.c.b16 %v2244, %v2243
      %v3847 = vpack.c.b16 %v2246, %v2245
      %v3848 = vpack.c.b16 %v2248, %v2247
      %v3849 = vpack.c.b16 %v2250, %v2249
      %v3850 = vpack.c.b16 %v2630, %v2251
      %v3851 = vpack.c.b16 %v3845, %v3845
      %v3852 = vrot.slane %v3846, 1
      %v3853 = vrot.slane %v3847, 1
      %v3854 = vsel %vm3037, %v3852, %v3853
      %v3855 = vrot.slane %v3848, 1
      %v3856 = vsel %vm3037, %v3853, %v3855
      %v3857 = vrot.slane %v3849, 1
      %v3858 = vsel %vm3037, %v3855, %v3857
      %v3859 = vrot.slane %v3850, 1
      %v3860 = vsel %vm3037, %v3857, %v3859
      %v3861 = vrot.slane %v3851, 1
      %v3862 = vsel %vm3037, %v3859, %v3861
      %s3863 = scalar_lea.vmem %s4, 192
      %v3864 = vld [vmem:[%s3863] sm:$0xf]
      %v3865 = vld [vmem:[%s3863 + $0x4] sm:$0xf]
      %v3866 = vld [vmem:[%s3863 + $0x8] sm:$0xf]
      %v3867 = vld [vmem:[%s3863 + $0xc] sm:$0xf]
      %v3872 = vunpack.c.l.b16 %v3864
      %v3873 = vunpack.c.l.b16 %v3865
      %v3874 = vunpack.c.l.b16 %v3866
      %v3875 = vunpack.c.l.b16 %v3867
      %v3876 = vpack.c.b16 %v3873, %v3872
      %v3877 = vpack.c.b16 %v3875, %v3874
      %v3881 = vsel %vm1572, %v3835, 0
      %v3884 = vsel %vm1572, %v3837, 0
      %v3887 = vsel %vm1572, %v3839, 0
      %v3890 = vsel %vm1572, %v3841, 0
      %v3893 = vsel %vm1572, %v3843, 0
      %v3896 = vsel %vm1572, %v3854, 0
      %v3899 = vsel %vm1572, %v3856, 0
      %v3902 = vsel %vm1572, %v3858, 0
      %v3905 = vsel %vm1572, %v3860, 0
      %v3908 = vsel %vm1572, %v3862, 0
      %3910 = vmatpush.bf16.msra.mxu0 0
      %3911 = vmatpush.bf16.msra.mxu0 0
      %3912 = vmatpush.bf16.msra.mxu0 0
      %3913 = vmatpush.bf16.msra.mxu0 0
      %3914 = vmatpush.bf16.msra.mxu0 0
      %3915 = vmatpush.bf16.msra.mxu0 0
      %3916 = vmatpush.bf16.msra.mxu0 %v3877
      %3917 = vmatpush.bf16.msra.mxu0 %v3876
      %3918 = vmatmul.bf16.gmra.mxu0 %v3881
      %v3919 = vpop.f32.mrf.mxu0
      %v3920 = vadd.f32 0.0, %v3919
      %v3921 = vpop.f32.mrf.mxu0
      %v3922 = vadd.f32 0.0, %v3921
      %3923 = vmatmul.bf16.gmra.mxu0 %v3884
      %v3924 = vpop.f32.mrf.mxu0
      %v3925 = vadd.f32 0.0, %v3924
      %v3926 = vpop.f32.mrf.mxu0
      %v3927 = vadd.f32 0.0, %v3926
      %3928 = vmatmul.bf16.gmra.mxu0 %v3887
      %v3929 = vpop.f32.mrf.mxu0
      %v3930 = vadd.f32 0.0, %v3929
      %v3931 = vpop.f32.mrf.mxu0
      %v3932 = vadd.f32 0.0, %v3931
      %3933 = vmatmul.bf16.gmra.mxu0 %v3890
      %v3934 = vpop.f32.mrf.mxu0
      %v3935 = vadd.f32 0.0, %v3934
      %v3936 = vpop.f32.mrf.mxu0
      %v3937 = vadd.f32 0.0, %v3936
      %3938 = vmatmul.bf16.gmra.mxu0 %v3893
      %v3939 = vpop.f32.mrf.mxu0
      %v3940 = vadd.f32 0.0, %v3939
      %v3941 = vpop.f32.mrf.mxu0
      %v3942 = vadd.f32 0.0, %v3941
      %3943 = vmatmul.bf16.gmra.mxu0 %v3896
      %v3944 = vpop.f32.mrf.mxu0
      %v3945 = vadd.f32 0.0, %v3944
      %v3946 = vpop.f32.mrf.mxu0
      %v3947 = vadd.f32 0.0, %v3946
      %3948 = vmatmul.bf16.gmra.mxu0 %v3899
      %v3949 = vpop.f32.mrf.mxu0
      %v3950 = vadd.f32 0.0, %v3949
      %v3951 = vpop.f32.mrf.mxu0
      %v3952 = vadd.f32 0.0, %v3951
      %3953 = vmatmul.bf16.gmra.mxu0 %v3902
      %v3954 = vpop.f32.mrf.mxu0
      %v3955 = vadd.f32 0.0, %v3954
      %v3956 = vpop.f32.mrf.mxu0
      %v3957 = vadd.f32 0.0, %v3956
      %3958 = vmatmul.bf16.gmra.mxu0 %v3905
      %v3959 = vpop.f32.mrf.mxu0
      %v3960 = vadd.f32 0.0, %v3959
      %v3961 = vpop.f32.mrf.mxu0
      %v3962 = vadd.f32 0.0, %v3961
      %3963 = vmatmul.bf16.gmra.mxu0 %v3908
      %v3964 = vpop.f32.mrf.mxu0
      %v3965 = vadd.f32 0.0, %v3964
      %v3966 = vpop.f32.mrf.mxu0
      %v3967 = vadd.f32 0.0, %v3966
      %3968 = vdwg.mxu0
      %v3969 = vadd.f32 %v3805, %v3920
      %v3970 = vadd.f32 %v3806, %v3922
      %v3971 = vadd.f32 %v3807, %v3925
      %v3972 = vadd.f32 %v3808, %v3927
      %v3973 = vadd.f32 %v3809, %v3930
      %v3974 = vadd.f32 %v3810, %v3932
      %v3975 = vadd.f32 %v3811, %v3935
      %v3976 = vadd.f32 %v3812, %v3937
      %v3977 = vadd.f32 %v3813, %v3940
      %v3978 = vadd.f32 %v3814, %v3942
      %v3979 = vadd.f32 %v3815, %v3945
      %v3980 = vadd.f32 %v3816, %v3947
      %v3981 = vadd.f32 %v3817, %v3950
      %v3982 = vadd.f32 %v3818, %v3952
      %v3983 = vadd.f32 %v3819, %v3955
      %v3984 = vadd.f32 %v3820, %v3957
      %v3985 = vadd.f32 %v3821, %v3960
      %v3986 = vadd.f32 %v3822, %v3962
      %v3987 = vadd.f32 %v3823, %v3965
      %v3988 = vadd.f32 %v3824, %v3967
      %v3990 = vunpack.c.l.b16 %v1373
      %v3991 = vpack.c.b16 %v2396, %v2395
      %v3992 = vpack.c.b16 %v2398, %v2397
      %v3993 = vpack.c.b16 %v2400, %v2399
      %v3994 = vpack.c.b16 %v2402, %v2401
      %v3995 = vpack.c.b16 %v2404, %v2403
      %v3996 = vpack.c.b16 %v3990, %v3990
      %v3997 = vrot.slane %v3991, 3
      %v3998 = vrot.slane %v3992, 3
      %v3999 = vsel %vm3202, %v3997, %v3998
      %v4000 = vrot.slane %v3993, 3
      %v4001 = vsel %vm3202, %v3998, %v4000
      %v4002 = vrot.slane %v3994, 3
      %v4003 = vsel %vm3202, %v4000, %v4002
      %v4004 = vrot.slane %v3995, 3
      %v4005 = vsel %vm3202, %v4002, %v4004
      %v4006 = vrot.slane %v3996, 3
      %v4007 = vsel %vm3202, %v4004, %v4006
      %v4009 = vunpack.c.l.b16 %v1421
      %v4010 = vpack.c.b16 %v2435, %v2434
      %v4011 = vpack.c.b16 %v2437, %v2436
      %v4012 = vpack.c.b16 %v2439, %v2438
      %v4013 = vpack.c.b16 %v2441, %v2440
      %v4014 = vpack.c.b16 %v2443, %v2442
      %v4015 = vpack.c.b16 %v4009, %v4009
      %v4016 = vrot.slane %v4010, 3
      %v4017 = vrot.slane %v4011, 3
      %v4018 = vsel %vm3202, %v4016, %v4017
      %v4019 = vrot.slane %v4012, 3
      %v4020 = vsel %vm3202, %v4017, %v4019
      %v4021 = vrot.slane %v4013, 3
      %v4022 = vsel %vm3202, %v4019, %v4021
      %v4023 = vrot.slane %v4014, 3
      %v4024 = vsel %vm3202, %v4021, %v4023
      %v4025 = vrot.slane %v4015, 3
      %v4026 = vsel %vm3202, %v4023, %v4025
      %s4027 = scalar_lea.vmem %s4, 208
      %v4028 = vld [vmem:[%s4027] sm:$0xf]
      %v4029 = vld [vmem:[%s4027 + $0x4] sm:$0xf]
      %v4030 = vld [vmem:[%s4027 + $0x8] sm:$0xf]
      %v4031 = vld [vmem:[%s4027 + $0xc] sm:$0xf]
      %v4036 = vunpack.c.l.b16 %v4028
      %v4037 = vunpack.c.l.b16 %v4029
      %v4038 = vunpack.c.l.b16 %v4030
      %v4039 = vunpack.c.l.b16 %v4031
      %v4040 = vpack.c.b16 %v4037, %v4036
      %v4041 = vpack.c.b16 %v4039, %v4038
      %v4045 = vsel %vm1572, %v3999, 0
      %v4048 = vsel %vm1572, %v4001, 0
      %v4051 = vsel %vm1572, %v4003, 0
      %v4054 = vsel %vm1572, %v4005, 0
      %v4057 = vsel %vm1572, %v4007, 0
      %v4060 = vsel %vm1572, %v4018, 0
      %v4063 = vsel %vm1572, %v4020, 0
      %v4066 = vsel %vm1572, %v4022, 0
      %v4069 = vsel %vm1572, %v4024, 0
      %v4072 = vsel %vm1572, %v4026, 0
      %4074 = vmatpush.bf16.msra.mxu0 0
      %4075 = vmatpush.bf16.msra.mxu0 0
      %4076 = vmatpush.bf16.msra.mxu0 0
      %4077 = vmatpush.bf16.msra.mxu0 0
      %4078 = vmatpush.bf16.msra.mxu0 0
      %4079 = vmatpush.bf16.msra.mxu0 0
      %4080 = vmatpush.bf16.msra.mxu0 %v4041
      %4081 = vmatpush.bf16.msra.mxu0 %v4040
      %4082 = vmatmul.bf16.gmra.mxu0 %v4045
      %v4083 = vpop.f32.mrf.mxu0
      %v4084 = vadd.f32 0.0, %v4083
      %v4085 = vpop.f32.mrf.mxu0
      %v4086 = vadd.f32 0.0, %v4085
      %4087 = vmatmul.bf16.gmra.mxu0 %v4048
      %v4088 = vpop.f32.mrf.mxu0
      %v4089 = vadd.f32 0.0, %v4088
      %v4090 = vpop.f32.mrf.mxu0
      %v4091 = vadd.f32 0.0, %v4090
      %4092 = vmatmul.bf16.gmra.mxu0 %v4051
      %v4093 = vpop.f32.mrf.mxu0
      %v4094 = vadd.f32 0.0, %v4093
      %v4095 = vpop.f32.mrf.mxu0
      %v4096 = vadd.f32 0.0, %v4095
      %4097 = vmatmul.bf16.gmra.mxu0 %v4054
      %v4098 = vpop.f32.mrf.mxu0
      %v4099 = vadd.f32 0.0, %v4098
      %v4100 = vpop.f32.mrf.mxu0
      %v4101 = vadd.f32 0.0, %v4100
      %4102 = vmatmul.bf16.gmra.mxu0 %v4057
      %v4103 = vpop.f32.mrf.mxu0
      %v4104 = vadd.f32 0.0, %v4103
      %v4105 = vpop.f32.mrf.mxu0
      %v4106 = vadd.f32 0.0, %v4105
      %4107 = vmatmul.bf16.gmra.mxu0 %v4060
      %v4108 = vpop.f32.mrf.mxu0
      %v4109 = vadd.f32 0.0, %v4108
      %v4110 = vpop.f32.mrf.mxu0
      %v4111 = vadd.f32 0.0, %v4110
      %4112 = vmatmul.bf16.gmra.mxu0 %v4063
      %v4113 = vpop.f32.mrf.mxu0
      %v4114 = vadd.f32 0.0, %v4113
      %v4115 = vpop.f32.mrf.mxu0
      %v4116 = vadd.f32 0.0, %v4115
      %4117 = vmatmul.bf16.gmra.mxu0 %v4066
      %v4118 = vpop.f32.mrf.mxu0
      %v4119 = vadd.f32 0.0, %v4118
      %v4120 = vpop.f32.mrf.mxu0
      %v4121 = vadd.f32 0.0, %v4120
      %4122 = vmatmul.bf16.gmra.mxu0 %v4069
      %v4123 = vpop.f32.mrf.mxu0
      %v4124 = vadd.f32 0.0, %v4123
      %v4125 = vpop.f32.mrf.mxu0
      %v4126 = vadd.f32 0.0, %v4125
      %4127 = vmatmul.bf16.gmra.mxu0 %v4072
      %v4128 = vpop.f32.mrf.mxu0
      %v4129 = vadd.f32 0.0, %v4128
      %v4130 = vpop.f32.mrf.mxu0
      %v4131 = vadd.f32 0.0, %v4130
      %4132 = vdwg.mxu0
      %v4133 = vadd.f32 %v3969, %v4084
      %v4134 = vadd.f32 %v3970, %v4086
      %v4135 = vadd.f32 %v3971, %v4089
      %v4136 = vadd.f32 %v3972, %v4091
      %v4137 = vadd.f32 %v3973, %v4094
      %v4138 = vadd.f32 %v3974, %v4096
      %v4139 = vadd.f32 %v3975, %v4099
      %v4140 = vadd.f32 %v3976, %v4101
      %v4141 = vadd.f32 %v3977, %v4104
      %v4142 = vadd.f32 %v3978, %v4106
      %v4143 = vadd.f32 %v3979, %v4109
      %v4144 = vadd.f32 %v3980, %v4111
      %v4145 = vadd.f32 %v3981, %v4114
      %v4146 = vadd.f32 %v3982, %v4116
      %v4147 = vadd.f32 %v3983, %v4119
      %v4148 = vadd.f32 %v3984, %v4121
      %v4149 = vadd.f32 %v3985, %v4124
      %v4150 = vadd.f32 %v3986, %v4126
      %v4151 = vadd.f32 %v3987, %v4129
      %v4152 = vadd.f32 %v3988, %v4131
      %v4154 = vshrl.u32 %v3827, 16
      %v4156 = vrot.slane %v4154, 1
      %v4157 = vshll.u32 %v3827, 16
      %v4159 = vrot.slane %v4157, 2
      %v4160 = vor.u32 %v4156, %v4159
      %v4162 = vshrl.u32 %v3828, 16
      %v4164 = vrot.slane %v4162, 1
      %v4165 = vshll.u32 %v3828, 16
      %v4167 = vrot.slane %v4165, 2
      %v4168 = vor.u32 %v4164, %v4167
      %v4169 = vsel %vm3359, %v4160, %v4168
      %v4171 = vshrl.u32 %v3829, 16
      %v4173 = vrot.slane %v4171, 1
      %v4174 = vshll.u32 %v3829, 16
      %v4176 = vrot.slane %v4174, 2
      %v4177 = vor.u32 %v4173, %v4176
      %v4178 = vsel %vm3359, %v4168, %v4177
      %v4180 = vshrl.u32 %v3830, 16
      %v4182 = vrot.slane %v4180, 1
      %v4183 = vshll.u32 %v3830, 16
      %v4185 = vrot.slane %v4183, 2
      %v4186 = vor.u32 %v4182, %v4185
      %v4187 = vsel %vm3359, %v4177, %v4186
      %v4189 = vshrl.u32 %v3831, 16
      %v4191 = vrot.slane %v4189, 1
      %v4192 = vshll.u32 %v3831, 16
      %v4194 = vrot.slane %v4192, 2
      %v4195 = vor.u32 %v4191, %v4194
      %v4196 = vsel %vm3359, %v4186, %v4195
      %v4198 = vshrl.u32 %v3832, 16
      %v4200 = vrot.slane %v4198, 1
      %v4201 = vshll.u32 %v3832, 16
      %v4203 = vrot.slane %v4201, 2
      %v4204 = vor.u32 %v4200, %v4203
      %v4205 = vsel %vm3359, %v4195, %v4204
      %v4207 = vshrl.u32 %v3846, 16
      %v4209 = vrot.slane %v4207, 1
      %v4210 = vshll.u32 %v3846, 16
      %v4212 = vrot.slane %v4210, 2
      %v4213 = vor.u32 %v4209, %v4212
      %v4215 = vshrl.u32 %v3847, 16
      %v4217 = vrot.slane %v4215, 1
      %v4218 = vshll.u32 %v3847, 16
      %v4220 = vrot.slane %v4218, 2
      %v4221 = vor.u32 %v4217, %v4220
      %v4222 = vsel %vm3359, %v4213, %v4221
      %v4224 = vshrl.u32 %v3848, 16
      %v4226 = vrot.slane %v4224, 1
      %v4227 = vshll.u32 %v3848, 16
      %v4229 = vrot.slane %v4227, 2
      %v4230 = vor.u32 %v4226, %v4229
      %v4231 = vsel %vm3359, %v4221, %v4230
      %v4233 = vshrl.u32 %v3849, 16
      %v4235 = vrot.slane %v4233, 1
      %v4236 = vshll.u32 %v3849, 16
      %v4238 = vrot.slane %v4236, 2
      %v4239 = vor.u32 %v4235, %v4238
      %v4240 = vsel %vm3359, %v4230, %v4239
      %v4242 = vshrl.u32 %v3850, 16
      %v4244 = vrot.slane %v4242, 1
      %v4245 = vshll.u32 %v3850, 16
      %v4247 = vrot.slane %v4245, 2
      %v4248 = vor.u32 %v4244, %v4247
      %v4249 = vsel %vm3359, %v4239, %v4248
      %v4251 = vshrl.u32 %v3851, 16
      %v4253 = vrot.slane %v4251, 1
      %v4254 = vshll.u32 %v3851, 16
      %v4256 = vrot.slane %v4254, 2
      %v4257 = vor.u32 %v4253, %v4256
      %v4258 = vsel %vm3359, %v4248, %v4257
      %s4259 = scalar_lea.vmem %s4, 224
      %v4260 = vld [vmem:[%s4259] sm:$0xf]
      %v4261 = vld [vmem:[%s4259 + $0x4] sm:$0xf]
      %v4262 = vld [vmem:[%s4259 + $0x8] sm:$0xf]
      %v4263 = vld [vmem:[%s4259 + $0xc] sm:$0xf]
      %v4268 = vunpack.c.l.b16 %v4260
      %v4269 = vunpack.c.l.b16 %v4261
      %v4270 = vunpack.c.l.b16 %v4262
      %v4271 = vunpack.c.l.b16 %v4263
      %v4272 = vpack.c.b16 %v4269, %v4268
      %v4273 = vpack.c.b16 %v4271, %v4270
      %v4277 = vsel %vm1572, %v4169, 0
      %v4280 = vsel %vm1572, %v4178, 0
      %v4283 = vsel %vm1572, %v4187, 0
      %v4286 = vsel %vm1572, %v4196, 0
      %v4289 = vsel %vm1572, %v4205, 0
      %v4292 = vsel %vm1572, %v4222, 0
      %v4295 = vsel %vm1572, %v4231, 0
      %v4298 = vsel %vm1572, %v4240, 0
      %v4301 = vsel %vm1572, %v4249, 0
      %v4304 = vsel %vm1572, %v4258, 0
      %4306 = vmatpush.bf16.msra.mxu0 0
      %4307 = vmatpush.bf16.msra.mxu0 0
      %4308 = vmatpush.bf16.msra.mxu0 0
      %4309 = vmatpush.bf16.msra.mxu0 0
      %4310 = vmatpush.bf16.msra.mxu0 0
      %4311 = vmatpush.bf16.msra.mxu0 0
      %4312 = vmatpush.bf16.msra.mxu0 %v4273
      %4313 = vmatpush.bf16.msra.mxu0 %v4272
      %4314 = vmatmul.bf16.gmra.mxu0 %v4277
      %v4315 = vpop.f32.mrf.mxu0
      %v4316 = vadd.f32 0.0, %v4315
      %v4317 = vpop.f32.mrf.mxu0
      %v4318 = vadd.f32 0.0, %v4317
      %4319 = vmatmul.bf16.gmra.mxu0 %v4280
      %v4320 = vpop.f32.mrf.mxu0
      %v4321 = vadd.f32 0.0, %v4320
      %v4322 = vpop.f32.mrf.mxu0
      %v4323 = vadd.f32 0.0, %v4322
      %4324 = vmatmul.bf16.gmra.mxu0 %v4283
      %v4325 = vpop.f32.mrf.mxu0
      %v4326 = vadd.f32 0.0, %v4325
      %v4327 = vpop.f32.mrf.mxu0
      %v4328 = vadd.f32 0.0, %v4327
      %4329 = vmatmul.bf16.gmra.mxu0 %v4286
      %v4330 = vpop.f32.mrf.mxu0
      %v4331 = vadd.f32 0.0, %v4330
      %v4332 = vpop.f32.mrf.mxu0
      %v4333 = vadd.f32 0.0, %v4332
      %4334 = vmatmul.bf16.gmra.mxu0 %v4289
      %v4335 = vpop.f32.mrf.mxu0
      %v4336 = vadd.f32 0.0, %v4335
      %v4337 = vpop.f32.mrf.mxu0
      %v4338 = vadd.f32 0.0, %v4337
      %4339 = vmatmul.bf16.gmra.mxu0 %v4292
      %v4340 = vpop.f32.mrf.mxu0
      %v4341 = vadd.f32 0.0, %v4340
      %v4342 = vpop.f32.mrf.mxu0
      %v4343 = vadd.f32 0.0, %v4342
      %4344 = vmatmul.bf16.gmra.mxu0 %v4295
      %v4345 = vpop.f32.mrf.mxu0
      %v4346 = vadd.f32 0.0, %v4345
      %v4347 = vpop.f32.mrf.mxu0
      %v4348 = vadd.f32 0.0, %v4347
      %4349 = vmatmul.bf16.gmra.mxu0 %v4298
      %v4350 = vpop.f32.mrf.mxu0
      %v4351 = vadd.f32 0.0, %v4350
      %v4352 = vpop.f32.mrf.mxu0
      %v4353 = vadd.f32 0.0, %v4352
      %4354 = vmatmul.bf16.gmra.mxu0 %v4301
      %v4355 = vpop.f32.mrf.mxu0
      %v4356 = vadd.f32 0.0, %v4355
      %v4357 = vpop.f32.mrf.mxu0
      %v4358 = vadd.f32 0.0, %v4357
      %4359 = vmatmul.bf16.gmra.mxu0 %v4304
      %v4360 = vpop.f32.mrf.mxu0
      %v4361 = vadd.f32 0.0, %v4360
      %v4362 = vpop.f32.mrf.mxu0
      %v4363 = vadd.f32 0.0, %v4362
      %4364 = vdwg.mxu0
      %v4365 = vadd.f32 %v4133, %v4316
      %v4366 = vadd.f32 %v4134, %v4318
      %v4367 = vadd.f32 %v4135, %v4321
      %v4368 = vadd.f32 %v4136, %v4323
      %v4369 = vadd.f32 %v4137, %v4326
      %v4370 = vadd.f32 %v4138, %v4328
      %v4371 = vadd.f32 %v4139, %v4331
      %v4372 = vadd.f32 %v4140, %v4333
      %v4373 = vadd.f32 %v4141, %v4336
      %v4374 = vadd.f32 %v4142, %v4338
      %v4375 = vadd.f32 %v4143, %v4341
      %v4376 = vadd.f32 %v4144, %v4343
      %v4377 = vadd.f32 %v4145, %v4346
      %v4378 = vadd.f32 %v4146, %v4348
      %v4379 = vadd.f32 %v4147, %v4351
      %v4380 = vadd.f32 %v4148, %v4353
      %v4381 = vadd.f32 %v4149, %v4356
      %v4382 = vadd.f32 %v4150, %v4358
      %v4383 = vadd.f32 %v4151, %v4361
      %v4384 = vadd.f32 %v4152, %v4363
      %v4386 = vshrl.u32 %v3991, 16
      %v4388 = vrot.slane %v4386, 3
      %v4389 = vshll.u32 %v3991, 16
      %v4391 = vrot.slane %v4389, 4
      %v4392 = vor.u32 %v4388, %v4391
      %v4394 = vshrl.u32 %v3992, 16
      %v4396 = vrot.slane %v4394, 3
      %v4397 = vshll.u32 %v3992, 16
      %v4399 = vrot.slane %v4397, 4
      %v4400 = vor.u32 %v4396, %v4399
      %v4401 = vsel %vm3592, %v4392, %v4400
      %v4403 = vshrl.u32 %v3993, 16
      %v4405 = vrot.slane %v4403, 3
      %v4406 = vshll.u32 %v3993, 16
      %v4408 = vrot.slane %v4406, 4
      %v4409 = vor.u32 %v4405, %v4408
      %v4410 = vsel %vm3592, %v4400, %v4409
      %v4412 = vshrl.u32 %v3994, 16
      %v4414 = vrot.slane %v4412, 3
      %v4415 = vshll.u32 %v3994, 16
      %v4417 = vrot.slane %v4415, 4
      %v4418 = vor.u32 %v4414, %v4417
      %v4419 = vsel %vm3592, %v4409, %v4418
      %v4421 = vshrl.u32 %v3995, 16
      %v4423 = vrot.slane %v4421, 3
      %v4424 = vshll.u32 %v3995, 16
      %v4426 = vrot.slane %v4424, 4
      %v4427 = vor.u32 %v4423, %v4426
      %v4428 = vsel %vm3592, %v4418, %v4427
      %v4430 = vshrl.u32 %v3996, 16
      %v4432 = vrot.slane %v4430, 3
      %v4433 = vshll.u32 %v3996, 16
      %v4435 = vrot.slane %v4433, 4
      %v4436 = vor.u32 %v4432, %v4435
      %v4437 = vsel %vm3592, %v4427, %v4436
      %v4439 = vshrl.u32 %v4010, 16
      %v4441 = vrot.slane %v4439, 3
      %v4442 = vshll.u32 %v4010, 16
      %v4444 = vrot.slane %v4442, 4
      %v4445 = vor.u32 %v4441, %v4444
      %v4447 = vshrl.u32 %v4011, 16
      %v4449 = vrot.slane %v4447, 3
      %v4450 = vshll.u32 %v4011, 16
      %v4452 = vrot.slane %v4450, 4
      %v4453 = vor.u32 %v4449, %v4452
      %v4454 = vsel %vm3592, %v4445, %v4453
      %v4456 = vshrl.u32 %v4012, 16
      %v4458 = vrot.slane %v4456, 3
      %v4459 = vshll.u32 %v4012, 16
      %v4461 = vrot.slane %v4459, 4
      %v4462 = vor.u32 %v4458, %v4461
      %v4463 = vsel %vm3592, %v4453, %v4462
      %v4465 = vshrl.u32 %v4013, 16
      %v4467 = vrot.slane %v4465, 3
      %v4468 = vshll.u32 %v4013, 16
      %v4470 = vrot.slane %v4468, 4
      %v4471 = vor.u32 %v4467, %v4470
      %v4472 = vsel %vm3592, %v4462, %v4471
      %v4474 = vshrl.u32 %v4014, 16
      %v4476 = vrot.slane %v4474, 3
      %v4477 = vshll.u32 %v4014, 16
      %v4479 = vrot.slane %v4477, 4
      %v4480 = vor.u32 %v4476, %v4479
      %v4481 = vsel %vm3592, %v4471, %v4480
      %v4483 = vshrl.u32 %v4015, 16
      %v4485 = vrot.slane %v4483, 3
      %v4486 = vshll.u32 %v4015, 16
      %v4488 = vrot.slane %v4486, 4
      %v4489 = vor.u32 %v4485, %v4488
      %v4490 = vsel %vm3592, %v4480, %v4489
      %s4491 = scalar_lea.vmem %s4, 240
      %v4492 = vld [vmem:[%s4491] sm:$0xf]
      %v4493 = vld [vmem:[%s4491 + $0x4] sm:$0xf]
      %v4494 = vld [vmem:[%s4491 + $0x8] sm:$0xf]
      %v4495 = vld [vmem:[%s4491 + $0xc] sm:$0xf]
      %v4500 = vunpack.c.l.b16 %v4492
      %v4501 = vunpack.c.l.b16 %v4493
      %v4502 = vunpack.c.l.b16 %v4494
      %v4503 = vunpack.c.l.b16 %v4495
      %v4504 = vpack.c.b16 %v4501, %v4500
      %v4505 = vpack.c.b16 %v4503, %v4502
      %v4509 = vsel %vm1572, %v4401, 0
      %v4512 = vsel %vm1572, %v4410, 0
      %v4515 = vsel %vm1572, %v4419, 0
      %v4518 = vsel %vm1572, %v4428, 0
      %v4521 = vsel %vm1572, %v4437, 0
      %v4524 = vsel %vm1572, %v4454, 0
      %v4527 = vsel %vm1572, %v4463, 0
      %v4530 = vsel %vm1572, %v4472, 0
      %v4533 = vsel %vm1572, %v4481, 0
      %v4536 = vsel %vm1572, %v4490, 0
      %4538 = vmatpush.bf16.msra.mxu0 0
      %4539 = vmatpush.bf16.msra.mxu0 0
      %4540 = vmatpush.bf16.msra.mxu0 0
      %4541 = vmatpush.bf16.msra.mxu0 0
      %4542 = vmatpush.bf16.msra.mxu0 0
      %4543 = vmatpush.bf16.msra.mxu0 0
      %4544 = vmatpush.bf16.msra.mxu0 %v4505
      %4545 = vmatpush.bf16.msra.mxu0 %v4504
      %4546 = vmatmul.bf16.gmra.mxu0 %v4509
      %v4547 = vpop.f32.mrf.mxu0
      %v4548 = vadd.f32 0.0, %v4547
      %v4549 = vpop.f32.mrf.mxu0
      %v4550 = vadd.f32 0.0, %v4549
      %4551 = vmatmul.bf16.gmra.mxu0 %v4512
      %v4552 = vpop.f32.mrf.mxu0
      %v4553 = vadd.f32 0.0, %v4552
      %v4554 = vpop.f32.mrf.mxu0
      %v4555 = vadd.f32 0.0, %v4554
      %4556 = vmatmul.bf16.gmra.mxu0 %v4515
      %v4557 = vpop.f32.mrf.mxu0
      %v4558 = vadd.f32 0.0, %v4557
      %v4559 = vpop.f32.mrf.mxu0
      %v4560 = vadd.f32 0.0, %v4559
      %4561 = vmatmul.bf16.gmra.mxu0 %v4518
      %v4562 = vpop.f32.mrf.mxu0
      %v4563 = vadd.f32 0.0, %v4562
      %v4564 = vpop.f32.mrf.mxu0
      %v4565 = vadd.f32 0.0, %v4564
      %4566 = vmatmul.bf16.gmra.mxu0 %v4521
      %v4567 = vpop.f32.mrf.mxu0
      %v4568 = vadd.f32 0.0, %v4567
      %v4569 = vpop.f32.mrf.mxu0
      %v4570 = vadd.f32 0.0, %v4569
      %4571 = vmatmul.bf16.gmra.mxu0 %v4524
      %v4572 = vpop.f32.mrf.mxu0
      %v4573 = vadd.f32 0.0, %v4572
      %v4574 = vpop.f32.mrf.mxu0
      %v4575 = vadd.f32 0.0, %v4574
      %4576 = vmatmul.bf16.gmra.mxu0 %v4527
      %v4577 = vpop.f32.mrf.mxu0
      %v4578 = vadd.f32 0.0, %v4577
      %v4579 = vpop.f32.mrf.mxu0
      %v4580 = vadd.f32 0.0, %v4579
      %4581 = vmatmul.bf16.gmra.mxu0 %v4530
      %v4582 = vpop.f32.mrf.mxu0
      %v4583 = vadd.f32 0.0, %v4582
      %v4584 = vpop.f32.mrf.mxu0
      %v4585 = vadd.f32 0.0, %v4584
      %4586 = vmatmul.bf16.gmra.mxu0 %v4533
      %v4587 = vpop.f32.mrf.mxu0
      %v4588 = vadd.f32 0.0, %v4587
      %v4589 = vpop.f32.mrf.mxu0
      %v4590 = vadd.f32 0.0, %v4589
      %4591 = vmatmul.bf16.gmra.mxu0 %v4536
      %v4592 = vpop.f32.mrf.mxu0
      %v4593 = vadd.f32 0.0, %v4592
      %v4594 = vpop.f32.mrf.mxu0
      %v4595 = vadd.f32 0.0, %v4594
      %4596 = vdwg.mxu0
      %v4597 = vadd.f32 %v4365, %v4548
      %v4598 = vadd.f32 %v4366, %v4550
      %v4599 = vadd.f32 %v4367, %v4553
      %v4600 = vadd.f32 %v4368, %v4555
      %v4601 = vadd.f32 %v4369, %v4558
      %v4602 = vadd.f32 %v4370, %v4560
      %v4603 = vadd.f32 %v4371, %v4563
      %v4604 = vadd.f32 %v4372, %v4565
      %v4605 = vadd.f32 %v4373, %v4568
      %v4606 = vadd.f32 %v4374, %v4570
      %v4607 = vadd.f32 %v4375, %v4573
      %v4608 = vadd.f32 %v4376, %v4575
      %v4609 = vadd.f32 %v4377, %v4578
      %v4610 = vadd.f32 %v4378, %v4580
      %v4611 = vadd.f32 %v4379, %v4583
      %v4612 = vadd.f32 %v4380, %v4585
      %v4613 = vadd.f32 %v4381, %v4588
      %v4614 = vadd.f32 %v4382, %v4590
      %v4615 = vadd.f32 %v4383, %v4593
      %v4616 = vadd.f32 %v4384, %v4595
      %v4617 = vld [vmem:[%s5] sm:$0x1]
      %v4619 = vperm.slane %v4617, 0
      %v4621 = vadd.f32 %v4597, %v4619
      %v4622 = vadd.f32 %v4598, %v4619
      %v4623 = vadd.f32 %v4599, %v4619
      %v4624 = vadd.f32 %v4600, %v4619
      %v4625 = vadd.f32 %v4601, %v4619
      %v4626 = vadd.f32 %v4602, %v4619
      %v4627 = vadd.f32 %v4603, %v4619
      %v4628 = vadd.f32 %v4604, %v4619
      %v4629 = vadd.f32 %v4605, %v4619
      %v4630 = vadd.f32 %v4606, %v4619
      %v4631 = vadd.f32 %v4607, %v4619
      %v4632 = vadd.f32 %v4608, %v4619
      %v4633 = vadd.f32 %v4609, %v4619
      %v4634 = vadd.f32 %v4610, %v4619
      %v4635 = vadd.f32 %v4611, %v4619
      %v4636 = vadd.f32 %v4612, %v4619
      %v4637 = vadd.f32 %v4613, %v4619
      %v4638 = vadd.f32 %v4614, %v4619
      %v4639 = vadd.f32 %v4615, %v4619
      %v4640 = vadd.f32 %v4616, %v4619
      %v4641 = vmax.f32 %v4621, 0.0
      %v4642 = vmax.f32 %v4622, 0.0
      %v4643 = vmax.f32 %v4623, 0.0
      %v4644 = vmax.f32 %v4624, 0.0
      %v4645 = vmax.f32 %v4625, 0.0
      %v4646 = vmax.f32 %v4626, 0.0
      %v4647 = vmax.f32 %v4627, 0.0
      %v4648 = vmax.f32 %v4628, 0.0
      %v4649 = vmax.f32 %v4629, 0.0
      %v4650 = vmax.f32 %v4630, 0.0
      %v4651 = vmax.f32 %v4631, 0.0
      %v4652 = vmax.f32 %v4632, 0.0
      %v4653 = vmax.f32 %v4633, 0.0
      %v4654 = vmax.f32 %v4634, 0.0
      %v4655 = vmax.f32 %v4635, 0.0
      %v4656 = vmax.f32 %v4636, 0.0
      %v4657 = vmax.f32 %v4637, 0.0
      %v4658 = vmax.f32 %v4638, 0.0
      %v4659 = vmax.f32 %v4639, 0.0
      %v4660 = vmax.f32 %v4640, 0.0
      %v4661 = vpack.c.bf16 %v4641, %v4641
      %v4662 = vpack.c.bf16 %v4642, %v4642
      %v4663 = vpack.c.bf16 %v4643, %v4643
      %v4664 = vpack.c.bf16 %v4644, %v4644
      %v4665 = vpack.c.bf16 %v4645, %v4645
      %v4666 = vpack.c.bf16 %v4646, %v4646
      %v4667 = vpack.c.bf16 %v4647, %v4647
      %v4668 = vpack.c.bf16 %v4648, %v4648
      %v4669 = vpack.c.bf16 %v4649, %v4649
      %v4670 = vpack.c.bf16 %v4650, %v4650
      %v4671 = vpack.c.bf16 %v4651, %v4651
      %v4672 = vpack.c.bf16 %v4652, %v4652
      %v4673 = vpack.c.bf16 %v4653, %v4653
      %v4674 = vpack.c.bf16 %v4654, %v4654
      %v4675 = vpack.c.bf16 %v4655, %v4655
      %v4676 = vpack.c.bf16 %v4656, %v4656
      %v4677 = vpack.c.bf16 %v4657, %v4657
      %v4678 = vpack.c.bf16 %v4658, %v4658
      %v4679 = vpack.c.bf16 %v4659, %v4659
      %v4680 = vpack.c.bf16 %v4660, %v4660
      %v4688 = vunpack.c.l.b16 %v4661
      %v4689 = vunpack.c.l.b16 %v4662
      %v4690 = vunpack.c.l.b16 %v4663
      %v4691 = vunpack.c.l.b16 %v4664
      %v4692 = vunpack.c.l.b16 %v4665
      %v4693 = vunpack.c.l.b16 %v4666
      %v4694 = vunpack.c.l.b16 %v4667
      %v4695 = vpack.c.b16 %v4689, %v4688
      %v4696 = vpack.c.b16 %v4691, %v4690
      %v4697 = vpack.c.b16 %v4693, %v4692
      %v4698 = vpack.c.b16 %v4694, %v4694
      %v4706 = vunpack.c.l.b16 %v4671
      %v4707 = vunpack.c.l.b16 %v4672
      %v4708 = vunpack.c.l.b16 %v4673
      %v4709 = vunpack.c.l.b16 %v4674
      %v4710 = vunpack.c.l.b16 %v4675
      %v4711 = vunpack.c.l.b16 %v4676
      %v4712 = vunpack.c.l.b16 %v4677
      %v4713 = vpack.c.b16 %v4706, %v4706
      %v4714 = vpack.c.b16 %v4708, %v4707
      %v4715 = vpack.c.b16 %v4710, %v4709
      %v4716 = vpack.c.b16 %v4712, %v4711
      %vm4717 = vcmask 1043456
      %v4720 = vsel %vm4717, %v4698, %v4713
      %v4721 = vld [vmem:[%s6] sm:$0xf]
      %v4722 = vld [vmem:[%s6 + $0x4] sm:$0xf]
      %v4723 = vld [vmem:[%s6 + $0x8] sm:$0xf]
      %v4724 = vld [vmem:[%s6 + $0xc] sm:$0xf]
      %v4725 = vld [vmem:[%s6 + $0x10] sm:$0xf]
      %v4726 = vld [vmem:[%s6 + $0x14] sm:$0xf]
      %v4727 = vld [vmem:[%s6 + $0x18] sm:$0xf]
      %v4728 = vld [vmem:[%s6 + $0x1c] sm:$0xf]
      %v4730 = vunpack.c.l.b16 %v4668
      %v4731 = vpack.c.b16 %v4730, %v4694
      %v4733 = vshrl.u32 %v4695, 16
      %v4735 = vshll.u32 %v4695, 16
      %v4737 = vrot.slane %v4735, 1
      %v4738 = vor.u32 %v4733, %v4737
      %v4740 = vshll.u32 %v4696, 16
      %v4742 = vrot.slane %v4740, 1
      %v4743 = vsel %vm1766, %v4738, %v4742
      %v4744 = vshrl.u32 %v4696, 16
      %v4746 = vor.u32 %v4744, %v4742
      %v4748 = vshll.u32 %v4697, 16
      %v4750 = vrot.slane %v4748, 1
      %v4751 = vsel %vm1766, %v4746, %v4750
      %v4752 = vshrl.u32 %v4697, 16
      %v4754 = vor.u32 %v4752, %v4750
      %v4756 = vshll.u32 %v4731, 16
      %v4758 = vrot.slane %v4756, 1
      %v4759 = vsel %vm1766, %v4754, %v4758
      %v4760 = vshrl.u32 %v4731, 16
      %v4762 = vor.u32 %v4760, %v4758
      %v4764 = vunpack.c.l.b16 %v4678
      %v4765 = vpack.c.b16 %v4707, %v4706
      %v4766 = vpack.c.b16 %v4709, %v4708
      %v4767 = vpack.c.b16 %v4711, %v4710
      %v4768 = vpack.c.b16 %v4764, %v4712
      %vm4769 = vsmask.f32 3328
      %v4771 = vshrl.u32 %v4765, 16
      %v4773 = vrot.slane %v4771, 4
      %v4774 = vshll.u32 %v4765, 16
      %v4776 = vrot.slane %v4774, 5
      %v4777 = vor.u32 %v4773, %v4776
      %v4779 = vshrl.u32 %v4766, 16
      %v4781 = vrot.slane %v4779, 4
      %v4782 = vshll.u32 %v4766, 16
      %v4784 = vrot.slane %v4782, 5
      %v4785 = vor.u32 %v4781, %v4784
      %v4786 = vsel %vm4769, %v4777, %v4785
      %v4788 = vshrl.u32 %v4767, 16
      %v4790 = vrot.slane %v4788, 4
      %v4791 = vshll.u32 %v4767, 16
      %v4793 = vrot.slane %v4791, 5
      %v4794 = vor.u32 %v4790, %v4793
      %v4795 = vsel %vm4769, %v4785, %v4794
      %v4797 = vshrl.u32 %v4768, 16
      %v4799 = vrot.slane %v4797, 4
      %v4800 = vshll.u32 %v4768, 16
      %v4802 = vrot.slane %v4800, 5
      %v4803 = vor.u32 %v4799, %v4802
      %v4804 = vsel %vm4769, %v4794, %v4803
      %v4807 = vsel %vm4717, %v4762, %v4777
      %s4808 = scalar_lea.vmem %s6, 32
      %v4809 = vld [vmem:[%s4808] sm:$0xf]
      %v4810 = vld [vmem:[%s4808 + $0x4] sm:$0xf]
      %v4811 = vld [vmem:[%s4808 + $0x8] sm:$0xf]
      %v4812 = vld [vmem:[%s4808 + $0xc] sm:$0xf]
      %v4813 = vld [vmem:[%s4808 + $0x10] sm:$0xf]
      %v4814 = vld [vmem:[%s4808 + $0x14] sm:$0xf]
      %v4815 = vld [vmem:[%s4808 + $0x18] sm:$0xf]
      %v4816 = vld [vmem:[%s4808 + $0x1c] sm:$0xf]
      %v4825 = vunpack.c.l.b16 %v4809
      %v4826 = vunpack.c.l.b16 %v4810
      %v4827 = vunpack.c.l.b16 %v4811
      %v4828 = vunpack.c.l.b16 %v4812
      %v4829 = vunpack.c.l.b16 %v4813
      %v4830 = vunpack.c.l.b16 %v4814
      %v4831 = vunpack.c.l.b16 %v4815
      %v4832 = vunpack.c.l.b16 %v4816
      %v4833 = vpack.c.b16 %v4826, %v4825
      %v4834 = vpack.c.b16 %v4828, %v4827
      %v4835 = vpack.c.b16 %v4830, %v4829
      %v4836 = vpack.c.b16 %v4832, %v4831
      %v4842 = vsel %vm824, %v4743, 0
      %v4845 = vsel %vm824, %v4751, 0
      %v4848 = vsel %vm824, %v4759, 0
      %v4850 = vsel %vm824, %v4807, 0
      %v4853 = vsel %vm824, %v4786, 0
      %v4856 = vsel %vm824, %v4795, 0
      %v4859 = vsel %vm824, %v4804, 0
      %4861 = vmatpush.bf16.msra.mxu0 0
      %4862 = vmatpush.bf16.msra.mxu0 0
      %4863 = vmatpush.bf16.msra.mxu0 0
      %4864 = vmatpush.bf16.msra.mxu0 0
      %4865 = vmatpush.bf16.msra.mxu0 %v4836
      %4866 = vmatpush.bf16.msra.mxu0 %v4835
      %4867 = vmatpush.bf16.msra.mxu0 %v4834
      %4868 = vmatpush.bf16.msra.mxu0 %v4833
      %4869 = vmatmul.bf16.gmra.mxu0 %v4842
      %v4870 = vpop.f32.mrf.mxu0
      %v4871 = vadd.f32 0.0, %v4870
      %v4872 = vpop.f32.mrf.mxu0
      %v4873 = vadd.f32 0.0, %v4872
      %4874 = vmatmul.bf16.gmra.mxu0 %v4845
      %v4875 = vpop.f32.mrf.mxu0
      %v4876 = vadd.f32 0.0, %v4875
      %v4877 = vpop.f32.mrf.mxu0
      %v4878 = vadd.f32 0.0, %v4877
      %4879 = vmatmul.bf16.gmra.mxu0 %v4848
      %v4880 = vpop.f32.mrf.mxu0
      %v4881 = vadd.f32 0.0, %v4880
      %v4882 = vpop.f32.mrf.mxu0
      %v4883 = vadd.f32 0.0, %v4882
      %4884 = vmatmul.bf16.gmra.mxu0 %v4850
      %v4885 = vpop.f32.mrf.mxu0
      %v4886 = vadd.f32 0.0, %v4885
      %v4887 = vpop.f32.mrf.mxu0
      %v4888 = vadd.f32 0.0, %v4887
      %4889 = vmatmul.bf16.gmra.mxu0 %v4853
      %v4890 = vpop.f32.mrf.mxu0
      %v4891 = vadd.f32 0.0, %v4890
      %v4892 = vpop.f32.mrf.mxu0
      %v4893 = vadd.f32 0.0, %v4892
      %4894 = vmatmul.bf16.gmra.mxu0 %v4856
      %v4895 = vpop.f32.mrf.mxu0
      %v4896 = vadd.f32 0.0, %v4895
      %v4897 = vpop.f32.mrf.mxu0
      %v4898 = vadd.f32 0.0, %v4897
      %4899 = vmatmul.bf16.gmra.mxu0 %v4859
      %v4900 = vpop.f32.mrf.mxu0
      %v4901 = vadd.f32 0.0, %v4900
      %v4902 = vpop.f32.mrf.mxu0
      %v4903 = vadd.f32 0.0, %v4902
      %4904 = vdwg.mxu0
      %v4913 = vunpack.c.l.b16 %v4721
      %v4914 = vunpack.c.l.b16 %v4722
      %v4915 = vunpack.c.l.b16 %v4723
      %v4916 = vunpack.c.l.b16 %v4724
      %v4917 = vunpack.c.l.b16 %v4725
      %v4918 = vunpack.c.l.b16 %v4726
      %v4919 = vunpack.c.l.b16 %v4727
      %v4920 = vunpack.c.l.b16 %v4728
      %v4921 = vpack.c.b16 %v4914, %v4913
      %v4922 = vpack.c.b16 %v4916, %v4915
      %v4923 = vpack.c.b16 %v4918, %v4917
      %v4924 = vpack.c.b16 %v4920, %v4919
      %v4929 = vsel %vm824, %v4695, 0
      %v4931 = vsel %vm824, %v4696, 0
      %v4933 = vsel %vm824, %v4697, 0
      %v4935 = vsel %vm824, %v4720, 0
      %v4938 = vsel %vm824, %v4714, 0
      %v4941 = vsel %vm824, %v4715, 0
      %v4944 = vsel %vm824, %v4716, 0
      %4946 = vmatpush.bf16.msra.mxu0 0
      %4947 = vmatpush.bf16.msra.mxu0 0
      %4948 = vmatpush.bf16.msra.mxu0 0
      %4949 = vmatpush.bf16.msra.mxu0 0
      %4950 = vmatpush.bf16.msra.mxu0 %v4924
      %4951 = vmatpush.bf16.msra.mxu0 %v4923
      %4952 = vmatpush.bf16.msra.mxu0 %v4922
      %4953 = vmatpush.bf16.msra.mxu0 %v4921
      %4954 = vmatmul.bf16.gmra.mxu0 %v4929
      %v4955 = vpop.f32.mrf.mxu0
      %v4956 = vadd.f32 %v4871, %v4955
      %v4957 = vpop.f32.mrf.mxu0
      %v4958 = vadd.f32 %v4873, %v4957
      %4959 = vmatmul.bf16.gmra.mxu0 %v4931
      %v4960 = vpop.f32.mrf.mxu0
      %v4961 = vadd.f32 %v4876, %v4960
      %v4962 = vpop.f32.mrf.mxu0
      %v4963 = vadd.f32 %v4878, %v4962
      %4964 = vmatmul.bf16.gmra.mxu0 %v4933
      %v4965 = vpop.f32.mrf.mxu0
      %v4966 = vadd.f32 %v4881, %v4965
      %v4967 = vpop.f32.mrf.mxu0
      %v4968 = vadd.f32 %v4883, %v4967
      %4969 = vmatmul.bf16.gmra.mxu0 %v4935
      %v4970 = vpop.f32.mrf.mxu0
      %v4971 = vadd.f32 %v4886, %v4970
      %v4972 = vpop.f32.mrf.mxu0
      %v4973 = vadd.f32 %v4888, %v4972
      %4974 = vmatmul.bf16.gmra.mxu0 %v4938
      %v4975 = vpop.f32.mrf.mxu0
      %v4976 = vadd.f32 %v4891, %v4975
      %v4977 = vpop.f32.mrf.mxu0
      %v4978 = vadd.f32 %v4893, %v4977
      %4979 = vmatmul.bf16.gmra.mxu0 %v4941
      %v4980 = vpop.f32.mrf.mxu0
      %v4981 = vadd.f32 %v4896, %v4980
      %v4982 = vpop.f32.mrf.mxu0
      %v4983 = vadd.f32 %v4898, %v4982
      %4984 = vmatmul.bf16.gmra.mxu0 %v4944
      %v4985 = vpop.f32.mrf.mxu0
      %v4986 = vadd.f32 %v4901, %v4985
      %v4987 = vpop.f32.mrf.mxu0
      %v4988 = vadd.f32 %v4903, %v4987
      %4989 = vdwg.mxu0
      %v4990 = vrot.slane %v4695, 1
      %v4991 = vrot.slane %v4696, 1
      %v4992 = vsel %vm3037, %v4990, %v4991
      %v4993 = vrot.slane %v4697, 1
      %v4994 = vsel %vm3037, %v4991, %v4993
      %v4995 = vrot.slane %v4731, 1
      %v4996 = vsel %vm3037, %v4993, %v4995
      %vm4997 = vcmask 1042432
      %v4998 = vrot.slane %v4765, 5
      %v4999 = vrot.slane %v4766, 5
      %v5000 = vsel %vm4997, %v4998, %v4999
      %v5001 = vrot.slane %v4767, 5
      %v5002 = vsel %vm4997, %v4999, %v5001
      %v5003 = vrot.slane %v4768, 5
      %v5004 = vsel %vm4997, %v5001, %v5003
      %v5007 = vsel %vm4717, %v4995, %v4998
      %s5008 = scalar_lea.vmem %s6, 64
      %v5009 = vld [vmem:[%s5008] sm:$0xf]
      %v5010 = vld [vmem:[%s5008 + $0x4] sm:$0xf]
      %v5011 = vld [vmem:[%s5008 + $0x8] sm:$0xf]
      %v5012 = vld [vmem:[%s5008 + $0xc] sm:$0xf]
      %v5013 = vld [vmem:[%s5008 + $0x10] sm:$0xf]
      %v5014 = vld [vmem:[%s5008 + $0x14] sm:$0xf]
      %v5015 = vld [vmem:[%s5008 + $0x18] sm:$0xf]
      %v5016 = vld [vmem:[%s5008 + $0x1c] sm:$0xf]
      %v5025 = vunpack.c.l.b16 %v5009
      %v5026 = vunpack.c.l.b16 %v5010
      %v5027 = vunpack.c.l.b16 %v5011
      %v5028 = vunpack.c.l.b16 %v5012
      %v5029 = vunpack.c.l.b16 %v5013
      %v5030 = vunpack.c.l.b16 %v5014
      %v5031 = vunpack.c.l.b16 %v5015
      %v5032 = vunpack.c.l.b16 %v5016
      %v5033 = vpack.c.b16 %v5026, %v5025
      %v5034 = vpack.c.b16 %v5028, %v5027
      %v5035 = vpack.c.b16 %v5030, %v5029
      %v5036 = vpack.c.b16 %v5032, %v5031
      %v5042 = vsel %vm824, %v4992, 0
      %v5045 = vsel %vm824, %v4994, 0
      %v5048 = vsel %vm824, %v4996, 0
      %v5050 = vsel %vm824, %v5007, 0
      %v5053 = vsel %vm824, %v5000, 0
      %v5056 = vsel %vm824, %v5002, 0
      %v5059 = vsel %vm824, %v5004, 0
      %5061 = vmatpush.bf16.msra.mxu0 0
      %5062 = vmatpush.bf16.msra.mxu0 0
      %5063 = vmatpush.bf16.msra.mxu0 0
      %5064 = vmatpush.bf16.msra.mxu0 0
      %5065 = vmatpush.bf16.msra.mxu0 %v5036
      %5066 = vmatpush.bf16.msra.mxu0 %v5035
      %5067 = vmatpush.bf16.msra.mxu0 %v5034
      %5068 = vmatpush.bf16.msra.mxu0 %v5033
      %5069 = vmatmul.bf16.gmra.mxu0 %v5042
      %v5070 = vpop.f32.mrf.mxu0
      %v5071 = vadd.f32 0.0, %v5070
      %v5072 = vpop.f32.mrf.mxu0
      %v5073 = vadd.f32 0.0, %v5072
      %5074 = vmatmul.bf16.gmra.mxu0 %v5045
      %v5075 = vpop.f32.mrf.mxu0
      %v5076 = vadd.f32 0.0, %v5075
      %v5077 = vpop.f32.mrf.mxu0
      %v5078 = vadd.f32 0.0, %v5077
      %5079 = vmatmul.bf16.gmra.mxu0 %v5048
      %v5080 = vpop.f32.mrf.mxu0
      %v5081 = vadd.f32 0.0, %v5080
      %v5082 = vpop.f32.mrf.mxu0
      %v5083 = vadd.f32 0.0, %v5082
      %5084 = vmatmul.bf16.gmra.mxu0 %v5050
      %v5085 = vpop.f32.mrf.mxu0
      %v5086 = vadd.f32 0.0, %v5085
      %v5087 = vpop.f32.mrf.mxu0
      %v5088 = vadd.f32 0.0, %v5087
      %5089 = vmatmul.bf16.gmra.mxu0 %v5053
      %v5090 = vpop.f32.mrf.mxu0
      %v5091 = vadd.f32 0.0, %v5090
      %v5092 = vpop.f32.mrf.mxu0
      %v5093 = vadd.f32 0.0, %v5092
      %5094 = vmatmul.bf16.gmra.mxu0 %v5056
      %v5095 = vpop.f32.mrf.mxu0
      %v5096 = vadd.f32 0.0, %v5095
      %v5097 = vpop.f32.mrf.mxu0
      %v5098 = vadd.f32 0.0, %v5097
      %5099 = vmatmul.bf16.gmra.mxu0 %v5059
      %v5100 = vpop.f32.mrf.mxu0
      %v5101 = vadd.f32 0.0, %v5100
      %v5102 = vpop.f32.mrf.mxu0
      %v5103 = vadd.f32 0.0, %v5102
      %5104 = vdwg.mxu0
      %v5105 = vadd.f32 %v4956, %v5071
      %v5106 = vadd.f32 %v4958, %v5073
      %v5107 = vadd.f32 %v4961, %v5076
      %v5108 = vadd.f32 %v4963, %v5078
      %v5109 = vadd.f32 %v4966, %v5081
      %v5110 = vadd.f32 %v4968, %v5083
      %v5111 = vadd.f32 %v4971, %v5086
      %v5112 = vadd.f32 %v4973, %v5088
      %v5113 = vadd.f32 %v4976, %v5091
      %v5114 = vadd.f32 %v4978, %v5093
      %v5115 = vadd.f32 %v4981, %v5096
      %v5116 = vadd.f32 %v4983, %v5098
      %v5117 = vadd.f32 %v4986, %v5101
      %v5118 = vadd.f32 %v4988, %v5103
      %v5120 = vunpack.c.l.b16 %v4669
      %v5121 = vpack.c.b16 %v4690, %v4689
      %v5122 = vpack.c.b16 %v4692, %v4691
      %v5123 = vpack.c.b16 %v4694, %v4693
      %v5124 = vpack.c.b16 %v5120, %v4730
      %v5125 = vrot.slane %v5121, 1
      %v5126 = vrot.slane %v5122, 1
      %v5127 = vsel %vm3037, %v5125, %v5126
      %v5128 = vrot.slane %v5123, 1
      %v5129 = vsel %vm3037, %v5126, %v5128
      %v5130 = vrot.slane %v5124, 1
      %v5131 = vsel %vm3037, %v5128, %v5130
      %v5133 = vunpack.c.l.b16 %v4679
      %v5134 = vpack.c.b16 %v5133, %v4764
      %v5135 = vrot.slane %v4714, 5
      %v5136 = vrot.slane %v4715, 5
      %v5137 = vsel %vm4997, %v5135, %v5136
      %v5138 = vrot.slane %v4716, 5
      %v5139 = vsel %vm4997, %v5136, %v5138
      %v5140 = vrot.slane %v5134, 5
      %v5141 = vsel %vm4997, %v5138, %v5140
      %v5144 = vsel %vm4717, %v5130, %v5135
      %s5145 = scalar_lea.vmem %s6, 96
      %v5146 = vld [vmem:[%s5145] sm:$0xf]
      %v5147 = vld [vmem:[%s5145 + $0x4] sm:$0xf]
      %v5148 = vld [vmem:[%s5145 + $0x8] sm:$0xf]
      %v5149 = vld [vmem:[%s5145 + $0xc] sm:$0xf]
      %v5150 = vld [vmem:[%s5145 + $0x10] sm:$0xf]
      %v5151 = vld [vmem:[%s5145 + $0x14] sm:$0xf]
      %v5152 = vld [vmem:[%s5145 + $0x18] sm:$0xf]
      %v5153 = vld [vmem:[%s5145 + $0x1c] sm:$0xf]
      %v5162 = vunpack.c.l.b16 %v5146
      %v5163 = vunpack.c.l.b16 %v5147
      %v5164 = vunpack.c.l.b16 %v5148
      %v5165 = vunpack.c.l.b16 %v5149
      %v5166 = vunpack.c.l.b16 %v5150
      %v5167 = vunpack.c.l.b16 %v5151
      %v5168 = vunpack.c.l.b16 %v5152
      %v5169 = vunpack.c.l.b16 %v5153
      %v5170 = vpack.c.b16 %v5163, %v5162
      %v5171 = vpack.c.b16 %v5165, %v5164
      %v5172 = vpack.c.b16 %v5167, %v5166
      %v5173 = vpack.c.b16 %v5169, %v5168
      %v5179 = vsel %vm824, %v5127, 0
      %v5182 = vsel %vm824, %v5129, 0
      %v5185 = vsel %vm824, %v5131, 0
      %v5187 = vsel %vm824, %v5144, 0
      %v5190 = vsel %vm824, %v5137, 0
      %v5193 = vsel %vm824, %v5139, 0
      %v5196 = vsel %vm824, %v5141, 0
      %5198 = vmatpush.bf16.msra.mxu0 0
      %5199 = vmatpush.bf16.msra.mxu0 0
      %5200 = vmatpush.bf16.msra.mxu0 0
      %5201 = vmatpush.bf16.msra.mxu0 0
      %5202 = vmatpush.bf16.msra.mxu0 %v5173
      %5203 = vmatpush.bf16.msra.mxu0 %v5172
      %5204 = vmatpush.bf16.msra.mxu0 %v5171
      %5205 = vmatpush.bf16.msra.mxu0 %v5170
      %5206 = vmatmul.bf16.gmra.mxu0 %v5179
      %v5207 = vpop.f32.mrf.mxu0
      %v5208 = vadd.f32 0.0, %v5207
      %v5209 = vpop.f32.mrf.mxu0
      %v5210 = vadd.f32 0.0, %v5209
      %5211 = vmatmul.bf16.gmra.mxu0 %v5182
      %v5212 = vpop.f32.mrf.mxu0
      %v5213 = vadd.f32 0.0, %v5212
      %v5214 = vpop.f32.mrf.mxu0
      %v5215 = vadd.f32 0.0, %v5214
      %5216 = vmatmul.bf16.gmra.mxu0 %v5185
      %v5217 = vpop.f32.mrf.mxu0
      %v5218 = vadd.f32 0.0, %v5217
      %v5219 = vpop.f32.mrf.mxu0
      %v5220 = vadd.f32 0.0, %v5219
      %5221 = vmatmul.bf16.gmra.mxu0 %v5187
      %v5222 = vpop.f32.mrf.mxu0
      %v5223 = vadd.f32 0.0, %v5222
      %v5224 = vpop.f32.mrf.mxu0
      %v5225 = vadd.f32 0.0, %v5224
      %5226 = vmatmul.bf16.gmra.mxu0 %v5190
      %v5227 = vpop.f32.mrf.mxu0
      %v5228 = vadd.f32 0.0, %v5227
      %v5229 = vpop.f32.mrf.mxu0
      %v5230 = vadd.f32 0.0, %v5229
      %5231 = vmatmul.bf16.gmra.mxu0 %v5193
      %v5232 = vpop.f32.mrf.mxu0
      %v5233 = vadd.f32 0.0, %v5232
      %v5234 = vpop.f32.mrf.mxu0
      %v5235 = vadd.f32 0.0, %v5234
      %5236 = vmatmul.bf16.gmra.mxu0 %v5196
      %v5237 = vpop.f32.mrf.mxu0
      %v5238 = vadd.f32 0.0, %v5237
      %v5239 = vpop.f32.mrf.mxu0
      %v5240 = vadd.f32 0.0, %v5239
      %5241 = vdwg.mxu0
      %v5242 = vadd.f32 %v5105, %v5208
      %v5243 = vadd.f32 %v5106, %v5210
      %v5244 = vadd.f32 %v5107, %v5213
      %v5245 = vadd.f32 %v5108, %v5215
      %v5246 = vadd.f32 %v5109, %v5218
      %v5247 = vadd.f32 %v5110, %v5220
      %v5248 = vadd.f32 %v5111, %v5223
      %v5249 = vadd.f32 %v5112, %v5225
      %v5250 = vadd.f32 %v5113, %v5228
      %v5251 = vadd.f32 %v5114, %v5230
      %v5252 = vadd.f32 %v5115, %v5233
      %v5253 = vadd.f32 %v5116, %v5235
      %v5254 = vadd.f32 %v5117, %v5238
      %v5255 = vadd.f32 %v5118, %v5240
      %v5257 = vshrl.u32 %v5121, 16
      %v5259 = vrot.slane %v5257, 1
      %v5260 = vshll.u32 %v5121, 16
      %v5262 = vrot.slane %v5260, 2
      %v5263 = vor.u32 %v5259, %v5262
      %v5265 = vshrl.u32 %v5122, 16
      %v5267 = vrot.slane %v5265, 1
      %v5268 = vshll.u32 %v5122, 16
      %v5270 = vrot.slane %v5268, 2
      %v5271 = vor.u32 %v5267, %v5270
      %v5272 = vsel %vm3359, %v5263, %v5271
      %v5274 = vshrl.u32 %v5123, 16
      %v5276 = vrot.slane %v5274, 1
      %v5277 = vshll.u32 %v5123, 16
      %v5279 = vrot.slane %v5277, 2
      %v5280 = vor.u32 %v5276, %v5279
      %v5281 = vsel %vm3359, %v5271, %v5280
      %v5283 = vshrl.u32 %v5124, 16
      %v5285 = vrot.slane %v5283, 1
      %v5286 = vshll.u32 %v5124, 16
      %v5288 = vrot.slane %v5286, 2
      %v5289 = vor.u32 %v5285, %v5288
      %v5290 = vsel %vm3359, %v5280, %v5289
      %vm5291 = vsmask.f32 2304
      %v5292 = vshrl.u32 %v4714, 16
      %v5294 = vrot.slane %v5292, 5
      %v5295 = vshll.u32 %v4714, 16
      %v5297 = vrot.slane %v5295, 6
      %v5298 = vor.u32 %v5294, %v5297
      %v5299 = vshrl.u32 %v4715, 16
      %v5301 = vrot.slane %v5299, 5
      %v5302 = vshll.u32 %v4715, 16
      %v5304 = vrot.slane %v5302, 6
      %v5305 = vor.u32 %v5301, %v5304
      %v5306 = vsel %vm5291, %v5298, %v5305
      %v5307 = vshrl.u32 %v4716, 16
      %v5309 = vrot.slane %v5307, 5
      %v5310 = vshll.u32 %v4716, 16
      %v5312 = vrot.slane %v5310, 6
      %v5313 = vor.u32 %v5309, %v5312
      %v5314 = vsel %vm5291, %v5305, %v5313
      %v5316 = vshrl.u32 %v5134, 16
      %v5318 = vrot.slane %v5316, 5
      %v5319 = vshll.u32 %v5134, 16
      %v5321 = vrot.slane %v5319, 6
      %v5322 = vor.u32 %v5318, %v5321
      %v5323 = vsel %vm5291, %v5313, %v5322
      %v5326 = vsel %vm4717, %v5289, %v5298
      %s5327 = scalar_lea.vmem %s6, 128
      %v5328 = vld [vmem:[%s5327] sm:$0xf]
      %v5329 = vld [vmem:[%s5327 + $0x4] sm:$0xf]
      %v5330 = vld [vmem:[%s5327 + $0x8] sm:$0xf]
      %v5331 = vld [vmem:[%s5327 + $0xc] sm:$0xf]
      %v5332 = vld [vmem:[%s5327 + $0x10] sm:$0xf]
      %v5333 = vld [vmem:[%s5327 + $0x14] sm:$0xf]
      %v5334 = vld [vmem:[%s5327 + $0x18] sm:$0xf]
      %v5335 = vld [vmem:[%s5327 + $0x1c] sm:$0xf]
      %v5344 = vunpack.c.l.b16 %v5328
      %v5345 = vunpack.c.l.b16 %v5329
      %v5346 = vunpack.c.l.b16 %v5330
      %v5347 = vunpack.c.l.b16 %v5331
      %v5348 = vunpack.c.l.b16 %v5332
      %v5349 = vunpack.c.l.b16 %v5333
      %v5350 = vunpack.c.l.b16 %v5334
      %v5351 = vunpack.c.l.b16 %v5335
      %v5352 = vpack.c.b16 %v5345, %v5344
      %v5353 = vpack.c.b16 %v5347, %v5346
      %v5354 = vpack.c.b16 %v5349, %v5348
      %v5355 = vpack.c.b16 %v5351, %v5350
      %v5361 = vsel %vm824, %v5272, 0
      %v5364 = vsel %vm824, %v5281, 0
      %v5367 = vsel %vm824, %v5290, 0
      %v5369 = vsel %vm824, %v5326, 0
      %v5372 = vsel %vm824, %v5306, 0
      %v5375 = vsel %vm824, %v5314, 0
      %v5378 = vsel %vm824, %v5323, 0
      %5380 = vmatpush.bf16.msra.mxu0 0
      %5381 = vmatpush.bf16.msra.mxu0 0
      %5382 = vmatpush.bf16.msra.mxu0 0
      %5383 = vmatpush.bf16.msra.mxu0 0
      %5384 = vmatpush.bf16.msra.mxu0 %v5355
      %5385 = vmatpush.bf16.msra.mxu0 %v5354
      %5386 = vmatpush.bf16.msra.mxu0 %v5353
      %5387 = vmatpush.bf16.msra.mxu0 %v5352
      %5388 = vmatmul.bf16.gmra.mxu0 %v5361
      %v5389 = vpop.f32.mrf.mxu0
      %v5390 = vadd.f32 0.0, %v5389
      %v5391 = vpop.f32.mrf.mxu0
      %v5392 = vadd.f32 0.0, %v5391
      %5393 = vmatmul.bf16.gmra.mxu0 %v5364
      %v5394 = vpop.f32.mrf.mxu0
      %v5395 = vadd.f32 0.0, %v5394
      %v5396 = vpop.f32.mrf.mxu0
      %v5397 = vadd.f32 0.0, %v5396
      %5398 = vmatmul.bf16.gmra.mxu0 %v5367
      %v5399 = vpop.f32.mrf.mxu0
      %v5400 = vadd.f32 0.0, %v5399
      %v5401 = vpop.f32.mrf.mxu0
      %v5402 = vadd.f32 0.0, %v5401
      %5403 = vmatmul.bf16.gmra.mxu0 %v5369
      %v5404 = vpop.f32.mrf.mxu0
      %v5405 = vadd.f32 0.0, %v5404
      %v5406 = vpop.f32.mrf.mxu0
      %v5407 = vadd.f32 0.0, %v5406
      %5408 = vmatmul.bf16.gmra.mxu0 %v5372
      %v5409 = vpop.f32.mrf.mxu0
      %v5410 = vadd.f32 0.0, %v5409
      %v5411 = vpop.f32.mrf.mxu0
      %v5412 = vadd.f32 0.0, %v5411
      %5413 = vmatmul.bf16.gmra.mxu0 %v5375
      %v5414 = vpop.f32.mrf.mxu0
      %v5415 = vadd.f32 0.0, %v5414
      %v5416 = vpop.f32.mrf.mxu0
      %v5417 = vadd.f32 0.0, %v5416
      %5418 = vmatmul.bf16.gmra.mxu0 %v5378
      %v5419 = vpop.f32.mrf.mxu0
      %v5420 = vadd.f32 0.0, %v5419
      %v5421 = vpop.f32.mrf.mxu0
      %v5422 = vadd.f32 0.0, %v5421
      %5423 = vdwg.mxu0
      %v5424 = vadd.f32 %v5242, %v5390
      %v5425 = vadd.f32 %v5243, %v5392
      %v5426 = vadd.f32 %v5244, %v5395
      %v5427 = vadd.f32 %v5245, %v5397
      %v5428 = vadd.f32 %v5246, %v5400
      %v5429 = vadd.f32 %v5247, %v5402
      %v5430 = vadd.f32 %v5248, %v5405
      %v5431 = vadd.f32 %v5249, %v5407
      %v5432 = vadd.f32 %v5250, %v5410
      %v5433 = vadd.f32 %v5251, %v5412
      %v5434 = vadd.f32 %v5252, %v5415
      %v5435 = vadd.f32 %v5253, %v5417
      %v5436 = vadd.f32 %v5254, %v5420
      %v5437 = vadd.f32 %v5255, %v5422
      %v5438 = vrot.slane %v5121, 2
      %v5439 = vrot.slane %v5122, 2
      %v5440 = vsel %vm1504, %v5438, %v5439
      %v5441 = vrot.slane %v5123, 2
      %v5442 = vsel %vm1504, %v5439, %v5441
      %v5443 = vrot.slane %v5124, 2
      %v5444 = vsel %vm1504, %v5441, %v5443
      %vm5445 = vcmask 1041408
      %v5446 = vrot.slane %v4714, 6
      %v5447 = vrot.slane %v4715, 6
      %v5448 = vsel %vm5445, %v5446, %v5447
      %v5449 = vrot.slane %v4716, 6
      %v5450 = vsel %vm5445, %v5447, %v5449
      %v5451 = vrot.slane %v5134, 6
      %v5452 = vsel %vm5445, %v5449, %v5451
      %v5455 = vsel %vm4717, %v5443, %v5446
      %s5456 = scalar_lea.vmem %s6, 160
      %v5457 = vld [vmem:[%s5456] sm:$0xf]
      %v5458 = vld [vmem:[%s5456 + $0x4] sm:$0xf]
      %v5459 = vld [vmem:[%s5456 + $0x8] sm:$0xf]
      %v5460 = vld [vmem:[%s5456 + $0xc] sm:$0xf]
      %v5461 = vld [vmem:[%s5456 + $0x10] sm:$0xf]
      %v5462 = vld [vmem:[%s5456 + $0x14] sm:$0xf]
      %v5463 = vld [vmem:[%s5456 + $0x18] sm:$0xf]
      %v5464 = vld [vmem:[%s5456 + $0x1c] sm:$0xf]
      %v5473 = vunpack.c.l.b16 %v5457
      %v5474 = vunpack.c.l.b16 %v5458
      %v5475 = vunpack.c.l.b16 %v5459
      %v5476 = vunpack.c.l.b16 %v5460
      %v5477 = vunpack.c.l.b16 %v5461
      %v5478 = vunpack.c.l.b16 %v5462
      %v5479 = vunpack.c.l.b16 %v5463
      %v5480 = vunpack.c.l.b16 %v5464
      %v5481 = vpack.c.b16 %v5474, %v5473
      %v5482 = vpack.c.b16 %v5476, %v5475
      %v5483 = vpack.c.b16 %v5478, %v5477
      %v5484 = vpack.c.b16 %v5480, %v5479
      %v5490 = vsel %vm824, %v5440, 0
      %v5493 = vsel %vm824, %v5442, 0
      %v5496 = vsel %vm824, %v5444, 0
      %v5498 = vsel %vm824, %v5455, 0
      %v5501 = vsel %vm824, %v5448, 0
      %v5504 = vsel %vm824, %v5450, 0
      %v5507 = vsel %vm824, %v5452, 0
      %5509 = vmatpush.bf16.msra.mxu0 0
      %5510 = vmatpush.bf16.msra.mxu0 0
      %5511 = vmatpush.bf16.msra.mxu0 0
      %5512 = vmatpush.bf16.msra.mxu0 0
      %5513 = vmatpush.bf16.msra.mxu0 %v5484
      %5514 = vmatpush.bf16.msra.mxu0 %v5483
      %5515 = vmatpush.bf16.msra.mxu0 %v5482
      %5516 = vmatpush.bf16.msra.mxu0 %v5481
      %5517 = vmatmul.bf16.gmra.mxu0 %v5490
      %v5518 = vpop.f32.mrf.mxu0
      %v5519 = vadd.f32 0.0, %v5518
      %v5520 = vpop.f32.mrf.mxu0
      %v5521 = vadd.f32 0.0, %v5520
      %5522 = vmatmul.bf16.gmra.mxu0 %v5493
      %v5523 = vpop.f32.mrf.mxu0
      %v5524 = vadd.f32 0.0, %v5523
      %v5525 = vpop.f32.mrf.mxu0
      %v5526 = vadd.f32 0.0, %v5525
      %5527 = vmatmul.bf16.gmra.mxu0 %v5496
      %v5528 = vpop.f32.mrf.mxu0
      %v5529 = vadd.f32 0.0, %v5528
      %v5530 = vpop.f32.mrf.mxu0
      %v5531 = vadd.f32 0.0, %v5530
      %5532 = vmatmul.bf16.gmra.mxu0 %v5498
      %v5533 = vpop.f32.mrf.mxu0
      %v5534 = vadd.f32 0.0, %v5533
      %v5535 = vpop.f32.mrf.mxu0
      %v5536 = vadd.f32 0.0, %v5535
      %5537 = vmatmul.bf16.gmra.mxu0 %v5501
      %v5538 = vpop.f32.mrf.mxu0
      %v5539 = vadd.f32 0.0, %v5538
      %v5540 = vpop.f32.mrf.mxu0
      %v5541 = vadd.f32 0.0, %v5540
      %5542 = vmatmul.bf16.gmra.mxu0 %v5504
      %v5543 = vpop.f32.mrf.mxu0
      %v5544 = vadd.f32 0.0, %v5543
      %v5545 = vpop.f32.mrf.mxu0
      %v5546 = vadd.f32 0.0, %v5545
      %5547 = vmatmul.bf16.gmra.mxu0 %v5507
      %v5548 = vpop.f32.mrf.mxu0
      %v5549 = vadd.f32 0.0, %v5548
      %v5550 = vpop.f32.mrf.mxu0
      %v5551 = vadd.f32 0.0, %v5550
      %5552 = vdwg.mxu0
      %v5553 = vadd.f32 %v5424, %v5519
      %v5554 = vadd.f32 %v5425, %v5521
      %v5555 = vadd.f32 %v5426, %v5524
      %v5556 = vadd.f32 %v5427, %v5526
      %v5557 = vadd.f32 %v5428, %v5529
      %v5558 = vadd.f32 %v5429, %v5531
      %v5559 = vadd.f32 %v5430, %v5534
      %v5560 = vadd.f32 %v5431, %v5536
      %v5561 = vadd.f32 %v5432, %v5539
      %v5562 = vadd.f32 %v5433, %v5541
      %v5563 = vadd.f32 %v5434, %v5544
      %v5564 = vadd.f32 %v5435, %v5546
      %v5565 = vadd.f32 %v5436, %v5549
      %v5566 = vadd.f32 %v5437, %v5551
      %v5568 = vunpack.c.l.b16 %v4670
      %v5569 = vpack.c.b16 %v5568, %v5120
      %v5570 = vrot.slane %v4696, 2
      %v5571 = vrot.slane %v4697, 2
      %v5572 = vsel %vm1504, %v5570, %v5571
      %v5573 = vrot.slane %v4731, 2
      %v5574 = vsel %vm1504, %v5571, %v5573
      %v5575 = vrot.slane %v5569, 2
      %v5576 = vsel %vm1504, %v5573, %v5575
      %v5578 = vunpack.c.l.b16 %v4680
      %v5579 = vpack.c.b16 %v5578, %v5133
      %v5580 = vrot.slane %v4766, 6
      %v5581 = vrot.slane %v4767, 6
      %v5582 = vsel %vm5445, %v5580, %v5581
      %v5583 = vrot.slane %v4768, 6
      %v5584 = vsel %vm5445, %v5581, %v5583
      %v5585 = vrot.slane %v5579, 6
      %v5586 = vsel %vm5445, %v5583, %v5585
      %v5589 = vsel %vm4717, %v5575, %v5580
      %s5590 = scalar_lea.vmem %s6, 192
      %v5591 = vld [vmem:[%s5590] sm:$0xf]
      %v5592 = vld [vmem:[%s5590 + $0x4] sm:$0xf]
      %v5593 = vld [vmem:[%s5590 + $0x8] sm:$0xf]
      %v5594 = vld [vmem:[%s5590 + $0xc] sm:$0xf]
      %v5595 = vld [vmem:[%s5590 + $0x10] sm:$0xf]
      %v5596 = vld [vmem:[%s5590 + $0x14] sm:$0xf]
      %v5597 = vld [vmem:[%s5590 + $0x18] sm:$0xf]
      %v5598 = vld [vmem:[%s5590 + $0x1c] sm:$0xf]
      %v5607 = vunpack.c.l.b16 %v5591
      %v5608 = vunpack.c.l.b16 %v5592
      %v5609 = vunpack.c.l.b16 %v5593
      %v5610 = vunpack.c.l.b16 %v5594
      %v5611 = vunpack.c.l.b16 %v5595
      %v5612 = vunpack.c.l.b16 %v5596
      %v5613 = vunpack.c.l.b16 %v5597
      %v5614 = vunpack.c.l.b16 %v5598
      %v5615 = vpack.c.b16 %v5608, %v5607
      %v5616 = vpack.c.b16 %v5610, %v5609
      %v5617 = vpack.c.b16 %v5612, %v5611
      %v5618 = vpack.c.b16 %v5614, %v5613
      %v5624 = vsel %vm824, %v5572, 0
      %v5627 = vsel %vm824, %v5574, 0
      %v5630 = vsel %vm824, %v5576, 0
      %v5632 = vsel %vm824, %v5589, 0
      %v5635 = vsel %vm824, %v5582, 0
      %v5638 = vsel %vm824, %v5584, 0
      %v5641 = vsel %vm824, %v5586, 0
      %5643 = vmatpush.bf16.msra.mxu0 0
      %5644 = vmatpush.bf16.msra.mxu0 0
      %5645 = vmatpush.bf16.msra.mxu0 0
      %5646 = vmatpush.bf16.msra.mxu0 0
      %5647 = vmatpush.bf16.msra.mxu0 %v5618
      %5648 = vmatpush.bf16.msra.mxu0 %v5617
      %5649 = vmatpush.bf16.msra.mxu0 %v5616
      %5650 = vmatpush.bf16.msra.mxu0 %v5615
      %5651 = vmatmul.bf16.gmra.mxu0 %v5624
      %v5652 = vpop.f32.mrf.mxu0
      %v5653 = vadd.f32 0.0, %v5652
      %v5654 = vpop.f32.mrf.mxu0
      %v5655 = vadd.f32 0.0, %v5654
      %5656 = vmatmul.bf16.gmra.mxu0 %v5627
      %v5657 = vpop.f32.mrf.mxu0
      %v5658 = vadd.f32 0.0, %v5657
      %v5659 = vpop.f32.mrf.mxu0
      %v5660 = vadd.f32 0.0, %v5659
      %5661 = vmatmul.bf16.gmra.mxu0 %v5630
      %v5662 = vpop.f32.mrf.mxu0
      %v5663 = vadd.f32 0.0, %v5662
      %v5664 = vpop.f32.mrf.mxu0
      %v5665 = vadd.f32 0.0, %v5664
      %5666 = vmatmul.bf16.gmra.mxu0 %v5632
      %v5667 = vpop.f32.mrf.mxu0
      %v5668 = vadd.f32 0.0, %v5667
      %v5669 = vpop.f32.mrf.mxu0
      %v5670 = vadd.f32 0.0, %v5669
      %5671 = vmatmul.bf16.gmra.mxu0 %v5635
      %v5672 = vpop.f32.mrf.mxu0
      %v5673 = vadd.f32 0.0, %v5672
      %v5674 = vpop.f32.mrf.mxu0
      %v5675 = vadd.f32 0.0, %v5674
      %5676 = vmatmul.bf16.gmra.mxu0 %v5638
      %v5677 = vpop.f32.mrf.mxu0
      %v5678 = vadd.f32 0.0, %v5677
      %v5679 = vpop.f32.mrf.mxu0
      %v5680 = vadd.f32 0.0, %v5679
      %5681 = vmatmul.bf16.gmra.mxu0 %v5641
      %v5682 = vpop.f32.mrf.mxu0
      %v5683 = vadd.f32 0.0, %v5682
      %v5684 = vpop.f32.mrf.mxu0
      %v5685 = vadd.f32 0.0, %v5684
      %5686 = vdwg.mxu0
      %v5687 = vadd.f32 %v5553, %v5653
      %v5688 = vadd.f32 %v5554, %v5655
      %v5689 = vadd.f32 %v5555, %v5658
      %v5690 = vadd.f32 %v5556, %v5660
      %v5691 = vadd.f32 %v5557, %v5663
      %v5692 = vadd.f32 %v5558, %v5665
      %v5693 = vadd.f32 %v5559, %v5668
      %v5694 = vadd.f32 %v5560, %v5670
      %v5695 = vadd.f32 %v5561, %v5673
      %v5696 = vadd.f32 %v5562, %v5675
      %v5697 = vadd.f32 %v5563, %v5678
      %v5698 = vadd.f32 %v5564, %v5680
      %v5699 = vadd.f32 %v5565, %v5683
      %v5700 = vadd.f32 %v5566, %v5685
      %v5701 = vrot.slane %v4744, 2
      %v5702 = vrot.slane %v4740, 3
      %v5703 = vor.u32 %v5701, %v5702
      %v5704 = vrot.slane %v4752, 2
      %v5705 = vrot.slane %v4748, 3
      %v5706 = vor.u32 %v5704, %v5705
      %v5707 = vsel %vm1974, %v5703, %v5706
      %v5708 = vrot.slane %v4760, 2
      %v5709 = vrot.slane %v4756, 3
      %v5710 = vor.u32 %v5708, %v5709
      %v5711 = vsel %vm1974, %v5706, %v5710
      %v5713 = vshrl.u32 %v5569, 16
      %v5715 = vrot.slane %v5713, 2
      %v5716 = vshll.u32 %v5569, 16
      %v5718 = vrot.slane %v5716, 3
      %v5719 = vor.u32 %v5715, %v5718
      %v5720 = vsel %vm1974, %v5710, %v5719
      %vm5721 = vsmask.f32 1280
      %v5722 = vrot.slane %v4779, 6
      %v5723 = vrot.slane %v4782, 7
      %v5724 = vor.u32 %v5722, %v5723
      %v5725 = vrot.slane %v4788, 6
      %v5726 = vrot.slane %v4791, 7
      %v5727 = vor.u32 %v5725, %v5726
      %v5728 = vsel %vm5721, %v5724, %v5727
      %v5729 = vrot.slane %v4797, 6
      %v5730 = vrot.slane %v4800, 7
      %v5731 = vor.u32 %v5729, %v5730
      %v5732 = vsel %vm5721, %v5727, %v5731
      %v5734 = vshrl.u32 %v5579, 16
      %v5736 = vrot.slane %v5734, 6
      %v5737 = vshll.u32 %v5579, 16
      %v5739 = vrot.slane %v5737, 7
      %v5740 = vor.u32 %v5736, %v5739
      %v5741 = vsel %vm5721, %v5731, %v5740
      %v5744 = vsel %vm4717, %v5719, %v5724
      %s5745 = scalar_lea.vmem %s6, 224
      %v5746 = vld [vmem:[%s5745] sm:$0xf]
      %v5747 = vld [vmem:[%s5745 + $0x4] sm:$0xf]
      %v5748 = vld [vmem:[%s5745 + $0x8] sm:$0xf]
      %v5749 = vld [vmem:[%s5745 + $0xc] sm:$0xf]
      %v5750 = vld [vmem:[%s5745 + $0x10] sm:$0xf]
      %v5751 = vld [vmem:[%s5745 + $0x14] sm:$0xf]
      %v5752 = vld [vmem:[%s5745 + $0x18] sm:$0xf]
      %v5753 = vld [vmem:[%s5745 + $0x1c] sm:$0xf]
      %v5762 = vunpack.c.l.b16 %v5746
      %v5763 = vunpack.c.l.b16 %v5747
      %v5764 = vunpack.c.l.b16 %v5748
      %v5765 = vunpack.c.l.b16 %v5749
      %v5766 = vunpack.c.l.b16 %v5750
      %v5767 = vunpack.c.l.b16 %v5751
      %v5768 = vunpack.c.l.b16 %v5752
      %v5769 = vunpack.c.l.b16 %v5753
      %v5770 = vpack.c.b16 %v5763, %v5762
      %v5771 = vpack.c.b16 %v5765, %v5764
      %v5772 = vpack.c.b16 %v5767, %v5766
      %v5773 = vpack.c.b16 %v5769, %v5768
      %v5779 = vsel %vm824, %v5707, 0
      %v5782 = vsel %vm824, %v5711, 0
      %v5785 = vsel %vm824, %v5720, 0
      %v5787 = vsel %vm824, %v5744, 0
      %v5790 = vsel %vm824, %v5728, 0
      %v5793 = vsel %vm824, %v5732, 0
      %v5796 = vsel %vm824, %v5741, 0
      %5798 = vmatpush.bf16.msra.mxu0 0
      %5799 = vmatpush.bf16.msra.mxu0 0
      %5800 = vmatpush.bf16.msra.mxu0 0
      %5801 = vmatpush.bf16.msra.mxu0 0
      %5802 = vmatpush.bf16.msra.mxu0 %v5773
      %5803 = vmatpush.bf16.msra.mxu0 %v5772
      %5804 = vmatpush.bf16.msra.mxu0 %v5771
      %5805 = vmatpush.bf16.msra.mxu0 %v5770
      %5806 = vmatmul.bf16.gmra.mxu0 %v5779
      %v5807 = vpop.f32.mrf.mxu0
      %v5808 = vadd.f32 0.0, %v5807
      %v5809 = vpop.f32.mrf.mxu0
      %v5810 = vadd.f32 0.0, %v5809
      %5811 = vmatmul.bf16.gmra.mxu0 %v5782
      %v5812 = vpop.f32.mrf.mxu0
      %v5813 = vadd.f32 0.0, %v5812
      %v5814 = vpop.f32.mrf.mxu0
      %v5815 = vadd.f32 0.0, %v5814
      %5816 = vmatmul.bf16.gmra.mxu0 %v5785
      %v5817 = vpop.f32.mrf.mxu0
      %v5818 = vadd.f32 0.0, %v5817
      %v5819 = vpop.f32.mrf.mxu0
      %v5820 = vadd.f32 0.0, %v5819
      %5821 = vmatmul.bf16.gmra.mxu0 %v5787
      %v5822 = vpop.f32.mrf.mxu0
      %v5823 = vadd.f32 0.0, %v5822
      %v5824 = vpop.f32.mrf.mxu0
      %v5825 = vadd.f32 0.0, %v5824
      %5826 = vmatmul.bf16.gmra.mxu0 %v5790
      %v5827 = vpop.f32.mrf.mxu0
      %v5828 = vadd.f32 0.0, %v5827
      %v5829 = vpop.f32.mrf.mxu0
      %v5830 = vadd.f32 0.0, %v5829
      %5831 = vmatmul.bf16.gmra.mxu0 %v5793
      %v5832 = vpop.f32.mrf.mxu0
      %v5833 = vadd.f32 0.0, %v5832
      %v5834 = vpop.f32.mrf.mxu0
      %v5835 = vadd.f32 0.0, %v5834
      %5836 = vmatmul.bf16.gmra.mxu0 %v5796
      %v5837 = vpop.f32.mrf.mxu0
      %v5838 = vadd.f32 0.0, %v5837
      %v5839 = vpop.f32.mrf.mxu0
      %v5840 = vadd.f32 0.0, %v5839
      %5841 = vdwg.mxu0
      %v5842 = vadd.f32 %v5687, %v5808
      %v5843 = vadd.f32 %v5688, %v5810
      %v5844 = vadd.f32 %v5689, %v5813
      %v5845 = vadd.f32 %v5690, %v5815
      %v5846 = vadd.f32 %v5691, %v5818
      %v5847 = vadd.f32 %v5692, %v5820
      %v5848 = vadd.f32 %v5693, %v5823
      %v5849 = vadd.f32 %v5694, %v5825
      %v5850 = vadd.f32 %v5695, %v5828
      %v5851 = vadd.f32 %v5696, %v5830
      %v5852 = vadd.f32 %v5697, %v5833
      %v5853 = vadd.f32 %v5698, %v5835
      %v5854 = vadd.f32 %v5699, %v5838
      %v5855 = vadd.f32 %v5700, %v5840
      %v5856 = vrot.slane %v4696, 3
      %v5857 = vrot.slane %v4697, 3
      %v5858 = vsel %vm3202, %v5856, %v5857
      %v5859 = vrot.slane %v4731, 3
      %v5860 = vsel %vm3202, %v5857, %v5859
      %v5861 = vrot.slane %v5569, 3
      %v5862 = vsel %vm3202, %v5859, %v5861
      %vm5863 = vcmask 1040384
      %v5864 = vrot.slane %v4766, 7
      %v5865 = vrot.slane %v4767, 7
      %v5866 = vsel %vm5863, %v5864, %v5865
      %v5867 = vrot.slane %v4768, 7
      %v5868 = vsel %vm5863, %v5865, %v5867
      %v5869 = vrot.slane %v5579, 7
      %v5870 = vsel %vm5863, %v5867, %v5869
      %v5873 = vsel %vm4717, %v5861, %v5864
      %s5874 = scalar_lea.vmem %s6, 256
      %v5875 = vld [vmem:[%s5874] sm:$0xf]
      %v5876 = vld [vmem:[%s5874 + $0x4] sm:$0xf]
      %v5877 = vld [vmem:[%s5874 + $0x8] sm:$0xf]
      %v5878 = vld [vmem:[%s5874 + $0xc] sm:$0xf]
      %v5879 = vld [vmem:[%s5874 + $0x10] sm:$0xf]
      %v5880 = vld [vmem:[%s5874 + $0x14] sm:$0xf]
      %v5881 = vld [vmem:[%s5874 + $0x18] sm:$0xf]
      %v5882 = vld [vmem:[%s5874 + $0x1c] sm:$0xf]
      %v5891 = vunpack.c.l.b16 %v5875
      %v5892 = vunpack.c.l.b16 %v5876
      %v5893 = vunpack.c.l.b16 %v5877
      %v5894 = vunpack.c.l.b16 %v5878
      %v5895 = vunpack.c.l.b16 %v5879
      %v5896 = vunpack.c.l.b16 %v5880
      %v5897 = vunpack.c.l.b16 %v5881
      %v5898 = vunpack.c.l.b16 %v5882
      %v5899 = vpack.c.b16 %v5892, %v5891
      %v5900 = vpack.c.b16 %v5894, %v5893
      %v5901 = vpack.c.b16 %v5896, %v5895
      %v5902 = vpack.c.b16 %v5898, %v5897
      %v5908 = vsel %vm824, %v5858, 0
      %v5911 = vsel %vm824, %v5860, 0
      %v5914 = vsel %vm824, %v5862, 0
      %v5916 = vsel %vm824, %v5873, 0
      %v5919 = vsel %vm824, %v5866, 0
      %v5922 = vsel %vm824, %v5868, 0
      %v5925 = vsel %vm824, %v5870, 0
      %5927 = vmatpush.bf16.msra.mxu0 0
      %5928 = vmatpush.bf16.msra.mxu0 0
      %5929 = vmatpush.bf16.msra.mxu0 0
      %5930 = vmatpush.bf16.msra.mxu0 0
      %5931 = vmatpush.bf16.msra.mxu0 %v5902
      %5932 = vmatpush.bf16.msra.mxu0 %v5901
      %5933 = vmatpush.bf16.msra.mxu0 %v5900
      %5934 = vmatpush.bf16.msra.mxu0 %v5899
      %5935 = vmatmul.bf16.gmra.mxu0 %v5908
      %v5936 = vpop.f32.mrf.mxu0
      %v5937 = vadd.f32 0.0, %v5936
      %v5938 = vpop.f32.mrf.mxu0
      %v5939 = vadd.f32 0.0, %v5938
      %5940 = vmatmul.bf16.gmra.mxu0 %v5911
      %v5941 = vpop.f32.mrf.mxu0
      %v5942 = vadd.f32 0.0, %v5941
      %v5943 = vpop.f32.mrf.mxu0
      %v5944 = vadd.f32 0.0, %v5943
      %5945 = vmatmul.bf16.gmra.mxu0 %v5914
      %v5946 = vpop.f32.mrf.mxu0
      %v5947 = vadd.f32 0.0, %v5946
      %v5948 = vpop.f32.mrf.mxu0
      %v5949 = vadd.f32 0.0, %v5948
      %5950 = vmatmul.bf16.gmra.mxu0 %v5916
      %v5951 = vpop.f32.mrf.mxu0
      %v5952 = vadd.f32 0.0, %v5951
      %v5953 = vpop.f32.mrf.mxu0
      %v5954 = vadd.f32 0.0, %v5953
      %5955 = vmatmul.bf16.gmra.mxu0 %v5919
      %v5956 = vpop.f32.mrf.mxu0
      %v5957 = vadd.f32 0.0, %v5956
      %v5958 = vpop.f32.mrf.mxu0
      %v5959 = vadd.f32 0.0, %v5958
      %5960 = vmatmul.bf16.gmra.mxu0 %v5922
      %v5961 = vpop.f32.mrf.mxu0
      %v5962 = vadd.f32 0.0, %v5961
      %v5963 = vpop.f32.mrf.mxu0
      %v5964 = vadd.f32 0.0, %v5963
      %5965 = vmatmul.bf16.gmra.mxu0 %v5925
      %v5966 = vpop.f32.mrf.mxu0
      %v5967 = vadd.f32 0.0, %v5966
      %v5968 = vpop.f32.mrf.mxu0
      %v5969 = vadd.f32 0.0, %v5968
      %5970 = vdwg.mxu0
      %v5971 = vadd.f32 %v5842, %v5937
      %v5972 = vadd.f32 %v5843, %v5939
      %v5973 = vadd.f32 %v5844, %v5942
      %v5974 = vadd.f32 %v5845, %v5944
      %v5975 = vadd.f32 %v5846, %v5947
      %v5976 = vadd.f32 %v5847, %v5949
      %v5977 = vadd.f32 %v5848, %v5952
      %v5978 = vadd.f32 %v5849, %v5954
      %v5979 = vadd.f32 %v5850, %v5957
      %v5980 = vadd.f32 %v5851, %v5959
      %v5981 = vadd.f32 %v5852, %v5962
      %v5982 = vadd.f32 %v5853, %v5964
      %v5983 = vadd.f32 %v5854, %v5967
      %v5984 = vadd.f32 %v5855, %v5969
      %v5985 = vld [vmem:[%s7] sm:$0x1]
      %v5987 = vperm.slane %v5985, 0
      %v5989 = vadd.f32 %v5971, %v5987
      %v5990 = vadd.f32 %v5972, %v5987
      %v5991 = vadd.f32 %v5973, %v5987
      %v5992 = vadd.f32 %v5974, %v5987
      %v5993 = vadd.f32 %v5975, %v5987
      %v5994 = vadd.f32 %v5976, %v5987
      %v5995 = vadd.f32 %v5977, %v5987
      %v5996 = vadd.f32 %v5978, %v5987
      %v5997 = vadd.f32 %v5979, %v5987
      %v5998 = vadd.f32 %v5980, %v5987
      %v5999 = vadd.f32 %v5981, %v5987
      %v6000 = vadd.f32 %v5982, %v5987
      %v6001 = vadd.f32 %v5983, %v5987
      %v6002 = vadd.f32 %v5984, %v5987
      %v6003 = vmax.f32 %v5989, 0.0
      %v6004 = vmax.f32 %v5990, 0.0
      %v6005 = vmax.f32 %v5991, 0.0
      %v6006 = vmax.f32 %v5992, 0.0
      %v6007 = vmax.f32 %v5993, 0.0
      %v6008 = vmax.f32 %v5994, 0.0
      %v6009 = vmax.f32 %v5995, 0.0
      %v6010 = vmax.f32 %v5996, 0.0
      %v6011 = vmax.f32 %v5997, 0.0
      %v6012 = vmax.f32 %v5998, 0.0
      %v6013 = vmax.f32 %v5999, 0.0
      %v6014 = vmax.f32 %v6000, 0.0
      %v6015 = vmax.f32 %v6001, 0.0
      %v6016 = vmax.f32 %v6002, 0.0
      %v6017 = vpack.c.bf16 %v6003, %v6003
      %v6018 = vpack.c.bf16 %v6004, %v6004
      %v6019 = vpack.c.bf16 %v6005, %v6005
      %v6020 = vpack.c.bf16 %v6006, %v6006
      %v6021 = vpack.c.bf16 %v6007, %v6007
      %v6022 = vpack.c.bf16 %v6008, %v6008
      %v6023 = vpack.c.bf16 %v6009, %v6009
      %v6024 = vpack.c.bf16 %v6010, %v6010
      %v6025 = vpack.c.bf16 %v6011, %v6011
      %v6026 = vpack.c.bf16 %v6012, %v6012
      %v6027 = vpack.c.bf16 %v6013, %v6013
      %v6028 = vpack.c.bf16 %v6014, %v6014
      %v6029 = vpack.c.bf16 %v6015, %v6015
      %v6030 = vpack.c.bf16 %v6016, %v6016
      %v6032 = vunpack.c.l.b16 %v6018
      %v6033 = vpack.c.b16 %v6032, %v6032
      %6034 = vrot.lane.b32.xlu0 %v6033, 32
      %v6035 = vpop.permute.xlu0 %6034
      %v6037 = vunpack.c.l.b16 %v6019
      %v6038 = vpack.c.b16 %v6037, %v6037
      %6039 = vrot.lane.b32.xlu0 %v6038, 64
      %v6040 = vpop.permute.xlu0 %6039
      %v6042 = vunpack.c.l.b16 %v6020
      %v6043 = vpack.c.b16 %v6042, %v6042
      %6044 = vrot.lane.b32.xlu0 %v6043, 96
      %v6045 = vpop.permute.xlu0 %6044
      %v6047 = vunpack.c.l.b16 %v6022
      %v6048 = vpack.c.b16 %v6047, %v6047
      %6049 = vrot.lane.b32.xlu0 %v6048, 32
      %v6050 = vpop.permute.xlu0 %6049
      %v6052 = vunpack.c.l.b16 %v6023
      %v6053 = vpack.c.b16 %v6052, %v6052
      %6054 = vrot.lane.b32.xlu0 %v6053, 64
      %v6055 = vpop.permute.xlu0 %6054
      %v6058 = vsel %vm1572, %v6017, %v6035
      %v6060 = vsel %vm824, %v6058, %v6040
      %vm6061 = vcmask 785408
      %v6063 = vsel %vm6061, %v6060, %v6045
      %v6067 = vsel %vm1572, %v6021, %v6050
      %v6069 = vsel %vm824, %v6067, %v6055
      %v6070 = vshrl.u32 %v6063, 16
      %v6072 = vshrl.u32 %v6069, 16
      %6074 = vrot.lane.b32.xlu0 %v6070, 96
      %v6075 = vpop.permute.xlu0 %6074
      %6076 = vrot.lane.b32.xlu0 %v6072, 96
      %v6077 = vpop.permute.xlu0 %6076
      %vm6078 = vcmask 785408
      %v6079 = vsel %vm6078, %v6075, %v6077
      %v6083 = vrot.slane %v6063, 1
      %v6084 = vrot.slane %v6069, 1
      %6085 = vrot.lane.b32.xlu0 %v6083, 64
      %v6086 = vpop.permute.xlu0 %6085
      %6087 = vrot.lane.b32.xlu0 %v6084, 64
      %v6088 = vpop.permute.xlu0 %6087
      %vm6089 = vcmask 523264
      %v6090 = vsel %vm6089, %v6086, %v6088
      %v6092 = vrot.slane %v6070, 1
      %v6093 = vrot.slane %v6072, 1
      %6094 = vrot.lane.b32.xlu0 %v6092, 32
      %v6095 = vpop.permute.xlu0 %6094
      %6096 = vrot.lane.b32.xlu0 %v6093, 32
      %v6097 = vpop.permute.xlu0 %6096
      %vm6098 = vcmask 261120
      %v6099 = vsel %vm6098, %v6095, %v6097
      %v6101 = vrot.slane %v6063, 2
      %v6102 = vrot.slane %v6069, 2
      %v6104 = vrot.slane %v6070, 2
      %v6105 = vrot.slane %v6072, 2
      %6106 = vrot.lane.b32.xlu0 %v6104, 96
      %v6107 = vpop.permute.xlu0 %6106
      %6108 = vrot.lane.b32.xlu0 %v6105, 96
      %v6109 = vpop.permute.xlu0 %6108
      %v6110 = vsel %vm6078, %v6107, %v6109
      %v6112 = vrot.slane %v6063, 3
      %v6113 = vrot.slane %v6069, 3
      %6114 = vrot.lane.b32.xlu0 %v6112, 64
      %v6115 = vpop.permute.xlu0 %6114
      %6116 = vrot.lane.b32.xlu0 %v6113, 64
      %v6117 = vpop.permute.xlu0 %6116
      %v6118 = vsel %vm6089, %v6115, %v6117
      %v6120 = vrot.slane %v6070, 3
      %v6121 = vrot.slane %v6072, 3
      %6122 = vrot.lane.b32.xlu0 %v6120, 32
      %v6123 = vpop.permute.xlu0 %6122
      %6124 = vrot.lane.b32.xlu0 %v6121, 32
      %v6125 = vpop.permute.xlu0 %6124
      %v6126 = vsel %vm6098, %v6123, %v6125
      %v6129 = vsel %vm6061, %v6069, %v6075
      %v6133 = vsel %vm824, %v6077, %v6086
      %v6137 = vsel %vm1572, %v6088, %v6095
      %v6141 = vsel %vm6061, %v6102, %v6107
      %v6145 = vsel %vm824, %v6109, %v6115
      %v6149 = vsel %vm1572, %v6117, %v6123
      %v6152 = vunpack.c.l.b16 %v6025
      %v6153 = vpack.c.b16 %v6152, %v6152
      %6154 = vrot.lane.b32.xlu0 %v6153, 32
      %v6155 = vpop.permute.xlu0 %6154
      %v6157 = vunpack.c.l.b16 %v6026
      %v6158 = vpack.c.b16 %v6157, %v6157
      %6159 = vrot.lane.b32.xlu0 %v6158, 64
      %v6160 = vpop.permute.xlu0 %6159
      %v6162 = vunpack.c.l.b16 %v6027
      %v6163 = vpack.c.b16 %v6162, %v6162
      %6164 = vrot.lane.b32.xlu0 %v6163, 96
      %v6165 = vpop.permute.xlu0 %6164
      %v6167 = vunpack.c.l.b16 %v6029
      %v6168 = vpack.c.b16 %v6167, %v6167
      %6169 = vrot.lane.b32.xlu0 %v6168, 32
      %v6170 = vpop.permute.xlu0 %6169
      %v6172 = vunpack.c.l.b16 %v6030
      %v6173 = vpack.c.b16 %v6172, %v6172
      %6174 = vrot.lane.b32.xlu0 %v6173, 64
      %v6175 = vpop.permute.xlu0 %6174
      %v6178 = vsel %vm1572, %v6024, %v6155
      %v6180 = vsel %vm824, %v6178, %v6160
      %v6182 = vsel %vm6061, %v6180, %v6165
      %v6185 = vsel %vm1572, %v6028, %v6170
      %v6187 = vsel %vm824, %v6185, %v6175
      %v6188 = vshrl.u32 %v6182, 16
      %v6190 = vshrl.u32 %v6187, 16
      %6192 = vrot.lane.b32.xlu0 %v6188, 96
      %v6193 = vpop.permute.xlu0 %6192
      %6194 = vrot.lane.b32.xlu0 %v6190, 96
      %v6195 = vpop.permute.xlu0 %6194
      %v6196 = vsel %vm6078, %v6193, %v6195
      %v6199 = vrot.slane %v6182, 1
      %v6200 = vrot.slane %v6187, 1
      %6201 = vrot.lane.b32.xlu0 %v6199, 64
      %v6202 = vpop.permute.xlu0 %6201
      %6203 = vrot.lane.b32.xlu0 %v6200, 64
      %v6204 = vpop.permute.xlu0 %6203
      %v6205 = vsel %vm6089, %v6202, %v6204
      %v6206 = vrot.slane %v6188, 1
      %v6207 = vrot.slane %v6190, 1
      %6208 = vrot.lane.b32.xlu0 %v6206, 32
      %v6209 = vpop.permute.xlu0 %6208
      %6210 = vrot.lane.b32.xlu0 %v6207, 32
      %v6211 = vpop.permute.xlu0 %6210
      %v6212 = vsel %vm6098, %v6209, %v6211
      %v6213 = vrot.slane %v6182, 2
      %v6214 = vrot.slane %v6187, 2
      %v6215 = vrot.slane %v6188, 2
      %v6216 = vrot.slane %v6190, 2
      %6217 = vrot.lane.b32.xlu0 %v6215, 96
      %v6218 = vpop.permute.xlu0 %6217
      %6219 = vrot.lane.b32.xlu0 %v6216, 96
      %v6220 = vpop.permute.xlu0 %6219
      %v6221 = vsel %vm6078, %v6218, %v6220
      %v6222 = vrot.slane %v6182, 3
      %v6223 = vrot.slane %v6187, 3
      %6224 = vrot.lane.b32.xlu0 %v6222, 64
      %v6225 = vpop.permute.xlu0 %6224
      %6226 = vrot.lane.b32.xlu0 %v6223, 64
      %v6227 = vpop.permute.xlu0 %6226
      %v6228 = vsel %vm6089, %v6225, %v6227
      %v6229 = vrot.slane %v6188, 3
      %v6230 = vrot.slane %v6190, 3
      %6231 = vrot.lane.b32.xlu0 %v6229, 32
      %v6232 = vpop.permute.xlu0 %6231
      %6233 = vrot.lane.b32.xlu0 %v6230, 32
      %v6234 = vpop.permute.xlu0 %6233
      %v6235 = vsel %vm6098, %v6232, %v6234
      %v6237 = vsel %vm6061, %v6187, %v6193
      %v6240 = vsel %vm824, %v6195, %v6202
      %v6243 = vsel %vm1572, %v6204, %v6209
      %v6246 = vsel %vm6061, %v6214, %v6218
      %v6249 = vsel %vm824, %v6220, %v6225
      %v6252 = vsel %vm1572, %v6227, %v6232
      %v6253 = vshll.u32 %v6182, 16
      %v6255 = vshll.u32 %v6237, 16
      %v6258 = vshll.u32 %v6196, 16
      %v6260 = vshll.u32 %v6240, 16
      %v6263 = vshll.u32 %v6205, 16
      %v6265 = vshll.u32 %v6243, 16
      %v6268 = vshll.u32 %v6212, 16
      %v6271 = vshll.u32 %v6213, 16
      %v6273 = vshll.u32 %v6246, 16
      %v6276 = vshll.u32 %v6221, 16
      %v6278 = vshll.u32 %v6249, 16
      %v6281 = vshll.u32 %v6228, 16
      %v6283 = vshll.u32 %v6252, 16
      %v6286 = vshll.u32 %v6235, 16
      %vm6302 = vsmask.f32 256
      %vm6303 = vmand %vm5863, %vm6302
      %v6304 = vsel %vm6303, %v6063, %v6253
      %v6305 = vsel %vm6303, %v6129, %v6255
      %v6306 = vsel %vm6303, %v6079, %v6258
      %v6307 = vsel %vm6303, %v6133, %v6260
      %v6308 = vsel %vm6303, %v6090, %v6263
      %v6309 = vsel %vm6303, %v6137, %v6265
      %v6310 = vsel %vm6303, %v6099, %v6268
      %v6311 = vsel %vm6303, %v6101, %v6271
      %v6312 = vsel %vm6303, %v6141, %v6273
      %v6313 = vsel %vm6303, %v6110, %v6276
      %v6314 = vsel %vm6303, %v6145, %v6278
      %v6315 = vsel %vm6303, %v6118, %v6281
      %v6316 = vsel %vm6303, %v6149, %v6283
      %v6317 = vsel %vm6303, %v6126, %v6286
      %v6318 = vld [vmem:[%s8] sm:$0xf]
      %v6319 = vld [vmem:[%s8 + $0x4] sm:$0xf]
      %v6320 = vld [vmem:[%s8 + $0x8] sm:$0xf]
      %v6321 = vld [vmem:[%s8 + $0xc] sm:$0xf]
      %v6322 = vld [vmem:[%s8 + $0x10] sm:$0xf]
      %v6323 = vld [vmem:[%s8 + $0x14] sm:$0xf]
      %v6324 = vld [vmem:[%s8 + $0x18] sm:$0xf]
      %v6325 = vld [vmem:[%s8 + $0x1c] sm:$0xf]
      %v6326 = vld [vmem:[%s8 + $0x20] sm:$0xf]
      %v6327 = vld [vmem:[%s8 + $0x24] sm:$0xf]
      %v6328 = vld [vmem:[%s8 + $0x28] sm:$0xf]
      %v6329 = vld [vmem:[%s8 + $0x2c] sm:$0xf]
      %v6330 = vld [vmem:[%s8 + $0x30] sm:$0xf]
      %v6331 = vld [vmem:[%s8 + $0x34] sm:$0xf]
      %v6332 = vld [vmem:[%s8 + $0x38] sm:$0xf]
      %v6333 = vld [vmem:[%s8 + $0x3c] sm:$0xf]
      %v6334 = vld [vmem:[%s8 + $0x40] sm:$0xf]
      %v6335 = vld [vmem:[%s8 + $0x44] sm:$0xf]
      %v6336 = vld [vmem:[%s8 + $0x48] sm:$0xf]
      %v6337 = vld [vmem:[%s8 + $0x4c] sm:$0xf]
      %v6338 = vld [vmem:[%s8 + $0x50] sm:$0xf]
      %v6339 = vld [vmem:[%s8 + $0x54] sm:$0xf]
      %v6340 = vld [vmem:[%s8 + $0x58] sm:$0xf]
      %v6341 = vld [vmem:[%s8 + $0x5c] sm:$0xf]
      %v6342 = vld [vmem:[%s8 + $0x60] sm:$0xf]
      %v6343 = vld [vmem:[%s8 + $0x64] sm:$0xf]
      %v6344 = vld [vmem:[%s8 + $0x68] sm:$0xf]
      %v6345 = vld [vmem:[%s8 + $0x6c] sm:$0xf]
      %v6346 = vld [vmem:[%s8 + $0x70] sm:$0xf]
      %v6347 = vld [vmem:[%s8 + $0x74] sm:$0xf]
      %v6348 = vld [vmem:[%s8 + $0x78] sm:$0xf]
      %v6349 = vld [vmem:[%s8 + $0x7c] sm:$0xf]
      %v6350 = vld [vmem:[%s8 + $0x80] sm:$0xf]
      %v6351 = vld [vmem:[%s8 + $0x84] sm:$0xf]
      %v6352 = vld [vmem:[%s8 + $0x88] sm:$0xf]
      %v6353 = vld [vmem:[%s8 + $0x8c] sm:$0xf]
      %v6354 = vld [vmem:[%s8 + $0x90] sm:$0xf]
      %v6355 = vld [vmem:[%s8 + $0x94] sm:$0xf]
      %v6356 = vld [vmem:[%s8 + $0x98] sm:$0xf]
      %v6357 = vld [vmem:[%s8 + $0x9c] sm:$0xf]
      %v6358 = vld [vmem:[%s8 + $0xa0] sm:$0xf]
      %v6359 = vld [vmem:[%s8 + $0xa4] sm:$0xf]
      %v6360 = vld [vmem:[%s8 + $0xa8] sm:$0xf]
      %v6361 = vld [vmem:[%s8 + $0xac] sm:$0xf]
      %v6362 = vld [vmem:[%s8 + $0xb0] sm:$0xf]
      %v6363 = vld [vmem:[%s8 + $0xb4] sm:$0xf]
      %v6364 = vld [vmem:[%s8 + $0xb8] sm:$0xf]
      %v6365 = vld [vmem:[%s8 + $0xbc] sm:$0xf]
      %v6366 = vld [vmem:[%s8 + $0xc0] sm:$0xf]
      %v6367 = vld [vmem:[%s8 + $0xc4] sm:$0xf]
      %v6368 = vld [vmem:[%s8 + $0xc8] sm:$0xf]
      %v6369 = vld [vmem:[%s8 + $0xcc] sm:$0xf]
      %v6370 = vld [vmem:[%s8 + $0xd0] sm:$0xf]
      %v6371 = vld [vmem:[%s8 + $0xd4] sm:$0xf]
      %v6372 = vld [vmem:[%s8 + $0xd8] sm:$0xf]
      %v6373 = vld [vmem:[%s8 + $0xdc] sm:$0xf]
      %v6374 = vld [vmem:[%s8 + $0xe0] sm:$0xf]
      %v6375 = vld [vmem:[%s8 + $0xe4] sm:$0xf]
      %v6376 = vld [vmem:[%s8 + $0xe8] sm:$0xf]
      %v6377 = vld [vmem:[%s8 + $0xec] sm:$0xf]
      %v6378 = vld [vmem:[%s8 + $0xf0] sm:$0xf]
      %v6379 = vld [vmem:[%s8 + $0xf4] sm:$0xf]
      %v6380 = vld [vmem:[%s8 + $0xf8] sm:$0xf]
      %v6381 = vld [vmem:[%s8 + $0xfc] sm:$0xf]
      %v6382 = vld [vmem:[%s8 + $0x100] sm:$0xf]
      %v6383 = vld [vmem:[%s8 + $0x104] sm:$0xf]
      %v6384 = vld [vmem:[%s8 + $0x108] sm:$0xf]
      %v6385 = vld [vmem:[%s8 + $0x10c] sm:$0xf]
      %v6386 = vld [vmem:[%s8 + $0x110] sm:$0xf]
      %v6387 = vld [vmem:[%s8 + $0x114] sm:$0xf]
      %v6388 = vld [vmem:[%s8 + $0x118] sm:$0xf]
      %v6389 = vld [vmem:[%s8 + $0x11c] sm:$0xf]
      %v6390 = vld [vmem:[%s8 + $0x120] sm:$0xf]
      %v6391 = vld [vmem:[%s8 + $0x124] sm:$0xf]
      %v6392 = vld [vmem:[%s8 + $0x128] sm:$0xf]
      %v6393 = vld [vmem:[%s8 + $0x12c] sm:$0xf]
      %v6394 = vld [vmem:[%s8 + $0x130] sm:$0xf]
      %v6395 = vld [vmem:[%s8 + $0x134] sm:$0xf]
      %v6396 = vld [vmem:[%s8 + $0x138] sm:$0xf]
      %v6397 = vld [vmem:[%s8 + $0x13c] sm:$0xf]
      %v6398 = vld [vmem:[%s8 + $0x140] sm:$0xf]
      %v6399 = vld [vmem:[%s8 + $0x144] sm:$0xf]
      %v6400 = vld [vmem:[%s8 + $0x148] sm:$0xf]
      %v6401 = vld [vmem:[%s8 + $0x14c] sm:$0xf]
      %v6402 = vld [vmem:[%s8 + $0x150] sm:$0xf]
      %v6403 = vld [vmem:[%s8 + $0x154] sm:$0xf]
      %v6404 = vld [vmem:[%s8 + $0x158] sm:$0xf]
      %v6405 = vld [vmem:[%s8 + $0x15c] sm:$0xf]
      %v6406 = vld [vmem:[%s8 + $0x160] sm:$0xf]
      %v6407 = vld [vmem:[%s8 + $0x164] sm:$0xf]
      %v6408 = vld [vmem:[%s8 + $0x168] sm:$0xf]
      %v6409 = vld [vmem:[%s8 + $0x16c] sm:$0xf]
      %v6410 = vld [vmem:[%s8 + $0x170] sm:$0xf]
      %v6411 = vld [vmem:[%s8 + $0x174] sm:$0xf]
      %v6412 = vld [vmem:[%s8 + $0x178] sm:$0xf]
      %v6413 = vld [vmem:[%s8 + $0x17c] sm:$0xf]
      %v6414 = vld [vmem:[%s8 + $0x180] sm:$0xf]
      %v6415 = vld [vmem:[%s8 + $0x184] sm:$0xf]
      %v6416 = vld [vmem:[%s8 + $0x188] sm:$0xf]
      %v6417 = vld [vmem:[%s8 + $0x18c] sm:$0xf]
      %v6418 = vld [vmem:[%s8 + $0x190] sm:$0xf]
      %v6419 = vld [vmem:[%s8 + $0x194] sm:$0xf]
      %v6420 = vld [vmem:[%s8 + $0x198] sm:$0xf]
      %v6421 = vld [vmem:[%s8 + $0x19c] sm:$0xf]
      %v6422 = vld [vmem:[%s8 + $0x1a0] sm:$0xf]
      %v6423 = vld [vmem:[%s8 + $0x1a4] sm:$0xf]
      %v6424 = vld [vmem:[%s8 + $0x1a8] sm:$0xf]
      %v6425 = vld [vmem:[%s8 + $0x1ac] sm:$0xf]
      %v6426 = vld [vmem:[%s8 + $0x1b0] sm:$0xf]
      %v6427 = vld [vmem:[%s8 + $0x1b4] sm:$0xf]
      %v6428 = vld [vmem:[%s8 + $0x1b8] sm:$0xf]
      %v6429 = vld [vmem:[%s8 + $0x1bc] sm:$0xf]
      %v6430 = vld [vmem:[%s8 + $0x1c0] sm:$0xf]
      %v6431 = vld [vmem:[%s8 + $0x1c4] sm:$0xf]
      %v6432 = vld [vmem:[%s8 + $0x1c8] sm:$0xf]
      %v6433 = vld [vmem:[%s8 + $0x1cc] sm:$0xf]
      %v6434 = vld [vmem:[%s8 + $0x1d0] sm:$0xf]
      %v6435 = vld [vmem:[%s8 + $0x1d4] sm:$0xf]
      %v6436 = vld [vmem:[%s8 + $0x1d8] sm:$0xf]
      %v6437 = vld [vmem:[%s8 + $0x1dc] sm:$0xf]
      %v6438 = vld [vmem:[%s8 + $0x1e0] sm:$0xf]
      %v6439 = vld [vmem:[%s8 + $0x1e4] sm:$0xf]
      %v6440 = vld [vmem:[%s8 + $0x1e8] sm:$0xf]
      %v6441 = vld [vmem:[%s8 + $0x1ec] sm:$0xf]
      %v6442 = vld [vmem:[%s8 + $0x1f0] sm:$0xf]
      %v6443 = vld [vmem:[%s8 + $0x1f4] sm:$0xf]
      %v6444 = vld [vmem:[%s8 + $0x1f8] sm:$0xf]
      %v6445 = vld [vmem:[%s8 + $0x1fc] sm:$0xf]
      %v6446 = vld [vmem:[%s8 + $0x200] sm:$0xf]
      %v6447 = vld [vmem:[%s8 + $0x204] sm:$0xf]
      %v6448 = vld [vmem:[%s8 + $0x208] sm:$0xf]
      %v6449 = vld [vmem:[%s8 + $0x20c] sm:$0xf]
      %v6450 = vld [vmem:[%s8 + $0x210] sm:$0xf]
      %v6451 = vld [vmem:[%s8 + $0x214] sm:$0xf]
      %v6452 = vld [vmem:[%s8 + $0x218] sm:$0xf]
      %v6453 = vld [vmem:[%s8 + $0x21c] sm:$0xf]
      %v6454 = vld [vmem:[%s8 + $0x220] sm:$0xf]
      %v6455 = vld [vmem:[%s8 + $0x224] sm:$0xf]
      %v6456 = vld [vmem:[%s8 + $0x228] sm:$0xf]
      %v6457 = vld [vmem:[%s8 + $0x22c] sm:$0xf]
      %v6458 = vld [vmem:[%s8 + $0x230] sm:$0xf]
      %v6459 = vld [vmem:[%s8 + $0x234] sm:$0xf]
      %v6460 = vld [vmem:[%s8 + $0x238] sm:$0xf]
      %v6461 = vld [vmem:[%s8 + $0x23c] sm:$0xf]
      %v6462 = vld [vmem:[%s8 + $0x240] sm:$0xf]
      %v6463 = vld [vmem:[%s8 + $0x244] sm:$0xf]
      %v6464 = vld [vmem:[%s8 + $0x248] sm:$0xf]
      %v6465 = vld [vmem:[%s8 + $0x24c] sm:$0xf]
      %v6466 = vld [vmem:[%s8 + $0x250] sm:$0xf]
      %v6467 = vld [vmem:[%s8 + $0x254] sm:$0xf]
      %v6468 = vld [vmem:[%s8 + $0x258] sm:$0xf]
      %v6469 = vld [vmem:[%s8 + $0x25c] sm:$0xf]
      %v6470 = vld [vmem:[%s8 + $0x260] sm:$0xf]
      %v6471 = vld [vmem:[%s8 + $0x264] sm:$0xf]
      %v6472 = vld [vmem:[%s8 + $0x268] sm:$0xf]
      %v6473 = vld [vmem:[%s8 + $0x26c] sm:$0xf]
      %v6474 = vld [vmem:[%s8 + $0x270] sm:$0xf]
      %v6475 = vld [vmem:[%s8 + $0x274] sm:$0xf]
      %v6476 = vld [vmem:[%s8 + $0x278] sm:$0xf]
      %v6477 = vld [vmem:[%s8 + $0x27c] sm:$0xf]
      %v6478 = vld [vmem:[%s8 + $0x280] sm:$0xf]
      %v6479 = vld [vmem:[%s8 + $0x284] sm:$0xf]
      %v6480 = vld [vmem:[%s8 + $0x288] sm:$0xf]
      %v6481 = vld [vmem:[%s8 + $0x28c] sm:$0xf]
      %v6482 = vld [vmem:[%s8 + $0x290] sm:$0xf]
      %v6483 = vld [vmem:[%s8 + $0x294] sm:$0xf]
      %v6484 = vld [vmem:[%s8 + $0x298] sm:$0xf]
      %v6485 = vld [vmem:[%s8 + $0x29c] sm:$0xf]
      %v6486 = vld [vmem:[%s8 + $0x2a0] sm:$0xf]
      %v6487 = vld [vmem:[%s8 + $0x2a4] sm:$0xf]
      %v6488 = vld [vmem:[%s8 + $0x2a8] sm:$0xf]
      %v6489 = vld [vmem:[%s8 + $0x2ac] sm:$0xf]
      %v6490 = vld [vmem:[%s8 + $0x2b0] sm:$0xf]
      %v6491 = vld [vmem:[%s8 + $0x2b4] sm:$0xf]
      %v6492 = vld [vmem:[%s8 + $0x2b8] sm:$0xf]
      %v6493 = vld [vmem:[%s8 + $0x2bc] sm:$0xf]
      %v6494 = vld [vmem:[%s8 + $0x2c0] sm:$0xf]
      %v6495 = vld [vmem:[%s8 + $0x2c4] sm:$0xf]
      %v6496 = vld [vmem:[%s8 + $0x2c8] sm:$0xf]
      %v6497 = vld [vmem:[%s8 + $0x2cc] sm:$0xf]
      %v6498 = vld [vmem:[%s8 + $0x2d0] sm:$0xf]
      %v6499 = vld [vmem:[%s8 + $0x2d4] sm:$0xf]
      %v6500 = vld [vmem:[%s8 + $0x2d8] sm:$0xf]
      %v6501 = vld [vmem:[%s8 + $0x2dc] sm:$0xf]
      %v6502 = vld [vmem:[%s8 + $0x2e0] sm:$0xf]
      %v6503 = vld [vmem:[%s8 + $0x2e4] sm:$0xf]
      %v6504 = vld [vmem:[%s8 + $0x2e8] sm:$0xf]
      %v6505 = vld [vmem:[%s8 + $0x2ec] sm:$0xf]
      %v6506 = vld [vmem:[%s8 + $0x2f0] sm:$0xf]
      %v6507 = vld [vmem:[%s8 + $0x2f4] sm:$0xf]
      %v6508 = vld [vmem:[%s8 + $0x2f8] sm:$0xf]
      %v6509 = vld [vmem:[%s8 + $0x2fc] sm:$0xf]
      %v6510 = vld [vmem:[%s8 + $0x300] sm:$0xf]
      %v6511 = vld [vmem:[%s8 + $0x304] sm:$0xf]
      %v6512 = vld [vmem:[%s8 + $0x308] sm:$0xf]
      %v6513 = vld [vmem:[%s8 + $0x30c] sm:$0xf]
      %v6514 = vld [vmem:[%s8 + $0x310] sm:$0xf]
      %v6515 = vld [vmem:[%s8 + $0x314] sm:$0xf]
      %v6516 = vld [vmem:[%s8 + $0x318] sm:$0xf]
      %v6517 = vld [vmem:[%s8 + $0x31c] sm:$0xf]
      %v6518 = vld [vmem:[%s8 + $0x320] sm:$0xf]
      %v6519 = vld [vmem:[%s8 + $0x324] sm:$0xf]
      %v6520 = vld [vmem:[%s8 + $0x328] sm:$0xf]
      %v6521 = vld [vmem:[%s8 + $0x32c] sm:$0xf]
      %v6522 = vld [vmem:[%s8 + $0x330] sm:$0xf]
      %v6523 = vld [vmem:[%s8 + $0x334] sm:$0xf]
      %v6524 = vld [vmem:[%s8 + $0x338] sm:$0xf]
      %v6525 = vld [vmem:[%s8 + $0x33c] sm:$0xf]
      %v6526 = vld [vmem:[%s8 + $0x340] sm:$0xf]
      %v6527 = vld [vmem:[%s8 + $0x344] sm:$0xf]
      %v6528 = vld [vmem:[%s8 + $0x348] sm:$0xf]
      %v6529 = vld [vmem:[%s8 + $0x34c] sm:$0xf]
      %v6530 = vld [vmem:[%s8 + $0x350] sm:$0xf]
      %v6531 = vld [vmem:[%s8 + $0x354] sm:$0xf]
      %v6532 = vld [vmem:[%s8 + $0x358] sm:$0xf]
      %v6533 = vld [vmem:[%s8 + $0x35c] sm:$0xf]
      %v6534 = vld [vmem:[%s8 + $0x360] sm:$0xf]
      %v6535 = vld [vmem:[%s8 + $0x364] sm:$0xf]
      %v6536 = vld [vmem:[%s8 + $0x368] sm:$0xf]
      %v6537 = vld [vmem:[%s8 + $0x36c] sm:$0xf]
      %v6538 = vld [vmem:[%s8 + $0x370] sm:$0xf]
      %v6539 = vld [vmem:[%s8 + $0x374] sm:$0xf]
      %v6540 = vld [vmem:[%s8 + $0x378] sm:$0xf]
      %v6541 = vld [vmem:[%s8 + $0x37c] sm:$0xf]
      %v6542 = vld [vmem:[%s9] sm:$0x1]
      %v6544 = vperm.slane %v6542, 0
      %v6770 = vunpack.c.l.b16 %v6318
      %v6771 = vunpack.c.l.b16 %v6319
      %v6772 = vunpack.c.l.b16 %v6320
      %v6773 = vunpack.c.l.b16 %v6321
      %v6774 = vunpack.c.l.b16 %v6322
      %v6775 = vunpack.c.l.b16 %v6323
      %v6776 = vunpack.c.l.b16 %v6324
      %v6777 = vunpack.c.l.b16 %v6325
      %v6778 = vunpack.c.l.b16 %v6326
      %v6779 = vunpack.c.l.b16 %v6327
      %v6780 = vunpack.c.l.b16 %v6328
      %v6781 = vunpack.c.l.b16 %v6329
      %v6782 = vunpack.c.l.b16 %v6330
      %v6783 = vunpack.c.l.b16 %v6331
      %v6784 = vunpack.c.l.b16 %v6332
      %v6785 = vunpack.c.l.b16 %v6333
      %v6786 = vunpack.c.l.b16 %v6334
      %v6787 = vunpack.c.l.b16 %v6335
      %v6788 = vunpack.c.l.b16 %v6336
      %v6789 = vunpack.c.l.b16 %v6337
      %v6790 = vunpack.c.l.b16 %v6338
      %v6791 = vunpack.c.l.b16 %v6339
      %v6792 = vunpack.c.l.b16 %v6340
      %v6793 = vunpack.c.l.b16 %v6341
      %v6794 = vunpack.c.l.b16 %v6342
      %v6795 = vunpack.c.l.b16 %v6343
      %v6796 = vunpack.c.l.b16 %v6344
      %v6797 = vunpack.c.l.b16 %v6345
      %v6798 = vunpack.c.l.b16 %v6346
      %v6799 = vunpack.c.l.b16 %v6347
      %v6800 = vunpack.c.l.b16 %v6348
      %v6801 = vunpack.c.l.b16 %v6349
      %v6802 = vunpack.c.l.b16 %v6350
      %v6803 = vunpack.c.l.b16 %v6351
      %v6804 = vunpack.c.l.b16 %v6352
      %v6805 = vunpack.c.l.b16 %v6353
      %v6806 = vunpack.c.l.b16 %v6354
      %v6807 = vunpack.c.l.b16 %v6355
      %v6808 = vunpack.c.l.b16 %v6356
      %v6809 = vunpack.c.l.b16 %v6357
      %v6810 = vunpack.c.l.b16 %v6358
      %v6811 = vunpack.c.l.b16 %v6359
      %v6812 = vunpack.c.l.b16 %v6360
      %v6813 = vunpack.c.l.b16 %v6361
      %v6814 = vunpack.c.l.b16 %v6362
      %v6815 = vunpack.c.l.b16 %v6363
      %v6816 = vunpack.c.l.b16 %v6364
      %v6817 = vunpack.c.l.b16 %v6365
      %v6818 = vunpack.c.l.b16 %v6366
      %v6819 = vunpack.c.l.b16 %v6367
      %v6820 = vunpack.c.l.b16 %v6368
      %v6821 = vunpack.c.l.b16 %v6369
      %v6822 = vunpack.c.l.b16 %v6370
      %v6823 = vunpack.c.l.b16 %v6371
      %v6824 = vunpack.c.l.b16 %v6372
      %v6825 = vunpack.c.l.b16 %v6373
      %v6826 = vunpack.c.l.b16 %v6374
      %v6827 = vunpack.c.l.b16 %v6375
      %v6828 = vunpack.c.l.b16 %v6376
      %v6829 = vunpack.c.l.b16 %v6377
      %v6830 = vunpack.c.l.b16 %v6378
      %v6831 = vunpack.c.l.b16 %v6379
      %v6832 = vunpack.c.l.b16 %v6380
      %v6833 = vunpack.c.l.b16 %v6381
      %v6834 = vunpack.c.l.b16 %v6382
      %v6835 = vunpack.c.l.b16 %v6383
      %v6836 = vunpack.c.l.b16 %v6384
      %v6837 = vunpack.c.l.b16 %v6385
      %v6838 = vunpack.c.l.b16 %v6386
      %v6839 = vunpack.c.l.b16 %v6387
      %v6840 = vunpack.c.l.b16 %v6388
      %v6841 = vunpack.c.l.b16 %v6389
      %v6842 = vunpack.c.l.b16 %v6390
      %v6843 = vunpack.c.l.b16 %v6391
      %v6844 = vunpack.c.l.b16 %v6392
      %v6845 = vunpack.c.l.b16 %v6393
      %v6846 = vunpack.c.l.b16 %v6394
      %v6847 = vunpack.c.l.b16 %v6395
      %v6848 = vunpack.c.l.b16 %v6396
      %v6849 = vunpack.c.l.b16 %v6397
      %v6850 = vunpack.c.l.b16 %v6398
      %v6851 = vunpack.c.l.b16 %v6399
      %v6852 = vunpack.c.l.b16 %v6400
      %v6853 = vunpack.c.l.b16 %v6401
      %v6854 = vunpack.c.l.b16 %v6402
      %v6855 = vunpack.c.l.b16 %v6403
      %v6856 = vunpack.c.l.b16 %v6404
      %v6857 = vunpack.c.l.b16 %v6405
      %v6858 = vunpack.c.l.b16 %v6406
      %v6859 = vunpack.c.l.b16 %v6407
      %v6860 = vunpack.c.l.b16 %v6408
      %v6861 = vunpack.c.l.b16 %v6409
      %v6862 = vunpack.c.l.b16 %v6410
      %v6863 = vunpack.c.l.b16 %v6411
      %v6864 = vunpack.c.l.b16 %v6412
      %v6865 = vunpack.c.l.b16 %v6413
      %v6866 = vunpack.c.l.b16 %v6414
      %v6867 = vunpack.c.l.b16 %v6415
      %v6868 = vunpack.c.l.b16 %v6416
      %v6869 = vunpack.c.l.b16 %v6417
      %v6870 = vunpack.c.l.b16 %v6418
      %v6871 = vunpack.c.l.b16 %v6419
      %v6872 = vunpack.c.l.b16 %v6420
      %v6873 = vunpack.c.l.b16 %v6421
      %v6874 = vunpack.c.l.b16 %v6422
      %v6875 = vunpack.c.l.b16 %v6423
      %v6876 = vunpack.c.l.b16 %v6424
      %v6877 = vunpack.c.l.b16 %v6425
      %v6878 = vunpack.c.l.b16 %v6426
      %v6879 = vunpack.c.l.b16 %v6427
      %v6880 = vunpack.c.l.b16 %v6428
      %v6881 = vunpack.c.l.b16 %v6429
      %v6882 = vunpack.c.l.b16 %v6430
      %v6883 = vunpack.c.l.b16 %v6431
      %v6884 = vunpack.c.l.b16 %v6432
      %v6885 = vunpack.c.l.b16 %v6433
      %v6886 = vunpack.c.l.b16 %v6434
      %v6887 = vunpack.c.l.b16 %v6435
      %v6888 = vunpack.c.l.b16 %v6436
      %v6889 = vunpack.c.l.b16 %v6437
      %v6890 = vunpack.c.l.b16 %v6438
      %v6891 = vunpack.c.l.b16 %v6439
      %v6892 = vunpack.c.l.b16 %v6440
      %v6893 = vunpack.c.l.b16 %v6441
      %v6894 = vunpack.c.l.b16 %v6442
      %v6895 = vunpack.c.l.b16 %v6443
      %v6896 = vunpack.c.l.b16 %v6444
      %v6897 = vunpack.c.l.b16 %v6445
      %v6898 = vunpack.c.l.b16 %v6446
      %v6899 = vunpack.c.l.b16 %v6447
      %v6900 = vunpack.c.l.b16 %v6448
      %v6901 = vunpack.c.l.b16 %v6449
      %v6902 = vunpack.c.l.b16 %v6450
      %v6903 = vunpack.c.l.b16 %v6451
      %v6904 = vunpack.c.l.b16 %v6452
      %v6905 = vunpack.c.l.b16 %v6453
      %v6906 = vunpack.c.l.b16 %v6454
      %v6907 = vunpack.c.l.b16 %v6455
      %v6908 = vunpack.c.l.b16 %v6456
      %v6909 = vunpack.c.l.b16 %v6457
      %v6910 = vunpack.c.l.b16 %v6458
      %v6911 = vunpack.c.l.b16 %v6459
      %v6912 = vunpack.c.l.b16 %v6460
      %v6913 = vunpack.c.l.b16 %v6461
      %v6914 = vunpack.c.l.b16 %v6462
      %v6915 = vunpack.c.l.b16 %v6463
      %v6916 = vunpack.c.l.b16 %v6464
      %v6917 = vunpack.c.l.b16 %v6465
      %v6918 = vunpack.c.l.b16 %v6466
      %v6919 = vunpack.c.l.b16 %v6467
      %v6920 = vunpack.c.l.b16 %v6468
      %v6921 = vunpack.c.l.b16 %v6469
      %v6922 = vunpack.c.l.b16 %v6470
      %v6923 = vunpack.c.l.b16 %v6471
      %v6924 = vunpack.c.l.b16 %v6472
      %v6925 = vunpack.c.l.b16 %v6473
      %v6926 = vunpack.c.l.b16 %v6474
      %v6927 = vunpack.c.l.b16 %v6475
      %v6928 = vunpack.c.l.b16 %v6476
      %v6929 = vunpack.c.l.b16 %v6477
      %v6930 = vunpack.c.l.b16 %v6478
      %v6931 = vunpack.c.l.b16 %v6479
      %v6932 = vunpack.c.l.b16 %v6480
      %v6933 = vunpack.c.l.b16 %v6481
      %v6934 = vunpack.c.l.b16 %v6482
      %v6935 = vunpack.c.l.b16 %v6483
      %v6936 = vunpack.c.l.b16 %v6484
      %v6937 = vunpack.c.l.b16 %v6485
      %v6938 = vunpack.c.l.b16 %v6486
      %v6939 = vunpack.c.l.b16 %v6487
      %v6940 = vunpack.c.l.b16 %v6488
      %v6941 = vunpack.c.l.b16 %v6489
      %v6942 = vunpack.c.l.b16 %v6490
      %v6943 = vunpack.c.l.b16 %v6491
      %v6944 = vunpack.c.l.b16 %v6492
      %v6945 = vunpack.c.l.b16 %v6493
      %v6946 = vunpack.c.l.b16 %v6494
      %v6947 = vunpack.c.l.b16 %v6495
      %v6948 = vunpack.c.l.b16 %v6496
      %v6949 = vunpack.c.l.b16 %v6497
      %v6950 = vunpack.c.l.b16 %v6498
      %v6951 = vunpack.c.l.b16 %v6499
      %v6952 = vunpack.c.l.b16 %v6500
      %v6953 = vunpack.c.l.b16 %v6501
      %v6954 = vunpack.c.l.b16 %v6502
      %v6955 = vunpack.c.l.b16 %v6503
      %v6956 = vunpack.c.l.b16 %v6504
      %v6957 = vunpack.c.l.b16 %v6505
      %v6958 = vunpack.c.l.b16 %v6506
      %v6959 = vunpack.c.l.b16 %v6507
      %v6960 = vunpack.c.l.b16 %v6508
      %v6961 = vunpack.c.l.b16 %v6509
      %v6962 = vunpack.c.l.b16 %v6510
      %v6963 = vunpack.c.l.b16 %v6511
      %v6964 = vunpack.c.l.b16 %v6512
      %v6965 = vunpack.c.l.b16 %v6513
      %v6966 = vunpack.c.l.b16 %v6514
      %v6967 = vunpack.c.l.b16 %v6515
      %v6968 = vunpack.c.l.b16 %v6516
      %v6969 = vunpack.c.l.b16 %v6517
      %v6970 = vunpack.c.l.b16 %v6518
      %v6971 = vunpack.c.l.b16 %v6519
      %v6972 = vunpack.c.l.b16 %v6520
      %v6973 = vunpack.c.l.b16 %v6521
      %v6974 = vunpack.c.l.b16 %v6522
      %v6975 = vunpack.c.l.b16 %v6523
      %v6976 = vunpack.c.l.b16 %v6524
      %v6977 = vunpack.c.l.b16 %v6525
      %v6978 = vunpack.c.l.b16 %v6526
      %v6979 = vunpack.c.l.b16 %v6527
      %v6980 = vunpack.c.l.b16 %v6528
      %v6981 = vunpack.c.l.b16 %v6529
      %v6982 = vunpack.c.l.b16 %v6530
      %v6983 = vunpack.c.l.b16 %v6531
      %v6984 = vunpack.c.l.b16 %v6532
      %v6985 = vunpack.c.l.b16 %v6533
      %v6986 = vunpack.c.l.b16 %v6534
      %v6987 = vunpack.c.l.b16 %v6535
      %v6988 = vunpack.c.l.b16 %v6536
      %v6989 = vunpack.c.l.b16 %v6537
      %v6990 = vunpack.c.l.b16 %v6538
      %v6991 = vunpack.c.l.b16 %v6539
      %v6992 = vunpack.c.l.b16 %v6540
      %v6993 = vunpack.c.l.b16 %v6541
      %v6994 = vpack.c.b16 %v6771, %v6770
      %v6995 = vpack.c.b16 %v6773, %v6772
      %v6996 = vpack.c.b16 %v6775, %v6774
      %v6997 = vpack.c.b16 %v6777, %v6776
      %v6998 = vpack.c.b16 %v6779, %v6778
      %v6999 = vpack.c.b16 %v6781, %v6780
      %v7000 = vpack.c.b16 %v6783, %v6782
      %v7001 = vpack.c.b16 %v6785, %v6784
      %v7002 = vpack.c.b16 %v6787, %v6786
      %v7003 = vpack.c.b16 %v6789, %v6788
      %v7004 = vpack.c.b16 %v6791, %v6790
      %v7005 = vpack.c.b16 %v6793, %v6792
      %v7006 = vpack.c.b16 %v6795, %v6794
      %v7007 = vpack.c.b16 %v6797, %v6796
      %v7008 = vpack.c.b16 %v6799, %v6798
      %v7009 = vpack.c.b16 %v6801, %v6800
      %v7010 = vpack.c.b16 %v6803, %v6802
      %v7011 = vpack.c.b16 %v6805, %v6804
      %v7012 = vpack.c.b16 %v6807, %v6806
      %v7013 = vpack.c.b16 %v6809, %v6808
      %v7014 = vpack.c.b16 %v6811, %v6810
      %v7015 = vpack.c.b16 %v6813, %v6812
      %v7016 = vpack.c.b16 %v6815, %v6814
      %v7017 = vpack.c.b16 %v6817, %v6816
      %v7018 = vpack.c.b16 %v6819, %v6818
      %v7019 = vpack.c.b16 %v6821, %v6820
      %v7020 = vpack.c.b16 %v6823, %v6822
      %v7021 = vpack.c.b16 %v6825, %v6824
      %v7022 = vpack.c.b16 %v6827, %v6826
      %v7023 = vpack.c.b16 %v6829, %v6828
      %v7024 = vpack.c.b16 %v6831, %v6830
      %v7025 = vpack.c.b16 %v6833, %v6832
      %v7026 = vpack.c.b16 %v6835, %v6834
      %v7027 = vpack.c.b16 %v6837, %v6836
      %v7028 = vpack.c.b16 %v6839, %v6838
      %v7029 = vpack.c.b16 %v6841, %v6840
      %v7030 = vpack.c.b16 %v6843, %v6842
      %v7031 = vpack.c.b16 %v6845, %v6844
      %v7032 = vpack.c.b16 %v6847, %v6846
      %v7033 = vpack.c.b16 %v6849, %v6848
      %v7034 = vpack.c.b16 %v6851, %v6850
      %v7035 = vpack.c.b16 %v6853, %v6852
      %v7036 = vpack.c.b16 %v6855, %v6854
      %v7037 = vpack.c.b16 %v6857, %v6856
      %v7038 = vpack.c.b16 %v6859, %v6858
      %v7039 = vpack.c.b16 %v6861, %v6860
      %v7040 = vpack.c.b16 %v6863, %v6862
      %v7041 = vpack.c.b16 %v6865, %v6864
      %v7042 = vpack.c.b16 %v6867, %v6866
      %v7043 = vpack.c.b16 %v6869, %v6868
      %v7044 = vpack.c.b16 %v6871, %v6870
      %v7045 = vpack.c.b16 %v6873, %v6872
      %v7046 = vpack.c.b16 %v6875, %v6874
      %v7047 = vpack.c.b16 %v6877, %v6876
      %v7048 = vpack.c.b16 %v6879, %v6878
      %v7049 = vpack.c.b16 %v6881, %v6880
      %v7050 = vpack.c.b16 %v6883, %v6882
      %v7051 = vpack.c.b16 %v6885, %v6884
      %v7052 = vpack.c.b16 %v6887, %v6886
      %v7053 = vpack.c.b16 %v6889, %v6888
      %v7054 = vpack.c.b16 %v6891, %v6890
      %v7055 = vpack.c.b16 %v6893, %v6892
      %v7056 = vpack.c.b16 %v6895, %v6894
      %v7057 = vpack.c.b16 %v6897, %v6896
      %v7058 = vpack.c.b16 %v6899, %v6898
      %v7059 = vpack.c.b16 %v6901, %v6900
      %v7060 = vpack.c.b16 %v6903, %v6902
      %v7061 = vpack.c.b16 %v6905, %v6904
      %v7062 = vpack.c.b16 %v6907, %v6906
      %v7063 = vpack.c.b16 %v6909, %v6908
      %v7064 = vpack.c.b16 %v6911, %v6910
      %v7065 = vpack.c.b16 %v6913, %v6912
      %v7066 = vpack.c.b16 %v6915, %v6914
      %v7067 = vpack.c.b16 %v6917, %v6916
      %v7068 = vpack.c.b16 %v6919, %v6918
      %v7069 = vpack.c.b16 %v6921, %v6920
      %v7070 = vpack.c.b16 %v6923, %v6922
      %v7071 = vpack.c.b16 %v6925, %v6924
      %v7072 = vpack.c.b16 %v6927, %v6926
      %v7073 = vpack.c.b16 %v6929, %v6928
      %v7074 = vpack.c.b16 %v6931, %v6930
      %v7075 = vpack.c.b16 %v6933, %v6932
      %v7076 = vpack.c.b16 %v6935, %v6934
      %v7077 = vpack.c.b16 %v6937, %v6936
      %v7078 = vpack.c.b16 %v6939, %v6938
      %v7079 = vpack.c.b16 %v6941, %v6940
      %v7080 = vpack.c.b16 %v6943, %v6942
      %v7081 = vpack.c.b16 %v6945, %v6944
      %v7082 = vpack.c.b16 %v6947, %v6946
      %v7083 = vpack.c.b16 %v6949, %v6948
      %v7084 = vpack.c.b16 %v6951, %v6950
      %v7085 = vpack.c.b16 %v6953, %v6952
      %v7086 = vpack.c.b16 %v6955, %v6954
      %v7087 = vpack.c.b16 %v6957, %v6956
      %v7088 = vpack.c.b16 %v6959, %v6958
      %v7089 = vpack.c.b16 %v6961, %v6960
      %v7090 = vpack.c.b16 %v6963, %v6962
      %v7091 = vpack.c.b16 %v6965, %v6964
      %v7092 = vpack.c.b16 %v6967, %v6966
      %v7093 = vpack.c.b16 %v6969, %v6968
      %v7094 = vpack.c.b16 %v6971, %v6970
      %v7095 = vpack.c.b16 %v6973, %v6972
      %v7096 = vpack.c.b16 %v6975, %v6974
      %v7097 = vpack.c.b16 %v6977, %v6976
      %v7098 = vpack.c.b16 %v6979, %v6978
      %v7099 = vpack.c.b16 %v6981, %v6980
      %v7100 = vpack.c.b16 %v6983, %v6982
      %v7101 = vpack.c.b16 %v6985, %v6984
      %v7102 = vpack.c.b16 %v6987, %v6986
      %v7103 = vpack.c.b16 %v6989, %v6988
      %v7104 = vpack.c.b16 %v6991, %v6990
      %v7105 = vpack.c.b16 %v6993, %v6992
      %7218 = vmatpush.bf16.msra.mxu0 %v7001
      %7219 = vmatpush.bf16.msra.mxu0 %v7000
      %7220 = vmatpush.bf16.msra.mxu0 %v6999
      %7221 = vmatpush.bf16.msra.mxu0 %v6998
      %7222 = vmatpush.bf16.msra.mxu0 %v6997
      %7223 = vmatpush.bf16.msra.mxu0 %v6996
      %7224 = vmatpush.bf16.msra.mxu0 %v6995
      %7225 = vmatpush.bf16.msra.mxu0 %v6994
      %7226 = vmatmul.bf16.gmra.mxu0 %v6304
      %v7227 = vpop.f32.mrf.mxu0
      %v7228 = vadd.f32 %v6544, %v7227
      %v7229 = vpop.f32.mrf.mxu0
      %7230 = vdwg.mxu0
      %7231 = vmatpush.bf16.msra.mxu0 %v7009
      %7232 = vmatpush.bf16.msra.mxu0 %v7008
      %7233 = vmatpush.bf16.msra.mxu0 %v7007
      %7234 = vmatpush.bf16.msra.mxu0 %v7006
      %7235 = vmatpush.bf16.msra.mxu0 %v7005
      %7236 = vmatpush.bf16.msra.mxu0 %v7004
      %7237 = vmatpush.bf16.msra.mxu0 %v7003
      %7238 = vmatpush.bf16.msra.mxu0 %v7002
      %7239 = vmatmul.bf16.gmra.mxu0 %v6305
      %v7240 = vpop.f32.mrf.mxu0
      %v7241 = vadd.f32 %v7228, %v7240
      %v7242 = vpop.f32.mrf.mxu0
      %7243 = vdwg.mxu0
      %7244 = vmatpush.bf16.msra.mxu0 %v7017
      %7245 = vmatpush.bf16.msra.mxu0 %v7016
      %7246 = vmatpush.bf16.msra.mxu0 %v7015
      %7247 = vmatpush.bf16.msra.mxu0 %v7014
      %7248 = vmatpush.bf16.msra.mxu0 %v7013
      %7249 = vmatpush.bf16.msra.mxu0 %v7012
      %7250 = vmatpush.bf16.msra.mxu0 %v7011
      %7251 = vmatpush.bf16.msra.mxu0 %v7010
      %7252 = vmatmul.bf16.gmra.mxu0 %v6306
      %v7253 = vpop.f32.mrf.mxu0
      %v7254 = vadd.f32 %v7241, %v7253
      %v7255 = vpop.f32.mrf.mxu0
      %7256 = vdwg.mxu0
      %7257 = vmatpush.bf16.msra.mxu0 %v7025
      %7258 = vmatpush.bf16.msra.mxu0 %v7024
      %7259 = vmatpush.bf16.msra.mxu0 %v7023
      %7260 = vmatpush.bf16.msra.mxu0 %v7022
      %7261 = vmatpush.bf16.msra.mxu0 %v7021
      %7262 = vmatpush.bf16.msra.mxu0 %v7020
      %7263 = vmatpush.bf16.msra.mxu0 %v7019
      %7264 = vmatpush.bf16.msra.mxu0 %v7018
      %7265 = vmatmul.bf16.gmra.mxu0 %v6307
      %v7266 = vpop.f32.mrf.mxu0
      %v7267 = vadd.f32 %v7254, %v7266
      %v7268 = vpop.f32.mrf.mxu0
      %7269 = vdwg.mxu0
      %7270 = vmatpush.bf16.msra.mxu0 %v7033
      %7271 = vmatpush.bf16.msra.mxu0 %v7032
      %7272 = vmatpush.bf16.msra.mxu0 %v7031
      %7273 = vmatpush.bf16.msra.mxu0 %v7030
      %7274 = vmatpush.bf16.msra.mxu0 %v7029
      %7275 = vmatpush.bf16.msra.mxu0 %v7028
      %7276 = vmatpush.bf16.msra.mxu0 %v7027
      %7277 = vmatpush.bf16.msra.mxu0 %v7026
      %7278 = vmatmul.bf16.gmra.mxu0 %v6308
      %v7279 = vpop.f32.mrf.mxu0
      %v7280 = vadd.f32 %v7267, %v7279
      %v7281 = vpop.f32.mrf.mxu0
      %7282 = vdwg.mxu0
      %7283 = vmatpush.bf16.msra.mxu0 %v7041
      %7284 = vmatpush.bf16.msra.mxu0 %v7040
      %7285 = vmatpush.bf16.msra.mxu0 %v7039
      %7286 = vmatpush.bf16.msra.mxu0 %v7038
      %7287 = vmatpush.bf16.msra.mxu0 %v7037
      %7288 = vmatpush.bf16.msra.mxu0 %v7036
      %7289 = vmatpush.bf16.msra.mxu0 %v7035
      %7290 = vmatpush.bf16.msra.mxu0 %v7034
      %7291 = vmatmul.bf16.gmra.mxu0 %v6309
      %v7292 = vpop.f32.mrf.mxu0
      %v7293 = vadd.f32 %v7280, %v7292
      %v7294 = vpop.f32.mrf.mxu0
      %7295 = vdwg.mxu0
      %7296 = vmatpush.bf16.msra.mxu0 %v7049
      %7297 = vmatpush.bf16.msra.mxu0 %v7048
      %7298 = vmatpush.bf16.msra.mxu0 %v7047
      %7299 = vmatpush.bf16.msra.mxu0 %v7046
      %7300 = vmatpush.bf16.msra.mxu0 %v7045
      %7301 = vmatpush.bf16.msra.mxu0 %v7044
      %7302 = vmatpush.bf16.msra.mxu0 %v7043
      %7303 = vmatpush.bf16.msra.mxu0 %v7042
      %7304 = vmatmul.bf16.gmra.mxu0 %v6310
      %v7305 = vpop.f32.mrf.mxu0
      %v7306 = vadd.f32 %v7293, %v7305
      %v7307 = vpop.f32.mrf.mxu0
      %7308 = vdwg.mxu0
      %7309 = vmatpush.bf16.msra.mxu0 %v7057
      %7310 = vmatpush.bf16.msra.mxu0 %v7056
      %7311 = vmatpush.bf16.msra.mxu0 %v7055
      %7312 = vmatpush.bf16.msra.mxu0 %v7054
      %7313 = vmatpush.bf16.msra.mxu0 %v7053
      %7314 = vmatpush.bf16.msra.mxu0 %v7052
      %7315 = vmatpush.bf16.msra.mxu0 %v7051
      %7316 = vmatpush.bf16.msra.mxu0 %v7050
      %7317 = vmatmul.bf16.gmra.mxu0 %v6311
      %v7318 = vpop.f32.mrf.mxu0
      %v7319 = vadd.f32 %v7306, %v7318
      %v7320 = vpop.f32.mrf.mxu0
      %7321 = vdwg.mxu0
      %7322 = vmatpush.bf16.msra.mxu0 %v7065
      %7323 = vmatpush.bf16.msra.mxu0 %v7064
      %7324 = vmatpush.bf16.msra.mxu0 %v7063
      %7325 = vmatpush.bf16.msra.mxu0 %v7062
      %7326 = vmatpush.bf16.msra.mxu0 %v7061
      %7327 = vmatpush.bf16.msra.mxu0 %v7060
      %7328 = vmatpush.bf16.msra.mxu0 %v7059
      %7329 = vmatpush.bf16.msra.mxu0 %v7058
      %7330 = vmatmul.bf16.gmra.mxu0 %v6312
      %v7331 = vpop.f32.mrf.mxu0
      %v7332 = vadd.f32 %v7319, %v7331
      %v7333 = vpop.f32.mrf.mxu0
      %7334 = vdwg.mxu0
      %7335 = vmatpush.bf16.msra.mxu0 %v7073
      %7336 = vmatpush.bf16.msra.mxu0 %v7072
      %7337 = vmatpush.bf16.msra.mxu0 %v7071
      %7338 = vmatpush.bf16.msra.mxu0 %v7070
      %7339 = vmatpush.bf16.msra.mxu0 %v7069
      %7340 = vmatpush.bf16.msra.mxu0 %v7068
      %7341 = vmatpush.bf16.msra.mxu0 %v7067
      %7342 = vmatpush.bf16.msra.mxu0 %v7066
      %7343 = vmatmul.bf16.gmra.mxu0 %v6313
      %v7344 = vpop.f32.mrf.mxu0
      %v7345 = vadd.f32 %v7332, %v7344
      %v7346 = vpop.f32.mrf.mxu0
      %7347 = vdwg.mxu0
      %7348 = vmatpush.bf16.msra.mxu0 %v7081
      %7349 = vmatpush.bf16.msra.mxu0 %v7080
      %7350 = vmatpush.bf16.msra.mxu0 %v7079
      %7351 = vmatpush.bf16.msra.mxu0 %v7078
      %7352 = vmatpush.bf16.msra.mxu0 %v7077
      %7353 = vmatpush.bf16.msra.mxu0 %v7076
      %7354 = vmatpush.bf16.msra.mxu0 %v7075
      %7355 = vmatpush.bf16.msra.mxu0 %v7074
      %7356 = vmatmul.bf16.gmra.mxu0 %v6314
      %v7357 = vpop.f32.mrf.mxu0
      %v7358 = vadd.f32 %v7345, %v7357
      %v7359 = vpop.f32.mrf.mxu0
      %7360 = vdwg.mxu0
      %7361 = vmatpush.bf16.msra.mxu0 %v7089
      %7362 = vmatpush.bf16.msra.mxu0 %v7088
      %7363 = vmatpush.bf16.msra.mxu0 %v7087
      %7364 = vmatpush.bf16.msra.mxu0 %v7086
      %7365 = vmatpush.bf16.msra.mxu0 %v7085
      %7366 = vmatpush.bf16.msra.mxu0 %v7084
      %7367 = vmatpush.bf16.msra.mxu0 %v7083
      %7368 = vmatpush.bf16.msra.mxu0 %v7082
      %7369 = vmatmul.bf16.gmra.mxu0 %v6315
      %v7370 = vpop.f32.mrf.mxu0
      %v7371 = vadd.f32 %v7358, %v7370
      %v7372 = vpop.f32.mrf.mxu0
      %7373 = vdwg.mxu0
      %7374 = vmatpush.bf16.msra.mxu0 %v7097
      %7375 = vmatpush.bf16.msra.mxu0 %v7096
      %7376 = vmatpush.bf16.msra.mxu0 %v7095
      %7377 = vmatpush.bf16.msra.mxu0 %v7094
      %7378 = vmatpush.bf16.msra.mxu0 %v7093
      %7379 = vmatpush.bf16.msra.mxu0 %v7092
      %7380 = vmatpush.bf16.msra.mxu0 %v7091
      %7381 = vmatpush.bf16.msra.mxu0 %v7090
      %7382 = vmatmul.bf16.gmra.mxu0 %v6316
      %v7383 = vpop.f32.mrf.mxu0
      %v7384 = vadd.f32 %v7371, %v7383
      %v7385 = vpop.f32.mrf.mxu0
      %7386 = vdwg.mxu0
      %7387 = vmatpush.bf16.msra.mxu0 %v7105
      %7388 = vmatpush.bf16.msra.mxu0 %v7104
      %7389 = vmatpush.bf16.msra.mxu0 %v7103
      %7390 = vmatpush.bf16.msra.mxu0 %v7102
      %7391 = vmatpush.bf16.msra.mxu0 %v7101
      %7392 = vmatpush.bf16.msra.mxu0 %v7100
      %7393 = vmatpush.bf16.msra.mxu0 %v7099
      %7394 = vmatpush.bf16.msra.mxu0 %v7098
      %7395 = vmatmul.bf16.gmra.mxu0 %v6317
      %v7396 = vpop.f32.mrf.mxu0
      %v7397 = vadd.f32 %v7384, %v7396
      %v7398 = vpop.f32.mrf.mxu0
      %7399 = vdwg.mxu0
      %v7400 = vmax.f32 %v7397, 0.0
      %v7401 = vpack.c.bf16 %v7400, %v7400
      %v7402 = vld [vmem:[%s10] sm:$0xf]
      %v7403 = vld [vmem:[%s10 + $0x4] sm:$0xf]
      %v7404 = vld [vmem:[%s10 + $0x8] sm:$0xf]
      %v7405 = vld [vmem:[%s10 + $0xc] sm:$0xf]
      %v7406 = vld [vmem:[%s10 + $0x10] sm:$0xf]
      %v7407 = vld [vmem:[%s10 + $0x14] sm:$0xf]
      %v7408 = vld [vmem:[%s10 + $0x18] sm:$0xf]
      %v7409 = vld [vmem:[%s10 + $0x1c] sm:$0xf]
      %v7410 = vld [vmem:[%s10 + $0x20] sm:$0xf]
      %v7411 = vld [vmem:[%s10 + $0x24] sm:$0xf]
      %v7412 = vld [vmem:[%s10 + $0x28] sm:$0xf]
      %v7413 = vld [vmem:[%s10 + $0x2c] sm:$0xf]
      %v7414 = vld [vmem:[%s10 + $0x30] sm:$0xf]
      %v7415 = vld [vmem:[%s10 + $0x34] sm:$0xf]
      %v7416 = vld [vmem:[%s10 + $0x38] sm:$0xf]
      %v7417 = vld [vmem:[%s10 + $0x3c] sm:$0xf]
      %v7418 = vld [vmem:[%s11] sm:$0x1]
      %v7420 = vperm.slane %v7418, 0
      %v7438 = vunpack.c.l.b16 %v7402
      %v7439 = vunpack.c.l.b16 %v7403
      %v7440 = vunpack.c.l.b16 %v7404
      %v7441 = vunpack.c.l.b16 %v7405
      %v7442 = vunpack.c.l.b16 %v7406
      %v7443 = vunpack.c.l.b16 %v7407
      %v7444 = vunpack.c.l.b16 %v7408
      %v7445 = vunpack.c.l.b16 %v7409
      %v7446 = vunpack.c.l.b16 %v7410
      %v7447 = vunpack.c.l.b16 %v7411
      %v7448 = vunpack.c.l.b16 %v7412
      %v7449 = vunpack.c.l.b16 %v7413
      %v7450 = vunpack.c.l.b16 %v7414
      %v7451 = vunpack.c.l.b16 %v7415
      %v7452 = vunpack.c.l.b16 %v7416
      %v7453 = vunpack.c.l.b16 %v7417
      %v7454 = vpack.c.b16 %v7439, %v7438
      %v7455 = vpack.c.b16 %v7441, %v7440
      %v7456 = vpack.c.b16 %v7443, %v7442
      %v7457 = vpack.c.b16 %v7445, %v7444
      %v7458 = vpack.c.b16 %v7447, %v7446
      %v7459 = vpack.c.b16 %v7449, %v7448
      %v7460 = vpack.c.b16 %v7451, %v7450
      %v7461 = vpack.c.b16 %v7453, %v7452
      %7470 = vmatpush.bf16.msra.mxu0 %v7461
      %7471 = vmatpush.bf16.msra.mxu0 %v7460
      %7472 = vmatpush.bf16.msra.mxu0 %v7459
      %7473 = vmatpush.bf16.msra.mxu0 %v7458
      %7474 = vmatpush.bf16.msra.mxu0 %v7457
      %7475 = vmatpush.bf16.msra.mxu0 %v7456
      %7476 = vmatpush.bf16.msra.mxu0 %v7455
      %7477 = vmatpush.bf16.msra.mxu0 %v7454
      %7478 = vmatmul.bf16.gmra.mxu0 %v7401
      %v7479 = vpop.f32.mrf.mxu0
      %v7480 = vadd.f32 %v7420, %v7479
      %v7481 = vpop.f32.mrf.mxu0
      %7482 = vdwg.mxu0
      %vm7483 = vcmask 9216
      %v7484 = vsel %vm7483, %v7480, -inf
      %7485 = vmax.xlane.f32.xlu0 %v7484
      %v7486 = vpop.xlane.xlu0 %7485
      %v7487 = vsub.f32 %v7480, %v7486
      %v7488 = vmul.f32 %v7487, 1.442695
      %v7489 = vpow.pop %v7488
      %v7490 = vsel %vm7483, %v7489, 0.0
      %7491 = vadd.xlane.f32.xlu0 %v7490
      %v7492 = vpop.xlane.xlu0 %7491
      %v7493 = vlog2.pop %v7492
      %v7494 = vmul.f32 %v7493, 0.6931472
      %v7495 = vsub.f32 %v7487, %v7494
      %v7496 = vld [vmem:[%s430] sm:$0x1]
      %v7497 = vld [vmem:[%s430 + $0x1] sm:$0x1]
      %7500 = vst [vmem:[#allocation1] ss:$9 sm:$0xff] %v7496
      %s7501 = scalar_lea.vmem [#allocation1], 1
      %7502 = vst [vmem:[%s7501] ss:$9 sm:$0xff] %v7497
      %v7503 = vld [vmem:[#allocation1] sm:$0xff]
      %v7505 = vadd.f32 %v7480, %v7503
      %7507 = vrot.lane.b32.xlu0 %v7505, 1
      %v7508 = vpop.permute.xlu0 %7507
      %vm7510 = vcmp.gt.f32.partialorder %v7505, %v7508
      %v7511 = vsel %vm7510, 1, 0
      %v7512 = vcvt.s32.f32 %v7511
      %v7513 = vmul.f32 %v7512, %v7495
      %v7514 = vsub.f32 1.0, %v7512
      %7516 = vrot.lane.b32.xlu0 %v7495, 1
      %v7517 = vpop.permute.xlu0 %7516
      %v7519 = vmul.f32 %v7514, %v7517
      %v7520 = vadd.f32 %v7513, %v7519
      %v7521 = vlaneseq
      %v7522 = vand.u32 %v7521, 127
      %vm7523 = vcmp.eq.s32.totalorder %v7522, 0
      %v7524 = vsel %vm7523, 1, 0
      %v7525 = vcvt.s32.f32 %v7524
      %7527 = vset.pattern.permute.xlu0 2
      %7528 = vperm.xlu0 %7527, %v7480
      %v7529 = vpop.permute.xlu0 %7528
      %v7531 = vmul.f32 %v7525, %v7529
      %vm7532 = vcmp.eq.s32.totalorder %v7522, 1
      %v7533 = vsel %vm7532, 1, 0
      %v7534 = vcvt.s32.f32 %v7533
      %7536 = vset.pattern.permute.xlu0 1
      %7537 = vperm.xlu0 %7536, %v7512
      %v7538 = vpop.permute.xlu0 %7537
      %v7540 = vmul.f32 %v7534, %v7538
      %v7541 = vadd.f32 %v7531, %v7540
      %vm7542 = vcmp.eq.s32.totalorder %v7522, 2
      %v7543 = vsel %vm7542, 1, 0
      %v7544 = vcvt.s32.f32 %v7543
      %7546 = vset.pattern.permute.xlu0 1
      %7547 = vperm.xlu0 %7546, %v7520
      %v7548 = vpop.permute.xlu0 %7547
      %v7550 = vmul.f32 %v7544, %v7548
      %v7551 = vadd.f32 %v7541, %v7550
      %v7553 = vrot.slane %v7551, 1
      %7555 = vst [vmem:[%s435] sm:$0x1] %v7551
      %7556 = vst [vmem:[%s435 + $0x1] sm:$0x1] %v7553
      %s7557 = smul.u32 2, %s23
      %p7558 = scmp.lt.s32.totalorder %s7557, 3
      %s7559 = scalar_select %p7558, %s7557, 3
      %s7560 = scalar_lea.vmem %s12, %s7559
      // Predicated region
      $region69: #{policy_forward.1} parent=67 // pred_check
        %p7561 = pneg %p303
      $region70: #{policy_forward.1} parent=67 // pred_check_branch
        %7563 = sbr.rel (%p7561) target = $region72
      $region71: #{policy_forward.1} parent=67 // pred_region
        %s7564 = smul.u32 2, %s23
      $region72: #{policy_forward.1} parent=67 // pred_fallthru
        _
    $region68: #{policy_forward.1} parent=5 // pred_fallthru
      _
    %p7565 = scmp.le.s32.totalorder 2, %s18
    // Predicated region
    $region73: #{policy_forward.1} parent=5 // pred_check
      %p7566 = pneg %p7565
    $region74: #{policy_forward.1} parent=5 // pred_check_branch
      %7568 = sbr.rel (%p7566) target = $region76
    $region75: #{policy_forward.1} parent=5 // pred_region
      %s7569 = ssub.s32 %s18, 2
      // Predicated region
      $region77: #{policy_forward.1} parent=75 // pred_check
        %p7570 = pneg %p309
      $region78: #{policy_forward.1} parent=75 // pred_check_branch
        %7572 = sbr.rel (%p7570) target = $region80
      $region79: #{policy_forward.1} parent=75 // pred_region
        %s7573 = smul.u32 2, %s24
        %p7574 = scmp.lt.s32.totalorder %s7573, 3
        %s7575 = scalar_select %p7574, %s7573, 3
        %s7576 = scalar_lea.vmem %s12, %s7575
      $region80: #{policy_forward.1} parent=75 // pred_fallthru
        _
    $region76: #{policy_forward.1} parent=5 // pred_fallthru
      _
  $region6: #{policy_forward.1} parent=0 // loop_footer
    %s22 = sadd.s32 1, %s18
  $region7: #{policy_forward.1} parent=0 // loop_footer_branch
    %17 = sbr.rel target = $region3
  $region8: #{policy_forward.1} parent=0 // loop_exit
    _

</llo_original>
